<compile_context>
chip_gen: v6e
topology: v6e:2x2x1
jax: 0.10.0
libtpu: 0.0.40
codegen_flags: <defaults>
</compile_context>

<pallas_src>
from functools import partial

import jax
import jax.numpy as jnp
from jax.experimental import pallas as pl
from jax.experimental.pallas import tpu as pltpu


# ---------------------------------------------------------------------------
# Fused kernel: layer1 (bi-LSTM, H=256) -> layer2 (bi-LSTM, H=64, gate-packed)
# -> attention over batch -> classifier.  Everything resident in VMEM.
# ---------------------------------------------------------------------------
def _lstmnet_kernel(x_ref, wih1_ref, whh1f_ref, whh1b_ref, b1_ref,
                    b2_ref, bha_ref, w1_ref, b1h_ref, bc1_ref, wc2_ref, bc2_ref,
                    wih2_hbm, whh2_hbm, wha_hbm, wc1_hbm,
                    out_ref,
                    gx1_ref, y1_ref, gp_ref,
                    wih2_v, whh2_v, wha_v, wc1_v, sem,
                    *, T, Bp, B, H1, H2):
    f32 = jnp.float32
    bf16 = jnp.bfloat16
    G1 = 4 * H1            # 1024: gates of one layer-1 direction
    H2p = 2 * H2           # 128 : packed layer-2 hidden (fwd|bwd)
    G2 = 4 * H2p           # 512 : packed layer-2 gates

    # --- kick off HBM->VMEM DMAs for layer-2 / head weights; they complete
    #     behind the layer-1 recurrence (P4-style manual overlap).
    cp_wih2 = pltpu.make_async_copy(wih2_hbm, wih2_v, sem.at[0]); cp_wih2.start()
    cp_whh2 = pltpu.make_async_copy(whh2_hbm, whh2_v, sem.at[1]); cp_whh2.start()
    cp_wha = pltpu.make_async_copy(wha_hbm, wha_v, sem.at[2]);  cp_wha.start()
    cp_wc1 = pltpu.make_async_copy(wc1_hbm, wc1_v, sem.at[3]);  cp_wc1.start()

    def cell(gates, c, H):
        # Packed gate order [i | f | o | g]: one contiguous sigmoid slab.
        act = jax.nn.sigmoid(gates[:, 0:3 * H])
        i = act[:, 0:H]
        f = act[:, H:2 * H]
        o = act[:, 2 * H:3 * H]
        g = jnp.tanh(gates[:, 3 * H:4 * H])
        c_new = f * c + i * g
        return o * jnp.tanh(c_new), c_new

    # ----- layer 1: hoisted input projection (single fused fwd|bwd matmul) ----
    x_bf = x_ref[...].astype(bf16)
    gx1_ref[...] = (jnp.dot(x_bf, wih1_ref[...], preferred_element_type=f32)
                    + b1_ref[...])                       # (T*Bp, 2*G1), bias folded in

    whh1f = whh1f_ref[...]
    whh1b = whh1b_ref[...]
    h_f = jnp.zeros((Bp, H1), f32)
    c_f = jnp.zeros((Bp, H1), f32)
    h_b = jnp.zeros((Bp, H1), f32)
    c_b = jnp.zeros((Bp, H1), f32)
    for t in range(T):                                   # fully unrolled
        gf = (gx1_ref[t * Bp:(t + 1) * Bp, 0:G1]
              + jnp.dot(h_f.astype(bf16), whh1f, preferred_element_type=f32))
        h_f, c_f = cell(gf, c_f, H1)
        y1_ref[t * Bp:(t + 1) * Bp, 0:H1] = h_f

        tb = T - 1 - t
        gb = (gx1_ref[tb * Bp:(tb + 1) * Bp, G1:2 * G1]
              + jnp.dot(h_b.astype(bf16), whh1b, preferred_element_type=f32))
        h_b, c_b = cell(gb, c_b, H1)
        y1_ref[tb * Bp:(tb + 1) * Bp, H1:2 * H1] = h_b

    # ----- layer 2: fused input projection + loop-invariant gate pre-sum ------
    cp_wih2.wait()
    cp_whh2.wait()
    y1_bf = y1_ref[...].astype(bf16)                     # (T*Bp, 2*H1)
    g2 = jnp.dot(y1_bf, wih2_v[...], preferred_element_type=f32)  # (T*Bp, 2*G2)
    b2 = b2_ref[...]
    for s in range(T):
        sb = T - 1 - s
        gp_ref[s * Bp:(s + 1) * Bp, :] = (g2[s * Bp:(s + 1) * Bp, 0:G2]
                                          + g2[sb * Bp:(sb + 1) * Bp, G2:2 * G2]
                                          + b2)

    whh2 = whh2_v[...]
    h2 = jnp.zeros((Bp, H2p), f32)                       # [h_fwd | h_bwd]
    c2 = jnp.zeros((Bp, H2p), f32)
    h2_first = None
    for s in range(T):                                   # fully unrolled serial chain
        gates = (gp_ref[s * Bp:(s + 1) * Bp, :]
                 + jnp.dot(h2.astype(bf16), whh2, preferred_element_type=f32))
        h2, c2 = cell(gates, c2, H2p)
        if s == 0:
            h2_first = h2

    # ht = y2[-1]: forward half from the last step, backward half from the first
    # step (the backward pass starts at t = T-1).  In-place lane select.
    lane = jax.lax.broadcasted_iota(jnp.int32, (Bp, H2p), 1)
    ht = jnp.where(lane < H2, h2, h2_first)              # (Bp, 128)

    # ----- attention head (softmax over batch, padded rows masked) ------------
    cp_wha.wait()
    cp_wc1.wait()
    ha = jnp.tanh(jnp.dot(ht.astype(bf16), wha_v[...], preferred_element_type=f32)
                  + bha_ref[...])                        # (Bp, 128) (cols >=50 are 0)
    alp = (jnp.dot(ha.astype(bf16), w1_ref[...], preferred_element_type=f32)
           + b1h_ref[...])                               # (Bp, 1)

    row = jax.lax.broadcasted_iota(jnp.int32, alp.shape, 0)
    alp = jnp.where(row < B, alp, jnp.float32(-1e30))
    m = jnp.max(alp, axis=0, keepdims=True)
    e = jnp.exp(alp - m)
    al = e * pl.reciprocal(jnp.sum(e, axis=0, keepdims=True), approx=True)
    c_att = jnp.sum(al * ht, axis=0, keepdims=True)      # (1, 128)

    # ----- classifier ----------------------------------------------------------
    h1c = (jnp.dot(c_att.astype(bf16), wc1_v[...], preferred_element_type=f32)
           + bc1_ref[...])
    out_ref[...] = (jnp.dot(h1c.astype(bf16), wc2_ref[...],
                            preferred_element_type=f32) + bc2_ref[...])


# ---------------------------------------------------------------------------
# Wrapper: pad batch + features, build the single pallas_call
# ---------------------------------------------------------------------------
def lstmnet_forward(x, packed):
    (wih1, whh1f, whh1b, b1, b2, bha, w1, b1h, bc1, wc2, bc2,
     wih2, whh2, wha, wc1) = packed

    T, B, F = x.shape
    FP = wih1.shape[0]                          # feature dim padded to 128
    H1 = whh1f.shape[0]                         # 256
    H2p = whh2.shape[0]                         # 128 (packed fwd|bwd)
    H2 = H2p // 2
    n_out = wc2.shape[1]

    Bp = ((B + 7) // 8) * 8                     # pad batch to full sublanes
    x_pad = jnp.pad(x, ((0, 0), (0, Bp - B), (0, FP - F)))
    x2d = x_pad.reshape(T * Bp, FP)

    kernel = partial(_lstmnet_kernel, T=T, Bp=Bp, B=B, H1=H1, H2=H2)

    in_specs = ([pl.BlockSpec(memory_space=pltpu.MemorySpace.VMEM) for _ in range(12)]
                + [pl.BlockSpec(memory_space=pl.ANY) for _ in range(4)])

    return pl.pallas_call(
        kernel,
        out_shape=jax.ShapeDtypeStruct((1, n_out), jnp.float32),
        in_specs=in_specs,
        out_specs=pl.BlockSpec(memory_space=pltpu.MemorySpace.VMEM),
        scratch_shapes=[
            pltpu.VMEM((T * Bp, 8 * H1), jnp.float32),   # gx1 (fwd|bwd input gates)
            pltpu.VMEM((T * Bp, 2 * H1), jnp.float32),   # y1  (bi-dir layer-1 output)
            pltpu.VMEM((T * Bp, 4 * H2p), jnp.float32),  # gp  (layer-2 pre-gates + bias)
            pltpu.VMEM(wih2.shape, jnp.bfloat16),        # layer-2 / head weight buffers
            pltpu.VMEM(whh2.shape, jnp.bfloat16),        #   (filled by async DMA)
            pltpu.VMEM(wha.shape, jnp.bfloat16),
            pltpu.VMEM(wc1.shape, jnp.bfloat16),
            pltpu.SemaphoreType.DMA((4,)),
        ],
        compiler_params=pltpu.CompilerParams(vmem_limit_bytes=32 * 1024 * 1024),
    )(x2d, wih1, whh1f, whh1b, b1, b2, bha, w1, b1h, bc1, wc2, bc2,
      wih2, whh2, wha, wc1)


# ---------------------------------------------------------------------------
# Parameter construction (deterministic, PyTorch-like uniform init) + packing
# ---------------------------------------------------------------------------
def _uniform(key, shape, bound):
    return jax.random.uniform(key, shape, jnp.float32, -bound, bound)


def init_bilstm_params(key, input_size, hidden):
    k = hidden ** -0.5
    ks = jax.random.split(key, 8)
    wih_f = _uniform(ks[0], (4 * hidden, input_size), k)
    whh_f = _uniform(ks[1], (4 * hidden, hidden), k)
    b_f = _uniform(ks[2], (4 * hidden,), k) + _uniform(ks[3], (4 * hidden,), k)
    wih_b = _uniform(ks[4], (4 * hidden, input_size), k)
    whh_b = _uniform(ks[5], (4 * hidden, hidden), k)
    b_b = _uniform(ks[6], (4 * hidden,), k) + _uniform(ks[7], (4 * hidden,), k)
    return {
        "hidden": hidden,
        "wih_f": wih_f.T, "whh_f": whh_f.T, "b_f": b_f.reshape(1, -1),
        "wih_b": wih_b.T, "whh_b": whh_b.T, "b_b": b_b.reshape(1, -1),
    }


def init_head_params(key):
    ks = jax.random.split(key, 8)

    def lin(kw, kb, out_f, in_f):
        bound = in_f ** -0.5
        w = _uniform(kw, (out_f, in_f), bound)
        b = _uniform(kb, (out_f,), bound)
        return w.T, b.reshape(1, -1)

    wha, bha = lin(ks[0], ks[1], 50, 128)
    w1, b1 = lin(ks[2], ks[3], 1, 50)
    wc1, bc1 = lin(ks[4], ks[5], 128, 128)
    wc2, bc2 = lin(ks[6], ks[7], 8, 128)
    return {"wha": wha, "bha": bha, "w1": w1, "b1": b1,
            "wc1": wc1, "bc1": bc1, "wc2": wc2, "bc2": bc2}


def pack_params(p1, p2, ph):
    """Host-side, one-time weight packing:
       * gate order [i,f,g,o] -> [i,f,o,g] (contiguous sigmoid slab in-kernel),
       * layer-1 fwd|bwd fused along columns, F padded 80 -> 128,
       * layer-2 gate-packed so every gate occupies a full 128-lane group
         ([i_f,i_b | f_f,f_b | o_f,o_b | g_f,g_b]) and fwd|bwd fused,
       * attention hidden padded 50 -> 128 lanes (zero columns are inert),
       * all matmul weights cast to bf16 (f32 accumulation in-kernel)."""
    bf16 = jnp.bfloat16
    H1 = p1["hidden"]
    H2 = p2["hidden"]

    def reorder(w, H):                # columns [i,f,g,o] -> [i,f,o,g]
        return jnp.concatenate(
            [w[:, 0:H], w[:, H:2 * H], w[:, 3 * H:4 * H], w[:, 2 * H:3 * H]], axis=1)

    # ---- layer 1 ----
    FP = 128
    F = p1["wih_f"].shape[0]
    pad_rows = lambda w: jnp.pad(w, ((0, FP - F), (0, 0)))
    wih1 = jnp.concatenate([reorder(pad_rows(p1["wih_f"]), H1),
                            reorder(pad_rows(p1["wih_b"]), H1)], axis=1).astype(bf16)
    whh1f = reorder(p1["whh_f"], H1).astype(bf16)
    whh1b = reorder(p1["whh_b"], H1).astype(bf16)
    b1 = jnp.concatenate([reorder(p1["b_f"], H1), reorder(p1["b_b"], H1)], axis=1)

    # ---- layer 2 (gate-packed both directions) ----
    def pack_cols(w, d):
        rows = w.shape[0]
        out = jnp.zeros((rows, 8 * H2), w.dtype)
        for slot, g in enumerate((0, 1, 3, 2)):          # i, f, o, g
            out = out.at[:, (2 * slot + d) * H2:(2 * slot + d + 1) * H2].set(
                w[:, g * H2:(g + 1) * H2])
        return out

    wih2 = jnp.concatenate([pack_cols(p2["wih_f"], 0),
                            pack_cols(p2["wih_b"], 1)], axis=1).astype(bf16)   # (2H1,16H2)
    whh2 = jnp.concatenate([pack_cols(p2["whh_f"], 0),
                            pack_cols(p2["whh_b"], 1)], axis=0).astype(bf16)   # (2H2, 8H2)
    b2 = pack_cols(p2["b_f"], 0) + pack_cols(p2["b_b"], 1)                     # (1, 8H2)

    # ---- head ----
    HA = 128
    ha_dim = ph["wha"].shape[1]
    wha = jnp.pad(ph["wha"], ((0, 0), (0, HA - ha_dim))).astype(bf16)          # (128,128)
    bha = jnp.pad(ph["bha"], ((0, 0), (0, HA - ha_dim)))                        # (1,128)
    w1 = jnp.pad(ph["w1"], ((0, HA - ha_dim), (0, 0))).astype(bf16)             # (128,1)
    b1h = ph["b1"]
    wc1 = ph["wc1"].astype(bf16)
    bc1 = ph["bc1"]
    wc2 = ph["wc2"].astype(bf16)
    bc2 = ph["bc2"]

    return (wih1, whh1f, whh1b, b1, b2, bha, w1, b1h, bc1, wc2, bc2,
            wih2, whh2, wha, wc1)


# ---------------------------------------------------------------------------
# Pure-JAX f32 reference for verification
# ---------------------------------------------------------------------------
def _lstm_dir_ref(x, wih_t, whh_t, bias, hidden, reverse):
    xs = x[::-1] if reverse else x

    def step(carry, x_t):
        h, c = carry
        gates = x_t @ wih_t + h @ whh_t + bias
        i = jax.nn.sigmoid(gates[:, :hidden])
        f = jax.nn.sigmoid(gates[:, hidden:2 * hidden])
        g = jnp.tanh(gates[:, 2 * hidden:3 * hidden])
        o = jax.nn.sigmoid(gates[:, 3 * hidden:])
        c = f * c + i * g
        h = o * jnp.tanh(c)
        return (h, c), h

    B = x.shape[1]
    init = (jnp.zeros((B, hidden), jnp.float32), jnp.zeros((B, hidden), jnp.float32))
    _, ys = jax.lax.scan(step, init, xs)
    return ys[::-1] if reverse else ys


def lstmnet_forward_ref(x, p1, p2, ph):
    def bi(x, p):
        f = _lstm_dir_ref(x, p["wih_f"], p["whh_f"], p["b_f"], p["hidden"], False)
        b = _lstm_dir_ref(x, p["wih_b"], p["whh_b"], p["b_b"], p["hidden"], True)
        return jnp.concatenate([f, b], axis=-1)

    y = bi(bi(x, p1), p2)
    ht = y[-1]
    ha = jnp.tanh(ht @ ph["wha"] + ph["bha"])
    alp = ha @ ph["w1"] + ph["b1"]
    al = jax.nn.softmax(alp, axis=0)
    c = jnp.sum(al * ht, axis=0, keepdims=True)
    return (c @ ph["wc1"] + ph["bc1"]) @ ph["wc2"] + ph["bc2"]


if __name__ == "__main__":
    T, B, F = 8, 4, 80
    key = jax.random.PRNGKey(0)
    kx, k1, k2, kh = jax.random.split(key, 4)

    x = jax.random.normal(kx, (T, B, F), jnp.float32)
    p_lstm1 = init_bilstm_params(k1, 80, 256)
    p_lstm2 = init_bilstm_params(k2, 2 * 256, 64)
    p_head = init_head_params(kh)

    packed = pack_params(p_lstm1, p_lstm2, p_head)

    fwd = jax.jit(lstmnet_forward)
    out = jax.block_until_ready(fwd(x, packed))
    ref = jax.block_until_ready(lstmnet_forward_ref(x, p_lstm1, p_lstm2, p_head))

    assert out.shape == (1, 8), out.shape
    # bf16 weights + approx-reciprocal softmax => slightly looser than the f32-only
    # check (observed error is ~1e-3; 2e-2 leaves ample margin).
    assert jnp.allclose(out, ref, atol=2e-2, rtol=2e-2), (out, ref)
    print("KERNEL_OK")
</pallas_src>

<mosaic_0001>
module attributes {stable_mosaic.version = 11 : i64} {
  func.func @_lstmnet_kernel(%arg0: memref<64x128xf32, #tpu.memory_space<vmem>>, %arg1: memref<128x2048xbf16, #tpu.memory_space<vmem>>, %arg2: memref<256x1024xbf16, #tpu.memory_space<vmem>>, %arg3: memref<256x1024xbf16, #tpu.memory_space<vmem>>, %arg4: memref<1x2048xf32, #tpu.memory_space<vmem>>, %arg5: memref<1x512xf32, #tpu.memory_space<vmem>>, %arg6: memref<1x128xf32, #tpu.memory_space<vmem>>, %arg7: memref<128x1xbf16, #tpu.memory_space<vmem>>, %arg8: memref<1x1xf32, #tpu.memory_space<vmem>>, %arg9: memref<1x128xf32, #tpu.memory_space<vmem>>, %arg10: memref<128x8xbf16, #tpu.memory_space<vmem>>, %arg11: memref<1x8xf32, #tpu.memory_space<vmem>>, %arg12: memref<512x1024xbf16, #tpu.memory_space<any>>, %arg13: memref<128x512xbf16, #tpu.memory_space<any>>, %arg14: memref<128x128xbf16, #tpu.memory_space<any>>, %arg15: memref<128x128xbf16, #tpu.memory_space<any>>, %arg16: memref<1x8xf32, #tpu.memory_space<vmem>>, %arg17: memref<64x2048xf32, #tpu.memory_space<vmem>>, %arg18: memref<64x512xf32, #tpu.memory_space<vmem>>, %arg19: memref<64x512xf32, #tpu.memory_space<vmem>>, %arg20: memref<512x1024xbf16, #tpu.memory_space<vmem>>, %arg21: memref<128x512xbf16, #tpu.memory_space<vmem>>, %arg22: memref<128x128xbf16, #tpu.memory_space<vmem>>, %arg23: memref<128x128xbf16, #tpu.memory_space<vmem>>, %arg24: memref<4x!tpu.dma_semaphore, #tpu.memory_space<semaphore_mem>>) attributes {dimension_semantics = [], scalar_prefetch = 0 : i64, scratch_operands = 8 : i64, tpu.core_type = #tpu.core_type<tc>} {
    %c0_i32 = arith.constant 0 : i32
    %0 = tpu.memref_slice %arg24[%c0_i32] : memref<4x!tpu.dma_semaphore, #tpu.memory_space<semaphore_mem>> -> memref<1x!tpu.dma_semaphore, #tpu.memory_space<semaphore_mem>>
    %1 = tpu.memref_squeeze %0 : memref<1x!tpu.dma_semaphore, #tpu.memory_space<semaphore_mem>> -> memref<!tpu.dma_semaphore, #tpu.memory_space<semaphore_mem>>
    tpu.enqueue_dma source(%arg12 : memref<512x1024xbf16, #tpu.memory_space<any>>) target(%arg20 : memref<512x1024xbf16, #tpu.memory_space<vmem>>) target_semaphore(%1 : memref<!tpu.dma_semaphore, #tpu.memory_space<semaphore_mem>>)
    %c1_i32 = arith.constant 1 : i32
    %2 = tpu.memref_slice %arg24[%c1_i32] : memref<4x!tpu.dma_semaphore, #tpu.memory_space<semaphore_mem>> -> memref<1x!tpu.dma_semaphore, #tpu.memory_space<semaphore_mem>>
    %3 = tpu.memref_squeeze %2 : memref<1x!tpu.dma_semaphore, #tpu.memory_space<semaphore_mem>> -> memref<!tpu.dma_semaphore, #tpu.memory_space<semaphore_mem>>
    tpu.enqueue_dma source(%arg13 : memref<128x512xbf16, #tpu.memory_space<any>>) target(%arg21 : memref<128x512xbf16, #tpu.memory_space<vmem>>) target_semaphore(%3 : memref<!tpu.dma_semaphore, #tpu.memory_space<semaphore_mem>>)
    %c2_i32 = arith.constant 2 : i32
    %4 = tpu.memref_slice %arg24[%c2_i32] : memref<4x!tpu.dma_semaphore, #tpu.memory_space<semaphore_mem>> -> memref<1x!tpu.dma_semaphore, #tpu.memory_space<semaphore_mem>>
    %5 = tpu.memref_squeeze %4 : memref<1x!tpu.dma_semaphore, #tpu.memory_space<semaphore_mem>> -> memref<!tpu.dma_semaphore, #tpu.memory_space<semaphore_mem>>
    tpu.enqueue_dma source(%arg14 : memref<128x128xbf16, #tpu.memory_space<any>>) target(%arg22 : memref<128x128xbf16, #tpu.memory_space<vmem>>) target_semaphore(%5 : memref<!tpu.dma_semaphore, #tpu.memory_space<semaphore_mem>>)
    %c3_i32 = arith.constant 3 : i32
    %6 = tpu.memref_slice %arg24[%c3_i32] : memref<4x!tpu.dma_semaphore, #tpu.memory_space<semaphore_mem>> -> memref<1x!tpu.dma_semaphore, #tpu.memory_space<semaphore_mem>>
    %7 = tpu.memref_squeeze %6 : memref<1x!tpu.dma_semaphore, #tpu.memory_space<semaphore_mem>> -> memref<!tpu.dma_semaphore, #tpu.memory_space<semaphore_mem>>
    tpu.enqueue_dma source(%arg15 : memref<128x128xbf16, #tpu.memory_space<any>>) target(%arg23 : memref<128x128xbf16, #tpu.memory_space<vmem>>) target_semaphore(%7 : memref<!tpu.dma_semaphore, #tpu.memory_space<semaphore_mem>>)
    %c0 = arith.constant 0 : index
    %c0_0 = arith.constant 0 : index
    %8 = vector.load %arg0[%c0, %c0_0] : memref<64x128xf32, #tpu.memory_space<vmem>>, vector<64x128xf32>
    %9 = arith.truncf %8 : vector<64x128xf32> to vector<64x128xbf16>
    %c0_1 = arith.constant 0 : index
    %c0_2 = arith.constant 0 : index
    %10 = vector.load %arg1[%c0_1, %c0_2] : memref<128x2048xbf16, #tpu.memory_space<vmem>>, vector<128x2048xbf16>
    %cst = arith.constant dense<0.000000e+00> : vector<64x2048xf32>
    %11 = tpu.matmul %9, %10, %cst {dimension_numbers = #tpu.dot_dimension_numbers<[1], [0], [0], [1], [0, 0, 1, 1], [], []>} : vector<64x128xbf16>, vector<128x2048xbf16>, vector<64x2048xf32> -> vector<64x2048xf32>
    %c0_3 = arith.constant 0 : index
    %c0_4 = arith.constant 0 : index
    %12 = vector.load %arg4[%c0_3, %c0_4] : memref<1x2048xf32, #tpu.memory_space<vmem>>, vector<1x2048xf32>
    %13 = vector.broadcast %12 : vector<1x2048xf32> to vector<64x2048xf32>
    %14 = arith.addf %11, %13 : vector<64x2048xf32>
    %c0_5 = arith.constant 0 : index
    %c0_6 = arith.constant 0 : index
    %15 = vector.load %arg17[%c0_5, %c0_6] : memref<64x2048xf32, #tpu.memory_space<vmem>>, vector<64x2048xf32>
    tpu.vector_store %arg17[%c0_5, %c0_6], %14 {strides = array<i32>} : memref<64x2048xf32, #tpu.memory_space<vmem>>, vector<64x2048xf32>,
    %c0_7 = arith.constant 0 : index
    %c0_8 = arith.constant 0 : index
    %16 = vector.load %arg2[%c0_7, %c0_8] : memref<256x1024xbf16, #tpu.memory_space<vmem>>, vector<256x1024xbf16>
    %c0_9 = arith.constant 0 : index
    %c0_10 = arith.constant 0 : index
    %17 = vector.load %arg3[%c0_9, %c0_10] : memref<256x1024xbf16, #tpu.memory_space<vmem>>, vector<256x1024xbf16>
    %cst_11 = arith.constant 0.000000e+00 : f32
    %18 = vector.broadcast %cst_11 : f32 to vector<8x256xf32>
    %cst_12 = arith.constant 0.000000e+00 : f32
    %19 = vector.broadcast %cst_12 : f32 to vector<8x256xf32>
    %cst_13 = arith.constant 0.000000e+00 : f32
    %20 = vector.broadcast %cst_13 : f32 to vector<8x256xf32>
    %cst_14 = arith.constant 0.000000e+00 : f32
    %21 = vector.broadcast %cst_14 : f32 to vector<8x256xf32>
    %c0_15 = arith.constant 0 : index
    %c0_16 = arith.constant 0 : index
    %22 = vector.load %arg17[%c0_15, %c0_16] : memref<64x2048xf32, #tpu.memory_space<vmem>>, vector<8x1024xf32>
    %23 = arith.truncf %18 : vector<8x256xf32> to vector<8x256xbf16>
    %cst_17 = arith.constant dense<0.000000e+00> : vector<8x1024xf32>
    %24 = tpu.matmul %23, %16, %cst_17 {dimension_numbers = #tpu.dot_dimension_numbers<[1], [0], [0], [1], [0, 0, 1, 1], [], []>} : vector<8x256xbf16>, vector<256x1024xbf16>, vector<8x1024xf32> -> vector<8x1024xf32>
    %25 = arith.addf %22, %24 : vector<8x1024xf32>
    %26 = vector.extract_strided_slice %25 {offsets = [0, 0], sizes = [8, 768], strides = [1, 1]} : vector<8x1024xf32> to vector<8x768xf32>
    %27 = arith.negf %26 : vector<8x768xf32>
    %28 = math.exp %27 : vector<8x768xf32>
    %cst_18 = arith.constant 1.000000e+00 : f32
    %29 = vector.broadcast %cst_18 : f32 to vector<8x768xf32>
    %30 = arith.addf %29, %28 : vector<8x768xf32>
    %31 = arith.divf %29, %30 : vector<8x768xf32>
    %32 = vector.extract_strided_slice %31 {offsets = [0, 0], sizes = [8, 256], strides = [1, 1]} : vector<8x768xf32> to vector<8x256xf32>
    %33 = vector.extract_strided_slice %31 {offsets = [0, 256], sizes = [8, 256], strides = [1, 1]} : vector<8x768xf32> to vector<8x256xf32>
    %34 = vector.extract_strided_slice %31 {offsets = [0, 512], sizes = [8, 256], strides = [1, 1]} : vector<8x768xf32> to vector<8x256xf32>
    %35 = vector.extract_strided_slice %25 {offsets = [0, 768], sizes = [8, 256], strides = [1, 1]} : vector<8x1024xf32> to vector<8x256xf32>
    %36 = math.tanh %35 : vector<8x256xf32>
    %37 = arith.mulf %33, %19 : vector<8x256xf32>
    %38 = arith.mulf %32, %36 : vector<8x256xf32>
    %39 = arith.addf %37, %38 : vector<8x256xf32>
    %40 = math.tanh %39 : vector<8x256xf32>
    %41 = arith.mulf %34, %40 : vector<8x256xf32>
    %c0_19 = arith.constant 0 : index
    %c0_20 = arith.constant 0 : index
    %42 = vector.load %arg18[%c0_19, %c0_20] : memref<64x512xf32, #tpu.memory_space<vmem>>, vector<8x256xf32>
    tpu.vector_store %arg18[%c0_19, %c0_20], %41 {strides = array<i32>} : memref<64x512xf32, #tpu.memory_space<vmem>>, vector<8x256xf32>,
    %c56 = arith.constant 56 : index
    %c1024 = arith.constant 1024 : index
    %43 = vector.load %arg17[%c56, %c1024] : memref<64x2048xf32, #tpu.memory_space<vmem>>, vector<8x1024xf32>
    %44 = arith.truncf %20 : vector<8x256xf32> to vector<8x256xbf16>
    %cst_21 = arith.constant dense<0.000000e+00> : vector<8x1024xf32>
    %45 = tpu.matmul %44, %17, %cst_21 {dimension_numbers = #tpu.dot_dimension_numbers<[1], [0], [0], [1], [0, 0, 1, 1], [], []>} : vector<8x256xbf16>, vector<256x1024xbf16>, vector<8x1024xf32> -> vector<8x1024xf32>
    %46 = arith.addf %43, %45 : vector<8x1024xf32>
    %47 = vector.extract_strided_slice %46 {offsets = [0, 0], sizes = [8, 768], strides = [1, 1]} : vector<8x1024xf32> to vector<8x768xf32>
    %48 = arith.negf %47 : vector<8x768xf32>
    %49 = math.exp %48 : vector<8x768xf32>
    %cst_22 = arith.constant 1.000000e+00 : f32
    %50 = vector.broadcast %cst_22 : f32 to vector<8x768xf32>
    %51 = arith.addf %50, %49 : vector<8x768xf32>
    %52 = arith.divf %50, %51 : vector<8x768xf32>
    %53 = vector.extract_strided_slice %52 {offsets = [0, 0], sizes = [8, 256], strides = [1, 1]} : vector<8x768xf32> to vector<8x256xf32>
    %54 = vector.extract_strided_slice %52 {offsets = [0, 256], sizes = [8, 256], strides = [1, 1]} : vector<8x768xf32> to vector<8x256xf32>
    %55 = vector.extract_strided_slice %52 {offsets = [0, 512], sizes = [8, 256], strides = [1, 1]} : vector<8x768xf32> to vector<8x256xf32>
    %56 = vector.extract_strided_slice %46 {offsets = [0, 768], sizes = [8, 256], strides = [1, 1]} : vector<8x1024xf32> to vector<8x256xf32>
    %57 = math.tanh %56 : vector<8x256xf32>
    %58 = arith.mulf %54, %21 : vector<8x256xf32>
    %59 = arith.mulf %53, %57 : vector<8x256xf32>
    %60 = arith.addf %58, %59 : vector<8x256xf32>
    %61 = math.tanh %60 : vector<8x256xf32>
    %62 = arith.mulf %55, %61 : vector<8x256xf32>
    %c56_23 = arith.constant 56 : index
    %c256 = arith.constant 256 : index
    %63 = vector.load %arg18[%c56_23, %c256] : memref<64x512xf32, #tpu.memory_space<vmem>>, vector<8x256xf32>
    tpu.vector_store %arg18[%c56_23, %c256], %62 {strides = array<i32>} : memref<64x512xf32, #tpu.memory_space<vmem>>, vector<8x256xf32>,
    %c8 = arith.constant 8 : index
    %c0_24 = arith.constant 0 : index
    %64 = vector.load %arg17[%c8, %c0_24] : memref<64x2048xf32, #tpu.memory_space<vmem>>, vector<8x1024xf32>
    %65 = arith.truncf %41 : vector<8x256xf32> to vector<8x256xbf16>
    %cst_25 = arith.constant dense<0.000000e+00> : vector<8x1024xf32>
    %66 = tpu.matmul %65, %16, %cst_25 {dimension_numbers = #tpu.dot_dimension_numbers<[1], [0], [0], [1], [0, 0, 1, 1], [], []>} : vector<8x256xbf16>, vector<256x1024xbf16>, vector<8x1024xf32> -> vector<8x1024xf32>
    %67 = arith.addf %64, %66 : vector<8x1024xf32>
    %68 = vector.extract_strided_slice %67 {offsets = [0, 0], sizes = [8, 768], strides = [1, 1]} : vector<8x1024xf32> to vector<8x768xf32>
    %69 = arith.negf %68 : vector<8x768xf32>
    %70 = math.exp %69 : vector<8x768xf32>
    %cst_26 = arith.constant 1.000000e+00 : f32
    %71 = vector.broadcast %cst_26 : f32 to vector<8x768xf32>
    %72 = arith.addf %71, %70 : vector<8x768xf32>
    %73 = arith.divf %71, %72 : vector<8x768xf32>
    %74 = vector.extract_strided_slice %73 {offsets = [0, 0], sizes = [8, 256], strides = [1, 1]} : vector<8x768xf32> to vector<8x256xf32>
    %75 = vector.extract_strided_slice %73 {offsets = [0, 256], sizes = [8, 256], strides = [1, 1]} : vector<8x768xf32> to vector<8x256xf32>
    %76 = vector.extract_strided_slice %73 {offsets = [0, 512], sizes = [8, 256], strides = [1, 1]} : vector<8x768xf32> to vector<8x256xf32>
    %77 = vector.extract_strided_slice %67 {offsets = [0, 768], sizes = [8, 256], strides = [1, 1]} : vector<8x1024xf32> to vector<8x256xf32>
    %78 = math.tanh %77 : vector<8x256xf32>
    %79 = arith.mulf %75, %39 : vector<8x256xf32>
    %80 = arith.mulf %74, %78 : vector<8x256xf32>
    %81 = arith.addf %79, %80 : vector<8x256xf32>
    %82 = math.tanh %81 : vector<8x256xf32>
    %83 = arith.mulf %76, %82 : vector<8x256xf32>
    %c8_27 = arith.constant 8 : index
    %c0_28 = arith.constant 0 : index
    %84 = vector.load %arg18[%c8_27, %c0_28] : memref<64x512xf32, #tpu.memory_space<vmem>>, vector<8x256xf32>
    tpu.vector_store %arg18[%c8_27, %c0_28], %83 {strides = array<i32>} : memref<64x512xf32, #tpu.memory_space<vmem>>, vector<8x256xf32>,
    %c48 = arith.constant 48 : index
    %c1024_29 = arith.constant 1024 : index
    %85 = vector.load %arg17[%c48, %c1024_29] : memref<64x2048xf32, #tpu.memory_space<vmem>>, vector<8x1024xf32>
    %86 = arith.truncf %62 : vector<8x256xf32> to vector<8x256xbf16>
    %cst_30 = arith.constant dense<0.000000e+00> : vector<8x1024xf32>
    %87 = tpu.matmul %86, %17, %cst_30 {dimension_numbers = #tpu.dot_dimension_numbers<[1], [0], [0], [1], [0, 0, 1, 1], [], []>} : vector<8x256xbf16>, vector<256x1024xbf16>, vector<8x1024xf32> -> vector<8x1024xf32>
    %88 = arith.addf %85, %87 : vector<8x1024xf32>
    %89 = vector.extract_strided_slice %88 {offsets = [0, 0], sizes = [8, 768], strides = [1, 1]} : vector<8x1024xf32> to vector<8x768xf32>
    %90 = arith.negf %89 : vector<8x768xf32>
    %91 = math.exp %90 : vector<8x768xf32>
    %cst_31 = arith.constant 1.000000e+00 : f32
    %92 = vector.broadcast %cst_31 : f32 to vector<8x768xf32>
    %93 = arith.addf %92, %91 : vector<8x768xf32>
    %94 = arith.divf %92, %93 : vector<8x768xf32>
    %95 = vector.extract_strided_slice %94 {offsets = [0, 0], sizes = [8, 256], strides = [1, 1]} : vector<8x768xf32> to vector<8x256xf32>
    %96 = vector.extract_strided_slice %94 {offsets = [0, 256], sizes = [8, 256], strides = [1, 1]} : vector<8x768xf32> to vector<8x256xf32>
    %97 = vector.extract_strided_slice %94 {offsets = [0, 512], sizes = [8, 256], strides = [1, 1]} : vector<8x768xf32> to vector<8x256xf32>
    %98 = vector.extract_strided_slice %88 {offsets = [0, 768], sizes = [8, 256], strides = [1, 1]} : vector<8x1024xf32> to vector<8x256xf32>
    %99 = math.tanh %98 : vector<8x256xf32>
    %100 = arith.mulf %96, %60 : vector<8x256xf32>
    %101 = arith.mulf %95, %99 : vector<8x256xf32>
    %102 = arith.addf %100, %101 : vector<8x256xf32>
    %103 = math.tanh %102 : vector<8x256xf32>
    %104 = arith.mulf %97, %103 : vector<8x256xf32>
    %c48_32 = arith.constant 48 : index
    %c256_33 = arith.constant 256 : index
    %105 = vector.load %arg18[%c48_32, %c256_33] : memref<64x512xf32, #tpu.memory_space<vmem>>, vector<8x256xf32>
    tpu.vector_store %arg18[%c48_32, %c256_33], %104 {strides = array<i32>} : memref<64x512xf32, #tpu.memory_space<vmem>>, vector<8x256xf32>,
    %c16 = arith.constant 16 : index
    %c0_34 = arith.constant 0 : index
    %106 = vector.load %arg17[%c16, %c0_34] : memref<64x2048xf32, #tpu.memory_space<vmem>>, vector<8x1024xf32>
    %107 = arith.truncf %83 : vector<8x256xf32> to vector<8x256xbf16>
    %cst_35 = arith.constant dense<0.000000e+00> : vector<8x1024xf32>
    %108 = tpu.matmul %107, %16, %cst_35 {dimension_numbers = #tpu.dot_dimension_numbers<[1], [0], [0], [1], [0, 0, 1, 1], [], []>} : vector<8x256xbf16>, vector<256x1024xbf16>, vector<8x1024xf32> -> vector<8x1024xf32>
    %109 = arith.addf %106, %108 : vector<8x1024xf32>
    %110 = vector.extract_strided_slice %109 {offsets = [0, 0], sizes = [8, 768], strides = [1, 1]} : vector<8x1024xf32> to vector<8x768xf32>
    %111 = arith.negf %110 : vector<8x768xf32>
    %112 = math.exp %111 : vector<8x768xf32>
    %cst_36 = arith.constant 1.000000e+00 : f32
    %113 = vector.broadcast %cst_36 : f32 to vector<8x768xf32>
    %114 = arith.addf %113, %112 : vector<8x768xf32>
    %115 = arith.divf %113, %114 : vector<8x768xf32>
    %116 = vector.extract_strided_slice %115 {offsets = [0, 0], sizes = [8, 256], strides = [1, 1]} : vector<8x768xf32> to vector<8x256xf32>
    %117 = vector.extract_strided_slice %115 {offsets = [0, 256], sizes = [8, 256], strides = [1, 1]} : vector<8x768xf32> to vector<8x256xf32>
    %118 = vector.extract_strided_slice %115 {offsets = [0, 512], sizes = [8, 256], strides = [1, 1]} : vector<8x768xf32> to vector<8x256xf32>
    %119 = vector.extract_strided_slice %109 {offsets = [0, 768], sizes = [8, 256], strides = [1, 1]} : vector<8x1024xf32> to vector<8x256xf32>
    %120 = math.tanh %119 : vector<8x256xf32>
    %121 = arith.mulf %117, %81 : vector<8x256xf32>
    %122 = arith.mulf %116, %120 : vector<8x256xf32>
    %123 = arith.addf %121, %122 : vector<8x256xf32>
    %124 = math.tanh %123 : vector<8x256xf32>
    %125 = arith.mulf %118, %124 : vector<8x256xf32>
    %c16_37 = arith.constant 16 : index
    %c0_38 = arith.constant 0 : index
    %126 = vector.load %arg18[%c16_37, %c0_38] : memref<64x512xf32, #tpu.memory_space<vmem>>, vector<8x256xf32>
    tpu.vector_store %arg18[%c16_37, %c0_38], %125 {strides = array<i32>} : memref<64x512xf32, #tpu.memory_space<vmem>>, vector<8x256xf32>,
    %c40 = arith.constant 40 : index
    %c1024_39 = arith.constant 1024 : index
    %127 = vector.load %arg17[%c40, %c1024_39] : memref<64x2048xf32, #tpu.memory_space<vmem>>, vector<8x1024xf32>
    %128 = arith.truncf %104 : vector<8x256xf32> to vector<8x256xbf16>
    %cst_40 = arith.constant dense<0.000000e+00> : vector<8x1024xf32>
    %129 = tpu.matmul %128, %17, %cst_40 {dimension_numbers = #tpu.dot_dimension_numbers<[1], [0], [0], [1], [0, 0, 1, 1], [], []>} : vector<8x256xbf16>, vector<256x1024xbf16>, vector<8x1024xf32> -> vector<8x1024xf32>
    %130 = arith.addf %127, %129 : vector<8x1024xf32>
    %131 = vector.extract_strided_slice %130 {offsets = [0, 0], sizes = [8, 768], strides = [1, 1]} : vector<8x1024xf32> to vector<8x768xf32>
    %132 = arith.negf %131 : vector<8x768xf32>
    %133 = math.exp %132 : vector<8x768xf32>
    %cst_41 = arith.constant 1.000000e+00 : f32
    %134 = vector.broadcast %cst_41 : f32 to vector<8x768xf32>
    %135 = arith.addf %134, %133 : vector<8x768xf32>
    %136 = arith.divf %134, %135 : vector<8x768xf32>
    %137 = vector.extract_strided_slice %136 {offsets = [0, 0], sizes = [8, 256], strides = [1, 1]} : vector<8x768xf32> to vector<8x256xf32>
    %138 = vector.extract_strided_slice %136 {offsets = [0, 256], sizes = [8, 256], strides = [1, 1]} : vector<8x768xf32> to vector<8x256xf32>
    %139 = vector.extract_strided_slice %136 {offsets = [0, 512], sizes = [8, 256], strides = [1, 1]} : vector<8x768xf32> to vector<8x256xf32>
    %140 = vector.extract_strided_slice %130 {offsets = [0, 768], sizes = [8, 256], strides = [1, 1]} : vector<8x1024xf32> to vector<8x256xf32>
    %141 = math.tanh %140 : vector<8x256xf32>
    %142 = arith.mulf %138, %102 : vector<8x256xf32>
    %143 = arith.mulf %137, %141 : vector<8x256xf32>
    %144 = arith.addf %142, %143 : vector<8x256xf32>
    %145 = math.tanh %144 : vector<8x256xf32>
    %146 = arith.mulf %139, %145 : vector<8x256xf32>
    %c40_42 = arith.constant 40 : index
    %c256_43 = arith.constant 256 : index
    %147 = vector.load %arg18[%c40_42, %c256_43] : memref<64x512xf32, #tpu.memory_space<vmem>>, vector<8x256xf32>
    tpu.vector_store %arg18[%c40_42, %c256_43], %146 {strides = array<i32>} : memref<64x512xf32, #tpu.memory_space<vmem>>, vector<8x256xf32>,
    %c24 = arith.constant 24 : index
    %c0_44 = arith.constant 0 : index
    %148 = vector.load %arg17[%c24, %c0_44] : memref<64x2048xf32, #tpu.memory_space<vmem>>, vector<8x1024xf32>
    %149 = arith.truncf %125 : vector<8x256xf32> to vector<8x256xbf16>
    %cst_45 = arith.constant dense<0.000000e+00> : vector<8x1024xf32>
    %150 = tpu.matmul %149, %16, %cst_45 {dimension_numbers = #tpu.dot_dimension_numbers<[1], [0], [0], [1], [0, 0, 1, 1], [], []>} : vector<8x256xbf16>, vector<256x1024xbf16>, vector<8x1024xf32> -> vector<8x1024xf32>
    %151 = arith.addf %148, %150 : vector<8x1024xf32>
    %152 = vector.extract_strided_slice %151 {offsets = [0, 0], sizes = [8, 768], strides = [1, 1]} : vector<8x1024xf32> to vector<8x768xf32>
    %153 = arith.negf %152 : vector<8x768xf32>
    %154 = math.exp %153 : vector<8x768xf32>
    %cst_46 = arith.constant 1.000000e+00 : f32
    %155 = vector.broadcast %cst_46 : f32 to vector<8x768xf32>
    %156 = arith.addf %155, %154 : vector<8x768xf32>
    %157 = arith.divf %155, %156 : vector<8x768xf32>
    %158 = vector.extract_strided_slice %157 {offsets = [0, 0], sizes = [8, 256], strides = [1, 1]} : vector<8x768xf32> to vector<8x256xf32>
    %159 = vector.extract_strided_slice %157 {offsets = [0, 256], sizes = [8, 256], strides = [1, 1]} : vector<8x768xf32> to vector<8x256xf32>
    %160 = vector.extract_strided_slice %157 {offsets = [0, 512], sizes = [8, 256], strides = [1, 1]} : vector<8x768xf32> to vector<8x256xf32>
    %161 = vector.extract_strided_slice %151 {offsets = [0, 768], sizes = [8, 256], strides = [1, 1]} : vector<8x1024xf32> to vector<8x256xf32>
    %162 = math.tanh %161 : vector<8x256xf32>
    %163 = arith.mulf %159, %123 : vector<8x256xf32>
    %164 = arith.mulf %158, %162 : vector<8x256xf32>
    %165 = arith.addf %163, %164 : vector<8x256xf32>
    %166 = math.tanh %165 : vector<8x256xf32>
    %167 = arith.mulf %160, %166 : vector<8x256xf32>
    %c24_47 = arith.constant 24 : index
    %c0_48 = arith.constant 0 : index
    %168 = vector.load %arg18[%c24_47, %c0_48] : memref<64x512xf32, #tpu.memory_space<vmem>>, vector<8x256xf32>
    tpu.vector_store %arg18[%c24_47, %c0_48], %167 {strides = array<i32>} : memref<64x512xf32, #tpu.memory_space<vmem>>, vector<8x256xf32>,
    %c32 = arith.constant 32 : index
    %c1024_49 = arith.constant 1024 : index
    %169 = vector.load %arg17[%c32, %c1024_49] : memref<64x2048xf32, #tpu.memory_space<vmem>>, vector<8x1024xf32>
    %170 = arith.truncf %146 : vector<8x256xf32> to vector<8x256xbf16>
    %cst_50 = arith.constant dense<0.000000e+00> : vector<8x1024xf32>
    %171 = tpu.matmul %170, %17, %cst_50 {dimension_numbers = #tpu.dot_dimension_numbers<[1], [0], [0], [1], [0, 0, 1, 1], [], []>} : vector<8x256xbf16>, vector<256x1024xbf16>, vector<8x1024xf32> -> vector<8x1024xf32>
    %172 = arith.addf %169, %171 : vector<8x1024xf32>
    %173 = vector.extract_strided_slice %172 {offsets = [0, 0], sizes = [8, 768], strides = [1, 1]} : vector<8x1024xf32> to vector<8x768xf32>
    %174 = arith.negf %173 : vector<8x768xf32>
    %175 = math.exp %174 : vector<8x768xf32>
    %cst_51 = arith.constant 1.000000e+00 : f32
    %176 = vector.broadcast %cst_51 : f32 to vector<8x768xf32>
    %177 = arith.addf %176, %175 : vector<8x768xf32>
    %178 = arith.divf %176, %177 : vector<8x768xf32>
    %179 = vector.extract_strided_slice %178 {offsets = [0, 0], sizes = [8, 256], strides = [1, 1]} : vector<8x768xf32> to vector<8x256xf32>
    %180 = vector.extract_strided_slice %178 {offsets = [0, 256], sizes = [8, 256], strides = [1, 1]} : vector<8x768xf32> to vector<8x256xf32>
    %181 = vector.extract_strided_slice %178 {offsets = [0, 512], sizes = [8, 256], strides = [1, 1]} : vector<8x768xf32> to vector<8x256xf32>
    %182 = vector.extract_strided_slice %172 {offsets = [0, 768], sizes = [8, 256], strides = [1, 1]} : vector<8x1024xf32> to vector<8x256xf32>
    %183 = math.tanh %182 : vector<8x256xf32>
    %184 = arith.mulf %180, %144 : vector<8x256xf32>
    %185 = arith.mulf %179, %183 : vector<8x256xf32>
    %186 = arith.addf %184, %185 : vector<8x256xf32>
    %187 = math.tanh %186 : vector<8x256xf32>
    %188 = arith.mulf %181, %187 : vector<8x256xf32>
    %c32_52 = arith.constant 32 : index
    %c256_53 = arith.constant 256 : index
    %189 = vector.load %arg18[%c32_52, %c256_53] : memref<64x512xf32, #tpu.memory_space<vmem>>, vector<8x256xf32>
    tpu.vector_store %arg18[%c32_52, %c256_53], %188 {strides = array<i32>} : memref<64x512xf32, #tpu.memory_space<vmem>>, vector<8x256xf32>,
    %c32_54 = arith.constant 32 : index
    %c0_55 = arith.constant 0 : index
    %190 = vector.load %arg17[%c32_54, %c0_55] : memref<64x2048xf32, #tpu.memory_space<vmem>>, vector<8x1024xf32>
    %191 = arith.truncf %167 : vector<8x256xf32> to vector<8x256xbf16>
    %cst_56 = arith.constant dense<0.000000e+00> : vector<8x1024xf32>
    %192 = tpu.matmul %191, %16, %cst_56 {dimension_numbers = #tpu.dot_dimension_numbers<[1], [0], [0], [1], [0, 0, 1, 1], [], []>} : vector<8x256xbf16>, vector<256x1024xbf16>, vector<8x1024xf32> -> vector<8x1024xf32>
    %193 = arith.addf %190, %192 : vector<8x1024xf32>
    %194 = vector.extract_strided_slice %193 {offsets = [0, 0], sizes = [8, 768], strides = [1, 1]} : vector<8x1024xf32> to vector<8x768xf32>
    %195 = arith.negf %194 : vector<8x768xf32>
    %196 = math.exp %195 : vector<8x768xf32>
    %cst_57 = arith.constant 1.000000e+00 : f32
    %197 = vector.broadcast %cst_57 : f32 to vector<8x768xf32>
    %198 = arith.addf %197, %196 : vector<8x768xf32>
    %199 = arith.divf %197, %198 : vector<8x768xf32>
    %200 = vector.extract_strided_slice %199 {offsets = [0, 0], sizes = [8, 256], strides = [1, 1]} : vector<8x768xf32> to vector<8x256xf32>
    %201 = vector.extract_strided_slice %199 {offsets = [0, 256], sizes = [8, 256], strides = [1, 1]} : vector<8x768xf32> to vector<8x256xf32>
    %202 = vector.extract_strided_slice %199 {offsets = [0, 512], sizes = [8, 256], strides = [1, 1]} : vector<8x768xf32> to vector<8x256xf32>
    %203 = vector.extract_strided_slice %193 {offsets = [0, 768], sizes = [8, 256], strides = [1, 1]} : vector<8x1024xf32> to vector<8x256xf32>
    %204 = math.tanh %203 : vector<8x256xf32>
    %205 = arith.mulf %201, %165 : vector<8x256xf32>
    %206 = arith.mulf %200, %204 : vector<8x256xf32>
    %207 = arith.addf %205, %206 : vector<8x256xf32>
    %208 = math.tanh %207 : vector<8x256xf32>
    %209 = arith.mulf %202, %208 : vector<8x256xf32>
    %c32_58 = arith.constant 32 : index
    %c0_59 = arith.constant 0 : index
    %210 = vector.load %arg18[%c32_58, %c0_59] : memref<64x512xf32, #tpu.memory_space<vmem>>, vector<8x256xf32>
    tpu.vector_store %arg18[%c32_58, %c0_59], %209 {strides = array<i32>} : memref<64x512xf32, #tpu.memory_space<vmem>>, vector<8x256xf32>,
    %c24_60 = arith.constant 24 : index
    %c1024_61 = arith.constant 1024 : index
    %211 = vector.load %arg17[%c24_60, %c1024_61] : memref<64x2048xf32, #tpu.memory_space<vmem>>, vector<8x1024xf32>
    %212 = arith.truncf %188 : vector<8x256xf32> to vector<8x256xbf16>
    %cst_62 = arith.constant dense<0.000000e+00> : vector<8x1024xf32>
    %213 = tpu.matmul %212, %17, %cst_62 {dimension_numbers = #tpu.dot_dimension_numbers<[1], [0], [0], [1], [0, 0, 1, 1], [], []>} : vector<8x256xbf16>, vector<256x1024xbf16>, vector<8x1024xf32> -> vector<8x1024xf32>
    %214 = arith.addf %211, %213 : vector<8x1024xf32>
    %215 = vector.extract_strided_slice %214 {offsets = [0, 0], sizes = [8, 768], strides = [1, 1]} : vector<8x1024xf32> to vector<8x768xf32>
    %216 = arith.negf %215 : vector<8x768xf32>
    %217 = math.exp %216 : vector<8x768xf32>
    %cst_63 = arith.constant 1.000000e+00 : f32
    %218 = vector.broadcast %cst_63 : f32 to vector<8x768xf32>
    %219 = arith.addf %218, %217 : vector<8x768xf32>
    %220 = arith.divf %218, %219 : vector<8x768xf32>
    %221 = vector.extract_strided_slice %220 {offsets = [0, 0], sizes = [8, 256], strides = [1, 1]} : vector<8x768xf32> to vector<8x256xf32>
    %222 = vector.extract_strided_slice %220 {offsets = [0, 256], sizes = [8, 256], strides = [1, 1]} : vector<8x768xf32> to vector<8x256xf32>
    %223 = vector.extract_strided_slice %220 {offsets = [0, 512], sizes = [8, 256], strides = [1, 1]} : vector<8x768xf32> to vector<8x256xf32>
    %224 = vector.extract_strided_slice %214 {offsets = [0, 768], sizes = [8, 256], strides = [1, 1]} : vector<8x1024xf32> to vector<8x256xf32>
    %225 = math.tanh %224 : vector<8x256xf32>
    %226 = arith.mulf %222, %186 : vector<8x256xf32>
    %227 = arith.mulf %221, %225 : vector<8x256xf32>
    %228 = arith.addf %226, %227 : vector<8x256xf32>
    %229 = math.tanh %228 : vector<8x256xf32>
    %230 = arith.mulf %223, %229 : vector<8x256xf32>
    %c24_64 = arith.constant 24 : index
    %c256_65 = arith.constant 256 : index
    %231 = vector.load %arg18[%c24_64, %c256_65] : memref<64x512xf32, #tpu.memory_space<vmem>>, vector<8x256xf32>
    tpu.vector_store %arg18[%c24_64, %c256_65], %230 {strides = array<i32>} : memref<64x512xf32, #tpu.memory_space<vmem>>, vector<8x256xf32>,
    %c40_66 = arith.constant 40 : index
    %c0_67 = arith.constant 0 : index
    %232 = vector.load %arg17[%c40_66, %c0_67] : memref<64x2048xf32, #tpu.memory_space<vmem>>, vector<8x1024xf32>
    %233 = arith.truncf %209 : vector<8x256xf32> to vector<8x256xbf16>
    %cst_68 = arith.constant dense<0.000000e+00> : vector<8x1024xf32>
    %234 = tpu.matmul %233, %16, %cst_68 {dimension_numbers = #tpu.dot_dimension_numbers<[1], [0], [0], [1], [0, 0, 1, 1], [], []>} : vector<8x256xbf16>, vector<256x1024xbf16>, vector<8x1024xf32> -> vector<8x1024xf32>
    %235 = arith.addf %232, %234 : vector<8x1024xf32>
    %236 = vector.extract_strided_slice %235 {offsets = [0, 0], sizes = [8, 768], strides = [1, 1]} : vector<8x1024xf32> to vector<8x768xf32>
    %237 = arith.negf %236 : vector<8x768xf32>
    %238 = math.exp %237 : vector<8x768xf32>
    %cst_69 = arith.constant 1.000000e+00 : f32
    %239 = vector.broadcast %cst_69 : f32 to vector<8x768xf32>
    %240 = arith.addf %239, %238 : vector<8x768xf32>
    %241 = arith.divf %239, %240 : vector<8x768xf32>
    %242 = vector.extract_strided_slice %241 {offsets = [0, 0], sizes = [8, 256], strides = [1, 1]} : vector<8x768xf32> to vector<8x256xf32>
    %243 = vector.extract_strided_slice %241 {offsets = [0, 256], sizes = [8, 256], strides = [1, 1]} : vector<8x768xf32> to vector<8x256xf32>
    %244 = vector.extract_strided_slice %241 {offsets = [0, 512], sizes = [8, 256], strides = [1, 1]} : vector<8x768xf32> to vector<8x256xf32>
    %245 = vector.extract_strided_slice %235 {offsets = [0, 768], sizes = [8, 256], strides = [1, 1]} : vector<8x1024xf32> to vector<8x256xf32>
    %246 = math.tanh %245 : vector<8x256xf32>
    %247 = arith.mulf %243, %207 : vector<8x256xf32>
    %248 = arith.mulf %242, %246 : vector<8x256xf32>
    %249 = arith.addf %247, %248 : vector<8x256xf32>
    %250 = math.tanh %249 : vector<8x256xf32>
    %251 = arith.mulf %244, %250 : vector<8x256xf32>
    %c40_70 = arith.constant 40 : index
    %c0_71 = arith.constant 0 : index
    %252 = vector.load %arg18[%c40_70, %c0_71] : memref<64x512xf32, #tpu.memory_space<vmem>>, vector<8x256xf32>
    tpu.vector_store %arg18[%c40_70, %c0_71], %251 {strides = array<i32>} : memref<64x512xf32, #tpu.memory_space<vmem>>, vector<8x256xf32>,
    %c16_72 = arith.constant 16 : index
    %c1024_73 = arith.constant 1024 : index
    %253 = vector.load %arg17[%c16_72, %c1024_73] : memref<64x2048xf32, #tpu.memory_space<vmem>>, vector<8x1024xf32>
    %254 = arith.truncf %230 : vector<8x256xf32> to vector<8x256xbf16>
    %cst_74 = arith.constant dense<0.000000e+00> : vector<8x1024xf32>
    %255 = tpu.matmul %254, %17, %cst_74 {dimension_numbers = #tpu.dot_dimension_numbers<[1], [0], [0], [1], [0, 0, 1, 1], [], []>} : vector<8x256xbf16>, vector<256x1024xbf16>, vector<8x1024xf32> -> vector<8x1024xf32>
    %256 = arith.addf %253, %255 : vector<8x1024xf32>
    %257 = vector.extract_strided_slice %256 {offsets = [0, 0], sizes = [8, 768], strides = [1, 1]} : vector<8x1024xf32> to vector<8x768xf32>
    %258 = arith.negf %257 : vector<8x768xf32>
    %259 = math.exp %258 : vector<8x768xf32>
    %cst_75 = arith.constant 1.000000e+00 : f32
    %260 = vector.broadcast %cst_75 : f32 to vector<8x768xf32>
    %261 = arith.addf %260, %259 : vector<8x768xf32>
    %262 = arith.divf %260, %261 : vector<8x768xf32>
    %263 = vector.extract_strided_slice %262 {offsets = [0, 0], sizes = [8, 256], strides = [1, 1]} : vector<8x768xf32> to vector<8x256xf32>
    %264 = vector.extract_strided_slice %262 {offsets = [0, 256], sizes = [8, 256], strides = [1, 1]} : vector<8x768xf32> to vector<8x256xf32>
    %265 = vector.extract_strided_slice %262 {offsets = [0, 512], sizes = [8, 256], strides = [1, 1]} : vector<8x768xf32> to vector<8x256xf32>
    %266 = vector.extract_strided_slice %256 {offsets = [0, 768], sizes = [8, 256], strides = [1, 1]} : vector<8x1024xf32> to vector<8x256xf32>
    %267 = math.tanh %266 : vector<8x256xf32>
    %268 = arith.mulf %264, %228 : vector<8x256xf32>
    %269 = arith.mulf %263, %267 : vector<8x256xf32>
    %270 = arith.addf %268, %269 : vector<8x256xf32>
    %271 = math.tanh %270 : vector<8x256xf32>
    %272 = arith.mulf %265, %271 : vector<8x256xf32>
    %c16_76 = arith.constant 16 : index
    %c256_77 = arith.constant 256 : index
    %273 = vector.load %arg18[%c16_76, %c256_77] : memref<64x512xf32, #tpu.memory_space<vmem>>, vector<8x256xf32>
    tpu.vector_store %arg18[%c16_76, %c256_77], %272 {strides = array<i32>} : memref<64x512xf32, #tpu.memory_space<vmem>>, vector<8x256xf32>,
    %c48_78 = arith.constant 48 : index
    %c0_79 = arith.constant 0 : index
    %274 = vector.load %arg17[%c48_78, %c0_79] : memref<64x2048xf32, #tpu.memory_space<vmem>>, vector<8x1024xf32>
    %275 = arith.truncf %251 : vector<8x256xf32> to vector<8x256xbf16>
    %cst_80 = arith.constant dense<0.000000e+00> : vector<8x1024xf32>
    %276 = tpu.matmul %275, %16, %cst_80 {dimension_numbers = #tpu.dot_dimension_numbers<[1], [0], [0], [1], [0, 0, 1, 1], [], []>} : vector<8x256xbf16>, vector<256x1024xbf16>, vector<8x1024xf32> -> vector<8x1024xf32>
    %277 = arith.addf %274, %276 : vector<8x1024xf32>
    %278 = vector.extract_strided_slice %277 {offsets = [0, 0], sizes = [8, 768], strides = [1, 1]} : vector<8x1024xf32> to vector<8x768xf32>
    %279 = arith.negf %278 : vector<8x768xf32>
    %280 = math.exp %279 : vector<8x768xf32>
    %cst_81 = arith.constant 1.000000e+00 : f32
    %281 = vector.broadcast %cst_81 : f32 to vector<8x768xf32>
    %282 = arith.addf %281, %280 : vector<8x768xf32>
    %283 = arith.divf %281, %282 : vector<8x768xf32>
    %284 = vector.extract_strided_slice %283 {offsets = [0, 0], sizes = [8, 256], strides = [1, 1]} : vector<8x768xf32> to vector<8x256xf32>
    %285 = vector.extract_strided_slice %283 {offsets = [0, 256], sizes = [8, 256], strides = [1, 1]} : vector<8x768xf32> to vector<8x256xf32>
    %286 = vector.extract_strided_slice %283 {offsets = [0, 512], sizes = [8, 256], strides = [1, 1]} : vector<8x768xf32> to vector<8x256xf32>
    %287 = vector.extract_strided_slice %277 {offsets = [0, 768], sizes = [8, 256], strides = [1, 1]} : vector<8x1024xf32> to vector<8x256xf32>
    %288 = math.tanh %287 : vector<8x256xf32>
    %289 = arith.mulf %285, %249 : vector<8x256xf32>
    %290 = arith.mulf %284, %288 : vector<8x256xf32>
    %291 = arith.addf %289, %290 : vector<8x256xf32>
    %292 = math.tanh %291 : vector<8x256xf32>
    %293 = arith.mulf %286, %292 : vector<8x256xf32>
    %c48_82 = arith.constant 48 : index
    %c0_83 = arith.constant 0 : index
    %294 = vector.load %arg18[%c48_82, %c0_83] : memref<64x512xf32, #tpu.memory_space<vmem>>, vector<8x256xf32>
    tpu.vector_store %arg18[%c48_82, %c0_83], %293 {strides = array<i32>} : memref<64x512xf32, #tpu.memory_space<vmem>>, vector<8x256xf32>,
    %c8_84 = arith.constant 8 : index
    %c1024_85 = arith.constant 1024 : index
    %295 = vector.load %arg17[%c8_84, %c1024_85] : memref<64x2048xf32, #tpu.memory_space<vmem>>, vector<8x1024xf32>
    %296 = arith.truncf %272 : vector<8x256xf32> to vector<8x256xbf16>
    %cst_86 = arith.constant dense<0.000000e+00> : vector<8x1024xf32>
    %297 = tpu.matmul %296, %17, %cst_86 {dimension_numbers = #tpu.dot_dimension_numbers<[1], [0], [0], [1], [0, 0, 1, 1], [], []>} : vector<8x256xbf16>, vector<256x1024xbf16>, vector<8x1024xf32> -> vector<8x1024xf32>
    %298 = arith.addf %295, %297 : vector<8x1024xf32>
    %299 = vector.extract_strided_slice %298 {offsets = [0, 0], sizes = [8, 768], strides = [1, 1]} : vector<8x1024xf32> to vector<8x768xf32>
    %300 = arith.negf %299 : vector<8x768xf32>
    %301 = math.exp %300 : vector<8x768xf32>
    %cst_87 = arith.constant 1.000000e+00 : f32
    %302 = vector.broadcast %cst_87 : f32 to vector<8x768xf32>
    %303 = arith.addf %302, %301 : vector<8x768xf32>
    %304 = arith.divf %302, %303 : vector<8x768xf32>
    %305 = vector.extract_strided_slice %304 {offsets = [0, 0], sizes = [8, 256], strides = [1, 1]} : vector<8x768xf32> to vector<8x256xf32>
    %306 = vector.extract_strided_slice %304 {offsets = [0, 256], sizes = [8, 256], strides = [1, 1]} : vector<8x768xf32> to vector<8x256xf32>
    %307 = vector.extract_strided_slice %304 {offsets = [0, 512], sizes = [8, 256], strides = [1, 1]} : vector<8x768xf32> to vector<8x256xf32>
    %308 = vector.extract_strided_slice %298 {offsets = [0, 768], sizes = [8, 256], strides = [1, 1]} : vector<8x1024xf32> to vector<8x256xf32>
    %309 = math.tanh %308 : vector<8x256xf32>
    %310 = arith.mulf %306, %270 : vector<8x256xf32>
    %311 = arith.mulf %305, %309 : vector<8x256xf32>
    %312 = arith.addf %310, %311 : vector<8x256xf32>
    %313 = math.tanh %312 : vector<8x256xf32>
    %314 = arith.mulf %307, %313 : vector<8x256xf32>
    %c8_88 = arith.constant 8 : index
    %c256_89 = arith.constant 256 : index
    %315 = vector.load %arg18[%c8_88, %c256_89] : memref<64x512xf32, #tpu.memory_space<vmem>>, vector<8x256xf32>
    tpu.vector_store %arg18[%c8_88, %c256_89], %314 {strides = array<i32>} : memref<64x512xf32, #tpu.memory_space<vmem>>, vector<8x256xf32>,
    %c56_90 = arith.constant 56 : index
    %c0_91 = arith.constant 0 : index
    %316 = vector.load %arg17[%c56_90, %c0_91] : memref<64x2048xf32, #tpu.memory_space<vmem>>, vector<8x1024xf32>
    %317 = arith.truncf %293 : vector<8x256xf32> to vector<8x256xbf16>
    %cst_92 = arith.constant dense<0.000000e+00> : vector<8x1024xf32>
    %318 = tpu.matmul %317, %16, %cst_92 {dimension_numbers = #tpu.dot_dimension_numbers<[1], [0], [0], [1], [0, 0, 1, 1], [], []>} : vector<8x256xbf16>, vector<256x1024xbf16>, vector<8x1024xf32> -> vector<8x1024xf32>
    %319 = arith.addf %316, %318 : vector<8x1024xf32>
    %320 = vector.extract_strided_slice %319 {offsets = [0, 0], sizes = [8, 768], strides = [1, 1]} : vector<8x1024xf32> to vector<8x768xf32>
    %321 = arith.negf %320 : vector<8x768xf32>
    %322 = math.exp %321 : vector<8x768xf32>
    %cst_93 = arith.constant 1.000000e+00 : f32
    %323 = vector.broadcast %cst_93 : f32 to vector<8x768xf32>
    %324 = arith.addf %323, %322 : vector<8x768xf32>
    %325 = arith.divf %323, %324 : vector<8x768xf32>
    %326 = vector.extract_strided_slice %325 {offsets = [0, 0], sizes = [8, 256], strides = [1, 1]} : vector<8x768xf32> to vector<8x256xf32>
    %327 = vector.extract_strided_slice %325 {offsets = [0, 256], sizes = [8, 256], strides = [1, 1]} : vector<8x768xf32> to vector<8x256xf32>
    %328 = vector.extract_strided_slice %325 {offsets = [0, 512], sizes = [8, 256], strides = [1, 1]} : vector<8x768xf32> to vector<8x256xf32>
    %329 = vector.extract_strided_slice %319 {offsets = [0, 768], sizes = [8, 256], strides = [1, 1]} : vector<8x1024xf32> to vector<8x256xf32>
    %330 = math.tanh %329 : vector<8x256xf32>
    %331 = arith.mulf %327, %291 : vector<8x256xf32>
    %332 = arith.mulf %326, %330 : vector<8x256xf32>
    %333 = arith.addf %331, %332 : vector<8x256xf32>
    %334 = math.tanh %333 : vector<8x256xf32>
    %335 = arith.mulf %328, %334 : vector<8x256xf32>
    %c56_94 = arith.constant 56 : index
    %c0_95 = arith.constant 0 : index
    %336 = vector.load %arg18[%c56_94, %c0_95] : memref<64x512xf32, #tpu.memory_space<vmem>>, vector<8x256xf32>
    tpu.vector_store %arg18[%c56_94, %c0_95], %335 {strides = array<i32>} : memref<64x512xf32, #tpu.memory_space<vmem>>, vector<8x256xf32>,
    %c0_96 = arith.constant 0 : index
    %c1024_97 = arith.constant 1024 : index
    %337 = vector.load %arg17[%c0_96, %c1024_97] : memref<64x2048xf32, #tpu.memory_space<vmem>>, vector<8x1024xf32>
    %338 = arith.truncf %314 : vector<8x256xf32> to vector<8x256xbf16>
    %cst_98 = arith.constant dense<0.000000e+00> : vector<8x1024xf32>
    %339 = tpu.matmul %338, %17, %cst_98 {dimension_numbers = #tpu.dot_dimension_numbers<[1], [0], [0], [1], [0, 0, 1, 1], [], []>} : vector<8x256xbf16>, vector<256x1024xbf16>, vector<8x1024xf32> -> vector<8x1024xf32>
    %340 = arith.addf %337, %339 : vector<8x1024xf32>
    %341 = vector.extract_strided_slice %340 {offsets = [0, 0], sizes = [8, 768], strides = [1, 1]} : vector<8x1024xf32> to vector<8x768xf32>
    %342 = arith.negf %341 : vector<8x768xf32>
    %343 = math.exp %342 : vector<8x768xf32>
    %cst_99 = arith.constant 1.000000e+00 : f32
    %344 = vector.broadcast %cst_99 : f32 to vector<8x768xf32>
    %345 = arith.addf %344, %343 : vector<8x768xf32>
    %346 = arith.divf %344, %345 : vector<8x768xf32>
    %347 = vector.extract_strided_slice %346 {offsets = [0, 0], sizes = [8, 256], strides = [1, 1]} : vector<8x768xf32> to vector<8x256xf32>
    %348 = vector.extract_strided_slice %346 {offsets = [0, 256], sizes = [8, 256], strides = [1, 1]} : vector<8x768xf32> to vector<8x256xf32>
    %349 = vector.extract_strided_slice %346 {offsets = [0, 512], sizes = [8, 256], strides = [1, 1]} : vector<8x768xf32> to vector<8x256xf32>
    %350 = vector.extract_strided_slice %340 {offsets = [0, 768], sizes = [8, 256], strides = [1, 1]} : vector<8x1024xf32> to vector<8x256xf32>
    %351 = math.tanh %350 : vector<8x256xf32>
    %352 = arith.mulf %348, %312 : vector<8x256xf32>
    %353 = arith.mulf %347, %351 : vector<8x256xf32>
    %354 = arith.addf %352, %353 : vector<8x256xf32>
    %355 = math.tanh %354 : vector<8x256xf32>
    %356 = arith.mulf %349, %355 : vector<8x256xf32>
    %c0_100 = arith.constant 0 : index
    %c256_101 = arith.constant 256 : index
    %357 = vector.load %arg18[%c0_100, %c256_101] : memref<64x512xf32, #tpu.memory_space<vmem>>, vector<8x256xf32>
    tpu.vector_store %arg18[%c0_100, %c256_101], %356 {strides = array<i32>} : memref<64x512xf32, #tpu.memory_space<vmem>>, vector<8x256xf32>,
    %c0_i32_102 = arith.constant 0 : i32
    %358 = tpu.memref_slice %arg24[%c0_i32_102] : memref<4x!tpu.dma_semaphore, #tpu.memory_space<semaphore_mem>> -> memref<1x!tpu.dma_semaphore, #tpu.memory_space<semaphore_mem>>
    %359 = tpu.memref_squeeze %358 : memref<1x!tpu.dma_semaphore, #tpu.memory_space<semaphore_mem>> -> memref<!tpu.dma_semaphore, #tpu.memory_space<semaphore_mem>>
    tpu.wait_dma2 semaphore(%359 : memref<!tpu.dma_semaphore, #tpu.memory_space<semaphore_mem>>) src(%arg12 : memref<512x1024xbf16, #tpu.memory_space<any>>) dst(%arg20 : memref<512x1024xbf16, #tpu.memory_space<vmem>>)
    %c1_i32_103 = arith.constant 1 : i32
    %360 = tpu.memref_slice %arg24[%c1_i32_103] : memref<4x!tpu.dma_semaphore, #tpu.memory_space<semaphore_mem>> -> memref<1x!tpu.dma_semaphore, #tpu.memory_space<semaphore_mem>>
    %361 = tpu.memref_squeeze %360 : memref<1x!tpu.dma_semaphore, #tpu.memory_space<semaphore_mem>> -> memref<!tpu.dma_semaphore, #tpu.memory_space<semaphore_mem>>
    tpu.wait_dma2 semaphore(%361 : memref<!tpu.dma_semaphore, #tpu.memory_space<semaphore_mem>>) src(%arg13 : memref<128x512xbf16, #tpu.memory_space<any>>) dst(%arg21 : memref<128x512xbf16, #tpu.memory_space<vmem>>)
    %c0_104 = arith.constant 0 : index
    %c0_105 = arith.constant 0 : index
    %362 = vector.load %arg18[%c0_104, %c0_105] : memref<64x512xf32, #tpu.memory_space<vmem>>, vector<64x512xf32>
    %363 = arith.truncf %362 : vector<64x512xf32> to vector<64x512xbf16>
    %c0_106 = arith.constant 0 : index
    %c0_107 = arith.constant 0 : index
    %364 = vector.load %arg20[%c0_106, %c0_107] : memref<512x1024xbf16, #tpu.memory_space<vmem>>, vector<512x1024xbf16>
    %cst_108 = arith.constant dense<0.000000e+00> : vector<64x1024xf32>
    %365 = tpu.matmul %363, %364, %cst_108 {dimension_numbers = #tpu.dot_dimension_numbers<[1], [0], [0], [1], [0, 0, 1, 1], [], []>} : vector<64x512xbf16>, vector<512x1024xbf16>, vector<64x1024xf32> -> vector<64x1024xf32>
    %c0_109 = arith.constant 0 : index
    %c0_110 = arith.constant 0 : index
    %366 = vector.load %arg5[%c0_109, %c0_110] : memref<1x512xf32, #tpu.memory_space<vmem>>, vector<1x512xf32>
    %367 = vector.extract_strided_slice %365 {offsets = [0, 0], sizes = [8, 512], strides = [1, 1]} : vector<64x1024xf32> to vector<8x512xf32>
    %368 = vector.extract_strided_slice %365 {offsets = [56, 512], sizes = [8, 512], strides = [1, 1]} : vector<64x1024xf32> to vector<8x512xf32>
    %369 = arith.addf %367, %368 : vector<8x512xf32>
    %370 = vector.broadcast %366 : vector<1x512xf32> to vector<8x512xf32>
    %371 = arith.addf %369, %370 : vector<8x512xf32>
    %c0_111 = arith.constant 0 : index
    %c0_112 = arith.constant 0 : index
    %372 = vector.load %arg19[%c0_111, %c0_112] : memref<64x512xf32, #tpu.memory_space<vmem>>, vector<8x512xf32>
    tpu.vector_store %arg19[%c0_111, %c0_112], %371 {strides = array<i32>} : memref<64x512xf32, #tpu.memory_space<vmem>>, vector<8x512xf32>,
    %373 = vector.extract_strided_slice %365 {offsets = [8, 0], sizes = [8, 512], strides = [1, 1]} : vector<64x1024xf32> to vector<8x512xf32>
    %374 = vector.extract_strided_slice %365 {offsets = [48, 512], sizes = [8, 512], strides = [1, 1]} : vector<64x1024xf32> to vector<8x512xf32>
    %375 = arith.addf %373, %374 : vector<8x512xf32>
    %376 = vector.broadcast %366 : vector<1x512xf32> to vector<8x512xf32>
    %377 = arith.addf %375, %376 : vector<8x512xf32>
    %c8_113 = arith.constant 8 : index
    %c0_114 = arith.constant 0 : index
    %378 = vector.load %arg19[%c8_113, %c0_114] : memref<64x512xf32, #tpu.memory_space<vmem>>, vector<8x512xf32>
    tpu.vector_store %arg19[%c8_113, %c0_114], %377 {strides = array<i32>} : memref<64x512xf32, #tpu.memory_space<vmem>>, vector<8x512xf32>,
    %379 = vector.extract_strided_slice %365 {offsets = [16, 0], sizes = [8, 512], strides = [1, 1]} : vector<64x1024xf32> to vector<8x512xf32>
    %380 = vector.extract_strided_slice %365 {offsets = [40, 512], sizes = [8, 512], strides = [1, 1]} : vector<64x1024xf32> to vector<8x512xf32>
    %381 = arith.addf %379, %380 : vector<8x512xf32>
    %382 = vector.broadcast %366 : vector<1x512xf32> to vector<8x512xf32>
    %383 = arith.addf %381, %382 : vector<8x512xf32>
    %c16_115 = arith.constant 16 : index
    %c0_116 = arith.constant 0 : index
    %384 = vector.load %arg19[%c16_115, %c0_116] : memref<64x512xf32, #tpu.memory_space<vmem>>, vector<8x512xf32>
    tpu.vector_store %arg19[%c16_115, %c0_116], %383 {strides = array<i32>} : memref<64x512xf32, #tpu.memory_space<vmem>>, vector<8x512xf32>,
    %385 = vector.extract_strided_slice %365 {offsets = [24, 0], sizes = [8, 512], strides = [1, 1]} : vector<64x1024xf32> to vector<8x512xf32>
    %386 = vector.extract_strided_slice %365 {offsets = [32, 512], sizes = [8, 512], strides = [1, 1]} : vector<64x1024xf32> to vector<8x512xf32>
    %387 = arith.addf %385, %386 : vector<8x512xf32>
    %388 = vector.broadcast %366 : vector<1x512xf32> to vector<8x512xf32>
    %389 = arith.addf %387, %388 : vector<8x512xf32>
    %c24_117 = arith.constant 24 : index
    %c0_118 = arith.constant 0 : index
    %390 = vector.load %arg19[%c24_117, %c0_118] : memref<64x512xf32, #tpu.memory_space<vmem>>, vector<8x512xf32>
    tpu.vector_store %arg19[%c24_117, %c0_118], %389 {strides = array<i32>} : memref<64x512xf32, #tpu.memory_space<vmem>>, vector<8x512xf32>,
    %391 = vector.extract_strided_slice %365 {offsets = [32, 0], sizes = [8, 512], strides = [1, 1]} : vector<64x1024xf32> to vector<8x512xf32>
    %392 = vector.extract_strided_slice %365 {offsets = [24, 512], sizes = [8, 512], strides = [1, 1]} : vector<64x1024xf32> to vector<8x512xf32>
    %393 = arith.addf %391, %392 : vector<8x512xf32>
    %394 = vector.broadcast %366 : vector<1x512xf32> to vector<8x512xf32>
    %395 = arith.addf %393, %394 : vector<8x512xf32>
    %c32_119 = arith.constant 32 : index
    %c0_120 = arith.constant 0 : index
    %396 = vector.load %arg19[%c32_119, %c0_120] : memref<64x512xf32, #tpu.memory_space<vmem>>, vector<8x512xf32>
    tpu.vector_store %arg19[%c32_119, %c0_120], %395 {strides = array<i32>} : memref<64x512xf32, #tpu.memory_space<vmem>>, vector<8x512xf32>,
    %397 = vector.extract_strided_slice %365 {offsets = [40, 0], sizes = [8, 512], strides = [1, 1]} : vector<64x1024xf32> to vector<8x512xf32>
    %398 = vector.extract_strided_slice %365 {offsets = [16, 512], sizes = [8, 512], strides = [1, 1]} : vector<64x1024xf32> to vector<8x512xf32>
    %399 = arith.addf %397, %398 : vector<8x512xf32>
    %400 = vector.broadcast %366 : vector<1x512xf32> to vector<8x512xf32>
    %401 = arith.addf %399, %400 : vector<8x512xf32>
    %c40_121 = arith.constant 40 : index
    %c0_122 = arith.constant 0 : index
    %402 = vector.load %arg19[%c40_121, %c0_122] : memref<64x512xf32, #tpu.memory_space<vmem>>, vector<8x512xf32>
    tpu.vector_store %arg19[%c40_121, %c0_122], %401 {strides = array<i32>} : memref<64x512xf32, #tpu.memory_space<vmem>>, vector<8x512xf32>,
    %403 = vector.extract_strided_slice %365 {offsets = [48, 0], sizes = [8, 512], strides = [1, 1]} : vector<64x1024xf32> to vector<8x512xf32>
    %404 = vector.extract_strided_slice %365 {offsets = [8, 512], sizes = [8, 512], strides = [1, 1]} : vector<64x1024xf32> to vector<8x512xf32>
    %405 = arith.addf %403, %404 : vector<8x512xf32>
    %406 = vector.broadcast %366 : vector<1x512xf32> to vector<8x512xf32>
    %407 = arith.addf %405, %406 : vector<8x512xf32>
    %c48_123 = arith.constant 48 : index
    %c0_124 = arith.constant 0 : index
    %408 = vector.load %arg19[%c48_123, %c0_124] : memref<64x512xf32, #tpu.memory_space<vmem>>, vector<8x512xf32>
    tpu.vector_store %arg19[%c48_123, %c0_124], %407 {strides = array<i32>} : memref<64x512xf32, #tpu.memory_space<vmem>>, vector<8x512xf32>,
    %409 = vector.extract_strided_slice %365 {offsets = [56, 0], sizes = [8, 512], strides = [1, 1]} : vector<64x1024xf32> to vector<8x512xf32>
    %410 = vector.extract_strided_slice %365 {offsets = [0, 512], sizes = [8, 512], strides = [1, 1]} : vector<64x1024xf32> to vector<8x512xf32>
    %411 = arith.addf %409, %410 : vector<8x512xf32>
    %412 = vector.broadcast %366 : vector<1x512xf32> to vector<8x512xf32>
    %413 = arith.addf %411, %412 : vector<8x512xf32>
    %c56_125 = arith.constant 56 : index
    %c0_126 = arith.constant 0 : index
    %414 = vector.load %arg19[%c56_125, %c0_126] : memref<64x512xf32, #tpu.memory_space<vmem>>, vector<8x512xf32>
    tpu.vector_store %arg19[%c56_125, %c0_126], %413 {strides = array<i32>} : memref<64x512xf32, #tpu.memory_space<vmem>>, vector<8x512xf32>,
    %c0_127 = arith.constant 0 : index
    %c0_128 = arith.constant 0 : index
    %415 = vector.load %arg21[%c0_127, %c0_128] : memref<128x512xbf16, #tpu.memory_space<vmem>>, vector<128x512xbf16>
    %cst_129 = arith.constant 0.000000e+00 : f32
    %416 = vector.broadcast %cst_129 : f32 to vector<8x128xf32>
    %cst_130 = arith.constant 0.000000e+00 : f32
    %417 = vector.broadcast %cst_130 : f32 to vector<8x128xf32>
    %c0_131 = arith.constant 0 : index
    %c0_132 = arith.constant 0 : index
    %418 = vector.load %arg19[%c0_131, %c0_132] : memref<64x512xf32, #tpu.memory_space<vmem>>, vector<8x512xf32>
    %419 = arith.truncf %416 : vector<8x128xf32> to vector<8x128xbf16>
    %cst_133 = arith.constant dense<0.000000e+00> : vector<8x512xf32>
    %420 = tpu.matmul %419, %415, %cst_133 {dimension_numbers = #tpu.dot_dimension_numbers<[1], [0], [0], [1], [0, 0, 1, 1], [], []>} : vector<8x128xbf16>, vector<128x512xbf16>, vector<8x512xf32> -> vector<8x512xf32>
    %421 = arith.addf %418, %420 : vector<8x512xf32>
    %422 = vector.extract_strided_slice %421 {offsets = [0, 0], sizes = [8, 384], strides = [1, 1]} : vector<8x512xf32> to vector<8x384xf32>
    %423 = arith.negf %422 : vector<8x384xf32>
    %424 = math.exp %423 : vector<8x384xf32>
    %cst_134 = arith.constant 1.000000e+00 : f32
    %425 = vector.broadcast %cst_134 : f32 to vector<8x384xf32>
    %426 = arith.addf %425, %424 : vector<8x384xf32>
    %427 = arith.divf %425, %426 : vector<8x384xf32>
    %428 = vector.extract_strided_slice %427 {offsets = [0, 0], sizes = [8, 128], strides = [1, 1]} : vector<8x384xf32> to vector<8x128xf32>
    %429 = vector.extract_strided_slice %427 {offsets = [0, 128], sizes = [8, 128], strides = [1, 1]} : vector<8x384xf32> to vector<8x128xf32>
    %430 = vector.extract_strided_slice %427 {offsets = [0, 256], sizes = [8, 128], strides = [1, 1]} : vector<8x384xf32> to vector<8x128xf32>
    %431 = vector.extract_strided_slice %421 {offsets = [0, 384], sizes = [8, 128], strides = [1, 1]} : vector<8x512xf32> to vector<8x128xf32>
    %432 = math.tanh %431 : vector<8x128xf32>
    %433 = arith.mulf %429, %417 : vector<8x128xf32>
    %434 = arith.mulf %428, %432 : vector<8x128xf32>
    %435 = arith.addf %433, %434 : vector<8x128xf32>
    %436 = math.tanh %435 : vector<8x128xf32>
    %437 = arith.mulf %430, %436 : vector<8x128xf32>
    %c8_135 = arith.constant 8 : index
    %c0_136 = arith.constant 0 : index
    %438 = vector.load %arg19[%c8_135, %c0_136] : memref<64x512xf32, #tpu.memory_space<vmem>>, vector<8x512xf32>
    %439 = arith.truncf %437 : vector<8x128xf32> to vector<8x128xbf16>
    %cst_137 = arith.constant dense<0.000000e+00> : vector<8x512xf32>
    %440 = tpu.matmul %439, %415, %cst_137 {dimension_numbers = #tpu.dot_dimension_numbers<[1], [0], [0], [1], [0, 0, 1, 1], [], []>} : vector<8x128xbf16>, vector<128x512xbf16>, vector<8x512xf32> -> vector<8x512xf32>
    %441 = arith.addf %438, %440 : vector<8x512xf32>
    %442 = vector.extract_strided_slice %441 {offsets = [0, 0], sizes = [8, 384], strides = [1, 1]} : vector<8x512xf32> to vector<8x384xf32>
    %443 = arith.negf %442 : vector<8x384xf32>
    %444 = math.exp %443 : vector<8x384xf32>
    %cst_138 = arith.constant 1.000000e+00 : f32
    %445 = vector.broadcast %cst_138 : f32 to vector<8x384xf32>
    %446 = arith.addf %445, %444 : vector<8x384xf32>
    %447 = arith.divf %445, %446 : vector<8x384xf32>
    %448 = vector.extract_strided_slice %447 {offsets = [0, 0], sizes = [8, 128], strides = [1, 1]} : vector<8x384xf32> to vector<8x128xf32>
    %449 = vector.extract_strided_slice %447 {offsets = [0, 128], sizes = [8, 128], strides = [1, 1]} : vector<8x384xf32> to vector<8x128xf32>
    %450 = vector.extract_strided_slice %447 {offsets = [0, 256], sizes = [8, 128], strides = [1, 1]} : vector<8x384xf32> to vector<8x128xf32>
    %451 = vector.extract_strided_slice %441 {offsets = [0, 384], sizes = [8, 128], strides = [1, 1]} : vector<8x512xf32> to vector<8x128xf32>
    %452 = math.tanh %451 : vector<8x128xf32>
    %453 = arith.mulf %449, %435 : vector<8x128xf32>
    %454 = arith.mulf %448, %452 : vector<8x128xf32>
    %455 = arith.addf %453, %454 : vector<8x128xf32>
    %456 = math.tanh %455 : vector<8x128xf32>
    %457 = arith.mulf %450, %456 : vector<8x128xf32>
    %c16_139 = arith.constant 16 : index
    %c0_140 = arith.constant 0 : index
    %458 = vector.load %arg19[%c16_139, %c0_140] : memref<64x512xf32, #tpu.memory_space<vmem>>, vector<8x512xf32>
    %459 = arith.truncf %457 : vector<8x128xf32> to vector<8x128xbf16>
    %cst_141 = arith.constant dense<0.000000e+00> : vector<8x512xf32>
    %460 = tpu.matmul %459, %415, %cst_141 {dimension_numbers = #tpu.dot_dimension_numbers<[1], [0], [0], [1], [0, 0, 1, 1], [], []>} : vector<8x128xbf16>, vector<128x512xbf16>, vector<8x512xf32> -> vector<8x512xf32>
    %461 = arith.addf %458, %460 : vector<8x512xf32>
    %462 = vector.extract_strided_slice %461 {offsets = [0, 0], sizes = [8, 384], strides = [1, 1]} : vector<8x512xf32> to vector<8x384xf32>
    %463 = arith.negf %462 : vector<8x384xf32>
    %464 = math.exp %463 : vector<8x384xf32>
    %cst_142 = arith.constant 1.000000e+00 : f32
    %465 = vector.broadcast %cst_142 : f32 to vector<8x384xf32>
    %466 = arith.addf %465, %464 : vector<8x384xf32>
    %467 = arith.divf %465, %466 : vector<8x384xf32>
    %468 = vector.extract_strided_slice %467 {offsets = [0, 0], sizes = [8, 128], strides = [1, 1]} : vector<8x384xf32> to vector<8x128xf32>
    %469 = vector.extract_strided_slice %467 {offsets = [0, 128], sizes = [8, 128], strides = [1, 1]} : vector<8x384xf32> to vector<8x128xf32>
    %470 = vector.extract_strided_slice %467 {offsets = [0, 256], sizes = [8, 128], strides = [1, 1]} : vector<8x384xf32> to vector<8x128xf32>
    %471 = vector.extract_strided_slice %461 {offsets = [0, 384], sizes = [8, 128], strides = [1, 1]} : vector<8x512xf32> to vector<8x128xf32>
    %472 = math.tanh %471 : vector<8x128xf32>
    %473 = arith.mulf %469, %455 : vector<8x128xf32>
    %474 = arith.mulf %468, %472 : vector<8x128xf32>
    %475 = arith.addf %473, %474 : vector<8x128xf32>
    %476 = math.tanh %475 : vector<8x128xf32>
    %477 = arith.mulf %470, %476 : vector<8x128xf32>
    %c24_143 = arith.constant 24 : index
    %c0_144 = arith.constant 0 : index
    %478 = vector.load %arg19[%c24_143, %c0_144] : memref<64x512xf32, #tpu.memory_space<vmem>>, vector<8x512xf32>
    %479 = arith.truncf %477 : vector<8x128xf32> to vector<8x128xbf16>
    %cst_145 = arith.constant dense<0.000000e+00> : vector<8x512xf32>
    %480 = tpu.matmul %479, %415, %cst_145 {dimension_numbers = #tpu.dot_dimension_numbers<[1], [0], [0], [1], [0, 0, 1, 1], [], []>} : vector<8x128xbf16>, vector<128x512xbf16>, vector<8x512xf32> -> vector<8x512xf32>
    %481 = arith.addf %478, %480 : vector<8x512xf32>
    %482 = vector.extract_strided_slice %481 {offsets = [0, 0], sizes = [8, 384], strides = [1, 1]} : vector<8x512xf32> to vector<8x384xf32>
    %483 = arith.negf %482 : vector<8x384xf32>
    %484 = math.exp %483 : vector<8x384xf32>
    %cst_146 = arith.constant 1.000000e+00 : f32
    %485 = vector.broadcast %cst_146 : f32 to vector<8x384xf32>
    %486 = arith.addf %485, %484 : vector<8x384xf32>
    %487 = arith.divf %485, %486 : vector<8x384xf32>
    %488 = vector.extract_strided_slice %487 {offsets = [0, 0], sizes = [8, 128], strides = [1, 1]} : vector<8x384xf32> to vector<8x128xf32>
    %489 = vector.extract_strided_slice %487 {offsets = [0, 128], sizes = [8, 128], strides = [1, 1]} : vector<8x384xf32> to vector<8x128xf32>
    %490 = vector.extract_strided_slice %487 {offsets = [0, 256], sizes = [8, 128], strides = [1, 1]} : vector<8x384xf32> to vector<8x128xf32>
    %491 = vector.extract_strided_slice %481 {offsets = [0, 384], sizes = [8, 128], strides = [1, 1]} : vector<8x512xf32> to vector<8x128xf32>
    %492 = math.tanh %491 : vector<8x128xf32>
    %493 = arith.mulf %489, %475 : vector<8x128xf32>
    %494 = arith.mulf %488, %492 : vector<8x128xf32>
    %495 = arith.addf %493, %494 : vector<8x128xf32>
    %496 = math.tanh %495 : vector<8x128xf32>
    %497 = arith.mulf %490, %496 : vector<8x128xf32>
    %c32_147 = arith.constant 32 : index
    %c0_148 = arith.constant 0 : index
    %498 = vector.load %arg19[%c32_147, %c0_148] : memref<64x512xf32, #tpu.memory_space<vmem>>, vector<8x512xf32>
    %499 = arith.truncf %497 : vector<8x128xf32> to vector<8x128xbf16>
    %cst_149 = arith.constant dense<0.000000e+00> : vector<8x512xf32>
    %500 = tpu.matmul %499, %415, %cst_149 {dimension_numbers = #tpu.dot_dimension_numbers<[1], [0], [0], [1], [0, 0, 1, 1], [], []>} : vector<8x128xbf16>, vector<128x512xbf16>, vector<8x512xf32> -> vector<8x512xf32>
    %501 = arith.addf %498, %500 : vector<8x512xf32>
    %502 = vector.extract_strided_slice %501 {offsets = [0, 0], sizes = [8, 384], strides = [1, 1]} : vector<8x512xf32> to vector<8x384xf32>
    %503 = arith.negf %502 : vector<8x384xf32>
    %504 = math.exp %503 : vector<8x384xf32>
    %cst_150 = arith.constant 1.000000e+00 : f32
    %505 = vector.broadcast %cst_150 : f32 to vector<8x384xf32>
    %506 = arith.addf %505, %504 : vector<8x384xf32>
    %507 = arith.divf %505, %506 : vector<8x384xf32>
    %508 = vector.extract_strided_slice %507 {offsets = [0, 0], sizes = [8, 128], strides = [1, 1]} : vector<8x384xf32> to vector<8x128xf32>
    %509 = vector.extract_strided_slice %507 {offsets = [0, 128], sizes = [8, 128], strides = [1, 1]} : vector<8x384xf32> to vector<8x128xf32>
    %510 = vector.extract_strided_slice %507 {offsets = [0, 256], sizes = [8, 128], strides = [1, 1]} : vector<8x384xf32> to vector<8x128xf32>
    %511 = vector.extract_strided_slice %501 {offsets = [0, 384], sizes = [8, 128], strides = [1, 1]} : vector<8x512xf32> to vector<8x128xf32>
    %512 = math.tanh %511 : vector<8x128xf32>
    %513 = arith.mulf %509, %495 : vector<8x128xf32>
    %514 = arith.mulf %508, %512 : vector<8x128xf32>
    %515 = arith.addf %513, %514 : vector<8x128xf32>
    %516 = math.tanh %515 : vector<8x128xf32>
    %517 = arith.mulf %510, %516 : vector<8x128xf32>
    %c40_151 = arith.constant 40 : index
    %c0_152 = arith.constant 0 : index
    %518 = vector.load %arg19[%c40_151, %c0_152] : memref<64x512xf32, #tpu.memory_space<vmem>>, vector<8x512xf32>
    %519 = arith.truncf %517 : vector<8x128xf32> to vector<8x128xbf16>
    %cst_153 = arith.constant dense<0.000000e+00> : vector<8x512xf32>
    %520 = tpu.matmul %519, %415, %cst_153 {dimension_numbers = #tpu.dot_dimension_numbers<[1], [0], [0], [1], [0, 0, 1, 1], [], []>} : vector<8x128xbf16>, vector<128x512xbf16>, vector<8x512xf32> -> vector<8x512xf32>
    %521 = arith.addf %518, %520 : vector<8x512xf32>
    %522 = vector.extract_strided_slice %521 {offsets = [0, 0], sizes = [8, 384], strides = [1, 1]} : vector<8x512xf32> to vector<8x384xf32>
    %523 = arith.negf %522 : vector<8x384xf32>
    %524 = math.exp %523 : vector<8x384xf32>
    %cst_154 = arith.constant 1.000000e+00 : f32
    %525 = vector.broadcast %cst_154 : f32 to vector<8x384xf32>
    %526 = arith.addf %525, %524 : vector<8x384xf32>
    %527 = arith.divf %525, %526 : vector<8x384xf32>
    %528 = vector.extract_strided_slice %527 {offsets = [0, 0], sizes = [8, 128], strides = [1, 1]} : vector<8x384xf32> to vector<8x128xf32>
    %529 = vector.extract_strided_slice %527 {offsets = [0, 128], sizes = [8, 128], strides = [1, 1]} : vector<8x384xf32> to vector<8x128xf32>
    %530 = vector.extract_strided_slice %527 {offsets = [0, 256], sizes = [8, 128], strides = [1, 1]} : vector<8x384xf32> to vector<8x128xf32>
    %531 = vector.extract_strided_slice %521 {offsets = [0, 384], sizes = [8, 128], strides = [1, 1]} : vector<8x512xf32> to vector<8x128xf32>
    %532 = math.tanh %531 : vector<8x128xf32>
    %533 = arith.mulf %529, %515 : vector<8x128xf32>
    %534 = arith.mulf %528, %532 : vector<8x128xf32>
    %535 = arith.addf %533, %534 : vector<8x128xf32>
    %536 = math.tanh %535 : vector<8x128xf32>
    %537 = arith.mulf %530, %536 : vector<8x128xf32>
    %c48_155 = arith.constant 48 : index
    %c0_156 = arith.constant 0 : index
    %538 = vector.load %arg19[%c48_155, %c0_156] : memref<64x512xf32, #tpu.memory_space<vmem>>, vector<8x512xf32>
    %539 = arith.truncf %537 : vector<8x128xf32> to vector<8x128xbf16>
    %cst_157 = arith.constant dense<0.000000e+00> : vector<8x512xf32>
    %540 = tpu.matmul %539, %415, %cst_157 {dimension_numbers = #tpu.dot_dimension_numbers<[1], [0], [0], [1], [0, 0, 1, 1], [], []>} : vector<8x128xbf16>, vector<128x512xbf16>, vector<8x512xf32> -> vector<8x512xf32>
    %541 = arith.addf %538, %540 : vector<8x512xf32>
    %542 = vector.extract_strided_slice %541 {offsets = [0, 0], sizes = [8, 384], strides = [1, 1]} : vector<8x512xf32> to vector<8x384xf32>
    %543 = arith.negf %542 : vector<8x384xf32>
    %544 = math.exp %543 : vector<8x384xf32>
    %cst_158 = arith.constant 1.000000e+00 : f32
    %545 = vector.broadcast %cst_158 : f32 to vector<8x384xf32>
    %546 = arith.addf %545, %544 : vector<8x384xf32>
    %547 = arith.divf %545, %546 : vector<8x384xf32>
    %548 = vector.extract_strided_slice %547 {offsets = [0, 0], sizes = [8, 128], strides = [1, 1]} : vector<8x384xf32> to vector<8x128xf32>
    %549 = vector.extract_strided_slice %547 {offsets = [0, 128], sizes = [8, 128], strides = [1, 1]} : vector<8x384xf32> to vector<8x128xf32>
    %550 = vector.extract_strided_slice %547 {offsets = [0, 256], sizes = [8, 128], strides = [1, 1]} : vector<8x384xf32> to vector<8x128xf32>
    %551 = vector.extract_strided_slice %541 {offsets = [0, 384], sizes = [8, 128], strides = [1, 1]} : vector<8x512xf32> to vector<8x128xf32>
    %552 = math.tanh %551 : vector<8x128xf32>
    %553 = arith.mulf %549, %535 : vector<8x128xf32>
    %554 = arith.mulf %548, %552 : vector<8x128xf32>
    %555 = arith.addf %553, %554 : vector<8x128xf32>
    %556 = math.tanh %555 : vector<8x128xf32>
    %557 = arith.mulf %550, %556 : vector<8x128xf32>
    %c56_159 = arith.constant 56 : index
    %c0_160 = arith.constant 0 : index
    %558 = vector.load %arg19[%c56_159, %c0_160] : memref<64x512xf32, #tpu.memory_space<vmem>>, vector<8x512xf32>
    %559 = arith.truncf %557 : vector<8x128xf32> to vector<8x128xbf16>
    %cst_161 = arith.constant dense<0.000000e+00> : vector<8x512xf32>
    %560 = tpu.matmul %559, %415, %cst_161 {dimension_numbers = #tpu.dot_dimension_numbers<[1], [0], [0], [1], [0, 0, 1, 1], [], []>} : vector<8x128xbf16>, vector<128x512xbf16>, vector<8x512xf32> -> vector<8x512xf32>
    %561 = arith.addf %558, %560 : vector<8x512xf32>
    %562 = vector.extract_strided_slice %561 {offsets = [0, 0], sizes = [8, 384], strides = [1, 1]} : vector<8x512xf32> to vector<8x384xf32>
    %563 = arith.negf %562 : vector<8x384xf32>
    %564 = math.exp %563 : vector<8x384xf32>
    %cst_162 = arith.constant 1.000000e+00 : f32
    %565 = vector.broadcast %cst_162 : f32 to vector<8x384xf32>
    %566 = arith.addf %565, %564 : vector<8x384xf32>
    %567 = arith.divf %565, %566 : vector<8x384xf32>
    %568 = vector.extract_strided_slice %567 {offsets = [0, 0], sizes = [8, 128], strides = [1, 1]} : vector<8x384xf32> to vector<8x128xf32>
    %569 = vector.extract_strided_slice %567 {offsets = [0, 128], sizes = [8, 128], strides = [1, 1]} : vector<8x384xf32> to vector<8x128xf32>
    %570 = vector.extract_strided_slice %567 {offsets = [0, 256], sizes = [8, 128], strides = [1, 1]} : vector<8x384xf32> to vector<8x128xf32>
    %571 = vector.extract_strided_slice %561 {offsets = [0, 384], sizes = [8, 128], strides = [1, 1]} : vector<8x512xf32> to vector<8x128xf32>
    %572 = math.tanh %571 : vector<8x128xf32>
    %573 = arith.mulf %569, %555 : vector<8x128xf32>
    %574 = arith.mulf %568, %572 : vector<8x128xf32>
    %575 = arith.addf %573, %574 : vector<8x128xf32>
    %576 = math.tanh %575 : vector<8x128xf32>
    %577 = arith.mulf %570, %576 : vector<8x128xf32>
    %578 = tpu.iota {dimensions = array<i32: 1>} : vector<8x128xi32>
    %c64_i32 = arith.constant 64 : i32
    %579 = vector.broadcast %c64_i32 : i32 to vector<8x128xi32>
    %580 = arith.cmpi slt, %578, %579 : vector<8x128xi32>
    %581 = arith.select %580, %577, %437 : vector<8x128xi1>, vector<8x128xf32>
    %c2_i32_163 = arith.constant 2 : i32
    %582 = tpu.memref_slice %arg24[%c2_i32_163] : memref<4x!tpu.dma_semaphore, #tpu.memory_space<semaphore_mem>> -> memref<1x!tpu.dma_semaphore, #tpu.memory_space<semaphore_mem>>
    %583 = tpu.memref_squeeze %582 : memref<1x!tpu.dma_semaphore, #tpu.memory_space<semaphore_mem>> -> memref<!tpu.dma_semaphore, #tpu.memory_space<semaphore_mem>>
    tpu.wait_dma2 semaphore(%583 : memref<!tpu.dma_semaphore, #tpu.memory_space<semaphore_mem>>) src(%arg14 : memref<128x128xbf16, #tpu.memory_space<any>>) dst(%arg22 : memref<128x128xbf16, #tpu.memory_space<vmem>>)
    %c3_i32_164 = arith.constant 3 : i32
    %584 = tpu.memref_slice %arg24[%c3_i32_164] : memref<4x!tpu.dma_semaphore, #tpu.memory_space<semaphore_mem>> -> memref<1x!tpu.dma_semaphore, #tpu.memory_space<semaphore_mem>>
    %585 = tpu.memref_squeeze %584 : memref<1x!tpu.dma_semaphore, #tpu.memory_space<semaphore_mem>> -> memref<!tpu.dma_semaphore, #tpu.memory_space<semaphore_mem>>
    tpu.wait_dma2 semaphore(%585 : memref<!tpu.dma_semaphore, #tpu.memory_space<semaphore_mem>>) src(%arg15 : memref<128x128xbf16, #tpu.memory_space<any>>) dst(%arg23 : memref<128x128xbf16, #tpu.memory_space<vmem>>)
    %586 = arith.truncf %581 : vector<8x128xf32> to vector<8x128xbf16>
    %c0_165 = arith.constant 0 : index
    %c0_166 = arith.constant 0 : index
    %587 = vector.load %arg22[%c0_165, %c0_166] : memref<128x128xbf16, #tpu.memory_space<vmem>>, vector<128x128xbf16>
    %cst_167 = arith.constant dense<0.000000e+00> : vector<8x128xf32>
    %588 = tpu.matmul %586, %587, %cst_167 {dimension_numbers = #tpu.dot_dimension_numbers<[1], [0], [0], [1], [0, 0, 1, 1], [], []>} : vector<8x128xbf16>, vector<128x128xbf16>, vector<8x128xf32> -> vector<8x128xf32>
    %c0_168 = arith.constant 0 : index
    %c0_169 = arith.constant 0 : index
    %589 = vector.load %arg6[%c0_168, %c0_169] : memref<1x128xf32, #tpu.memory_space<vmem>>, vector<1x128xf32>
    %590 = vector.broadcast %589 : vector<1x128xf32> to vector<8x128xf32>
    %591 = arith.addf %588, %590 : vector<8x128xf32>
    %592 = math.tanh %591 : vector<8x128xf32>
    %593 = arith.truncf %592 : vector<8x128xf32> to vector<8x128xbf16>
    %c0_170 = arith.constant 0 : index
    %c0_171 = arith.constant 0 : index
    %594 = vector.load %arg7[%c0_170, %c0_171] : memref<128x1xbf16, #tpu.memory_space<vmem>>, vector<128x1xbf16>
    %cst_172 = arith.constant dense<0.000000e+00> : vector<8x1xf32>
    %595 = tpu.matmul %593, %594, %cst_172 {dimension_numbers = #tpu.dot_dimension_numbers<[1], [0], [0], [1], [0, 0, 1, 1], [], []>} : vector<8x128xbf16>, vector<128x1xbf16>, vector<8x1xf32> -> vector<8x1xf32>
    %c0_173 = arith.constant 0 : index
    %c0_174 = arith.constant 0 : index
    %596 = vector.load %arg8[%c0_173, %c0_174] : memref<1x1xf32, #tpu.memory_space<vmem>>, vector<1x1xf32>
    %597 = vector.broadcast %596 : vector<1x1xf32> to vector<8x1xf32>
    %598 = arith.addf %595, %597 : vector<8x1xf32>
    %599 = tpu.iota {dimensions = array<i32: 0>} : vector<8x1xi32>
    %c4_i32 = arith.constant 4 : i32
    %600 = vector.broadcast %c4_i32 : i32 to vector<8x1xi32>
    %601 = arith.cmpi slt, %599, %600 : vector<8x1xi32>
    %cst_175 = arith.constant -1.000000e+30 : f32
    %602 = vector.broadcast %cst_175 : f32 to vector<8x1xf32>
    %603 = arith.select %601, %598, %602 : vector<8x1xi1>, vector<8x1xf32>
    %cst_176 = arith.constant dense<0xFF800000> : vector<1xf32>
    %604 = vector.multi_reduction <maximumf>, %603, %cst_176 [0] : vector<8x1xf32> to vector<1xf32>
    %605 = vector.shape_cast %604 : vector<1xf32> to vector<1x1xf32>
    %606 = vector.broadcast %605 : vector<1x1xf32> to vector<8x1xf32>
    %607 = arith.subf %603, %606 : vector<8x1xf32>
    %608 = math.exp %607 : vector<8x1xf32>
    %cst_177 = arith.constant dense<0.000000e+00> : vector<1xf32>
    %609 = vector.multi_reduction <add>, %608, %cst_177 [0] : vector<8x1xf32> to vector<1xf32>
    %610 = vector.shape_cast %609 : vector<1xf32> to vector<1x1xf32>
    %611 = tpu.reciprocal %610 {approx = true} : vector<1x1xf32> -> vector<1x1xf32>
    %612 = vector.broadcast %611 : vector<1x1xf32> to vector<8x1xf32>
    %613 = arith.mulf %608, %612 : vector<8x1xf32>
    %614 = vector.broadcast %613 : vector<8x1xf32> to vector<8x128xf32>
    %615 = arith.mulf %614, %581 : vector<8x128xf32>
    %cst_178 = arith.constant dense<0.000000e+00> : vector<128xf32>
    %616 = vector.multi_reduction <add>, %615, %cst_178 [0] : vector<8x128xf32> to vector<128xf32>
    %617 = vector.shape_cast %616 : vector<128xf32> to vector<1x128xf32>
    %618 = arith.truncf %617 : vector<1x128xf32> to vector<1x128xbf16>
    %c0_179 = arith.constant 0 : index
    %c0_180 = arith.constant 0 : index
    %619 = vector.load %arg23[%c0_179, %c0_180] : memref<128x128xbf16, #tpu.memory_space<vmem>>, vector<128x128xbf16>
    %cst_181 = arith.constant dense<0.000000e+00> : vector<1x128xf32>
    %620 = tpu.matmul %618, %619, %cst_181 {dimension_numbers = #tpu.dot_dimension_numbers<[1], [0], [0], [1], [0, 0, 1, 1], [], []>} : vector<1x128xbf16>, vector<128x128xbf16>, vector<1x128xf32> -> vector<1x128xf32>
    %c0_182 = arith.constant 0 : index
    %c0_183 = arith.constant 0 : index
    %621 = vector.load %arg9[%c0_182, %c0_183] : memref<1x128xf32, #tpu.memory_space<vmem>>, vector<1x128xf32>
    %622 = arith.addf %620, %621 : vector<1x128xf32>
    %623 = arith.truncf %622 : vector<1x128xf32> to vector<1x128xbf16>
    %c0_184 = arith.constant 0 : index
    %c0_185 = arith.constant 0 : index
    %624 = vector.load %arg10[%c0_184, %c0_185] : memref<128x8xbf16, #tpu.memory_space<vmem>>, vector<128x8xbf16>
    %cst_186 = arith.constant dense<0.000000e+00> : vector<1x8xf32>
    %625 = tpu.matmul %623, %624, %cst_186 {dimension_numbers = #tpu.dot_dimension_numbers<[1], [0], [0], [1], [0, 0, 1, 1], [], []>} : vector<1x128xbf16>, vector<128x8xbf16>, vector<1x8xf32> -> vector<1x8xf32>
    %c0_187 = arith.constant 0 : index
    %c0_188 = arith.constant 0 : index
    %626 = vector.load %arg11[%c0_187, %c0_188] : memref<1x8xf32, #tpu.memory_space<vmem>>, vector<1x8xf32>
    %627 = arith.addf %625, %626 : vector<1x8xf32>
    %c0_189 = arith.constant 0 : index
    %c0_190 = arith.constant 0 : index
    %628 = vector.load %arg16[%c0_189, %c0_190] : memref<1x8xf32, #tpu.memory_space<vmem>>, vector<1x8xf32>
    tpu.vector_store %arg16[%c0_189, %c0_190], %627 {strides = array<i32>} : memref<1x8xf32, #tpu.memory_space<vmem>>, vector<1x8xf32>,
    return
  }
}

</mosaic_0001>

<llo_original>
// kernel: lstmnet_forward.1
$region0: #{lstmnet_forward.1}
  #allocation0 [shape = 'u32[]', space=smem, size = 0x4, offset = 0x4, fixed_abs, tag = 'smem constant byte address 0x4 - core index']
  #allocation1 [shape = 'u32[144,128]{1,0:T(1,128)}', space=vmem, size = 0x12000, scoped, tag = 'internal scratch']
  #allocation2 [shape = 'f32[64,2048]{1,0:T(8,128)}', space=vmem, size = 0x80000, scoped, tag = 'scratch operand']
  #allocation3 [shape = 'f32[64,512]{1,0:T(8,128)}', space=vmem, size = 0x20000, scoped, tag = 'scratch operand']
  #allocation4 [shape = 'f32[64,512]{1,0:T(8,128)}', space=vmem, size = 0x20000, scoped, tag = 'scratch operand']
  #allocation5 [shape = 'bf16[512,1024]{1,0:T(8,128)(2,1)}', space=vmem, size = 0x100000, scoped, tag = 'scratch operand']
  #allocation6 [shape = 'bf16[128,512]{1,0:T(8,128)(2,1)}', space=vmem, size = 0x20000, scoped, tag = 'scratch operand']
  #allocation7 [shape = 'bf16[128,128]{1,0:T(8,128)(2,1)}', space=vmem, size = 0x8000, scoped, tag = 'scratch operand']
  #allocation8 [shape = 'bf16[128,128]{1,0:T(8,128)(2,1)}', space=vmem, size = 0x8000, scoped, tag = 'scratch operand']
  #allocation9 [shape = 's32[4]{0}', space=sflag, size = 0x10, scoped, tag = 'scratch operand']
  #allocation10 [shape = 'f32[1,1]{1,0:T(1,128)S(1)}', space=vmem, size = 0x200, scoped, tag = 'scoped memory for lstmnet_forward.1']
  #allocation18 [shape = 's32[]', space=sflag, size = 0x4, offset = 0, fixed_abs, tag = 'sflag constant byte address 0x0 - dummy sync flag']
  #allocation19 [shape = 's32[]', space=sflag, size = 0x4, offset = 0, fixed_abs, tag = 'sflag constant byte address 0x0 - dummy sync flag']
  #allocation20 [shape = 'u32[]', space=smem, size = 0x4, offset = 0x44, fixed_abs, tag = 'smem constant byte address 0x44 - assertion arg 0']
  #allocation21 [shape = 'u32[]', space=smem, size = 0x4, offset = 0x48, fixed_abs, tag = 'smem constant byte address 0x48 - assertion arg 1']
  #allocation22 [shape = 's32[]', space=sflag, size = 0x4, offset = 0, fixed_abs, tag = 'sflag constant byte address 0x0 - dummy sync flag']
  #allocation23 [shape = 's32[]', space=sflag, size = 0x4, offset = 0, fixed_abs, tag = 'sflag constant byte address 0x0 - dummy sync flag']
  #allocation24 [shape = 's32[]', space=sflag, size = 0x4, offset = 0, fixed_abs, tag = 'sflag constant byte address 0x0 - dummy sync flag']
  #allocation25 [shape = 's32[]', space=sflag, size = 0x4, offset = 0, fixed_abs, tag = 'sflag constant byte address 0x0 - dummy sync flag']
  %s0 = inlined_call_operand.vmem [shape: f32[64,128], index: 0, kind: input, shape index: {}]
  %s1 = inlined_call_operand.hbm [shape: bf16[128,2048], index: 1, kind: input, shape index: {}]
  %s2 = inlined_call_operand.hbm [shape: bf16[256,1024], index: 2, kind: input, shape index: {}]
  %s3 = inlined_call_operand.hbm [shape: bf16[256,1024], index: 3, kind: input, shape index: {}]
  %s4 = inlined_call_operand.vmem [shape: f32[1,2048], index: 4, kind: input, shape index: {}]
  %s5 = inlined_call_operand.vmem [shape: f32[1,512], index: 5, kind: input, shape index: {}]
  %s6 = inlined_call_operand.vmem [shape: f32[1,128], index: 6, kind: input, shape index: {}]
  %s7 = inlined_call_operand.vmem [shape: bf16[128,1], index: 7, kind: input, shape index: {}]
  %s8 = inlined_call_operand.<no memory space> [shape: f32[1,1], index: 8, kind: input, shape index: {}]
  %s9 = inlined_call_operand.vmem [shape: f32[1,128], index: 9, kind: input, shape index: {}]
  %s10 = inlined_call_operand.vmem [shape: bf16[128,8], index: 10, kind: input, shape index: {}]
  %s11 = inlined_call_operand.vmem [shape: f32[1,8], index: 11, kind: input, shape index: {}]
  %s12 = inlined_call_operand.hbm [shape: bf16[512,1024], index: 12, kind: input, shape index: {}]
  %s13 = inlined_call_operand.hbm [shape: bf16[128,512], index: 13, kind: input, shape index: {}]
  %s14 = inlined_call_operand.vmem [shape: bf16[128,128], index: 14, kind: input, shape index: {}]
  %s15 = inlined_call_operand.vmem [shape: bf16[128,128], index: 15, kind: input, shape index: {}]
  %s16 = inlined_call_operand.hbm [shape: f32[1,8], index: 16, kind: output, shape index: {}]
  %s17 = sld [smem:[#allocation0]]
  $region146: #{lstmnet_forward.1} parent=0
    _
  %s19 = ssub.s32 1, %s17
  %s20 = scalar_select 0, %s19, %s17
  %v21 = vstv %s8
  %22 = vst [vmem:[#allocation10] sm:$0x1] %v21
  $region1: #{lstmnet_forward.1} parent=0
    #allocation11 [shape = 'u8[524288]{0}', space=vmem, size = 0x80000, scoped, tag = 'input window, operand 1, single buffered']
    #allocation12 [shape = 's32[1]{0}', space=sflag, size = 0x4, scoped, tag = 'scoped memory for lstmnet_forward.1']
    #allocation13 [shape = 's32[1]{0}', space=sflag, size = 0x4, scoped, tag = 'scoped memory for lstmnet_forward.1']
    #allocation14 [shape = 'u8[524288]{0}', space=vmem, size = 0x80000, scoped, tag = 'input window, operand 2, single buffered']
    #allocation15 [shape = 's32[1]{0}', space=sflag, size = 0x4, scoped, tag = 'scoped memory for lstmnet_forward.1']
    #allocation16 [shape = 'u8[524288]{0}', space=vmem, size = 0x80000, scoped, tag = 'input window, operand 3, single buffered']
    #allocation17 [shape = 'u8[512]{0}', space=vmem, size = 0x400, scoped, tag = 'output window, operand 0, single buffered']
    %23 = vsyncpa [#allocation12], 0
    %24 = vsyncpa [#allocation15], 0
    %25 = vsyncpa [#allocation13], 0
    // Predicated region
    $region2: #{lstmnet_forward.1} parent=1 // pred_check
      _
    $region3: #{lstmnet_forward.1} parent=1 // pred_check_branch
      %27 = sbr.rel (0) target = $region5
    $region4: #{lstmnet_forward.1} parent=1 // pred_region
      _
    $region5: #{lstmnet_forward.1} parent=1 // pred_fallthru
      _
    // Predicated region
    $region6: #{lstmnet_forward.1} parent=1 // pred_check
      _
    $region7: #{lstmnet_forward.1} parent=1 // pred_check_branch
      %29 = sbr.rel (0) target = $region9
    $region8: #{lstmnet_forward.1} parent=1 // pred_region
      %s31 = ssub.s32 16384, 16384
      %32 = vsyncadd [#allocation12], %s31
      %s33 = sshll.u32 [#allocation11], 4
      %s34 = int_to_ptr.vmem [resolvable:$true] %s33
      %39 = dma.hbm_to_vmem [thread:$0]  %s1, 16384, %s34, [#allocation12], 1024, 1024, 64
    $region9: #{lstmnet_forward.1} parent=1 // pred_fallthru
      _
    // Predicated region
    $region10: #{lstmnet_forward.1} parent=1 // pred_check
      _
    $region11: #{lstmnet_forward.1} parent=1 // pred_check_branch
      %41 = sbr.rel (0) target = $region13
    $region12: #{lstmnet_forward.1} parent=1 // pred_region
      %s43 = ssub.s32 16384, 16384
      %44 = vsyncadd [#allocation15], %s43
      %s45 = sshll.u32 [#allocation14], 4
      %s46 = int_to_ptr.vmem [resolvable:$true] %s45
      %51 = dma.hbm_to_vmem [thread:$0]  %s2, 16384, %s46, [#allocation15], 512, 512, 32
    $region13: #{lstmnet_forward.1} parent=1 // pred_fallthru
      _
    // Predicated region
    $region14: #{lstmnet_forward.1} parent=1 // pred_check
      _
    $region15: #{lstmnet_forward.1} parent=1 // pred_check_branch
      %53 = sbr.rel (0) target = $region17
    $region16: #{lstmnet_forward.1} parent=1 // pred_region
      %s55 = ssub.s32 16384, 16384
      %56 = vsyncadd [#allocation15], %s55
      %s57 = sshll.u32 [#allocation16], 4
      %s58 = int_to_ptr.vmem [resolvable:$true] %s57
      %63 = dma.hbm_to_vmem [thread:$0]  %s3, 16384, %s58, [#allocation15], 512, 512, 32
    $region17: #{lstmnet_forward.1} parent=1 // pred_fallthru
      _
    // Predicated region
    $region18: #{lstmnet_forward.1} parent=1 // pred_check
      _
    $region19: #{lstmnet_forward.1} parent=1 // pred_check_branch
      %65 = sbr.rel (0) target = $region21
    $region20: #{lstmnet_forward.1} parent=1 // pred_region
      _
    $region21: #{lstmnet_forward.1} parent=1 // pred_fallthru
      _
    // Predicated region
    $region22: #{lstmnet_forward.1} parent=1 // pred_check
      _
    $region23: #{lstmnet_forward.1} parent=1 // pred_check_branch
      %67 = sbr.rel (0) target = $region25
    $region24: #{lstmnet_forward.1} parent=1 // pred_region
      _
    $region25: #{lstmnet_forward.1} parent=1 // pred_fallthru
      _
    // Predicated region
    $region26: #{lstmnet_forward.1} parent=1 // pred_check
      _
    $region27: #{lstmnet_forward.1} parent=1 // pred_check_branch
      %69 = sbr.rel (0) target = $region29
    $region28: #{lstmnet_forward.1} parent=1 // pred_region
      _
    $region29: #{lstmnet_forward.1} parent=1 // pred_fallthru
      _
    // Predicated region
    $region30: #{lstmnet_forward.1} parent=1 // pred_check
      _
    $region31: #{lstmnet_forward.1} parent=1 // pred_check_branch
      %71 = sbr.rel (0) target = $region33
    $region32: #{lstmnet_forward.1} parent=1 // pred_region
      _
    $region33: #{lstmnet_forward.1} parent=1 // pred_fallthru
      _
    // Predicated region
    $region34: #{lstmnet_forward.1} parent=1 // pred_check
      _
    $region35: #{lstmnet_forward.1} parent=1 // pred_check_branch
      %73 = sbr.rel (0) target = $region37
    $region36: #{lstmnet_forward.1} parent=1 // pred_region
      _
    $region37: #{lstmnet_forward.1} parent=1 // pred_fallthru
      _
    // Predicated region
    $region38: #{lstmnet_forward.1} parent=1 // pred_check
      _
    $region39: #{lstmnet_forward.1} parent=1 // pred_check_branch
      %75 = sbr.rel (0) target = $region41
    $region40: #{lstmnet_forward.1} parent=1 // pred_region
      _
    $region41: #{lstmnet_forward.1} parent=1 // pred_fallthru
      _
    // Predicated region
    $region42: #{lstmnet_forward.1} parent=1 // pred_check
      _
    $region43: #{lstmnet_forward.1} parent=1 // pred_check_branch
      %77 = sbr.rel (0) target = $region45
    $region44: #{lstmnet_forward.1} parent=1 // pred_region
      _
    $region45: #{lstmnet_forward.1} parent=1 // pred_fallthru
      _
    // Predicated region
    $region46: #{lstmnet_forward.1} parent=1 // pred_check
      _
    $region47: #{lstmnet_forward.1} parent=1 // pred_check_branch
      %79 = sbr.rel (0) target = $region49
    $region48: #{lstmnet_forward.1} parent=1 // pred_region
      _
    $region49: #{lstmnet_forward.1} parent=1 // pred_fallthru
      _
    // Predicated region
    $region50: #{lstmnet_forward.1} parent=1 // pred_check
      _
    $region51: #{lstmnet_forward.1} parent=1 // pred_check_branch
      %81 = sbr.rel (0) target = $region53
    $region52: #{lstmnet_forward.1} parent=1 // pred_region
      %82 = dma.done [#allocation12], 16384
    $region53: #{lstmnet_forward.1} parent=1 // pred_fallthru
      _
    // Predicated region
    $region54: #{lstmnet_forward.1} parent=1 // pred_check
      _
    $region55: #{lstmnet_forward.1} parent=1 // pred_check_branch
      %84 = sbr.rel (0) target = $region57
    $region56: #{lstmnet_forward.1} parent=1 // pred_region
      %85 = dma.done [#allocation15], 16384
    $region57: #{lstmnet_forward.1} parent=1 // pred_fallthru
      _
    // Predicated region
    $region58: #{lstmnet_forward.1} parent=1 // pred_check
      _
    $region59: #{lstmnet_forward.1} parent=1 // pred_check_branch
      %87 = sbr.rel (0) target = $region61
    $region60: #{lstmnet_forward.1} parent=1 // pred_region
      %88 = dma.done [#allocation15], 16384
    $region61: #{lstmnet_forward.1} parent=1 // pred_fallthru
      _
    // Predicated region
    $region62: #{lstmnet_forward.1} parent=1 // pred_check
      _
    $region63: #{lstmnet_forward.1} parent=1 // pred_check_branch
      %91 = sbr.rel target = $region65
    $region64: #{lstmnet_forward.1} parent=1 // pred_region
      %92 = sst [smem:[#allocation20]] [#allocation19]
      %93 = sst [smem:[#allocation21]] [#allocation18]
    $region65: #{lstmnet_forward.1} parent=1 // pred_fallthru
      _
    %95 = shalt.err (0)
    %s97 = sshll.u32 [#allocation5], 4
    %s98 = int_to_ptr.vmem [resolvable:$true] %s97
    %100 = dma.hbm_to_vmem [thread:$0]  %s12, 32768, %s98, [#allocation9]
    %s101 = scalar_lea.sflag [#allocation9], 1
    // Predicated region
    $region66: #{lstmnet_forward.1} parent=1 // pred_check
      _
    $region67: #{lstmnet_forward.1} parent=1 // pred_check_branch
      %103 = sbr.rel target = $region69
    $region68: #{lstmnet_forward.1} parent=1 // pred_region
      %104 = sst [smem:[#allocation20]] [#allocation23]
      %105 = sst [smem:[#allocation21]] [#allocation22]
    $region69: #{lstmnet_forward.1} parent=1 // pred_fallthru
      _
    %107 = shalt.err (0)
    %s109 = sshll.u32 [#allocation6], 4
    %s110 = int_to_ptr.vmem [resolvable:$true] %s109
    %112 = dma.hbm_to_vmem [thread:$0]  %s13, 4096, %s110, %s101
    %s113 = scalar_lea.sflag [#allocation9], 2
    %p115 = scmp.lt.u32.totalorder 64, 8
    %p116 = pneg %p115
    // Predicated region
    $region70: #{lstmnet_forward.1} parent=1 // pred_check
      _
    $region71: #{lstmnet_forward.1} parent=1 // pred_check_branch
      %118 = sbr.rel (%p115) target = $region73
    $region72: #{lstmnet_forward.1} parent=1 // pred_region
      %s134 = sand.u32 64, 7
      %p135 = scmp.eq.s32.totalorder %s134, 0
      // Predicated region
      $region85: #{lstmnet_forward.1} parent=72 // pred_check
        %p136 = pneg %p135
      $region86: #{lstmnet_forward.1} parent=72 // pred_check_branch
        %138 = sbr.rel (%p136) target = $region88
      $region87: #{lstmnet_forward.1} parent=72 // pred_region
        loop: start=0, step=1, limit=1
        $region89: #{lstmnet_forward.1} parent=87 // loop_pre_header
          _
        $region90: #{lstmnet_forward.1} parent=87 // loop_header
          %s140 = sphi 0, %s144
          %p141 = scmp.ge.s32.totalorder %s140, 1
          %s145 = sphi %s14, %s14
          %s146 = sphi [#allocation7], [#allocation7]
        $region91: #{lstmnet_forward.1} parent=87 // loop_header_branch
          %143 = sbr.rel (%p141) target = $region95
        $region92: #{lstmnet_forward.1} parent=87 // loop_body
          %v147 = vld [vmem:[%s145] sm:$0xff]
          %148 = vst [vmem:[%s146] sm:$0xff] %v147
          %v149 = vld [vmem:[%s145 + $0x8] sm:$0xff]
          %150 = vst [vmem:[%s146 + $0x8] sm:$0xff] %v149
          %v151 = vld [vmem:[%s145 + $0x10] sm:$0xff]
          %152 = vst [vmem:[%s146 + $0x10] sm:$0xff] %v151
          %v153 = vld [vmem:[%s145 + $0x18] sm:$0xff]
          %154 = vst [vmem:[%s146 + $0x18] sm:$0xff] %v153
          %v155 = vld [vmem:[%s145 + $0x20] sm:$0xff]
          %156 = vst [vmem:[%s146 + $0x20] sm:$0xff] %v155
          %v157 = vld [vmem:[%s145 + $0x28] sm:$0xff]
          %158 = vst [vmem:[%s146 + $0x28] sm:$0xff] %v157
          %v159 = vld [vmem:[%s145 + $0x30] sm:$0xff]
          %160 = vst [vmem:[%s146 + $0x30] sm:$0xff] %v159
          %v161 = vld [vmem:[%s145 + $0x38] sm:$0xff]
          %162 = vst [vmem:[%s146 + $0x38] sm:$0xff] %v161
        $region93: #{lstmnet_forward.1} parent=87 // loop_footer
          %s144 = sadd.s32 1, %s140
        $region94: #{lstmnet_forward.1} parent=87 // loop_footer_branch
          %139 = sbr.rel target = $region90
        $region95: #{lstmnet_forward.1} parent=87 // loop_exit
          _
      $region88: #{lstmnet_forward.1} parent=72 // pred_fallthru
        _
      %p163 = pneg %p135
      // Predicated region
      $region96: #{lstmnet_forward.1} parent=72 // pred_check
        _
      $region97: #{lstmnet_forward.1} parent=72 // pred_check_branch
        %165 = sbr.rel (%p135) target = $region99
      $region98: #{lstmnet_forward.1} parent=72 // pred_region
        %s166 = sand.u32 64, 7
      $region99: #{lstmnet_forward.1} parent=72 // pred_fallthru
        _
    $region73: #{lstmnet_forward.1} parent=1 // pred_fallthru
      _
    // Predicated region
    $region74: #{lstmnet_forward.1} parent=1 // pred_check
      %p119 = pneg %p115
    $region75: #{lstmnet_forward.1} parent=1 // pred_check_branch
      %121 = sbr.rel (%p119) target = $region77
    $region76: #{lstmnet_forward.1} parent=1 // pred_region
      %s122 = sshll.u32 1, 64
      %s123 = ssub.s32 %s122, 1
      loop: start=0, step=1, limit=1
      $region78: #{lstmnet_forward.1} parent=76 // loop_pre_header
        _
      $region79: #{lstmnet_forward.1} parent=76 // loop_header
        %s125 = sphi 0, %s129
        %p126 = scmp.ge.s32.totalorder %s125, 1
        %s130 = sphi %s14, %s14
        %s131 = sphi [#allocation7], [#allocation7]
      $region80: #{lstmnet_forward.1} parent=76 // loop_header_branch
        %128 = sbr.rel (%p126) target = $region84
      $region81: #{lstmnet_forward.1} parent=76 // loop_body
        %v132 = vld [vmem:[%s130] sm:%s123]
        %133 = vst [vmem:[%s131] sm:%s123] %v132
      $region82: #{lstmnet_forward.1} parent=76 // loop_footer
        %s129 = sadd.s32 1, %s125
      $region83: #{lstmnet_forward.1} parent=76 // loop_footer_branch
        %124 = sbr.rel target = $region79
      $region84: #{lstmnet_forward.1} parent=76 // loop_exit
        _
    $region77: #{lstmnet_forward.1} parent=1 // pred_fallthru
      _
    // Predicated region
    $region100: #{lstmnet_forward.1} parent=1 // pred_check
      _
    $region101: #{lstmnet_forward.1} parent=1 // pred_check_branch
      %169 = sbr.rel (0) target = $region103
    $region102: #{lstmnet_forward.1} parent=1 // pred_region
      %170 = vsyncadd %s113, 1024
    $region103: #{lstmnet_forward.1} parent=1 // pred_fallthru
      _
    %s171 = scalar_lea.sflag [#allocation9], 3
    %p173 = scmp.lt.u32.totalorder 64, 8
    %p174 = pneg %p173
    // Predicated region
    $region104: #{lstmnet_forward.1} parent=1 // pred_check
      _
    $region105: #{lstmnet_forward.1} parent=1 // pred_check_branch
      %176 = sbr.rel (%p173) target = $region107
    $region106: #{lstmnet_forward.1} parent=1 // pred_region
      %s192 = sand.u32 64, 7
      %p193 = scmp.eq.s32.totalorder %s192, 0
      // Predicated region
      $region119: #{lstmnet_forward.1} parent=106 // pred_check
        %p194 = pneg %p193
      $region120: #{lstmnet_forward.1} parent=106 // pred_check_branch
        %196 = sbr.rel (%p194) target = $region122
      $region121: #{lstmnet_forward.1} parent=106 // pred_region
        loop: start=0, step=1, limit=1
        $region123: #{lstmnet_forward.1} parent=121 // loop_pre_header
          _
        $region124: #{lstmnet_forward.1} parent=121 // loop_header
          %s198 = sphi 0, %s202
          %p199 = scmp.ge.s32.totalorder %s198, 1
          %s203 = sphi %s15, %s15
          %s204 = sphi [#allocation8], [#allocation8]
        $region125: #{lstmnet_forward.1} parent=121 // loop_header_branch
          %201 = sbr.rel (%p199) target = $region129
        $region126: #{lstmnet_forward.1} parent=121 // loop_body
          %v205 = vld [vmem:[%s203] sm:$0xff]
          %206 = vst [vmem:[%s204] sm:$0xff] %v205
          %v207 = vld [vmem:[%s203 + $0x8] sm:$0xff]
          %208 = vst [vmem:[%s204 + $0x8] sm:$0xff] %v207
          %v209 = vld [vmem:[%s203 + $0x10] sm:$0xff]
          %210 = vst [vmem:[%s204 + $0x10] sm:$0xff] %v209
          %v211 = vld [vmem:[%s203 + $0x18] sm:$0xff]
          %212 = vst [vmem:[%s204 + $0x18] sm:$0xff] %v211
          %v213 = vld [vmem:[%s203 + $0x20] sm:$0xff]
          %214 = vst [vmem:[%s204 + $0x20] sm:$0xff] %v213
          %v215 = vld [vmem:[%s203 + $0x28] sm:$0xff]
          %216 = vst [vmem:[%s204 + $0x28] sm:$0xff] %v215
          %v217 = vld [vmem:[%s203 + $0x30] sm:$0xff]
          %218 = vst [vmem:[%s204 + $0x30] sm:$0xff] %v217
          %v219 = vld [vmem:[%s203 + $0x38] sm:$0xff]
          %220 = vst [vmem:[%s204 + $0x38] sm:$0xff] %v219
        $region127: #{lstmnet_forward.1} parent=121 // loop_footer
          %s202 = sadd.s32 1, %s198
        $region128: #{lstmnet_forward.1} parent=121 // loop_footer_branch
          %197 = sbr.rel target = $region124
        $region129: #{lstmnet_forward.1} parent=121 // loop_exit
          _
      $region122: #{lstmnet_forward.1} parent=106 // pred_fallthru
        _
      %p221 = pneg %p193
      // Predicated region
      $region130: #{lstmnet_forward.1} parent=106 // pred_check
        _
      $region131: #{lstmnet_forward.1} parent=106 // pred_check_branch
        %223 = sbr.rel (%p193) target = $region133
      $region132: #{lstmnet_forward.1} parent=106 // pred_region
        %s224 = sand.u32 64, 7
      $region133: #{lstmnet_forward.1} parent=106 // pred_fallthru
        _
    $region107: #{lstmnet_forward.1} parent=1 // pred_fallthru
      _
    // Predicated region
    $region108: #{lstmnet_forward.1} parent=1 // pred_check
      %p177 = pneg %p173
    $region109: #{lstmnet_forward.1} parent=1 // pred_check_branch
      %179 = sbr.rel (%p177) target = $region111
    $region110: #{lstmnet_forward.1} parent=1 // pred_region
      %s180 = sshll.u32 1, 64
      %s181 = ssub.s32 %s180, 1
      loop: start=0, step=1, limit=1
      $region112: #{lstmnet_forward.1} parent=110 // loop_pre_header
        _
      $region113: #{lstmnet_forward.1} parent=110 // loop_header
        %s183 = sphi 0, %s187
        %p184 = scmp.ge.s32.totalorder %s183, 1
        %s188 = sphi %s15, %s15
        %s189 = sphi [#allocation8], [#allocation8]
      $region114: #{lstmnet_forward.1} parent=110 // loop_header_branch
        %186 = sbr.rel (%p184) target = $region118
      $region115: #{lstmnet_forward.1} parent=110 // loop_body
        %v190 = vld [vmem:[%s188] sm:%s181]
        %191 = vst [vmem:[%s189] sm:%s181] %v190
      $region116: #{lstmnet_forward.1} parent=110 // loop_footer
        %s187 = sadd.s32 1, %s183
      $region117: #{lstmnet_forward.1} parent=110 // loop_footer_branch
        %182 = sbr.rel target = $region113
      $region118: #{lstmnet_forward.1} parent=110 // loop_exit
        _
    $region111: #{lstmnet_forward.1} parent=1 // pred_fallthru
      _
    // Predicated region
    $region134: #{lstmnet_forward.1} parent=1 // pred_check
      _
    $region135: #{lstmnet_forward.1} parent=1 // pred_check_branch
      %227 = sbr.rel (0) target = $region137
    $region136: #{lstmnet_forward.1} parent=1 // pred_region
      %228 = vsyncadd %s171, 1024
    $region137: #{lstmnet_forward.1} parent=1 // pred_fallthru
      _
    %v229 = vld [vmem:[%s0] sm:$0xff]
    %v230 = vld [vmem:[%s0 + $0x8] sm:$0xff]
    %v231 = vld [vmem:[%s0 + $0x10] sm:$0xff]
    %v232 = vld [vmem:[%s0 + $0x18] sm:$0xff]
    %v233 = vld [vmem:[%s0 + $0x20] sm:$0xff]
    %v234 = vld [vmem:[%s0 + $0x28] sm:$0xff]
    %v235 = vld [vmem:[%s0 + $0x30] sm:$0xff]
    %v236 = vld [vmem:[%s0 + $0x38] sm:$0xff]
    %v237 = vpack.c.bf16 %v230, %v229
    %v238 = vpack.c.bf16 %v232, %v231
    %v239 = vpack.c.bf16 %v234, %v233
    %v240 = vpack.c.bf16 %v236, %v235
    %v241 = vld [vmem:[#allocation11] sm:$0xff]
    %v242 = vld [vmem:[#allocation11 + $0x8] sm:$0xff]
    %v243 = vld [vmem:[#allocation11 + $0x10] sm:$0xff]
    %v244 = vld [vmem:[#allocation11 + $0x18] sm:$0xff]
    %v245 = vld [vmem:[#allocation11 + $0x20] sm:$0xff]
    %v246 = vld [vmem:[#allocation11 + $0x28] sm:$0xff]
    %v247 = vld [vmem:[#allocation11 + $0x30] sm:$0xff]
    %v248 = vld [vmem:[#allocation11 + $0x38] sm:$0xff]
    %v249 = vld [vmem:[#allocation11 + $0x40] sm:$0xff]
    %v250 = vld [vmem:[#allocation11 + $0x48] sm:$0xff]
    %v251 = vld [vmem:[#allocation11 + $0x50] sm:$0xff]
    %v252 = vld [vmem:[#allocation11 + $0x58] sm:$0xff]
    %v253 = vld [vmem:[#allocation11 + $0x60] sm:$0xff]
    %v254 = vld [vmem:[#allocation11 + $0x68] sm:$0xff]
    %v255 = vld [vmem:[#allocation11 + $0x70] sm:$0xff]
    %v256 = vld [vmem:[#allocation11 + $0x78] sm:$0xff]
    %v257 = vld [vmem:[#allocation11 + $0x80] sm:$0xff]
    %v258 = vld [vmem:[#allocation11 + $0x88] sm:$0xff]
    %v259 = vld [vmem:[#allocation11 + $0x90] sm:$0xff]
    %v260 = vld [vmem:[#allocation11 + $0x98] sm:$0xff]
    %v261 = vld [vmem:[#allocation11 + $0xa0] sm:$0xff]
    %v262 = vld [vmem:[#allocation11 + $0xa8] sm:$0xff]
    %v263 = vld [vmem:[#allocation11 + $0xb0] sm:$0xff]
    %v264 = vld [vmem:[#allocation11 + $0xb8] sm:$0xff]
    %v265 = vld [vmem:[#allocation11 + $0xc0] sm:$0xff]
    %v266 = vld [vmem:[#allocation11 + $0xc8] sm:$0xff]
    %v267 = vld [vmem:[#allocation11 + $0xd0] sm:$0xff]
    %v268 = vld [vmem:[#allocation11 + $0xd8] sm:$0xff]
    %v269 = vld [vmem:[#allocation11 + $0xe0] sm:$0xff]
    %v270 = vld [vmem:[#allocation11 + $0xe8] sm:$0xff]
    %v271 = vld [vmem:[#allocation11 + $0xf0] sm:$0xff]
    %v272 = vld [vmem:[#allocation11 + $0xf8] sm:$0xff]
    %v273 = vld [vmem:[#allocation11 + $0x100] sm:$0xff]
    %v274 = vld [vmem:[#allocation11 + $0x108] sm:$0xff]
    %v275 = vld [vmem:[#allocation11 + $0x110] sm:$0xff]
    %v276 = vld [vmem:[#allocation11 + $0x118] sm:$0xff]
    %v277 = vld [vmem:[#allocation11 + $0x120] sm:$0xff]
    %v278 = vld [vmem:[#allocation11 + $0x128] sm:$0xff]
    %v279 = vld [vmem:[#allocation11 + $0x130] sm:$0xff]
    %v280 = vld [vmem:[#allocation11 + $0x138] sm:$0xff]
    %v281 = vld [vmem:[#allocation11 + $0x140] sm:$0xff]
    %v282 = vld [vmem:[#allocation11 + $0x148] sm:$0xff]
    %v283 = vld [vmem:[#allocation11 + $0x150] sm:$0xff]
    %v284 = vld [vmem:[#allocation11 + $0x158] sm:$0xff]
    %v285 = vld [vmem:[#allocation11 + $0x160] sm:$0xff]
    %v286 = vld [vmem:[#allocation11 + $0x168] sm:$0xff]
    %v287 = vld [vmem:[#allocation11 + $0x170] sm:$0xff]
    %v288 = vld [vmem:[#allocation11 + $0x178] sm:$0xff]
    %v289 = vld [vmem:[#allocation11 + $0x180] sm:$0xff]
    %v290 = vld [vmem:[#allocation11 + $0x188] sm:$0xff]
    %v291 = vld [vmem:[#allocation11 + $0x190] sm:$0xff]
    %v292 = vld [vmem:[#allocation11 + $0x198] sm:$0xff]
    %v293 = vld [vmem:[#allocation11 + $0x1a0] sm:$0xff]
    %v294 = vld [vmem:[#allocation11 + $0x1a8] sm:$0xff]
    %v295 = vld [vmem:[#allocation11 + $0x1b0] sm:$0xff]
    %v296 = vld [vmem:[#allocation11 + $0x1b8] sm:$0xff]
    %v297 = vld [vmem:[#allocation11 + $0x1c0] sm:$0xff]
    %v298 = vld [vmem:[#allocation11 + $0x1c8] sm:$0xff]
    %v299 = vld [vmem:[#allocation11 + $0x1d0] sm:$0xff]
    %v300 = vld [vmem:[#allocation11 + $0x1d8] sm:$0xff]
    %v301 = vld [vmem:[#allocation11 + $0x1e0] sm:$0xff]
    %v302 = vld [vmem:[#allocation11 + $0x1e8] sm:$0xff]
    %v303 = vld [vmem:[#allocation11 + $0x1f0] sm:$0xff]
    %v304 = vld [vmem:[#allocation11 + $0x1f8] sm:$0xff]
    %v305 = vld [vmem:[#allocation11 + $0x200] sm:$0xff]
    %v306 = vld [vmem:[#allocation11 + $0x208] sm:$0xff]
    %v307 = vld [vmem:[#allocation11 + $0x210] sm:$0xff]
    %v308 = vld [vmem:[#allocation11 + $0x218] sm:$0xff]
    %v309 = vld [vmem:[#allocation11 + $0x220] sm:$0xff]
    %v310 = vld [vmem:[#allocation11 + $0x228] sm:$0xff]
    %v311 = vld [vmem:[#allocation11 + $0x230] sm:$0xff]
    %v312 = vld [vmem:[#allocation11 + $0x238] sm:$0xff]
    %v313 = vld [vmem:[#allocation11 + $0x240] sm:$0xff]
    %v314 = vld [vmem:[#allocation11 + $0x248] sm:$0xff]
    %v315 = vld [vmem:[#allocation11 + $0x250] sm:$0xff]
    %v316 = vld [vmem:[#allocation11 + $0x258] sm:$0xff]
    %v317 = vld [vmem:[#allocation11 + $0x260] sm:$0xff]
    %v318 = vld [vmem:[#allocation11 + $0x268] sm:$0xff]
    %v319 = vld [vmem:[#allocation11 + $0x270] sm:$0xff]
    %v320 = vld [vmem:[#allocation11 + $0x278] sm:$0xff]
    %v321 = vld [vmem:[#allocation11 + $0x280] sm:$0xff]
    %v322 = vld [vmem:[#allocation11 + $0x288] sm:$0xff]
    %v323 = vld [vmem:[#allocation11 + $0x290] sm:$0xff]
    %v324 = vld [vmem:[#allocation11 + $0x298] sm:$0xff]
    %v325 = vld [vmem:[#allocation11 + $0x2a0] sm:$0xff]
    %v326 = vld [vmem:[#allocation11 + $0x2a8] sm:$0xff]
    %v327 = vld [vmem:[#allocation11 + $0x2b0] sm:$0xff]
    %v328 = vld [vmem:[#allocation11 + $0x2b8] sm:$0xff]
    %v329 = vld [vmem:[#allocation11 + $0x2c0] sm:$0xff]
    %v330 = vld [vmem:[#allocation11 + $0x2c8] sm:$0xff]
    %v331 = vld [vmem:[#allocation11 + $0x2d0] sm:$0xff]
    %v332 = vld [vmem:[#allocation11 + $0x2d8] sm:$0xff]
    %v333 = vld [vmem:[#allocation11 + $0x2e0] sm:$0xff]
    %v334 = vld [vmem:[#allocation11 + $0x2e8] sm:$0xff]
    %v335 = vld [vmem:[#allocation11 + $0x2f0] sm:$0xff]
    %v336 = vld [vmem:[#allocation11 + $0x2f8] sm:$0xff]
    %v337 = vld [vmem:[#allocation11 + $0x300] sm:$0xff]
    %v338 = vld [vmem:[#allocation11 + $0x308] sm:$0xff]
    %v339 = vld [vmem:[#allocation11 + $0x310] sm:$0xff]
    %v340 = vld [vmem:[#allocation11 + $0x318] sm:$0xff]
    %v341 = vld [vmem:[#allocation11 + $0x320] sm:$0xff]
    %v342 = vld [vmem:[#allocation11 + $0x328] sm:$0xff]
    %v343 = vld [vmem:[#allocation11 + $0x330] sm:$0xff]
    %v344 = vld [vmem:[#allocation11 + $0x338] sm:$0xff]
    %v345 = vld [vmem:[#allocation11 + $0x340] sm:$0xff]
    %v346 = vld [vmem:[#allocation11 + $0x348] sm:$0xff]
    %v347 = vld [vmem:[#allocation11 + $0x350] sm:$0xff]
    %v348 = vld [vmem:[#allocation11 + $0x358] sm:$0xff]
    %v349 = vld [vmem:[#allocation11 + $0x360] sm:$0xff]
    %v350 = vld [vmem:[#allocation11 + $0x368] sm:$0xff]
    %v351 = vld [vmem:[#allocation11 + $0x370] sm:$0xff]
    %v352 = vld [vmem:[#allocation11 + $0x378] sm:$0xff]
    %v353 = vld [vmem:[#allocation11 + $0x380] sm:$0xff]
    %v354 = vld [vmem:[#allocation11 + $0x388] sm:$0xff]
    %v355 = vld [vmem:[#allocation11 + $0x390] sm:$0xff]
    %v356 = vld [vmem:[#allocation11 + $0x398] sm:$0xff]
    %v357 = vld [vmem:[#allocation11 + $0x3a0] sm:$0xff]
    %v358 = vld [vmem:[#allocation11 + $0x3a8] sm:$0xff]
    %v359 = vld [vmem:[#allocation11 + $0x3b0] sm:$0xff]
    %v360 = vld [vmem:[#allocation11 + $0x3b8] sm:$0xff]
    %v361 = vld [vmem:[#allocation11 + $0x3c0] sm:$0xff]
    %v362 = vld [vmem:[#allocation11 + $0x3c8] sm:$0xff]
    %v363 = vld [vmem:[#allocation11 + $0x3d0] sm:$0xff]
    %v364 = vld [vmem:[#allocation11 + $0x3d8] sm:$0xff]
    %v365 = vld [vmem:[#allocation11 + $0x3e0] sm:$0xff]
    %v366 = vld [vmem:[#allocation11 + $0x3e8] sm:$0xff]
    %v367 = vld [vmem:[#allocation11 + $0x3f0] sm:$0xff]
    %v368 = vld [vmem:[#allocation11 + $0x3f8] sm:$0xff]
    %v369 = vld [vmem:[%s4] sm:$0xff]
    %v370 = vld [vmem:[%s4 + $0x8] sm:$0xff]
    %v373 = vlaneseq
    %v374 = vshrl.u32 %v373, 7
    %v375 = vsub.s32 0, %v374
    %v376 = vrot.slane %v369, %v375
    %v377 = vlaneseq
    %v378 = vshrl.u32 %v377, 7
    %v379 = vsub.s32 1, %v378
    %v380 = vrot.slane %v369, %v379
    %v381 = vlaneseq
    %v382 = vshrl.u32 %v381, 7
    %v383 = vsub.s32 2, %v382
    %v384 = vrot.slane %v369, %v383
    %v385 = vlaneseq
    %v386 = vshrl.u32 %v385, 7
    %v387 = vsub.s32 3, %v386
    %v388 = vrot.slane %v369, %v387
    %v389 = vlaneseq
    %v390 = vshrl.u32 %v389, 7
    %v391 = vsub.s32 4, %v390
    %v392 = vrot.slane %v369, %v391
    %v393 = vlaneseq
    %v394 = vshrl.u32 %v393, 7
    %v395 = vsub.s32 5, %v394
    %v396 = vrot.slane %v369, %v395
    %v397 = vlaneseq
    %v398 = vshrl.u32 %v397, 7
    %v399 = vsub.s32 6, %v398
    %v400 = vrot.slane %v369, %v399
    %v401 = vlaneseq
    %v402 = vshrl.u32 %v401, 7
    %v403 = vsub.s32 7, %v402
    %v404 = vrot.slane %v369, %v403
    %v405 = vlaneseq
    %v406 = vshrl.u32 %v405, 7
    %v407 = vsub.s32 0, %v406
    %v408 = vrot.slane %v370, %v407
    %v409 = vlaneseq
    %v410 = vshrl.u32 %v409, 7
    %v411 = vsub.s32 1, %v410
    %v412 = vrot.slane %v370, %v411
    %v413 = vlaneseq
    %v414 = vshrl.u32 %v413, 7
    %v415 = vsub.s32 2, %v414
    %v416 = vrot.slane %v370, %v415
    %v417 = vlaneseq
    %v418 = vshrl.u32 %v417, 7
    %v419 = vsub.s32 3, %v418
    %v420 = vrot.slane %v370, %v419
    %v421 = vlaneseq
    %v422 = vshrl.u32 %v421, 7
    %v423 = vsub.s32 4, %v422
    %v424 = vrot.slane %v370, %v423
    %v425 = vlaneseq
    %v426 = vshrl.u32 %v425, 7
    %v427 = vsub.s32 5, %v426
    %v428 = vrot.slane %v370, %v427
    %v429 = vlaneseq
    %v430 = vshrl.u32 %v429, 7
    %v431 = vsub.s32 6, %v430
    %v432 = vrot.slane %v370, %v431
    %v433 = vlaneseq
    %v434 = vshrl.u32 %v433, 7
    %v435 = vsub.s32 7, %v434
    %v436 = vrot.slane %v370, %v435
    %v581 = vunpack.c.l.b16 %v241
    %v582 = vunpack.c.h.b16 %v241
    %v583 = vunpack.c.l.b16 %v242
    %v584 = vunpack.c.h.b16 %v242
    %v585 = vunpack.c.l.b16 %v243
    %v586 = vunpack.c.h.b16 %v243
    %v587 = vunpack.c.l.b16 %v244
    %v588 = vunpack.c.h.b16 %v244
    %v589 = vunpack.c.l.b16 %v245
    %v590 = vunpack.c.h.b16 %v245
    %v591 = vunpack.c.l.b16 %v246
    %v592 = vunpack.c.h.b16 %v246
    %v593 = vunpack.c.l.b16 %v247
    %v594 = vunpack.c.h.b16 %v247
    %v595 = vunpack.c.l.b16 %v248
    %v596 = vunpack.c.h.b16 %v248
    %v597 = vunpack.c.l.b16 %v249
    %v598 = vunpack.c.h.b16 %v249
    %v599 = vunpack.c.l.b16 %v250
    %v600 = vunpack.c.h.b16 %v250
    %v601 = vunpack.c.l.b16 %v251
    %v602 = vunpack.c.h.b16 %v251
    %v603 = vunpack.c.l.b16 %v252
    %v604 = vunpack.c.h.b16 %v252
    %v605 = vunpack.c.l.b16 %v253
    %v606 = vunpack.c.h.b16 %v253
    %v607 = vunpack.c.l.b16 %v254
    %v608 = vunpack.c.h.b16 %v254
    %v609 = vunpack.c.l.b16 %v255
    %v610 = vunpack.c.h.b16 %v255
    %v611 = vunpack.c.l.b16 %v256
    %v612 = vunpack.c.h.b16 %v256
    %v613 = vunpack.c.l.b16 %v257
    %v614 = vunpack.c.h.b16 %v257
    %v615 = vunpack.c.l.b16 %v258
    %v616 = vunpack.c.h.b16 %v258
    %v617 = vunpack.c.l.b16 %v259
    %v618 = vunpack.c.h.b16 %v259
    %v619 = vunpack.c.l.b16 %v260
    %v620 = vunpack.c.h.b16 %v260
    %v621 = vunpack.c.l.b16 %v261
    %v622 = vunpack.c.h.b16 %v261
    %v623 = vunpack.c.l.b16 %v262
    %v624 = vunpack.c.h.b16 %v262
    %v625 = vunpack.c.l.b16 %v263
    %v626 = vunpack.c.h.b16 %v263
    %v627 = vunpack.c.l.b16 %v264
    %v628 = vunpack.c.h.b16 %v264
    %v629 = vunpack.c.l.b16 %v265
    %v630 = vunpack.c.h.b16 %v265
    %v631 = vunpack.c.l.b16 %v266
    %v632 = vunpack.c.h.b16 %v266
    %v633 = vunpack.c.l.b16 %v267
    %v634 = vunpack.c.h.b16 %v267
    %v635 = vunpack.c.l.b16 %v268
    %v636 = vunpack.c.h.b16 %v268
    %v637 = vunpack.c.l.b16 %v269
    %v638 = vunpack.c.h.b16 %v269
    %v639 = vunpack.c.l.b16 %v270
    %v640 = vunpack.c.h.b16 %v270
    %v641 = vunpack.c.l.b16 %v271
    %v642 = vunpack.c.h.b16 %v271
    %v643 = vunpack.c.l.b16 %v272
    %v644 = vunpack.c.h.b16 %v272
    %v645 = vunpack.c.l.b16 %v273
    %v646 = vunpack.c.h.b16 %v273
    %v647 = vunpack.c.l.b16 %v274
    %v648 = vunpack.c.h.b16 %v274
    %v649 = vunpack.c.l.b16 %v275
    %v650 = vunpack.c.h.b16 %v275
    %v651 = vunpack.c.l.b16 %v276
    %v652 = vunpack.c.h.b16 %v276
    %v653 = vunpack.c.l.b16 %v277
    %v654 = vunpack.c.h.b16 %v277
    %v655 = vunpack.c.l.b16 %v278
    %v656 = vunpack.c.h.b16 %v278
    %v657 = vunpack.c.l.b16 %v279
    %v658 = vunpack.c.h.b16 %v279
    %v659 = vunpack.c.l.b16 %v280
    %v660 = vunpack.c.h.b16 %v280
    %v661 = vunpack.c.l.b16 %v281
    %v662 = vunpack.c.h.b16 %v281
    %v663 = vunpack.c.l.b16 %v282
    %v664 = vunpack.c.h.b16 %v282
    %v665 = vunpack.c.l.b16 %v283
    %v666 = vunpack.c.h.b16 %v283
    %v667 = vunpack.c.l.b16 %v284
    %v668 = vunpack.c.h.b16 %v284
    %v669 = vunpack.c.l.b16 %v285
    %v670 = vunpack.c.h.b16 %v285
    %v671 = vunpack.c.l.b16 %v286
    %v672 = vunpack.c.h.b16 %v286
    %v673 = vunpack.c.l.b16 %v287
    %v674 = vunpack.c.h.b16 %v287
    %v675 = vunpack.c.l.b16 %v288
    %v676 = vunpack.c.h.b16 %v288
    %v677 = vunpack.c.l.b16 %v289
    %v678 = vunpack.c.h.b16 %v289
    %v679 = vunpack.c.l.b16 %v290
    %v680 = vunpack.c.h.b16 %v290
    %v681 = vunpack.c.l.b16 %v291
    %v682 = vunpack.c.h.b16 %v291
    %v683 = vunpack.c.l.b16 %v292
    %v684 = vunpack.c.h.b16 %v292
    %v685 = vunpack.c.l.b16 %v293
    %v686 = vunpack.c.h.b16 %v293
    %v687 = vunpack.c.l.b16 %v294
    %v688 = vunpack.c.h.b16 %v294
    %v689 = vunpack.c.l.b16 %v295
    %v690 = vunpack.c.h.b16 %v295
    %v691 = vunpack.c.l.b16 %v296
    %v692 = vunpack.c.h.b16 %v296
    %v693 = vunpack.c.l.b16 %v297
    %v694 = vunpack.c.h.b16 %v297
    %v695 = vunpack.c.l.b16 %v298
    %v696 = vunpack.c.h.b16 %v298
    %v697 = vunpack.c.l.b16 %v299
    %v698 = vunpack.c.h.b16 %v299
    %v699 = vunpack.c.l.b16 %v300
    %v700 = vunpack.c.h.b16 %v300
    %v701 = vunpack.c.l.b16 %v301
    %v702 = vunpack.c.h.b16 %v301
    %v703 = vunpack.c.l.b16 %v302
    %v704 = vunpack.c.h.b16 %v302
    %v705 = vunpack.c.l.b16 %v303
    %v706 = vunpack.c.h.b16 %v303
    %v707 = vunpack.c.l.b16 %v304
    %v708 = vunpack.c.h.b16 %v304
    %v709 = vunpack.c.l.b16 %v305
    %v710 = vunpack.c.h.b16 %v305
    %v711 = vunpack.c.l.b16 %v306
    %v712 = vunpack.c.h.b16 %v306
    %v713 = vunpack.c.l.b16 %v307
    %v714 = vunpack.c.h.b16 %v307
    %v715 = vunpack.c.l.b16 %v308
    %v716 = vunpack.c.h.b16 %v308
    %v717 = vunpack.c.l.b16 %v309
    %v718 = vunpack.c.h.b16 %v309
    %v719 = vunpack.c.l.b16 %v310
    %v720 = vunpack.c.h.b16 %v310
    %v721 = vunpack.c.l.b16 %v311
    %v722 = vunpack.c.h.b16 %v311
    %v723 = vunpack.c.l.b16 %v312
    %v724 = vunpack.c.h.b16 %v312
    %v725 = vunpack.c.l.b16 %v313
    %v726 = vunpack.c.h.b16 %v313
    %v727 = vunpack.c.l.b16 %v314
    %v728 = vunpack.c.h.b16 %v314
    %v729 = vunpack.c.l.b16 %v315
    %v730 = vunpack.c.h.b16 %v315
    %v731 = vunpack.c.l.b16 %v316
    %v732 = vunpack.c.h.b16 %v316
    %v733 = vunpack.c.l.b16 %v317
    %v734 = vunpack.c.h.b16 %v317
    %v735 = vunpack.c.l.b16 %v318
    %v736 = vunpack.c.h.b16 %v318
    %v737 = vunpack.c.l.b16 %v319
    %v738 = vunpack.c.h.b16 %v319
    %v739 = vunpack.c.l.b16 %v320
    %v740 = vunpack.c.h.b16 %v320
    %v741 = vunpack.c.l.b16 %v321
    %v742 = vunpack.c.h.b16 %v321
    %v743 = vunpack.c.l.b16 %v322
    %v744 = vunpack.c.h.b16 %v322
    %v745 = vunpack.c.l.b16 %v323
    %v746 = vunpack.c.h.b16 %v323
    %v747 = vunpack.c.l.b16 %v324
    %v748 = vunpack.c.h.b16 %v324
    %v749 = vunpack.c.l.b16 %v325
    %v750 = vunpack.c.h.b16 %v325
    %v751 = vunpack.c.l.b16 %v326
    %v752 = vunpack.c.h.b16 %v326
    %v753 = vunpack.c.l.b16 %v327
    %v754 = vunpack.c.h.b16 %v327
    %v755 = vunpack.c.l.b16 %v328
    %v756 = vunpack.c.h.b16 %v328
    %v757 = vunpack.c.l.b16 %v329
    %v758 = vunpack.c.h.b16 %v329
    %v759 = vunpack.c.l.b16 %v330
    %v760 = vunpack.c.h.b16 %v330
    %v761 = vunpack.c.l.b16 %v331
    %v762 = vunpack.c.h.b16 %v331
    %v763 = vunpack.c.l.b16 %v332
    %v764 = vunpack.c.h.b16 %v332
    %v765 = vunpack.c.l.b16 %v333
    %v766 = vunpack.c.h.b16 %v333
    %v767 = vunpack.c.l.b16 %v334
    %v768 = vunpack.c.h.b16 %v334
    %v769 = vunpack.c.l.b16 %v335
    %v770 = vunpack.c.h.b16 %v335
    %v771 = vunpack.c.l.b16 %v336
    %v772 = vunpack.c.h.b16 %v336
    %v773 = vunpack.c.l.b16 %v337
    %v774 = vunpack.c.h.b16 %v337
    %v775 = vunpack.c.l.b16 %v338
    %v776 = vunpack.c.h.b16 %v338
    %v777 = vunpack.c.l.b16 %v339
    %v778 = vunpack.c.h.b16 %v339
    %v779 = vunpack.c.l.b16 %v340
    %v780 = vunpack.c.h.b16 %v340
    %v781 = vunpack.c.l.b16 %v341
    %v782 = vunpack.c.h.b16 %v341
    %v783 = vunpack.c.l.b16 %v342
    %v784 = vunpack.c.h.b16 %v342
    %v785 = vunpack.c.l.b16 %v343
    %v786 = vunpack.c.h.b16 %v343
    %v787 = vunpack.c.l.b16 %v344
    %v788 = vunpack.c.h.b16 %v344
    %v789 = vunpack.c.l.b16 %v345
    %v790 = vunpack.c.h.b16 %v345
    %v791 = vunpack.c.l.b16 %v346
    %v792 = vunpack.c.h.b16 %v346
    %v793 = vunpack.c.l.b16 %v347
    %v794 = vunpack.c.h.b16 %v347
    %v795 = vunpack.c.l.b16 %v348
    %v796 = vunpack.c.h.b16 %v348
    %v797 = vunpack.c.l.b16 %v349
    %v798 = vunpack.c.h.b16 %v349
    %v799 = vunpack.c.l.b16 %v350
    %v800 = vunpack.c.h.b16 %v350
    %v801 = vunpack.c.l.b16 %v351
    %v802 = vunpack.c.h.b16 %v351
    %v803 = vunpack.c.l.b16 %v352
    %v804 = vunpack.c.h.b16 %v352
    %v805 = vunpack.c.l.b16 %v353
    %v806 = vunpack.c.h.b16 %v353
    %v807 = vunpack.c.l.b16 %v354
    %v808 = vunpack.c.h.b16 %v354
    %v809 = vunpack.c.l.b16 %v355
    %v810 = vunpack.c.h.b16 %v355
    %v811 = vunpack.c.l.b16 %v356
    %v812 = vunpack.c.h.b16 %v356
    %v813 = vunpack.c.l.b16 %v357
    %v814 = vunpack.c.h.b16 %v357
    %v815 = vunpack.c.l.b16 %v358
    %v816 = vunpack.c.h.b16 %v358
    %v817 = vunpack.c.l.b16 %v359
    %v818 = vunpack.c.h.b16 %v359
    %v819 = vunpack.c.l.b16 %v360
    %v820 = vunpack.c.h.b16 %v360
    %v821 = vunpack.c.l.b16 %v361
    %v822 = vunpack.c.h.b16 %v361
    %v823 = vunpack.c.l.b16 %v362
    %v824 = vunpack.c.h.b16 %v362
    %v825 = vunpack.c.l.b16 %v363
    %v826 = vunpack.c.h.b16 %v363
    %v827 = vunpack.c.l.b16 %v364
    %v828 = vunpack.c.h.b16 %v364
    %v829 = vunpack.c.l.b16 %v365
    %v830 = vunpack.c.h.b16 %v365
    %v831 = vunpack.c.l.b16 %v366
    %v832 = vunpack.c.h.b16 %v366
    %v833 = vunpack.c.l.b16 %v367
    %v834 = vunpack.c.h.b16 %v367
    %v835 = vunpack.c.l.b16 %v368
    %v836 = vunpack.c.h.b16 %v368
    %v837 = vpack.c.b16 %v597, %v581
    %v838 = vpack.c.b16 %v598, %v582
    %v839 = vpack.c.b16 %v599, %v583
    %v840 = vpack.c.b16 %v600, %v584
    %v841 = vpack.c.b16 %v601, %v585
    %v842 = vpack.c.b16 %v602, %v586
    %v843 = vpack.c.b16 %v603, %v587
    %v844 = vpack.c.b16 %v604, %v588
    %v845 = vpack.c.b16 %v605, %v589
    %v846 = vpack.c.b16 %v606, %v590
    %v847 = vpack.c.b16 %v607, %v591
    %v848 = vpack.c.b16 %v608, %v592
    %v849 = vpack.c.b16 %v609, %v593
    %v850 = vpack.c.b16 %v610, %v594
    %v851 = vpack.c.b16 %v611, %v595
    %v852 = vpack.c.b16 %v612, %v596
    %v853 = vpack.c.b16 %v629, %v613
    %v854 = vpack.c.b16 %v630, %v614
    %v855 = vpack.c.b16 %v631, %v615
    %v856 = vpack.c.b16 %v632, %v616
    %v857 = vpack.c.b16 %v633, %v617
    %v858 = vpack.c.b16 %v634, %v618
    %v859 = vpack.c.b16 %v635, %v619
    %v860 = vpack.c.b16 %v636, %v620
    %v861 = vpack.c.b16 %v637, %v621
    %v862 = vpack.c.b16 %v638, %v622
    %v863 = vpack.c.b16 %v639, %v623
    %v864 = vpack.c.b16 %v640, %v624
    %v865 = vpack.c.b16 %v641, %v625
    %v866 = vpack.c.b16 %v642, %v626
    %v867 = vpack.c.b16 %v643, %v627
    %v868 = vpack.c.b16 %v644, %v628
    %v869 = vpack.c.b16 %v661, %v645
    %v870 = vpack.c.b16 %v662, %v646
    %v871 = vpack.c.b16 %v663, %v647
    %v872 = vpack.c.b16 %v664, %v648
    %v873 = vpack.c.b16 %v665, %v649
    %v874 = vpack.c.b16 %v666, %v650
    %v875 = vpack.c.b16 %v667, %v651
    %v876 = vpack.c.b16 %v668, %v652
    %v877 = vpack.c.b16 %v669, %v653
    %v878 = vpack.c.b16 %v670, %v654
    %v879 = vpack.c.b16 %v671, %v655
    %v880 = vpack.c.b16 %v672, %v656
    %v881 = vpack.c.b16 %v673, %v657
    %v882 = vpack.c.b16 %v674, %v658
    %v883 = vpack.c.b16 %v675, %v659
    %v884 = vpack.c.b16 %v676, %v660
    %v885 = vpack.c.b16 %v693, %v677
    %v886 = vpack.c.b16 %v694, %v678
    %v887 = vpack.c.b16 %v695, %v679
    %v888 = vpack.c.b16 %v696, %v680
    %v889 = vpack.c.b16 %v697, %v681
    %v890 = vpack.c.b16 %v698, %v682
    %v891 = vpack.c.b16 %v699, %v683
    %v892 = vpack.c.b16 %v700, %v684
    %v893 = vpack.c.b16 %v701, %v685
    %v894 = vpack.c.b16 %v702, %v686
    %v895 = vpack.c.b16 %v703, %v687
    %v896 = vpack.c.b16 %v704, %v688
    %v897 = vpack.c.b16 %v705, %v689
    %v898 = vpack.c.b16 %v706, %v690
    %v899 = vpack.c.b16 %v707, %v691
    %v900 = vpack.c.b16 %v708, %v692
    %v901 = vpack.c.b16 %v725, %v709
    %v902 = vpack.c.b16 %v726, %v710
    %v903 = vpack.c.b16 %v727, %v711
    %v904 = vpack.c.b16 %v728, %v712
    %v905 = vpack.c.b16 %v729, %v713
    %v906 = vpack.c.b16 %v730, %v714
    %v907 = vpack.c.b16 %v731, %v715
    %v908 = vpack.c.b16 %v732, %v716
    %v909 = vpack.c.b16 %v733, %v717
    %v910 = vpack.c.b16 %v734, %v718
    %v911 = vpack.c.b16 %v735, %v719
    %v912 = vpack.c.b16 %v736, %v720
    %v913 = vpack.c.b16 %v737, %v721
    %v914 = vpack.c.b16 %v738, %v722
    %v915 = vpack.c.b16 %v739, %v723
    %v916 = vpack.c.b16 %v740, %v724
    %v917 = vpack.c.b16 %v757, %v741
    %v918 = vpack.c.b16 %v758, %v742
    %v919 = vpack.c.b16 %v759, %v743
    %v920 = vpack.c.b16 %v760, %v744
    %v921 = vpack.c.b16 %v761, %v745
    %v922 = vpack.c.b16 %v762, %v746
    %v923 = vpack.c.b16 %v763, %v747
    %v924 = vpack.c.b16 %v764, %v748
    %v925 = vpack.c.b16 %v765, %v749
    %v926 = vpack.c.b16 %v766, %v750
    %v927 = vpack.c.b16 %v767, %v751
    %v928 = vpack.c.b16 %v768, %v752
    %v929 = vpack.c.b16 %v769, %v753
    %v930 = vpack.c.b16 %v770, %v754
    %v931 = vpack.c.b16 %v771, %v755
    %v932 = vpack.c.b16 %v772, %v756
    %v933 = vpack.c.b16 %v789, %v773
    %v934 = vpack.c.b16 %v790, %v774
    %v935 = vpack.c.b16 %v791, %v775
    %v936 = vpack.c.b16 %v792, %v776
    %v937 = vpack.c.b16 %v793, %v777
    %v938 = vpack.c.b16 %v794, %v778
    %v939 = vpack.c.b16 %v795, %v779
    %v940 = vpack.c.b16 %v796, %v780
    %v941 = vpack.c.b16 %v797, %v781
    %v942 = vpack.c.b16 %v798, %v782
    %v943 = vpack.c.b16 %v799, %v783
    %v944 = vpack.c.b16 %v800, %v784
    %v945 = vpack.c.b16 %v801, %v785
    %v946 = vpack.c.b16 %v802, %v786
    %v947 = vpack.c.b16 %v803, %v787
    %v948 = vpack.c.b16 %v804, %v788
    %v949 = vpack.c.b16 %v821, %v805
    %v950 = vpack.c.b16 %v822, %v806
    %v951 = vpack.c.b16 %v823, %v807
    %v952 = vpack.c.b16 %v824, %v808
    %v953 = vpack.c.b16 %v825, %v809
    %v954 = vpack.c.b16 %v826, %v810
    %v955 = vpack.c.b16 %v827, %v811
    %v956 = vpack.c.b16 %v828, %v812
    %v957 = vpack.c.b16 %v829, %v813
    %v958 = vpack.c.b16 %v830, %v814
    %v959 = vpack.c.b16 %v831, %v815
    %v960 = vpack.c.b16 %v832, %v816
    %v961 = vpack.c.b16 %v833, %v817
    %v962 = vpack.c.b16 %v834, %v818
    %v963 = vpack.c.b16 %v835, %v819
    %v964 = vpack.c.b16 %v836, %v820
    %1093 = vmatprep.subr.bf16.mxu0 %v950
    %1094 = vmatpush1.bf16.msra.mxu0 %v949
    %1095 = vmatprep.subr.bf16.mxu0 %v934
    %1096 = vmatpush1.bf16.msra.mxu0 %v933
    %1097 = vmatprep.subr.bf16.mxu0 %v918
    %1098 = vmatpush1.bf16.msra.mxu0 %v917
    %1099 = vmatprep.subr.bf16.mxu0 %v902
    %1100 = vmatpush1.bf16.msra.mxu0 %v901
    %1101 = vmatprep.subr.bf16.mxu0 %v886
    %1102 = vmatpush1.bf16.msra.mxu0 %v885
    %1103 = vmatprep.subr.bf16.mxu0 %v870
    %1104 = vmatpush1.bf16.msra.mxu0 %v869
    %1105 = vmatprep.subr.bf16.mxu0 %v854
    %1106 = vmatpush1.bf16.msra.mxu0 %v853
    %1107 = vmatprep.subr.bf16.mxu0 %v838
    %1108 = vmatpush1.bf16.msra.mxu0 %v837
    %1109 = vmatprep.subr.bf16.mxu0 0
    %1110 = vmatpush2.bf16.msra.mxu0 0
    %1111 = vmatprep.subr.bf16.mxu0 0
    %1112 = vmatpush2.bf16.msra.mxu0 0
    %1113 = vmatprep.subr.bf16.mxu0 0
    %1114 = vmatpush2.bf16.msra.mxu0 0
    %1115 = vmatprep.subr.bf16.mxu0 0
    %1116 = vmatpush2.bf16.msra.mxu0 0
    %1117 = vmatprep.subr.bf16.mxu0 0
    %1118 = vmatpush2.bf16.msra.mxu0 0
    %1119 = vmatprep.subr.bf16.mxu0 0
    %1120 = vmatpush2.bf16.msra.mxu0 0
    %1121 = vmatprep.subr.bf16.mxu0 0
    %1122 = vmatpush2.bf16.msra.mxu0 0
    %1123 = vmatprep.subr.bf16.mxu0 0
    %1124 = vmatpush2.bf16.msra.mxu0 0
    %1125 = vmatprep.mubr.bf16.mxu0 0
    %1126 = vmatmul.mubr.bf16.gmra.mxu0 %v237
    %v1127 = vpop.f32.mrf.mxu0
    %v1128 = vadd.f32 %v376, %v1127
    %v1129 = vpop.f32.mrf.mxu0
    %v1130 = vadd.f32 %v380, %v1129
    %v1131 = vpop.f32.mrf.mxu0
    %v1132 = vadd.f32 %v376, %v1131
    %v1133 = vpop.f32.mrf.mxu0
    %v1134 = vadd.f32 %v380, %v1133
    %1135 = vmatprep.mubr.bf16.mxu0 0
    %1136 = vmatmul.mubr.bf16.gmra.mxu0 %v238
    %v1137 = vpop.f32.mrf.mxu0
    %v1138 = vadd.f32 %v376, %v1137
    %v1139 = vpop.f32.mrf.mxu0
    %v1140 = vadd.f32 %v380, %v1139
    %v1141 = vpop.f32.mrf.mxu0
    %v1142 = vadd.f32 %v376, %v1141
    %v1143 = vpop.f32.mrf.mxu0
    %v1144 = vadd.f32 %v380, %v1143
    %1145 = vmatprep.mubr.bf16.mxu0 0
    %1146 = vmatmul.mubr.bf16.gmra.mxu0 %v239
    %v1147 = vpop.f32.mrf.mxu0
    %v1148 = vadd.f32 %v376, %v1147
    %v1149 = vpop.f32.mrf.mxu0
    %v1150 = vadd.f32 %v380, %v1149
    %v1151 = vpop.f32.mrf.mxu0
    %v1152 = vadd.f32 %v376, %v1151
    %v1153 = vpop.f32.mrf.mxu0
    %v1154 = vadd.f32 %v380, %v1153
    %1155 = vmatprep.mubr.bf16.mxu0 0
    %1156 = vmatmul.mubr.bf16.gmra.mxu0 %v240
    %v1157 = vpop.f32.mrf.mxu0
    %v1158 = vadd.f32 %v376, %v1157
    %v1159 = vpop.f32.mrf.mxu0
    %v1160 = vadd.f32 %v380, %v1159
    %v1161 = vpop.f32.mrf.mxu0
    %v1162 = vadd.f32 %v376, %v1161
    %v1163 = vpop.f32.mrf.mxu0
    %v1164 = vadd.f32 %v380, %v1163
    %1165 = vdwg.mxu0
    %1166 = vmatprep.subr.bf16.mxu0 %v952
    %1167 = vmatpush1.bf16.msra.mxu0 %v951
    %1168 = vmatprep.subr.bf16.mxu0 %v936
    %1169 = vmatpush1.bf16.msra.mxu0 %v935
    %1170 = vmatprep.subr.bf16.mxu0 %v920
    %1171 = vmatpush1.bf16.msra.mxu0 %v919
    %1172 = vmatprep.subr.bf16.mxu0 %v904
    %1173 = vmatpush1.bf16.msra.mxu0 %v903
    %1174 = vmatprep.subr.bf16.mxu0 %v888
    %1175 = vmatpush1.bf16.msra.mxu0 %v887
    %1176 = vmatprep.subr.bf16.mxu0 %v872
    %1177 = vmatpush1.bf16.msra.mxu0 %v871
    %1178 = vmatprep.subr.bf16.mxu0 %v856
    %1179 = vmatpush1.bf16.msra.mxu0 %v855
    %1180 = vmatprep.subr.bf16.mxu0 %v840
    %1181 = vmatpush1.bf16.msra.mxu0 %v839
    %1182 = vmatprep.subr.bf16.mxu0 0
    %1183 = vmatpush2.bf16.msra.mxu0 0
    %1184 = vmatprep.subr.bf16.mxu0 0
    %1185 = vmatpush2.bf16.msra.mxu0 0
    %1186 = vmatprep.subr.bf16.mxu0 0
    %1187 = vmatpush2.bf16.msra.mxu0 0
    %1188 = vmatprep.subr.bf16.mxu0 0
    %1189 = vmatpush2.bf16.msra.mxu0 0
    %1190 = vmatprep.subr.bf16.mxu0 0
    %1191 = vmatpush2.bf16.msra.mxu0 0
    %1192 = vmatprep.subr.bf16.mxu0 0
    %1193 = vmatpush2.bf16.msra.mxu0 0
    %1194 = vmatprep.subr.bf16.mxu0 0
    %1195 = vmatpush2.bf16.msra.mxu0 0
    %1196 = vmatprep.subr.bf16.mxu0 0
    %1197 = vmatpush2.bf16.msra.mxu0 0
    %1198 = vmatprep.mubr.bf16.mxu0 0
    %1199 = vmatmul.mubr.bf16.gmra.mxu0 %v237
    %v1200 = vpop.f32.mrf.mxu0
    %v1201 = vadd.f32 %v384, %v1200
    %v1202 = vpop.f32.mrf.mxu0
    %v1203 = vadd.f32 %v388, %v1202
    %v1204 = vpop.f32.mrf.mxu0
    %v1205 = vadd.f32 %v384, %v1204
    %v1206 = vpop.f32.mrf.mxu0
    %v1207 = vadd.f32 %v388, %v1206
    %1208 = vmatprep.mubr.bf16.mxu0 0
    %1209 = vmatmul.mubr.bf16.gmra.mxu0 %v238
    %v1210 = vpop.f32.mrf.mxu0
    %v1211 = vadd.f32 %v384, %v1210
    %v1212 = vpop.f32.mrf.mxu0
    %v1213 = vadd.f32 %v388, %v1212
    %v1214 = vpop.f32.mrf.mxu0
    %v1215 = vadd.f32 %v384, %v1214
    %v1216 = vpop.f32.mrf.mxu0
    %v1217 = vadd.f32 %v388, %v1216
    %1218 = vmatprep.mubr.bf16.mxu0 0
    %1219 = vmatmul.mubr.bf16.gmra.mxu0 %v239
    %v1220 = vpop.f32.mrf.mxu0
    %v1221 = vadd.f32 %v384, %v1220
    %v1222 = vpop.f32.mrf.mxu0
    %v1223 = vadd.f32 %v388, %v1222
    %v1224 = vpop.f32.mrf.mxu0
    %v1225 = vadd.f32 %v384, %v1224
    %v1226 = vpop.f32.mrf.mxu0
    %v1227 = vadd.f32 %v388, %v1226
    %1228 = vmatprep.mubr.bf16.mxu0 0
    %1229 = vmatmul.mubr.bf16.gmra.mxu0 %v240
    %v1230 = vpop.f32.mrf.mxu0
    %v1231 = vadd.f32 %v384, %v1230
    %v1232 = vpop.f32.mrf.mxu0
    %v1233 = vadd.f32 %v388, %v1232
    %v1234 = vpop.f32.mrf.mxu0
    %v1235 = vadd.f32 %v384, %v1234
    %v1236 = vpop.f32.mrf.mxu0
    %v1237 = vadd.f32 %v388, %v1236
    %1238 = vdwg.mxu0
    %1239 = vmatprep.subr.bf16.mxu0 %v954
    %1240 = vmatpush1.bf16.msra.mxu0 %v953
    %1241 = vmatprep.subr.bf16.mxu0 %v938
    %1242 = vmatpush1.bf16.msra.mxu0 %v937
    %1243 = vmatprep.subr.bf16.mxu0 %v922
    %1244 = vmatpush1.bf16.msra.mxu0 %v921
    %1245 = vmatprep.subr.bf16.mxu0 %v906
    %1246 = vmatpush1.bf16.msra.mxu0 %v905
    %1247 = vmatprep.subr.bf16.mxu0 %v890
    %1248 = vmatpush1.bf16.msra.mxu0 %v889
    %1249 = vmatprep.subr.bf16.mxu0 %v874
    %1250 = vmatpush1.bf16.msra.mxu0 %v873
    %1251 = vmatprep.subr.bf16.mxu0 %v858
    %1252 = vmatpush1.bf16.msra.mxu0 %v857
    %1253 = vmatprep.subr.bf16.mxu0 %v842
    %1254 = vmatpush1.bf16.msra.mxu0 %v841
    %1255 = vmatprep.subr.bf16.mxu0 0
    %1256 = vmatpush2.bf16.msra.mxu0 0
    %1257 = vmatprep.subr.bf16.mxu0 0
    %1258 = vmatpush2.bf16.msra.mxu0 0
    %1259 = vmatprep.subr.bf16.mxu0 0
    %1260 = vmatpush2.bf16.msra.mxu0 0
    %1261 = vmatprep.subr.bf16.mxu0 0
    %1262 = vmatpush2.bf16.msra.mxu0 0
    %1263 = vmatprep.subr.bf16.mxu0 0
    %1264 = vmatpush2.bf16.msra.mxu0 0
    %1265 = vmatprep.subr.bf16.mxu0 0
    %1266 = vmatpush2.bf16.msra.mxu0 0
    %1267 = vmatprep.subr.bf16.mxu0 0
    %1268 = vmatpush2.bf16.msra.mxu0 0
    %1269 = vmatprep.subr.bf16.mxu0 0
    %1270 = vmatpush2.bf16.msra.mxu0 0
    %1271 = vmatprep.mubr.bf16.mxu0 0
    %1272 = vmatmul.mubr.bf16.gmra.mxu0 %v237
    %v1273 = vpop.f32.mrf.mxu0
    %v1274 = vadd.f32 %v392, %v1273
    %v1275 = vpop.f32.mrf.mxu0
    %v1276 = vadd.f32 %v396, %v1275
    %v1277 = vpop.f32.mrf.mxu0
    %v1278 = vadd.f32 %v392, %v1277
    %v1279 = vpop.f32.mrf.mxu0
    %v1280 = vadd.f32 %v396, %v1279
    %1281 = vmatprep.mubr.bf16.mxu0 0
    %1282 = vmatmul.mubr.bf16.gmra.mxu0 %v238
    %v1283 = vpop.f32.mrf.mxu0
    %v1284 = vadd.f32 %v392, %v1283
    %v1285 = vpop.f32.mrf.mxu0
    %v1286 = vadd.f32 %v396, %v1285
    %v1287 = vpop.f32.mrf.mxu0
    %v1288 = vadd.f32 %v392, %v1287
    %v1289 = vpop.f32.mrf.mxu0
    %v1290 = vadd.f32 %v396, %v1289
    %1291 = vmatprep.mubr.bf16.mxu0 0
    %1292 = vmatmul.mubr.bf16.gmra.mxu0 %v239
    %v1293 = vpop.f32.mrf.mxu0
    %v1294 = vadd.f32 %v392, %v1293
    %v1295 = vpop.f32.mrf.mxu0
    %v1296 = vadd.f32 %v396, %v1295
    %v1297 = vpop.f32.mrf.mxu0
    %v1298 = vadd.f32 %v392, %v1297
    %v1299 = vpop.f32.mrf.mxu0
    %v1300 = vadd.f32 %v396, %v1299
    %1301 = vmatprep.mubr.bf16.mxu0 0
    %1302 = vmatmul.mubr.bf16.gmra.mxu0 %v240
    %v1303 = vpop.f32.mrf.mxu0
    %v1304 = vadd.f32 %v392, %v1303
    %v1305 = vpop.f32.mrf.mxu0
    %v1306 = vadd.f32 %v396, %v1305
    %v1307 = vpop.f32.mrf.mxu0
    %v1308 = vadd.f32 %v392, %v1307
    %v1309 = vpop.f32.mrf.mxu0
    %v1310 = vadd.f32 %v396, %v1309
    %1311 = vdwg.mxu0
    %1312 = vmatprep.subr.bf16.mxu0 %v956
    %1313 = vmatpush1.bf16.msra.mxu0 %v955
    %1314 = vmatprep.subr.bf16.mxu0 %v940
    %1315 = vmatpush1.bf16.msra.mxu0 %v939
    %1316 = vmatprep.subr.bf16.mxu0 %v924
    %1317 = vmatpush1.bf16.msra.mxu0 %v923
    %1318 = vmatprep.subr.bf16.mxu0 %v908
    %1319 = vmatpush1.bf16.msra.mxu0 %v907
    %1320 = vmatprep.subr.bf16.mxu0 %v892
    %1321 = vmatpush1.bf16.msra.mxu0 %v891
    %1322 = vmatprep.subr.bf16.mxu0 %v876
    %1323 = vmatpush1.bf16.msra.mxu0 %v875
    %1324 = vmatprep.subr.bf16.mxu0 %v860
    %1325 = vmatpush1.bf16.msra.mxu0 %v859
    %1326 = vmatprep.subr.bf16.mxu0 %v844
    %1327 = vmatpush1.bf16.msra.mxu0 %v843
    %1328 = vmatprep.subr.bf16.mxu0 0
    %1329 = vmatpush2.bf16.msra.mxu0 0
    %1330 = vmatprep.subr.bf16.mxu0 0
    %1331 = vmatpush2.bf16.msra.mxu0 0
    %1332 = vmatprep.subr.bf16.mxu0 0
    %1333 = vmatpush2.bf16.msra.mxu0 0
    %1334 = vmatprep.subr.bf16.mxu0 0
    %1335 = vmatpush2.bf16.msra.mxu0 0
    %1336 = vmatprep.subr.bf16.mxu0 0
    %1337 = vmatpush2.bf16.msra.mxu0 0
    %1338 = vmatprep.subr.bf16.mxu0 0
    %1339 = vmatpush2.bf16.msra.mxu0 0
    %1340 = vmatprep.subr.bf16.mxu0 0
    %1341 = vmatpush2.bf16.msra.mxu0 0
    %1342 = vmatprep.subr.bf16.mxu0 0
    %1343 = vmatpush2.bf16.msra.mxu0 0
    %1344 = vmatprep.mubr.bf16.mxu0 0
    %1345 = vmatmul.mubr.bf16.gmra.mxu0 %v237
    %v1346 = vpop.f32.mrf.mxu0
    %v1347 = vadd.f32 %v400, %v1346
    %v1348 = vpop.f32.mrf.mxu0
    %v1349 = vadd.f32 %v404, %v1348
    %v1350 = vpop.f32.mrf.mxu0
    %v1351 = vadd.f32 %v400, %v1350
    %v1352 = vpop.f32.mrf.mxu0
    %v1353 = vadd.f32 %v404, %v1352
    %1354 = vmatprep.mubr.bf16.mxu0 0
    %1355 = vmatmul.mubr.bf16.gmra.mxu0 %v238
    %v1356 = vpop.f32.mrf.mxu0
    %v1357 = vadd.f32 %v400, %v1356
    %v1358 = vpop.f32.mrf.mxu0
    %v1359 = vadd.f32 %v404, %v1358
    %v1360 = vpop.f32.mrf.mxu0
    %v1361 = vadd.f32 %v400, %v1360
    %v1362 = vpop.f32.mrf.mxu0
    %v1363 = vadd.f32 %v404, %v1362
    %1364 = vmatprep.mubr.bf16.mxu0 0
    %1365 = vmatmul.mubr.bf16.gmra.mxu0 %v239
    %v1366 = vpop.f32.mrf.mxu0
    %v1367 = vadd.f32 %v400, %v1366
    %v1368 = vpop.f32.mrf.mxu0
    %v1369 = vadd.f32 %v404, %v1368
    %v1370 = vpop.f32.mrf.mxu0
    %v1371 = vadd.f32 %v400, %v1370
    %v1372 = vpop.f32.mrf.mxu0
    %v1373 = vadd.f32 %v404, %v1372
    %1374 = vmatprep.mubr.bf16.mxu0 0
    %1375 = vmatmul.mubr.bf16.gmra.mxu0 %v240
    %v1376 = vpop.f32.mrf.mxu0
    %v1377 = vadd.f32 %v400, %v1376
    %v1378 = vpop.f32.mrf.mxu0
    %v1379 = vadd.f32 %v404, %v1378
    %v1380 = vpop.f32.mrf.mxu0
    %v1381 = vadd.f32 %v400, %v1380
    %v1382 = vpop.f32.mrf.mxu0
    %v1383 = vadd.f32 %v404, %v1382
    %1384 = vdwg.mxu0
    %1385 = vmatprep.subr.bf16.mxu0 %v958
    %1386 = vmatpush1.bf16.msra.mxu0 %v957
    %1387 = vmatprep.subr.bf16.mxu0 %v942
    %1388 = vmatpush1.bf16.msra.mxu0 %v941
    %1389 = vmatprep.subr.bf16.mxu0 %v926
    %1390 = vmatpush1.bf16.msra.mxu0 %v925
    %1391 = vmatprep.subr.bf16.mxu0 %v910
    %1392 = vmatpush1.bf16.msra.mxu0 %v909
    %1393 = vmatprep.subr.bf16.mxu0 %v894
    %1394 = vmatpush1.bf16.msra.mxu0 %v893
    %1395 = vmatprep.subr.bf16.mxu0 %v878
    %1396 = vmatpush1.bf16.msra.mxu0 %v877
    %1397 = vmatprep.subr.bf16.mxu0 %v862
    %1398 = vmatpush1.bf16.msra.mxu0 %v861
    %1399 = vmatprep.subr.bf16.mxu0 %v846
    %1400 = vmatpush1.bf16.msra.mxu0 %v845
    %1401 = vmatprep.subr.bf16.mxu0 0
    %1402 = vmatpush2.bf16.msra.mxu0 0
    %1403 = vmatprep.subr.bf16.mxu0 0
    %1404 = vmatpush2.bf16.msra.mxu0 0
    %1405 = vmatprep.subr.bf16.mxu0 0
    %1406 = vmatpush2.bf16.msra.mxu0 0
    %1407 = vmatprep.subr.bf16.mxu0 0
    %1408 = vmatpush2.bf16.msra.mxu0 0
    %1409 = vmatprep.subr.bf16.mxu0 0
    %1410 = vmatpush2.bf16.msra.mxu0 0
    %1411 = vmatprep.subr.bf16.mxu0 0
    %1412 = vmatpush2.bf16.msra.mxu0 0
    %1413 = vmatprep.subr.bf16.mxu0 0
    %1414 = vmatpush2.bf16.msra.mxu0 0
    %1415 = vmatprep.subr.bf16.mxu0 0
    %1416 = vmatpush2.bf16.msra.mxu0 0
    %1417 = vmatprep.mubr.bf16.mxu0 0
    %1418 = vmatmul.mubr.bf16.gmra.mxu0 %v237
    %v1419 = vpop.f32.mrf.mxu0
    %v1420 = vadd.f32 %v408, %v1419
    %v1421 = vpop.f32.mrf.mxu0
    %v1422 = vadd.f32 %v412, %v1421
    %v1423 = vpop.f32.mrf.mxu0
    %v1424 = vadd.f32 %v408, %v1423
    %v1425 = vpop.f32.mrf.mxu0
    %v1426 = vadd.f32 %v412, %v1425
    %1427 = vmatprep.mubr.bf16.mxu0 0
    %1428 = vmatmul.mubr.bf16.gmra.mxu0 %v238
    %v1429 = vpop.f32.mrf.mxu0
    %v1430 = vadd.f32 %v408, %v1429
    %v1431 = vpop.f32.mrf.mxu0
    %v1432 = vadd.f32 %v412, %v1431
    %v1433 = vpop.f32.mrf.mxu0
    %v1434 = vadd.f32 %v408, %v1433
    %v1435 = vpop.f32.mrf.mxu0
    %v1436 = vadd.f32 %v412, %v1435
    %1437 = vmatprep.mubr.bf16.mxu0 0
    %1438 = vmatmul.mubr.bf16.gmra.mxu0 %v239
    %v1439 = vpop.f32.mrf.mxu0
    %v1440 = vadd.f32 %v408, %v1439
    %v1441 = vpop.f32.mrf.mxu0
    %v1442 = vadd.f32 %v412, %v1441
    %v1443 = vpop.f32.mrf.mxu0
    %v1444 = vadd.f32 %v408, %v1443
    %v1445 = vpop.f32.mrf.mxu0
    %v1446 = vadd.f32 %v412, %v1445
    %1447 = vmatprep.mubr.bf16.mxu0 0
    %1448 = vmatmul.mubr.bf16.gmra.mxu0 %v240
    %v1449 = vpop.f32.mrf.mxu0
    %v1450 = vadd.f32 %v408, %v1449
    %v1451 = vpop.f32.mrf.mxu0
    %v1452 = vadd.f32 %v412, %v1451
    %v1453 = vpop.f32.mrf.mxu0
    %v1454 = vadd.f32 %v408, %v1453
    %v1455 = vpop.f32.mrf.mxu0
    %v1456 = vadd.f32 %v412, %v1455
    %1457 = vdwg.mxu0
    %1458 = vmatprep.subr.bf16.mxu0 %v960
    %1459 = vmatpush1.bf16.msra.mxu0 %v959
    %1460 = vmatprep.subr.bf16.mxu0 %v944
    %1461 = vmatpush1.bf16.msra.mxu0 %v943
    %1462 = vmatprep.subr.bf16.mxu0 %v928
    %1463 = vmatpush1.bf16.msra.mxu0 %v927
    %1464 = vmatprep.subr.bf16.mxu0 %v912
    %1465 = vmatpush1.bf16.msra.mxu0 %v911
    %1466 = vmatprep.subr.bf16.mxu0 %v896
    %1467 = vmatpush1.bf16.msra.mxu0 %v895
    %1468 = vmatprep.subr.bf16.mxu0 %v880
    %1469 = vmatpush1.bf16.msra.mxu0 %v879
    %1470 = vmatprep.subr.bf16.mxu0 %v864
    %1471 = vmatpush1.bf16.msra.mxu0 %v863
    %1472 = vmatprep.subr.bf16.mxu0 %v848
    %1473 = vmatpush1.bf16.msra.mxu0 %v847
    %1474 = vmatprep.subr.bf16.mxu0 0
    %1475 = vmatpush2.bf16.msra.mxu0 0
    %1476 = vmatprep.subr.bf16.mxu0 0
    %1477 = vmatpush2.bf16.msra.mxu0 0
    %1478 = vmatprep.subr.bf16.mxu0 0
    %1479 = vmatpush2.bf16.msra.mxu0 0
    %1480 = vmatprep.subr.bf16.mxu0 0
    %1481 = vmatpush2.bf16.msra.mxu0 0
    %1482 = vmatprep.subr.bf16.mxu0 0
    %1483 = vmatpush2.bf16.msra.mxu0 0
    %1484 = vmatprep.subr.bf16.mxu0 0
    %1485 = vmatpush2.bf16.msra.mxu0 0
    %1486 = vmatprep.subr.bf16.mxu0 0
    %1487 = vmatpush2.bf16.msra.mxu0 0
    %1488 = vmatprep.subr.bf16.mxu0 0
    %1489 = vmatpush2.bf16.msra.mxu0 0
    %1490 = vmatprep.mubr.bf16.mxu0 0
    %1491 = vmatmul.mubr.bf16.gmra.mxu0 %v237
    %v1492 = vpop.f32.mrf.mxu0
    %v1493 = vadd.f32 %v416, %v1492
    %v1494 = vpop.f32.mrf.mxu0
    %v1495 = vadd.f32 %v420, %v1494
    %v1496 = vpop.f32.mrf.mxu0
    %v1497 = vadd.f32 %v416, %v1496
    %v1498 = vpop.f32.mrf.mxu0
    %v1499 = vadd.f32 %v420, %v1498
    %1500 = vmatprep.mubr.bf16.mxu0 0
    %1501 = vmatmul.mubr.bf16.gmra.mxu0 %v238
    %v1502 = vpop.f32.mrf.mxu0
    %v1503 = vadd.f32 %v416, %v1502
    %v1504 = vpop.f32.mrf.mxu0
    %v1505 = vadd.f32 %v420, %v1504
    %v1506 = vpop.f32.mrf.mxu0
    %v1507 = vadd.f32 %v416, %v1506
    %v1508 = vpop.f32.mrf.mxu0
    %v1509 = vadd.f32 %v420, %v1508
    %1510 = vmatprep.mubr.bf16.mxu0 0
    %1511 = vmatmul.mubr.bf16.gmra.mxu0 %v239
    %v1512 = vpop.f32.mrf.mxu0
    %v1513 = vadd.f32 %v416, %v1512
    %v1514 = vpop.f32.mrf.mxu0
    %v1515 = vadd.f32 %v420, %v1514
    %v1516 = vpop.f32.mrf.mxu0
    %v1517 = vadd.f32 %v416, %v1516
    %v1518 = vpop.f32.mrf.mxu0
    %v1519 = vadd.f32 %v420, %v1518
    %1520 = vmatprep.mubr.bf16.mxu0 0
    %1521 = vmatmul.mubr.bf16.gmra.mxu0 %v240
    %v1522 = vpop.f32.mrf.mxu0
    %v1523 = vadd.f32 %v416, %v1522
    %v1524 = vpop.f32.mrf.mxu0
    %v1525 = vadd.f32 %v420, %v1524
    %v1526 = vpop.f32.mrf.mxu0
    %v1527 = vadd.f32 %v416, %v1526
    %v1528 = vpop.f32.mrf.mxu0
    %v1529 = vadd.f32 %v420, %v1528
    %1530 = vdwg.mxu0
    %1531 = vmatprep.subr.bf16.mxu0 %v962
    %1532 = vmatpush1.bf16.msra.mxu0 %v961
    %1533 = vmatprep.subr.bf16.mxu0 %v946
    %1534 = vmatpush1.bf16.msra.mxu0 %v945
    %1535 = vmatprep.subr.bf16.mxu0 %v930
    %1536 = vmatpush1.bf16.msra.mxu0 %v929
    %1537 = vmatprep.subr.bf16.mxu0 %v914
    %1538 = vmatpush1.bf16.msra.mxu0 %v913
    %1539 = vmatprep.subr.bf16.mxu0 %v898
    %1540 = vmatpush1.bf16.msra.mxu0 %v897
    %1541 = vmatprep.subr.bf16.mxu0 %v882
    %1542 = vmatpush1.bf16.msra.mxu0 %v881
    %1543 = vmatprep.subr.bf16.mxu0 %v866
    %1544 = vmatpush1.bf16.msra.mxu0 %v865
    %1545 = vmatprep.subr.bf16.mxu0 %v850
    %1546 = vmatpush1.bf16.msra.mxu0 %v849
    %1547 = vmatprep.subr.bf16.mxu0 0
    %1548 = vmatpush2.bf16.msra.mxu0 0
    %1549 = vmatprep.subr.bf16.mxu0 0
    %1550 = vmatpush2.bf16.msra.mxu0 0
    %1551 = vmatprep.subr.bf16.mxu0 0
    %1552 = vmatpush2.bf16.msra.mxu0 0
    %1553 = vmatprep.subr.bf16.mxu0 0
    %1554 = vmatpush2.bf16.msra.mxu0 0
    %1555 = vmatprep.subr.bf16.mxu0 0
    %1556 = vmatpush2.bf16.msra.mxu0 0
    %1557 = vmatprep.subr.bf16.mxu0 0
    %1558 = vmatpush2.bf16.msra.mxu0 0
    %1559 = vmatprep.subr.bf16.mxu0 0
    %1560 = vmatpush2.bf16.msra.mxu0 0
    %1561 = vmatprep.subr.bf16.mxu0 0
    %1562 = vmatpush2.bf16.msra.mxu0 0
    %1563 = vmatprep.mubr.bf16.mxu0 0
    %1564 = vmatmul.mubr.bf16.gmra.mxu0 %v237
    %v1565 = vpop.f32.mrf.mxu0
    %v1566 = vadd.f32 %v424, %v1565
    %v1567 = vpop.f32.mrf.mxu0
    %v1568 = vadd.f32 %v428, %v1567
    %v1569 = vpop.f32.mrf.mxu0
    %v1570 = vadd.f32 %v424, %v1569
    %v1571 = vpop.f32.mrf.mxu0
    %v1572 = vadd.f32 %v428, %v1571
    %1573 = vmatprep.mubr.bf16.mxu0 0
    %1574 = vmatmul.mubr.bf16.gmra.mxu0 %v238
    %v1575 = vpop.f32.mrf.mxu0
    %v1576 = vadd.f32 %v424, %v1575
    %v1577 = vpop.f32.mrf.mxu0
    %v1578 = vadd.f32 %v428, %v1577
    %v1579 = vpop.f32.mrf.mxu0
    %v1580 = vadd.f32 %v424, %v1579
    %v1581 = vpop.f32.mrf.mxu0
    %v1582 = vadd.f32 %v428, %v1581
    %1583 = vmatprep.mubr.bf16.mxu0 0
    %1584 = vmatmul.mubr.bf16.gmra.mxu0 %v239
    %v1585 = vpop.f32.mrf.mxu0
    %v1586 = vadd.f32 %v424, %v1585
    %v1587 = vpop.f32.mrf.mxu0
    %v1588 = vadd.f32 %v428, %v1587
    %v1589 = vpop.f32.mrf.mxu0
    %v1590 = vadd.f32 %v424, %v1589
    %v1591 = vpop.f32.mrf.mxu0
    %v1592 = vadd.f32 %v428, %v1591
    %1593 = vmatprep.mubr.bf16.mxu0 0
    %1594 = vmatmul.mubr.bf16.gmra.mxu0 %v240
    %v1595 = vpop.f32.mrf.mxu0
    %v1596 = vadd.f32 %v424, %v1595
    %v1597 = vpop.f32.mrf.mxu0
    %v1598 = vadd.f32 %v428, %v1597
    %v1599 = vpop.f32.mrf.mxu0
    %v1600 = vadd.f32 %v424, %v1599
    %v1601 = vpop.f32.mrf.mxu0
    %v1602 = vadd.f32 %v428, %v1601
    %1603 = vdwg.mxu0
    %1604 = vmatprep.subr.bf16.mxu0 %v964
    %1605 = vmatpush1.bf16.msra.mxu0 %v963
    %1606 = vmatprep.subr.bf16.mxu0 %v948
    %1607 = vmatpush1.bf16.msra.mxu0 %v947
    %1608 = vmatprep.subr.bf16.mxu0 %v932
    %1609 = vmatpush1.bf16.msra.mxu0 %v931
    %1610 = vmatprep.subr.bf16.mxu0 %v916
    %1611 = vmatpush1.bf16.msra.mxu0 %v915
    %1612 = vmatprep.subr.bf16.mxu0 %v900
    %1613 = vmatpush1.bf16.msra.mxu0 %v899
    %1614 = vmatprep.subr.bf16.mxu0 %v884
    %1615 = vmatpush1.bf16.msra.mxu0 %v883
    %1616 = vmatprep.subr.bf16.mxu0 %v868
    %1617 = vmatpush1.bf16.msra.mxu0 %v867
    %1618 = vmatprep.subr.bf16.mxu0 %v852
    %1619 = vmatpush1.bf16.msra.mxu0 %v851
    %1620 = vmatprep.subr.bf16.mxu0 0
    %1621 = vmatpush2.bf16.msra.mxu0 0
    %1622 = vmatprep.subr.bf16.mxu0 0
    %1623 = vmatpush2.bf16.msra.mxu0 0
    %1624 = vmatprep.subr.bf16.mxu0 0
    %1625 = vmatpush2.bf16.msra.mxu0 0
    %1626 = vmatprep.subr.bf16.mxu0 0
    %1627 = vmatpush2.bf16.msra.mxu0 0
    %1628 = vmatprep.subr.bf16.mxu0 0
    %1629 = vmatpush2.bf16.msra.mxu0 0
    %1630 = vmatprep.subr.bf16.mxu0 0
    %1631 = vmatpush2.bf16.msra.mxu0 0
    %1632 = vmatprep.subr.bf16.mxu0 0
    %1633 = vmatpush2.bf16.msra.mxu0 0
    %1634 = vmatprep.subr.bf16.mxu0 0
    %1635 = vmatpush2.bf16.msra.mxu0 0
    %1636 = vmatprep.mubr.bf16.mxu0 0
    %1637 = vmatmul.mubr.bf16.gmra.mxu0 %v237
    %v1638 = vpop.f32.mrf.mxu0
    %v1639 = vadd.f32 %v432, %v1638
    %v1640 = vpop.f32.mrf.mxu0
    %v1641 = vadd.f32 %v436, %v1640
    %v1642 = vpop.f32.mrf.mxu0
    %v1643 = vadd.f32 %v432, %v1642
    %v1644 = vpop.f32.mrf.mxu0
    %v1645 = vadd.f32 %v436, %v1644
    %1646 = vmatprep.mubr.bf16.mxu0 0
    %1647 = vmatmul.mubr.bf16.gmra.mxu0 %v238
    %v1648 = vpop.f32.mrf.mxu0
    %v1649 = vadd.f32 %v432, %v1648
    %v1650 = vpop.f32.mrf.mxu0
    %v1651 = vadd.f32 %v436, %v1650
    %v1652 = vpop.f32.mrf.mxu0
    %v1653 = vadd.f32 %v432, %v1652
    %v1654 = vpop.f32.mrf.mxu0
    %v1655 = vadd.f32 %v436, %v1654
    %1656 = vmatprep.mubr.bf16.mxu0 0
    %1657 = vmatmul.mubr.bf16.gmra.mxu0 %v239
    %v1658 = vpop.f32.mrf.mxu0
    %v1659 = vadd.f32 %v432, %v1658
    %v1660 = vpop.f32.mrf.mxu0
    %v1661 = vadd.f32 %v436, %v1660
    %v1662 = vpop.f32.mrf.mxu0
    %v1663 = vadd.f32 %v432, %v1662
    %v1664 = vpop.f32.mrf.mxu0
    %v1665 = vadd.f32 %v436, %v1664
    %1666 = vmatprep.mubr.bf16.mxu0 0
    %1667 = vmatmul.mubr.bf16.gmra.mxu0 %v240
    %v1668 = vpop.f32.mrf.mxu0
    %v1669 = vadd.f32 %v432, %v1668
    %v1670 = vpop.f32.mrf.mxu0
    %v1671 = vadd.f32 %v436, %v1670
    %v1672 = vpop.f32.mrf.mxu0
    %v1673 = vadd.f32 %v432, %v1672
    %v1674 = vpop.f32.mrf.mxu0
    %v1675 = vadd.f32 %v436, %v1674
    %1676 = vdwg.mxu0
    %1677 = vst [vmem:[#allocation2] sm:$0xff] %v1128
    %1678 = vst [vmem:[#allocation2 + $0x8] sm:$0xff] %v1130
    %1679 = vst [vmem:[#allocation2 + $0x10] sm:$0xff] %v1201
    %1680 = vst [vmem:[#allocation2 + $0x18] sm:$0xff] %v1203
    %1681 = vst [vmem:[#allocation2 + $0x20] sm:$0xff] %v1274
    %1682 = vst [vmem:[#allocation2 + $0x28] sm:$0xff] %v1276
    %1683 = vst [vmem:[#allocation2 + $0x30] sm:$0xff] %v1347
    %1684 = vst [vmem:[#allocation2 + $0x38] sm:$0xff] %v1349
    %1685 = vst [vmem:[#allocation2 + $0x40] sm:$0xff] %v1420
    %1686 = vst [vmem:[#allocation2 + $0x48] sm:$0xff] %v1422
    %1687 = vst [vmem:[#allocation2 + $0x50] sm:$0xff] %v1493
    %1688 = vst [vmem:[#allocation2 + $0x58] sm:$0xff] %v1495
    %1689 = vst [vmem:[#allocation2 + $0x60] sm:$0xff] %v1566
    %1690 = vst [vmem:[#allocation2 + $0x68] sm:$0xff] %v1568
    %1691 = vst [vmem:[#allocation2 + $0x70] sm:$0xff] %v1639
    %1692 = vst [vmem:[#allocation2 + $0x78] sm:$0xff] %v1641
    %1693 = vst [vmem:[#allocation2 + $0x80] sm:$0xff] %v1132
    %1694 = vst [vmem:[#allocation2 + $0x88] sm:$0xff] %v1134
    %1695 = vst [vmem:[#allocation2 + $0x90] sm:$0xff] %v1205
    %1696 = vst [vmem:[#allocation2 + $0x98] sm:$0xff] %v1207
    %1697 = vst [vmem:[#allocation2 + $0xa0] sm:$0xff] %v1278
    %1698 = vst [vmem:[#allocation2 + $0xa8] sm:$0xff] %v1280
    %1699 = vst [vmem:[#allocation2 + $0xb0] sm:$0xff] %v1351
    %1700 = vst [vmem:[#allocation2 + $0xb8] sm:$0xff] %v1353
    %1701 = vst [vmem:[#allocation2 + $0xc0] sm:$0xff] %v1424
    %1702 = vst [vmem:[#allocation2 + $0xc8] sm:$0xff] %v1426
    %1703 = vst [vmem:[#allocation2 + $0xd0] sm:$0xff] %v1497
    %1704 = vst [vmem:[#allocation2 + $0xd8] sm:$0xff] %v1499
    %1705 = vst [vmem:[#allocation2 + $0xe0] sm:$0xff] %v1570
    %1706 = vst [vmem:[#allocation2 + $0xe8] sm:$0xff] %v1572
    %1707 = vst [vmem:[#allocation2 + $0xf0] sm:$0xff] %v1643
    %1708 = vst [vmem:[#allocation2 + $0xf8] sm:$0xff] %v1645
    %1709 = vst [vmem:[#allocation2 + $0x100] sm:$0xff] %v1138
    %1710 = vst [vmem:[#allocation2 + $0x108] sm:$0xff] %v1140
    %1711 = vst [vmem:[#allocation2 + $0x110] sm:$0xff] %v1211
    %1712 = vst [vmem:[#allocation2 + $0x118] sm:$0xff] %v1213
    %1713 = vst [vmem:[#allocation2 + $0x120] sm:$0xff] %v1284
    %1714 = vst [vmem:[#allocation2 + $0x128] sm:$0xff] %v1286
    %1715 = vst [vmem:[#allocation2 + $0x130] sm:$0xff] %v1357
    %1716 = vst [vmem:[#allocation2 + $0x138] sm:$0xff] %v1359
    %1717 = vst [vmem:[#allocation2 + $0x140] sm:$0xff] %v1430
    %1718 = vst [vmem:[#allocation2 + $0x148] sm:$0xff] %v1432
    %1719 = vst [vmem:[#allocation2 + $0x150] sm:$0xff] %v1503
    %1720 = vst [vmem:[#allocation2 + $0x158] sm:$0xff] %v1505
    %1721 = vst [vmem:[#allocation2 + $0x160] sm:$0xff] %v1576
    %1722 = vst [vmem:[#allocation2 + $0x168] sm:$0xff] %v1578
    %1723 = vst [vmem:[#allocation2 + $0x170] sm:$0xff] %v1649
    %1724 = vst [vmem:[#allocation2 + $0x178] sm:$0xff] %v1651
    %1725 = vst [vmem:[#allocation2 + $0x180] sm:$0xff] %v1142
    %1726 = vst [vmem:[#allocation2 + $0x188] sm:$0xff] %v1144
    %1727 = vst [vmem:[#allocation2 + $0x190] sm:$0xff] %v1215
    %1728 = vst [vmem:[#allocation2 + $0x198] sm:$0xff] %v1217
    %1729 = vst [vmem:[#allocation2 + $0x1a0] sm:$0xff] %v1288
    %1730 = vst [vmem:[#allocation2 + $0x1a8] sm:$0xff] %v1290
    %1731 = vst [vmem:[#allocation2 + $0x1b0] sm:$0xff] %v1361
    %1732 = vst [vmem:[#allocation2 + $0x1b8] sm:$0xff] %v1363
    %1733 = vst [vmem:[#allocation2 + $0x1c0] sm:$0xff] %v1434
    %1734 = vst [vmem:[#allocation2 + $0x1c8] sm:$0xff] %v1436
    %1735 = vst [vmem:[#allocation2 + $0x1d0] sm:$0xff] %v1507
    %1736 = vst [vmem:[#allocation2 + $0x1d8] sm:$0xff] %v1509
    %1737 = vst [vmem:[#allocation2 + $0x1e0] sm:$0xff] %v1580
    %1738 = vst [vmem:[#allocation2 + $0x1e8] sm:$0xff] %v1582
    %1739 = vst [vmem:[#allocation2 + $0x1f0] sm:$0xff] %v1653
    %1740 = vst [vmem:[#allocation2 + $0x1f8] sm:$0xff] %v1655
    %1741 = vst [vmem:[#allocation2 + $0x200] sm:$0xff] %v1148
    %1742 = vst [vmem:[#allocation2 + $0x208] sm:$0xff] %v1150
    %1743 = vst [vmem:[#allocation2 + $0x210] sm:$0xff] %v1221
    %1744 = vst [vmem:[#allocation2 + $0x218] sm:$0xff] %v1223
    %1745 = vst [vmem:[#allocation2 + $0x220] sm:$0xff] %v1294
    %1746 = vst [vmem:[#allocation2 + $0x228] sm:$0xff] %v1296
    %1747 = vst [vmem:[#allocation2 + $0x230] sm:$0xff] %v1367
    %1748 = vst [vmem:[#allocation2 + $0x238] sm:$0xff] %v1369
    %1749 = vst [vmem:[#allocation2 + $0x240] sm:$0xff] %v1440
    %1750 = vst [vmem:[#allocation2 + $0x248] sm:$0xff] %v1442
    %1751 = vst [vmem:[#allocation2 + $0x250] sm:$0xff] %v1513
    %1752 = vst [vmem:[#allocation2 + $0x258] sm:$0xff] %v1515
    %1753 = vst [vmem:[#allocation2 + $0x260] sm:$0xff] %v1586
    %1754 = vst [vmem:[#allocation2 + $0x268] sm:$0xff] %v1588
    %1755 = vst [vmem:[#allocation2 + $0x270] sm:$0xff] %v1659
    %1756 = vst [vmem:[#allocation2 + $0x278] sm:$0xff] %v1661
    %1757 = vst [vmem:[#allocation2 + $0x280] sm:$0xff] %v1152
    %1758 = vst [vmem:[#allocation2 + $0x288] sm:$0xff] %v1154
    %1759 = vst [vmem:[#allocation2 + $0x290] sm:$0xff] %v1225
    %1760 = vst [vmem:[#allocation2 + $0x298] sm:$0xff] %v1227
    %1761 = vst [vmem:[#allocation2 + $0x2a0] sm:$0xff] %v1298
    %1762 = vst [vmem:[#allocation2 + $0x2a8] sm:$0xff] %v1300
    %1763 = vst [vmem:[#allocation2 + $0x2b0] sm:$0xff] %v1371
    %1764 = vst [vmem:[#allocation2 + $0x2b8] sm:$0xff] %v1373
    %1765 = vst [vmem:[#allocation2 + $0x2c0] sm:$0xff] %v1444
    %1766 = vst [vmem:[#allocation2 + $0x2c8] sm:$0xff] %v1446
    %1767 = vst [vmem:[#allocation2 + $0x2d0] sm:$0xff] %v1517
    %1768 = vst [vmem:[#allocation2 + $0x2d8] sm:$0xff] %v1519
    %1769 = vst [vmem:[#allocation2 + $0x2e0] sm:$0xff] %v1590
    %1770 = vst [vmem:[#allocation2 + $0x2e8] sm:$0xff] %v1592
    %1771 = vst [vmem:[#allocation2 + $0x2f0] sm:$0xff] %v1663
    %1772 = vst [vmem:[#allocation2 + $0x2f8] sm:$0xff] %v1665
    %1773 = vst [vmem:[#allocation2 + $0x300] sm:$0xff] %v1158
    %1774 = vst [vmem:[#allocation2 + $0x308] sm:$0xff] %v1160
    %1775 = vst [vmem:[#allocation2 + $0x310] sm:$0xff] %v1231
    %1776 = vst [vmem:[#allocation2 + $0x318] sm:$0xff] %v1233
    %1777 = vst [vmem:[#allocation2 + $0x320] sm:$0xff] %v1304
    %1778 = vst [vmem:[#allocation2 + $0x328] sm:$0xff] %v1306
    %1779 = vst [vmem:[#allocation2 + $0x330] sm:$0xff] %v1377
    %1780 = vst [vmem:[#allocation2 + $0x338] sm:$0xff] %v1379
    %1781 = vst [vmem:[#allocation2 + $0x340] sm:$0xff] %v1450
    %1782 = vst [vmem:[#allocation2 + $0x348] sm:$0xff] %v1452
    %1783 = vst [vmem:[#allocation2 + $0x350] sm:$0xff] %v1523
    %1784 = vst [vmem:[#allocation2 + $0x358] sm:$0xff] %v1525
    %1785 = vst [vmem:[#allocation2 + $0x360] sm:$0xff] %v1596
    %1786 = vst [vmem:[#allocation2 + $0x368] sm:$0xff] %v1598
    %1787 = vst [vmem:[#allocation2 + $0x370] sm:$0xff] %v1669
    %1788 = vst [vmem:[#allocation2 + $0x378] sm:$0xff] %v1671
    %1789 = vst [vmem:[#allocation2 + $0x380] sm:$0xff] %v1162
    %1790 = vst [vmem:[#allocation2 + $0x388] sm:$0xff] %v1164
    %1791 = vst [vmem:[#allocation2 + $0x390] sm:$0xff] %v1235
    %1792 = vst [vmem:[#allocation2 + $0x398] sm:$0xff] %v1237
    %1793 = vst [vmem:[#allocation2 + $0x3a0] sm:$0xff] %v1308
    %1794 = vst [vmem:[#allocation2 + $0x3a8] sm:$0xff] %v1310
    %1795 = vst [vmem:[#allocation2 + $0x3b0] sm:$0xff] %v1381
    %1796 = vst [vmem:[#allocation2 + $0x3b8] sm:$0xff] %v1383
    %1797 = vst [vmem:[#allocation2 + $0x3c0] sm:$0xff] %v1454
    %1798 = vst [vmem:[#allocation2 + $0x3c8] sm:$0xff] %v1456
    %1799 = vst [vmem:[#allocation2 + $0x3d0] sm:$0xff] %v1527
    %1800 = vst [vmem:[#allocation2 + $0x3d8] sm:$0xff] %v1529
    %1801 = vst [vmem:[#allocation2 + $0x3e0] sm:$0xff] %v1600
    %1802 = vst [vmem:[#allocation2 + $0x3e8] sm:$0xff] %v1602
    %1803 = vst [vmem:[#allocation2 + $0x3f0] sm:$0xff] %v1673
    %1804 = vst [vmem:[#allocation2 + $0x3f8] sm:$0xff] %v1675
    %v1805 = vld [vmem:[#allocation14] sm:$0xff]
    %v1806 = vld [vmem:[#allocation14 + $0x8] sm:$0xff]
    %v1807 = vld [vmem:[#allocation14 + $0x10] sm:$0xff]
    %v1808 = vld [vmem:[#allocation14 + $0x18] sm:$0xff]
    %v1809 = vld [vmem:[#allocation14 + $0x20] sm:$0xff]
    %v1810 = vld [vmem:[#allocation14 + $0x28] sm:$0xff]
    %v1811 = vld [vmem:[#allocation14 + $0x30] sm:$0xff]
    %v1812 = vld [vmem:[#allocation14 + $0x38] sm:$0xff]
    %v1813 = vld [vmem:[#allocation14 + $0x40] sm:$0xff]
    %v1814 = vld [vmem:[#allocation14 + $0x48] sm:$0xff]
    %v1815 = vld [vmem:[#allocation14 + $0x50] sm:$0xff]
    %v1816 = vld [vmem:[#allocation14 + $0x58] sm:$0xff]
    %v1817 = vld [vmem:[#allocation14 + $0x60] sm:$0xff]
    %v1818 = vld [vmem:[#allocation14 + $0x68] sm:$0xff]
    %v1819 = vld [vmem:[#allocation14 + $0x70] sm:$0xff]
    %v1820 = vld [vmem:[#allocation14 + $0x78] sm:$0xff]
    %v1821 = vld [vmem:[#allocation14 + $0x80] sm:$0xff]
    %v1822 = vld [vmem:[#allocation14 + $0x88] sm:$0xff]
    %v1823 = vld [vmem:[#allocation14 + $0x90] sm:$0xff]
    %v1824 = vld [vmem:[#allocation14 + $0x98] sm:$0xff]
    %v1825 = vld [vmem:[#allocation14 + $0xa0] sm:$0xff]
    %v1826 = vld [vmem:[#allocation14 + $0xa8] sm:$0xff]
    %v1827 = vld [vmem:[#allocation14 + $0xb0] sm:$0xff]
    %v1828 = vld [vmem:[#allocation14 + $0xb8] sm:$0xff]
    %v1829 = vld [vmem:[#allocation14 + $0xc0] sm:$0xff]
    %v1830 = vld [vmem:[#allocation14 + $0xc8] sm:$0xff]
    %v1831 = vld [vmem:[#allocation14 + $0xd0] sm:$0xff]
    %v1832 = vld [vmem:[#allocation14 + $0xd8] sm:$0xff]
    %v1833 = vld [vmem:[#allocation14 + $0xe0] sm:$0xff]
    %v1834 = vld [vmem:[#allocation14 + $0xe8] sm:$0xff]
    %v1835 = vld [vmem:[#allocation14 + $0xf0] sm:$0xff]
    %v1836 = vld [vmem:[#allocation14 + $0xf8] sm:$0xff]
    %v1837 = vld [vmem:[#allocation14 + $0x100] sm:$0xff]
    %v1838 = vld [vmem:[#allocation14 + $0x108] sm:$0xff]
    %v1839 = vld [vmem:[#allocation14 + $0x110] sm:$0xff]
    %v1840 = vld [vmem:[#allocation14 + $0x118] sm:$0xff]
    %v1841 = vld [vmem:[#allocation14 + $0x120] sm:$0xff]
    %v1842 = vld [vmem:[#allocation14 + $0x128] sm:$0xff]
    %v1843 = vld [vmem:[#allocation14 + $0x130] sm:$0xff]
    %v1844 = vld [vmem:[#allocation14 + $0x138] sm:$0xff]
    %v1845 = vld [vmem:[#allocation14 + $0x140] sm:$0xff]
    %v1846 = vld [vmem:[#allocation14 + $0x148] sm:$0xff]
    %v1847 = vld [vmem:[#allocation14 + $0x150] sm:$0xff]
    %v1848 = vld [vmem:[#allocation14 + $0x158] sm:$0xff]
    %v1849 = vld [vmem:[#allocation14 + $0x160] sm:$0xff]
    %v1850 = vld [vmem:[#allocation14 + $0x168] sm:$0xff]
    %v1851 = vld [vmem:[#allocation14 + $0x170] sm:$0xff]
    %v1852 = vld [vmem:[#allocation14 + $0x178] sm:$0xff]
    %v1853 = vld [vmem:[#allocation14 + $0x180] sm:$0xff]
    %v1854 = vld [vmem:[#allocation14 + $0x188] sm:$0xff]
    %v1855 = vld [vmem:[#allocation14 + $0x190] sm:$0xff]
    %v1856 = vld [vmem:[#allocation14 + $0x198] sm:$0xff]
    %v1857 = vld [vmem:[#allocation14 + $0x1a0] sm:$0xff]
    %v1858 = vld [vmem:[#allocation14 + $0x1a8] sm:$0xff]
    %v1859 = vld [vmem:[#allocation14 + $0x1b0] sm:$0xff]
    %v1860 = vld [vmem:[#allocation14 + $0x1b8] sm:$0xff]
    %v1861 = vld [vmem:[#allocation14 + $0x1c0] sm:$0xff]
    %v1862 = vld [vmem:[#allocation14 + $0x1c8] sm:$0xff]
    %v1863 = vld [vmem:[#allocation14 + $0x1d0] sm:$0xff]
    %v1864 = vld [vmem:[#allocation14 + $0x1d8] sm:$0xff]
    %v1865 = vld [vmem:[#allocation14 + $0x1e0] sm:$0xff]
    %v1866 = vld [vmem:[#allocation14 + $0x1e8] sm:$0xff]
    %v1867 = vld [vmem:[#allocation14 + $0x1f0] sm:$0xff]
    %v1868 = vld [vmem:[#allocation14 + $0x1f8] sm:$0xff]
    %v1869 = vld [vmem:[#allocation14 + $0x200] sm:$0xff]
    %v1870 = vld [vmem:[#allocation14 + $0x208] sm:$0xff]
    %v1871 = vld [vmem:[#allocation14 + $0x210] sm:$0xff]
    %v1872 = vld [vmem:[#allocation14 + $0x218] sm:$0xff]
    %v1873 = vld [vmem:[#allocation14 + $0x220] sm:$0xff]
    %v1874 = vld [vmem:[#allocation14 + $0x228] sm:$0xff]
    %v1875 = vld [vmem:[#allocation14 + $0x230] sm:$0xff]
    %v1876 = vld [vmem:[#allocation14 + $0x238] sm:$0xff]
    %v1877 = vld [vmem:[#allocation14 + $0x240] sm:$0xff]
    %v1878 = vld [vmem:[#allocation14 + $0x248] sm:$0xff]
    %v1879 = vld [vmem:[#allocation14 + $0x250] sm:$0xff]
    %v1880 = vld [vmem:[#allocation14 + $0x258] sm:$0xff]
    %v1881 = vld [vmem:[#allocation14 + $0x260] sm:$0xff]
    %v1882 = vld [vmem:[#allocation14 + $0x268] sm:$0xff]
    %v1883 = vld [vmem:[#allocation14 + $0x270] sm:$0xff]
    %v1884 = vld [vmem:[#allocation14 + $0x278] sm:$0xff]
    %v1885 = vld [vmem:[#allocation14 + $0x280] sm:$0xff]
    %v1886 = vld [vmem:[#allocation14 + $0x288] sm:$0xff]
    %v1887 = vld [vmem:[#allocation14 + $0x290] sm:$0xff]
    %v1888 = vld [vmem:[#allocation14 + $0x298] sm:$0xff]
    %v1889 = vld [vmem:[#allocation14 + $0x2a0] sm:$0xff]
    %v1890 = vld [vmem:[#allocation14 + $0x2a8] sm:$0xff]
    %v1891 = vld [vmem:[#allocation14 + $0x2b0] sm:$0xff]
    %v1892 = vld [vmem:[#allocation14 + $0x2b8] sm:$0xff]
    %v1893 = vld [vmem:[#allocation14 + $0x2c0] sm:$0xff]
    %v1894 = vld [vmem:[#allocation14 + $0x2c8] sm:$0xff]
    %v1895 = vld [vmem:[#allocation14 + $0x2d0] sm:$0xff]
    %v1896 = vld [vmem:[#allocation14 + $0x2d8] sm:$0xff]
    %v1897 = vld [vmem:[#allocation14 + $0x2e0] sm:$0xff]
    %v1898 = vld [vmem:[#allocation14 + $0x2e8] sm:$0xff]
    %v1899 = vld [vmem:[#allocation14 + $0x2f0] sm:$0xff]
    %v1900 = vld [vmem:[#allocation14 + $0x2f8] sm:$0xff]
    %v1901 = vld [vmem:[#allocation14 + $0x300] sm:$0xff]
    %v1902 = vld [vmem:[#allocation14 + $0x308] sm:$0xff]
    %v1903 = vld [vmem:[#allocation14 + $0x310] sm:$0xff]
    %v1904 = vld [vmem:[#allocation14 + $0x318] sm:$0xff]
    %v1905 = vld [vmem:[#allocation14 + $0x320] sm:$0xff]
    %v1906 = vld [vmem:[#allocation14 + $0x328] sm:$0xff]
    %v1907 = vld [vmem:[#allocation14 + $0x330] sm:$0xff]
    %v1908 = vld [vmem:[#allocation14 + $0x338] sm:$0xff]
    %v1909 = vld [vmem:[#allocation14 + $0x340] sm:$0xff]
    %v1910 = vld [vmem:[#allocation14 + $0x348] sm:$0xff]
    %v1911 = vld [vmem:[#allocation14 + $0x350] sm:$0xff]
    %v1912 = vld [vmem:[#allocation14 + $0x358] sm:$0xff]
    %v1913 = vld [vmem:[#allocation14 + $0x360] sm:$0xff]
    %v1914 = vld [vmem:[#allocation14 + $0x368] sm:$0xff]
    %v1915 = vld [vmem:[#allocation14 + $0x370] sm:$0xff]
    %v1916 = vld [vmem:[#allocation14 + $0x378] sm:$0xff]
    %v1917 = vld [vmem:[#allocation14 + $0x380] sm:$0xff]
    %v1918 = vld [vmem:[#allocation14 + $0x388] sm:$0xff]
    %v1919 = vld [vmem:[#allocation14 + $0x390] sm:$0xff]
    %v1920 = vld [vmem:[#allocation14 + $0x398] sm:$0xff]
    %v1921 = vld [vmem:[#allocation14 + $0x3a0] sm:$0xff]
    %v1922 = vld [vmem:[#allocation14 + $0x3a8] sm:$0xff]
    %v1923 = vld [vmem:[#allocation14 + $0x3b0] sm:$0xff]
    %v1924 = vld [vmem:[#allocation14 + $0x3b8] sm:$0xff]
    %v1925 = vld [vmem:[#allocation14 + $0x3c0] sm:$0xff]
    %v1926 = vld [vmem:[#allocation14 + $0x3c8] sm:$0xff]
    %v1927 = vld [vmem:[#allocation14 + $0x3d0] sm:$0xff]
    %v1928 = vld [vmem:[#allocation14 + $0x3d8] sm:$0xff]
    %v1929 = vld [vmem:[#allocation14 + $0x3e0] sm:$0xff]
    %v1930 = vld [vmem:[#allocation14 + $0x3e8] sm:$0xff]
    %v1931 = vld [vmem:[#allocation14 + $0x3f0] sm:$0xff]
    %v1932 = vld [vmem:[#allocation14 + $0x3f8] sm:$0xff]
    %v1933 = vld [vmem:[#allocation16] sm:$0xff]
    %v1934 = vld [vmem:[#allocation16 + $0x8] sm:$0xff]
    %v1935 = vld [vmem:[#allocation16 + $0x10] sm:$0xff]
    %v1936 = vld [vmem:[#allocation16 + $0x18] sm:$0xff]
    %v1937 = vld [vmem:[#allocation16 + $0x20] sm:$0xff]
    %v1938 = vld [vmem:[#allocation16 + $0x28] sm:$0xff]
    %v1939 = vld [vmem:[#allocation16 + $0x30] sm:$0xff]
    %v1940 = vld [vmem:[#allocation16 + $0x38] sm:$0xff]
    %v1941 = vld [vmem:[#allocation16 + $0x40] sm:$0xff]
    %v1942 = vld [vmem:[#allocation16 + $0x48] sm:$0xff]
    %v1943 = vld [vmem:[#allocation16 + $0x50] sm:$0xff]
    %v1944 = vld [vmem:[#allocation16 + $0x58] sm:$0xff]
    %v1945 = vld [vmem:[#allocation16 + $0x60] sm:$0xff]
    %v1946 = vld [vmem:[#allocation16 + $0x68] sm:$0xff]
    %v1947 = vld [vmem:[#allocation16 + $0x70] sm:$0xff]
    %v1948 = vld [vmem:[#allocation16 + $0x78] sm:$0xff]
    %v1949 = vld [vmem:[#allocation16 + $0x80] sm:$0xff]
    %v1950 = vld [vmem:[#allocation16 + $0x88] sm:$0xff]
    %v1951 = vld [vmem:[#allocation16 + $0x90] sm:$0xff]
    %v1952 = vld [vmem:[#allocation16 + $0x98] sm:$0xff]
    %v1953 = vld [vmem:[#allocation16 + $0xa0] sm:$0xff]
    %v1954 = vld [vmem:[#allocation16 + $0xa8] sm:$0xff]
    %v1955 = vld [vmem:[#allocation16 + $0xb0] sm:$0xff]
    %v1956 = vld [vmem:[#allocation16 + $0xb8] sm:$0xff]
    %v1957 = vld [vmem:[#allocation16 + $0xc0] sm:$0xff]
    %v1958 = vld [vmem:[#allocation16 + $0xc8] sm:$0xff]
    %v1959 = vld [vmem:[#allocation16 + $0xd0] sm:$0xff]
    %v1960 = vld [vmem:[#allocation16 + $0xd8] sm:$0xff]
    %v1961 = vld [vmem:[#allocation16 + $0xe0] sm:$0xff]
    %v1962 = vld [vmem:[#allocation16 + $0xe8] sm:$0xff]
    %v1963 = vld [vmem:[#allocation16 + $0xf0] sm:$0xff]
    %v1964 = vld [vmem:[#allocation16 + $0xf8] sm:$0xff]
    %v1965 = vld [vmem:[#allocation16 + $0x100] sm:$0xff]
    %v1966 = vld [vmem:[#allocation16 + $0x108] sm:$0xff]
    %v1967 = vld [vmem:[#allocation16 + $0x110] sm:$0xff]
    %v1968 = vld [vmem:[#allocation16 + $0x118] sm:$0xff]
    %v1969 = vld [vmem:[#allocation16 + $0x120] sm:$0xff]
    %v1970 = vld [vmem:[#allocation16 + $0x128] sm:$0xff]
    %v1971 = vld [vmem:[#allocation16 + $0x130] sm:$0xff]
    %v1972 = vld [vmem:[#allocation16 + $0x138] sm:$0xff]
    %v1973 = vld [vmem:[#allocation16 + $0x140] sm:$0xff]
    %v1974 = vld [vmem:[#allocation16 + $0x148] sm:$0xff]
    %v1975 = vld [vmem:[#allocation16 + $0x150] sm:$0xff]
    %v1976 = vld [vmem:[#allocation16 + $0x158] sm:$0xff]
    %v1977 = vld [vmem:[#allocation16 + $0x160] sm:$0xff]
    %v1978 = vld [vmem:[#allocation16 + $0x168] sm:$0xff]
    %v1979 = vld [vmem:[#allocation16 + $0x170] sm:$0xff]
    %v1980 = vld [vmem:[#allocation16 + $0x178] sm:$0xff]
    %v1981 = vld [vmem:[#allocation16 + $0x180] sm:$0xff]
    %v1982 = vld [vmem:[#allocation16 + $0x188] sm:$0xff]
    %v1983 = vld [vmem:[#allocation16 + $0x190] sm:$0xff]
    %v1984 = vld [vmem:[#allocation16 + $0x198] sm:$0xff]
    %v1985 = vld [vmem:[#allocation16 + $0x1a0] sm:$0xff]
    %v1986 = vld [vmem:[#allocation16 + $0x1a8] sm:$0xff]
    %v1987 = vld [vmem:[#allocation16 + $0x1b0] sm:$0xff]
    %v1988 = vld [vmem:[#allocation16 + $0x1b8] sm:$0xff]
    %v1989 = vld [vmem:[#allocation16 + $0x1c0] sm:$0xff]
    %v1990 = vld [vmem:[#allocation16 + $0x1c8] sm:$0xff]
    %v1991 = vld [vmem:[#allocation16 + $0x1d0] sm:$0xff]
    %v1992 = vld [vmem:[#allocation16 + $0x1d8] sm:$0xff]
    %v1993 = vld [vmem:[#allocation16 + $0x1e0] sm:$0xff]
    %v1994 = vld [vmem:[#allocation16 + $0x1e8] sm:$0xff]
    %v1995 = vld [vmem:[#allocation16 + $0x1f0] sm:$0xff]
    %v1996 = vld [vmem:[#allocation16 + $0x1f8] sm:$0xff]
    %v1997 = vld [vmem:[#allocation16 + $0x200] sm:$0xff]
    %v1998 = vld [vmem:[#allocation16 + $0x208] sm:$0xff]
    %v1999 = vld [vmem:[#allocation16 + $0x210] sm:$0xff]
    %v2000 = vld [vmem:[#allocation16 + $0x218] sm:$0xff]
    %v2001 = vld [vmem:[#allocation16 + $0x220] sm:$0xff]
    %v2002 = vld [vmem:[#allocation16 + $0x228] sm:$0xff]
    %v2003 = vld [vmem:[#allocation16 + $0x230] sm:$0xff]
    %v2004 = vld [vmem:[#allocation16 + $0x238] sm:$0xff]
    %v2005 = vld [vmem:[#allocation16 + $0x240] sm:$0xff]
    %v2006 = vld [vmem:[#allocation16 + $0x248] sm:$0xff]
    %v2007 = vld [vmem:[#allocation16 + $0x250] sm:$0xff]
    %v2008 = vld [vmem:[#allocation16 + $0x258] sm:$0xff]
    %v2009 = vld [vmem:[#allocation16 + $0x260] sm:$0xff]
    %v2010 = vld [vmem:[#allocation16 + $0x268] sm:$0xff]
    %v2011 = vld [vmem:[#allocation16 + $0x270] sm:$0xff]
    %v2012 = vld [vmem:[#allocation16 + $0x278] sm:$0xff]
    %v2013 = vld [vmem:[#allocation16 + $0x280] sm:$0xff]
    %v2014 = vld [vmem:[#allocation16 + $0x288] sm:$0xff]
    %v2015 = vld [vmem:[#allocation16 + $0x290] sm:$0xff]
    %v2016 = vld [vmem:[#allocation16 + $0x298] sm:$0xff]
    %v2017 = vld [vmem:[#allocation16 + $0x2a0] sm:$0xff]
    %v2018 = vld [vmem:[#allocation16 + $0x2a8] sm:$0xff]
    %v2019 = vld [vmem:[#allocation16 + $0x2b0] sm:$0xff]
    %v2020 = vld [vmem:[#allocation16 + $0x2b8] sm:$0xff]
    %v2021 = vld [vmem:[#allocation16 + $0x2c0] sm:$0xff]
    %v2022 = vld [vmem:[#allocation16 + $0x2c8] sm:$0xff]
    %v2023 = vld [vmem:[#allocation16 + $0x2d0] sm:$0xff]
    %v2024 = vld [vmem:[#allocation16 + $0x2d8] sm:$0xff]
    %v2025 = vld [vmem:[#allocation16 + $0x2e0] sm:$0xff]
    %v2026 = vld [vmem:[#allocation16 + $0x2e8] sm:$0xff]
    %v2027 = vld [vmem:[#allocation16 + $0x2f0] sm:$0xff]
    %v2028 = vld [vmem:[#allocation16 + $0x2f8] sm:$0xff]
    %v2029 = vld [vmem:[#allocation16 + $0x300] sm:$0xff]
    %v2030 = vld [vmem:[#allocation16 + $0x308] sm:$0xff]
    %v2031 = vld [vmem:[#allocation16 + $0x310] sm:$0xff]
    %v2032 = vld [vmem:[#allocation16 + $0x318] sm:$0xff]
    %v2033 = vld [vmem:[#allocation16 + $0x320] sm:$0xff]
    %v2034 = vld [vmem:[#allocation16 + $0x328] sm:$0xff]
    %v2035 = vld [vmem:[#allocation16 + $0x330] sm:$0xff]
    %v2036 = vld [vmem:[#allocation16 + $0x338] sm:$0xff]
    %v2037 = vld [vmem:[#allocation16 + $0x340] sm:$0xff]
    %v2038 = vld [vmem:[#allocation16 + $0x348] sm:$0xff]
    %v2039 = vld [vmem:[#allocation16 + $0x350] sm:$0xff]
    %v2040 = vld [vmem:[#allocation16 + $0x358] sm:$0xff]
    %v2041 = vld [vmem:[#allocation16 + $0x360] sm:$0xff]
    %v2042 = vld [vmem:[#allocation16 + $0x368] sm:$0xff]
    %v2043 = vld [vmem:[#allocation16 + $0x370] sm:$0xff]
    %v2044 = vld [vmem:[#allocation16 + $0x378] sm:$0xff]
    %v2045 = vld [vmem:[#allocation16 + $0x380] sm:$0xff]
    %v2046 = vld [vmem:[#allocation16 + $0x388] sm:$0xff]
    %v2047 = vld [vmem:[#allocation16 + $0x390] sm:$0xff]
    %v2048 = vld [vmem:[#allocation16 + $0x398] sm:$0xff]
    %v2049 = vld [vmem:[#allocation16 + $0x3a0] sm:$0xff]
    %v2050 = vld [vmem:[#allocation16 + $0x3a8] sm:$0xff]
    %v2051 = vld [vmem:[#allocation16 + $0x3b0] sm:$0xff]
    %v2052 = vld [vmem:[#allocation16 + $0x3b8] sm:$0xff]
    %v2053 = vld [vmem:[#allocation16 + $0x3c0] sm:$0xff]
    %v2054 = vld [vmem:[#allocation16 + $0x3c8] sm:$0xff]
    %v2055 = vld [vmem:[#allocation16 + $0x3d0] sm:$0xff]
    %v2056 = vld [vmem:[#allocation16 + $0x3d8] sm:$0xff]
    %v2057 = vld [vmem:[#allocation16 + $0x3e0] sm:$0xff]
    %v2058 = vld [vmem:[#allocation16 + $0x3e8] sm:$0xff]
    %v2059 = vld [vmem:[#allocation16 + $0x3f0] sm:$0xff]
    %v2060 = vld [vmem:[#allocation16 + $0x3f8] sm:$0xff]
    %v2061 = vld [vmem:[#allocation2] sm:$0xff]
    %v2062 = vld [vmem:[#allocation2 + $0x8] sm:$0xff]
    %v2063 = vld [vmem:[#allocation2 + $0x10] sm:$0xff]
    %v2064 = vld [vmem:[#allocation2 + $0x18] sm:$0xff]
    %v2065 = vld [vmem:[#allocation2 + $0x20] sm:$0xff]
    %v2066 = vld [vmem:[#allocation2 + $0x28] sm:$0xff]
    %v2067 = vld [vmem:[#allocation2 + $0x30] sm:$0xff]
    %v2068 = vld [vmem:[#allocation2 + $0x38] sm:$0xff]
    %v2197 = vunpack.c.l.b16 %v1805
    %v2198 = vunpack.c.h.b16 %v1805
    %v2199 = vunpack.c.l.b16 %v1806
    %v2200 = vunpack.c.h.b16 %v1806
    %v2201 = vunpack.c.l.b16 %v1807
    %v2202 = vunpack.c.h.b16 %v1807
    %v2203 = vunpack.c.l.b16 %v1808
    %v2204 = vunpack.c.h.b16 %v1808
    %v2205 = vunpack.c.l.b16 %v1809
    %v2206 = vunpack.c.h.b16 %v1809
    %v2207 = vunpack.c.l.b16 %v1810
    %v2208 = vunpack.c.h.b16 %v1810
    %v2209 = vunpack.c.l.b16 %v1811
    %v2210 = vunpack.c.h.b16 %v1811
    %v2211 = vunpack.c.l.b16 %v1812
    %v2212 = vunpack.c.h.b16 %v1812
    %v2213 = vunpack.c.l.b16 %v1813
    %v2214 = vunpack.c.h.b16 %v1813
    %v2215 = vunpack.c.l.b16 %v1814
    %v2216 = vunpack.c.h.b16 %v1814
    %v2217 = vunpack.c.l.b16 %v1815
    %v2218 = vunpack.c.h.b16 %v1815
    %v2219 = vunpack.c.l.b16 %v1816
    %v2220 = vunpack.c.h.b16 %v1816
    %v2221 = vunpack.c.l.b16 %v1817
    %v2222 = vunpack.c.h.b16 %v1817
    %v2223 = vunpack.c.l.b16 %v1818
    %v2224 = vunpack.c.h.b16 %v1818
    %v2225 = vunpack.c.l.b16 %v1819
    %v2226 = vunpack.c.h.b16 %v1819
    %v2227 = vunpack.c.l.b16 %v1820
    %v2228 = vunpack.c.h.b16 %v1820
    %v2229 = vunpack.c.l.b16 %v1821
    %v2230 = vunpack.c.h.b16 %v1821
    %v2231 = vunpack.c.l.b16 %v1822
    %v2232 = vunpack.c.h.b16 %v1822
    %v2233 = vunpack.c.l.b16 %v1823
    %v2234 = vunpack.c.h.b16 %v1823
    %v2235 = vunpack.c.l.b16 %v1824
    %v2236 = vunpack.c.h.b16 %v1824
    %v2237 = vunpack.c.l.b16 %v1825
    %v2238 = vunpack.c.h.b16 %v1825
    %v2239 = vunpack.c.l.b16 %v1826
    %v2240 = vunpack.c.h.b16 %v1826
    %v2241 = vunpack.c.l.b16 %v1827
    %v2242 = vunpack.c.h.b16 %v1827
    %v2243 = vunpack.c.l.b16 %v1828
    %v2244 = vunpack.c.h.b16 %v1828
    %v2245 = vunpack.c.l.b16 %v1829
    %v2246 = vunpack.c.h.b16 %v1829
    %v2247 = vunpack.c.l.b16 %v1830
    %v2248 = vunpack.c.h.b16 %v1830
    %v2249 = vunpack.c.l.b16 %v1831
    %v2250 = vunpack.c.h.b16 %v1831
    %v2251 = vunpack.c.l.b16 %v1832
    %v2252 = vunpack.c.h.b16 %v1832
    %v2253 = vunpack.c.l.b16 %v1833
    %v2254 = vunpack.c.h.b16 %v1833
    %v2255 = vunpack.c.l.b16 %v1834
    %v2256 = vunpack.c.h.b16 %v1834
    %v2257 = vunpack.c.l.b16 %v1835
    %v2258 = vunpack.c.h.b16 %v1835
    %v2259 = vunpack.c.l.b16 %v1836
    %v2260 = vunpack.c.h.b16 %v1836
    %v2261 = vunpack.c.l.b16 %v1837
    %v2262 = vunpack.c.h.b16 %v1837
    %v2263 = vunpack.c.l.b16 %v1838
    %v2264 = vunpack.c.h.b16 %v1838
    %v2265 = vunpack.c.l.b16 %v1839
    %v2266 = vunpack.c.h.b16 %v1839
    %v2267 = vunpack.c.l.b16 %v1840
    %v2268 = vunpack.c.h.b16 %v1840
    %v2269 = vunpack.c.l.b16 %v1841
    %v2270 = vunpack.c.h.b16 %v1841
    %v2271 = vunpack.c.l.b16 %v1842
    %v2272 = vunpack.c.h.b16 %v1842
    %v2273 = vunpack.c.l.b16 %v1843
    %v2274 = vunpack.c.h.b16 %v1843
    %v2275 = vunpack.c.l.b16 %v1844
    %v2276 = vunpack.c.h.b16 %v1844
    %v2277 = vunpack.c.l.b16 %v1845
    %v2278 = vunpack.c.h.b16 %v1845
    %v2279 = vunpack.c.l.b16 %v1846
    %v2280 = vunpack.c.h.b16 %v1846
    %v2281 = vunpack.c.l.b16 %v1847
    %v2282 = vunpack.c.h.b16 %v1847
    %v2283 = vunpack.c.l.b16 %v1848
    %v2284 = vunpack.c.h.b16 %v1848
    %v2285 = vunpack.c.l.b16 %v1849
    %v2286 = vunpack.c.h.b16 %v1849
    %v2287 = vunpack.c.l.b16 %v1850
    %v2288 = vunpack.c.h.b16 %v1850
    %v2289 = vunpack.c.l.b16 %v1851
    %v2290 = vunpack.c.h.b16 %v1851
    %v2291 = vunpack.c.l.b16 %v1852
    %v2292 = vunpack.c.h.b16 %v1852
    %v2293 = vunpack.c.l.b16 %v1853
    %v2294 = vunpack.c.h.b16 %v1853
    %v2295 = vunpack.c.l.b16 %v1854
    %v2296 = vunpack.c.h.b16 %v1854
    %v2297 = vunpack.c.l.b16 %v1855
    %v2298 = vunpack.c.h.b16 %v1855
    %v2299 = vunpack.c.l.b16 %v1856
    %v2300 = vunpack.c.h.b16 %v1856
    %v2301 = vunpack.c.l.b16 %v1857
    %v2302 = vunpack.c.h.b16 %v1857
    %v2303 = vunpack.c.l.b16 %v1858
    %v2304 = vunpack.c.h.b16 %v1858
    %v2305 = vunpack.c.l.b16 %v1859
    %v2306 = vunpack.c.h.b16 %v1859
    %v2307 = vunpack.c.l.b16 %v1860
    %v2308 = vunpack.c.h.b16 %v1860
    %v2309 = vunpack.c.l.b16 %v1861
    %v2310 = vunpack.c.h.b16 %v1861
    %v2311 = vunpack.c.l.b16 %v1862
    %v2312 = vunpack.c.h.b16 %v1862
    %v2313 = vunpack.c.l.b16 %v1863
    %v2314 = vunpack.c.h.b16 %v1863
    %v2315 = vunpack.c.l.b16 %v1864
    %v2316 = vunpack.c.h.b16 %v1864
    %v2317 = vunpack.c.l.b16 %v1865
    %v2318 = vunpack.c.h.b16 %v1865
    %v2319 = vunpack.c.l.b16 %v1866
    %v2320 = vunpack.c.h.b16 %v1866
    %v2321 = vunpack.c.l.b16 %v1867
    %v2322 = vunpack.c.h.b16 %v1867
    %v2323 = vunpack.c.l.b16 %v1868
    %v2324 = vunpack.c.h.b16 %v1868
    %v2325 = vunpack.c.l.b16 %v1869
    %v2326 = vunpack.c.h.b16 %v1869
    %v2327 = vunpack.c.l.b16 %v1870
    %v2328 = vunpack.c.h.b16 %v1870
    %v2329 = vunpack.c.l.b16 %v1871
    %v2330 = vunpack.c.h.b16 %v1871
    %v2331 = vunpack.c.l.b16 %v1872
    %v2332 = vunpack.c.h.b16 %v1872
    %v2333 = vunpack.c.l.b16 %v1873
    %v2334 = vunpack.c.h.b16 %v1873
    %v2335 = vunpack.c.l.b16 %v1874
    %v2336 = vunpack.c.h.b16 %v1874
    %v2337 = vunpack.c.l.b16 %v1875
    %v2338 = vunpack.c.h.b16 %v1875
    %v2339 = vunpack.c.l.b16 %v1876
    %v2340 = vunpack.c.h.b16 %v1876
    %v2341 = vunpack.c.l.b16 %v1877
    %v2342 = vunpack.c.h.b16 %v1877
    %v2343 = vunpack.c.l.b16 %v1878
    %v2344 = vunpack.c.h.b16 %v1878
    %v2345 = vunpack.c.l.b16 %v1879
    %v2346 = vunpack.c.h.b16 %v1879
    %v2347 = vunpack.c.l.b16 %v1880
    %v2348 = vunpack.c.h.b16 %v1880
    %v2349 = vunpack.c.l.b16 %v1881
    %v2350 = vunpack.c.h.b16 %v1881
    %v2351 = vunpack.c.l.b16 %v1882
    %v2352 = vunpack.c.h.b16 %v1882
    %v2353 = vunpack.c.l.b16 %v1883
    %v2354 = vunpack.c.h.b16 %v1883
    %v2355 = vunpack.c.l.b16 %v1884
    %v2356 = vunpack.c.h.b16 %v1884
    %v2357 = vunpack.c.l.b16 %v1885
    %v2358 = vunpack.c.h.b16 %v1885
    %v2359 = vunpack.c.l.b16 %v1886
    %v2360 = vunpack.c.h.b16 %v1886
    %v2361 = vunpack.c.l.b16 %v1887
    %v2362 = vunpack.c.h.b16 %v1887
    %v2363 = vunpack.c.l.b16 %v1888
    %v2364 = vunpack.c.h.b16 %v1888
    %v2365 = vunpack.c.l.b16 %v1889
    %v2366 = vunpack.c.h.b16 %v1889
    %v2367 = vunpack.c.l.b16 %v1890
    %v2368 = vunpack.c.h.b16 %v1890
    %v2369 = vunpack.c.l.b16 %v1891
    %v2370 = vunpack.c.h.b16 %v1891
    %v2371 = vunpack.c.l.b16 %v1892
    %v2372 = vunpack.c.h.b16 %v1892
    %v2373 = vunpack.c.l.b16 %v1893
    %v2374 = vunpack.c.h.b16 %v1893
    %v2375 = vunpack.c.l.b16 %v1894
    %v2376 = vunpack.c.h.b16 %v1894
    %v2377 = vunpack.c.l.b16 %v1895
    %v2378 = vunpack.c.h.b16 %v1895
    %v2379 = vunpack.c.l.b16 %v1896
    %v2380 = vunpack.c.h.b16 %v1896
    %v2381 = vunpack.c.l.b16 %v1897
    %v2382 = vunpack.c.h.b16 %v1897
    %v2383 = vunpack.c.l.b16 %v1898
    %v2384 = vunpack.c.h.b16 %v1898
    %v2385 = vunpack.c.l.b16 %v1899
    %v2386 = vunpack.c.h.b16 %v1899
    %v2387 = vunpack.c.l.b16 %v1900
    %v2388 = vunpack.c.h.b16 %v1900
    %v2389 = vunpack.c.l.b16 %v1901
    %v2390 = vunpack.c.h.b16 %v1901
    %v2391 = vunpack.c.l.b16 %v1902
    %v2392 = vunpack.c.h.b16 %v1902
    %v2393 = vunpack.c.l.b16 %v1903
    %v2394 = vunpack.c.h.b16 %v1903
    %v2395 = vunpack.c.l.b16 %v1904
    %v2396 = vunpack.c.h.b16 %v1904
    %v2397 = vunpack.c.l.b16 %v1905
    %v2398 = vunpack.c.h.b16 %v1905
    %v2399 = vunpack.c.l.b16 %v1906
    %v2400 = vunpack.c.h.b16 %v1906
    %v2401 = vunpack.c.l.b16 %v1907
    %v2402 = vunpack.c.h.b16 %v1907
    %v2403 = vunpack.c.l.b16 %v1908
    %v2404 = vunpack.c.h.b16 %v1908
    %v2405 = vunpack.c.l.b16 %v1909
    %v2406 = vunpack.c.h.b16 %v1909
    %v2407 = vunpack.c.l.b16 %v1910
    %v2408 = vunpack.c.h.b16 %v1910
    %v2409 = vunpack.c.l.b16 %v1911
    %v2410 = vunpack.c.h.b16 %v1911
    %v2411 = vunpack.c.l.b16 %v1912
    %v2412 = vunpack.c.h.b16 %v1912
    %v2413 = vunpack.c.l.b16 %v1913
    %v2414 = vunpack.c.h.b16 %v1913
    %v2415 = vunpack.c.l.b16 %v1914
    %v2416 = vunpack.c.h.b16 %v1914
    %v2417 = vunpack.c.l.b16 %v1915
    %v2418 = vunpack.c.h.b16 %v1915
    %v2419 = vunpack.c.l.b16 %v1916
    %v2420 = vunpack.c.h.b16 %v1916
    %v2421 = vunpack.c.l.b16 %v1917
    %v2422 = vunpack.c.h.b16 %v1917
    %v2423 = vunpack.c.l.b16 %v1918
    %v2424 = vunpack.c.h.b16 %v1918
    %v2425 = vunpack.c.l.b16 %v1919
    %v2426 = vunpack.c.h.b16 %v1919
    %v2427 = vunpack.c.l.b16 %v1920
    %v2428 = vunpack.c.h.b16 %v1920
    %v2429 = vunpack.c.l.b16 %v1921
    %v2430 = vunpack.c.h.b16 %v1921
    %v2431 = vunpack.c.l.b16 %v1922
    %v2432 = vunpack.c.h.b16 %v1922
    %v2433 = vunpack.c.l.b16 %v1923
    %v2434 = vunpack.c.h.b16 %v1923
    %v2435 = vunpack.c.l.b16 %v1924
    %v2436 = vunpack.c.h.b16 %v1924
    %v2437 = vunpack.c.l.b16 %v1925
    %v2438 = vunpack.c.h.b16 %v1925
    %v2439 = vunpack.c.l.b16 %v1926
    %v2440 = vunpack.c.h.b16 %v1926
    %v2441 = vunpack.c.l.b16 %v1927
    %v2442 = vunpack.c.h.b16 %v1927
    %v2443 = vunpack.c.l.b16 %v1928
    %v2444 = vunpack.c.h.b16 %v1928
    %v2445 = vunpack.c.l.b16 %v1929
    %v2446 = vunpack.c.h.b16 %v1929
    %v2447 = vunpack.c.l.b16 %v1930
    %v2448 = vunpack.c.h.b16 %v1930
    %v2449 = vunpack.c.l.b16 %v1931
    %v2450 = vunpack.c.h.b16 %v1931
    %v2451 = vunpack.c.l.b16 %v1932
    %v2452 = vunpack.c.h.b16 %v1932
    %v2453 = vpack.c.b16 %v2205, %v2197
    %v2454 = vpack.c.b16 %v2206, %v2198
    %v2455 = vpack.c.b16 %v2207, %v2199
    %v2456 = vpack.c.b16 %v2208, %v2200
    %v2457 = vpack.c.b16 %v2209, %v2201
    %v2458 = vpack.c.b16 %v2210, %v2202
    %v2459 = vpack.c.b16 %v2211, %v2203
    %v2460 = vpack.c.b16 %v2212, %v2204
    %v2461 = vpack.c.b16 %v2221, %v2213
    %v2462 = vpack.c.b16 %v2222, %v2214
    %v2463 = vpack.c.b16 %v2223, %v2215
    %v2464 = vpack.c.b16 %v2224, %v2216
    %v2465 = vpack.c.b16 %v2225, %v2217
    %v2466 = vpack.c.b16 %v2226, %v2218
    %v2467 = vpack.c.b16 %v2227, %v2219
    %v2468 = vpack.c.b16 %v2228, %v2220
    %v2469 = vpack.c.b16 %v2237, %v2229
    %v2470 = vpack.c.b16 %v2238, %v2230
    %v2471 = vpack.c.b16 %v2239, %v2231
    %v2472 = vpack.c.b16 %v2240, %v2232
    %v2473 = vpack.c.b16 %v2241, %v2233
    %v2474 = vpack.c.b16 %v2242, %v2234
    %v2475 = vpack.c.b16 %v2243, %v2235
    %v2476 = vpack.c.b16 %v2244, %v2236
    %v2477 = vpack.c.b16 %v2253, %v2245
    %v2478 = vpack.c.b16 %v2254, %v2246
    %v2479 = vpack.c.b16 %v2255, %v2247
    %v2480 = vpack.c.b16 %v2256, %v2248
    %v2481 = vpack.c.b16 %v2257, %v2249
    %v2482 = vpack.c.b16 %v2258, %v2250
    %v2483 = vpack.c.b16 %v2259, %v2251
    %v2484 = vpack.c.b16 %v2260, %v2252
    %v2485 = vpack.c.b16 %v2269, %v2261
    %v2486 = vpack.c.b16 %v2270, %v2262
    %v2487 = vpack.c.b16 %v2271, %v2263
    %v2488 = vpack.c.b16 %v2272, %v2264
    %v2489 = vpack.c.b16 %v2273, %v2265
    %v2490 = vpack.c.b16 %v2274, %v2266
    %v2491 = vpack.c.b16 %v2275, %v2267
    %v2492 = vpack.c.b16 %v2276, %v2268
    %v2493 = vpack.c.b16 %v2285, %v2277
    %v2494 = vpack.c.b16 %v2286, %v2278
    %v2495 = vpack.c.b16 %v2287, %v2279
    %v2496 = vpack.c.b16 %v2288, %v2280
    %v2497 = vpack.c.b16 %v2289, %v2281
    %v2498 = vpack.c.b16 %v2290, %v2282
    %v2499 = vpack.c.b16 %v2291, %v2283
    %v2500 = vpack.c.b16 %v2292, %v2284
    %v2501 = vpack.c.b16 %v2301, %v2293
    %v2502 = vpack.c.b16 %v2302, %v2294
    %v2503 = vpack.c.b16 %v2303, %v2295
    %v2504 = vpack.c.b16 %v2304, %v2296
    %v2505 = vpack.c.b16 %v2305, %v2297
    %v2506 = vpack.c.b16 %v2306, %v2298
    %v2507 = vpack.c.b16 %v2307, %v2299
    %v2508 = vpack.c.b16 %v2308, %v2300
    %v2509 = vpack.c.b16 %v2317, %v2309
    %v2510 = vpack.c.b16 %v2318, %v2310
    %v2511 = vpack.c.b16 %v2319, %v2311
    %v2512 = vpack.c.b16 %v2320, %v2312
    %v2513 = vpack.c.b16 %v2321, %v2313
    %v2514 = vpack.c.b16 %v2322, %v2314
    %v2515 = vpack.c.b16 %v2323, %v2315
    %v2516 = vpack.c.b16 %v2324, %v2316
    %v2517 = vpack.c.b16 %v2333, %v2325
    %v2518 = vpack.c.b16 %v2334, %v2326
    %v2519 = vpack.c.b16 %v2335, %v2327
    %v2520 = vpack.c.b16 %v2336, %v2328
    %v2521 = vpack.c.b16 %v2337, %v2329
    %v2522 = vpack.c.b16 %v2338, %v2330
    %v2523 = vpack.c.b16 %v2339, %v2331
    %v2524 = vpack.c.b16 %v2340, %v2332
    %v2525 = vpack.c.b16 %v2349, %v2341
    %v2526 = vpack.c.b16 %v2350, %v2342
    %v2527 = vpack.c.b16 %v2351, %v2343
    %v2528 = vpack.c.b16 %v2352, %v2344
    %v2529 = vpack.c.b16 %v2353, %v2345
    %v2530 = vpack.c.b16 %v2354, %v2346
    %v2531 = vpack.c.b16 %v2355, %v2347
    %v2532 = vpack.c.b16 %v2356, %v2348
    %v2533 = vpack.c.b16 %v2365, %v2357
    %v2534 = vpack.c.b16 %v2366, %v2358
    %v2535 = vpack.c.b16 %v2367, %v2359
    %v2536 = vpack.c.b16 %v2368, %v2360
    %v2537 = vpack.c.b16 %v2369, %v2361
    %v2538 = vpack.c.b16 %v2370, %v2362
    %v2539 = vpack.c.b16 %v2371, %v2363
    %v2540 = vpack.c.b16 %v2372, %v2364
    %v2541 = vpack.c.b16 %v2381, %v2373
    %v2542 = vpack.c.b16 %v2382, %v2374
    %v2543 = vpack.c.b16 %v2383, %v2375
    %v2544 = vpack.c.b16 %v2384, %v2376
    %v2545 = vpack.c.b16 %v2385, %v2377
    %v2546 = vpack.c.b16 %v2386, %v2378
    %v2547 = vpack.c.b16 %v2387, %v2379
    %v2548 = vpack.c.b16 %v2388, %v2380
    %v2549 = vpack.c.b16 %v2397, %v2389
    %v2550 = vpack.c.b16 %v2398, %v2390
    %v2551 = vpack.c.b16 %v2399, %v2391
    %v2552 = vpack.c.b16 %v2400, %v2392
    %v2553 = vpack.c.b16 %v2401, %v2393
    %v2554 = vpack.c.b16 %v2402, %v2394
    %v2555 = vpack.c.b16 %v2403, %v2395
    %v2556 = vpack.c.b16 %v2404, %v2396
    %v2557 = vpack.c.b16 %v2413, %v2405
    %v2558 = vpack.c.b16 %v2414, %v2406
    %v2559 = vpack.c.b16 %v2415, %v2407
    %v2560 = vpack.c.b16 %v2416, %v2408
    %v2561 = vpack.c.b16 %v2417, %v2409
    %v2562 = vpack.c.b16 %v2418, %v2410
    %v2563 = vpack.c.b16 %v2419, %v2411
    %v2564 = vpack.c.b16 %v2420, %v2412
    %v2565 = vpack.c.b16 %v2429, %v2421
    %v2566 = vpack.c.b16 %v2430, %v2422
    %v2567 = vpack.c.b16 %v2431, %v2423
    %v2568 = vpack.c.b16 %v2432, %v2424
    %v2569 = vpack.c.b16 %v2433, %v2425
    %v2570 = vpack.c.b16 %v2434, %v2426
    %v2571 = vpack.c.b16 %v2435, %v2427
    %v2572 = vpack.c.b16 %v2436, %v2428
    %v2573 = vpack.c.b16 %v2445, %v2437
    %v2574 = vpack.c.b16 %v2446, %v2438
    %v2575 = vpack.c.b16 %v2447, %v2439
    %v2576 = vpack.c.b16 %v2448, %v2440
    %v2577 = vpack.c.b16 %v2449, %v2441
    %v2578 = vpack.c.b16 %v2450, %v2442
    %v2579 = vpack.c.b16 %v2451, %v2443
    %v2580 = vpack.c.b16 %v2452, %v2444
    %2709 = vmatprep.subr.bf16.mxu0 %v2510
    %2710 = vmatpush1.bf16.msra.mxu0 %v2509
    %2711 = vmatprep.subr.bf16.mxu0 %v2502
    %2712 = vmatpush1.bf16.msra.mxu0 %v2501
    %2713 = vmatprep.subr.bf16.mxu0 %v2494
    %2714 = vmatpush1.bf16.msra.mxu0 %v2493
    %2715 = vmatprep.subr.bf16.mxu0 %v2486
    %2716 = vmatpush1.bf16.msra.mxu0 %v2485
    %2717 = vmatprep.subr.bf16.mxu0 %v2478
    %2718 = vmatpush1.bf16.msra.mxu0 %v2477
    %2719 = vmatprep.subr.bf16.mxu0 %v2470
    %2720 = vmatpush1.bf16.msra.mxu0 %v2469
    %2721 = vmatprep.subr.bf16.mxu0 %v2462
    %2722 = vmatpush1.bf16.msra.mxu0 %v2461
    %2723 = vmatprep.subr.bf16.mxu0 %v2454
    %2724 = vmatpush1.bf16.msra.mxu0 %v2453
    %2725 = vmatprep.subr.bf16.mxu0 %v2574
    %2726 = vmatpush2.bf16.msra.mxu0 %v2573
    %2727 = vmatprep.subr.bf16.mxu0 %v2566
    %2728 = vmatpush2.bf16.msra.mxu0 %v2565
    %2729 = vmatprep.subr.bf16.mxu0 %v2558
    %2730 = vmatpush2.bf16.msra.mxu0 %v2557
    %2731 = vmatprep.subr.bf16.mxu0 %v2550
    %2732 = vmatpush2.bf16.msra.mxu0 %v2549
    %2733 = vmatprep.subr.bf16.mxu0 %v2542
    %2734 = vmatpush2.bf16.msra.mxu0 %v2541
    %2735 = vmatprep.subr.bf16.mxu0 %v2534
    %2736 = vmatpush2.bf16.msra.mxu0 %v2533
    %2737 = vmatprep.subr.bf16.mxu0 %v2526
    %2738 = vmatpush2.bf16.msra.mxu0 %v2525
    %2739 = vmatprep.subr.bf16.mxu0 %v2518
    %2740 = vmatpush2.bf16.msra.mxu0 %v2517
    %2741 = vmatprep.mubr.bf16.mxu0 0
    %2742 = vmatmul.mubr.bf16.gmra.mxu0 0
    %v2743 = vpop.f32.mrf.mxu0
    %v2744 = vadd.f32 0.0, %v2743
    %v2745 = vpop.f32.mrf.mxu0
    %v2746 = vadd.f32 0.0, %v2745
    %v2747 = vpop.f32.mrf.mxu0
    %v2748 = vpop.f32.mrf.mxu0
    %2749 = vdwg.mxu0
    %2750 = vmatprep.subr.bf16.mxu0 %v2512
    %2751 = vmatpush1.bf16.msra.mxu0 %v2511
    %2752 = vmatprep.subr.bf16.mxu0 %v2504
    %2753 = vmatpush1.bf16.msra.mxu0 %v2503
    %2754 = vmatprep.subr.bf16.mxu0 %v2496
    %2755 = vmatpush1.bf16.msra.mxu0 %v2495
    %2756 = vmatprep.subr.bf16.mxu0 %v2488
    %2757 = vmatpush1.bf16.msra.mxu0 %v2487
    %2758 = vmatprep.subr.bf16.mxu0 %v2480
    %2759 = vmatpush1.bf16.msra.mxu0 %v2479
    %2760 = vmatprep.subr.bf16.mxu0 %v2472
    %2761 = vmatpush1.bf16.msra.mxu0 %v2471
    %2762 = vmatprep.subr.bf16.mxu0 %v2464
    %2763 = vmatpush1.bf16.msra.mxu0 %v2463
    %2764 = vmatprep.subr.bf16.mxu0 %v2456
    %2765 = vmatpush1.bf16.msra.mxu0 %v2455
    %2766 = vmatprep.subr.bf16.mxu0 %v2576
    %2767 = vmatpush2.bf16.msra.mxu0 %v2575
    %2768 = vmatprep.subr.bf16.mxu0 %v2568
    %2769 = vmatpush2.bf16.msra.mxu0 %v2567
    %2770 = vmatprep.subr.bf16.mxu0 %v2560
    %2771 = vmatpush2.bf16.msra.mxu0 %v2559
    %2772 = vmatprep.subr.bf16.mxu0 %v2552
    %2773 = vmatpush2.bf16.msra.mxu0 %v2551
    %2774 = vmatprep.subr.bf16.mxu0 %v2544
    %2775 = vmatpush2.bf16.msra.mxu0 %v2543
    %2776 = vmatprep.subr.bf16.mxu0 %v2536
    %2777 = vmatpush2.bf16.msra.mxu0 %v2535
    %2778 = vmatprep.subr.bf16.mxu0 %v2528
    %2779 = vmatpush2.bf16.msra.mxu0 %v2527
    %2780 = vmatprep.subr.bf16.mxu0 %v2520
    %2781 = vmatpush2.bf16.msra.mxu0 %v2519
    %2782 = vmatprep.mubr.bf16.mxu0 0
    %2783 = vmatmul.mubr.bf16.gmra.mxu0 0
    %v2784 = vpop.f32.mrf.mxu0
    %v2785 = vadd.f32 0.0, %v2784
    %v2786 = vpop.f32.mrf.mxu0
    %v2787 = vadd.f32 0.0, %v2786
    %v2788 = vpop.f32.mrf.mxu0
    %v2789 = vpop.f32.mrf.mxu0
    %2790 = vdwg.mxu0
    %2791 = vmatprep.subr.bf16.mxu0 %v2514
    %2792 = vmatpush1.bf16.msra.mxu0 %v2513
    %2793 = vmatprep.subr.bf16.mxu0 %v2506
    %2794 = vmatpush1.bf16.msra.mxu0 %v2505
    %2795 = vmatprep.subr.bf16.mxu0 %v2498
    %2796 = vmatpush1.bf16.msra.mxu0 %v2497
    %2797 = vmatprep.subr.bf16.mxu0 %v2490
    %2798 = vmatpush1.bf16.msra.mxu0 %v2489
    %2799 = vmatprep.subr.bf16.mxu0 %v2482
    %2800 = vmatpush1.bf16.msra.mxu0 %v2481
    %2801 = vmatprep.subr.bf16.mxu0 %v2474
    %2802 = vmatpush1.bf16.msra.mxu0 %v2473
    %2803 = vmatprep.subr.bf16.mxu0 %v2466
    %2804 = vmatpush1.bf16.msra.mxu0 %v2465
    %2805 = vmatprep.subr.bf16.mxu0 %v2458
    %2806 = vmatpush1.bf16.msra.mxu0 %v2457
    %2807 = vmatprep.subr.bf16.mxu0 %v2578
    %2808 = vmatpush2.bf16.msra.mxu0 %v2577
    %2809 = vmatprep.subr.bf16.mxu0 %v2570
    %2810 = vmatpush2.bf16.msra.mxu0 %v2569
    %2811 = vmatprep.subr.bf16.mxu0 %v2562
    %2812 = vmatpush2.bf16.msra.mxu0 %v2561
    %2813 = vmatprep.subr.bf16.mxu0 %v2554
    %2814 = vmatpush2.bf16.msra.mxu0 %v2553
    %2815 = vmatprep.subr.bf16.mxu0 %v2546
    %2816 = vmatpush2.bf16.msra.mxu0 %v2545
    %2817 = vmatprep.subr.bf16.mxu0 %v2538
    %2818 = vmatpush2.bf16.msra.mxu0 %v2537
    %2819 = vmatprep.subr.bf16.mxu0 %v2530
    %2820 = vmatpush2.bf16.msra.mxu0 %v2529
    %2821 = vmatprep.subr.bf16.mxu0 %v2522
    %2822 = vmatpush2.bf16.msra.mxu0 %v2521
    %2823 = vmatprep.mubr.bf16.mxu0 0
    %2824 = vmatmul.mubr.bf16.gmra.mxu0 0
    %v2825 = vpop.f32.mrf.mxu0
    %v2826 = vadd.f32 0.0, %v2825
    %v2827 = vpop.f32.mrf.mxu0
    %v2828 = vadd.f32 0.0, %v2827
    %v2829 = vpop.f32.mrf.mxu0
    %v2830 = vpop.f32.mrf.mxu0
    %2831 = vdwg.mxu0
    %2832 = vmatprep.subr.bf16.mxu0 %v2516
    %2833 = vmatpush1.bf16.msra.mxu0 %v2515
    %2834 = vmatprep.subr.bf16.mxu0 %v2508
    %2835 = vmatpush1.bf16.msra.mxu0 %v2507
    %2836 = vmatprep.subr.bf16.mxu0 %v2500
    %2837 = vmatpush1.bf16.msra.mxu0 %v2499
    %2838 = vmatprep.subr.bf16.mxu0 %v2492
    %2839 = vmatpush1.bf16.msra.mxu0 %v2491
    %2840 = vmatprep.subr.bf16.mxu0 %v2484
    %2841 = vmatpush1.bf16.msra.mxu0 %v2483
    %2842 = vmatprep.subr.bf16.mxu0 %v2476
    %2843 = vmatpush1.bf16.msra.mxu0 %v2475
    %2844 = vmatprep.subr.bf16.mxu0 %v2468
    %2845 = vmatpush1.bf16.msra.mxu0 %v2467
    %2846 = vmatprep.subr.bf16.mxu0 %v2460
    %2847 = vmatpush1.bf16.msra.mxu0 %v2459
    %2848 = vmatprep.subr.bf16.mxu0 %v2580
    %2849 = vmatpush2.bf16.msra.mxu0 %v2579
    %2850 = vmatprep.subr.bf16.mxu0 %v2572
    %2851 = vmatpush2.bf16.msra.mxu0 %v2571
    %2852 = vmatprep.subr.bf16.mxu0 %v2564
    %2853 = vmatpush2.bf16.msra.mxu0 %v2563
    %2854 = vmatprep.subr.bf16.mxu0 %v2556
    %2855 = vmatpush2.bf16.msra.mxu0 %v2555
    %2856 = vmatprep.subr.bf16.mxu0 %v2548
    %2857 = vmatpush2.bf16.msra.mxu0 %v2547
    %2858 = vmatprep.subr.bf16.mxu0 %v2540
    %2859 = vmatpush2.bf16.msra.mxu0 %v2539
    %2860 = vmatprep.subr.bf16.mxu0 %v2532
    %2861 = vmatpush2.bf16.msra.mxu0 %v2531
    %2862 = vmatprep.subr.bf16.mxu0 %v2524
    %2863 = vmatpush2.bf16.msra.mxu0 %v2523
    %2864 = vmatprep.mubr.bf16.mxu0 0
    %2865 = vmatmul.mubr.bf16.gmra.mxu0 0
    %v2866 = vpop.f32.mrf.mxu0
    %v2867 = vadd.f32 0.0, %v2866
    %v2868 = vpop.f32.mrf.mxu0
    %v2869 = vadd.f32 0.0, %v2868
    %v2870 = vpop.f32.mrf.mxu0
    %v2871 = vpop.f32.mrf.mxu0
    %2872 = vdwg.mxu0
    %v2873 = vadd.f32 %v2061, %v2744
    %v2874 = vadd.f32 %v2062, %v2746
    %v2875 = vadd.f32 %v2063, %v2785
    %v2876 = vadd.f32 %v2064, %v2787
    %v2877 = vadd.f32 %v2065, %v2826
    %v2878 = vadd.f32 %v2066, %v2828
    %v2879 = vadd.f32 %v2067, %v2867
    %v2880 = vadd.f32 %v2068, %v2869
    %v2881 = vxor.u32 %v2873, 2147483648
    %v2882 = vxor.u32 %v2874, 2147483648
    %v2883 = vxor.u32 %v2875, 2147483648
    %v2884 = vxor.u32 %v2876, 2147483648
    %v2885 = vxor.u32 %v2877, 2147483648
    %v2886 = vxor.u32 %v2878, 2147483648
    %v2887 = vmul.f32 %v2881, 1.442695
    %v2888 = vpow.pop %v2887
    %v2889 = vmul.f32 %v2882, 1.442695
    %v2890 = vpow.pop %v2889
    %v2891 = vmul.f32 %v2883, 1.442695
    %v2892 = vpow.pop %v2891
    %v2893 = vmul.f32 %v2884, 1.442695
    %v2894 = vpow.pop %v2893
    %v2895 = vmul.f32 %v2885, 1.442695
    %v2896 = vpow.pop %v2895
    %v2897 = vmul.f32 %v2886, 1.442695
    %v2898 = vpow.pop %v2897
    %v2899 = vadd.f32 %v2888, 1.0
    %v2900 = vadd.f32 %v2890, 1.0
    %v2901 = vadd.f32 %v2892, 1.0
    %v2902 = vadd.f32 %v2894, 1.0
    %v2903 = vadd.f32 %v2896, 1.0
    %v2904 = vadd.f32 %v2898, 1.0
    %v2905 = vrcp.pop %v2899
    %v2906 = vmul.f32 1.0, %v2905
    %v2907 = vrcp.pop %v2900
    %v2908 = vmul.f32 1.0, %v2907
    %v2909 = vrcp.pop %v2901
    %v2910 = vmul.f32 1.0, %v2909
    %v2911 = vrcp.pop %v2902
    %v2912 = vmul.f32 1.0, %v2911
    %v2913 = vrcp.pop %v2903
    %v2914 = vmul.f32 1.0, %v2913
    %v2915 = vrcp.pop %v2904
    %v2916 = vmul.f32 1.0, %v2915
    %v2917 = vtanh.pop %v2879
    %v2918 = vtanh.pop %v2880
    %v2919 = vmul.f32 %v2910, 0.0
    %v2920 = vmul.f32 %v2912, 0.0
    %v2921 = vmul.f32 %v2906, %v2917
    %v2922 = vmul.f32 %v2908, %v2918
    %v2923 = vadd.f32 %v2919, %v2921
    %v2924 = vadd.f32 %v2920, %v2922
    %v2925 = vtanh.pop %v2923
    %v2926 = vtanh.pop %v2924
    %v2927 = vmul.f32 %v2914, %v2925
    %v2928 = vmul.f32 %v2916, %v2926
    %2929 = vst [vmem:[#allocation3] sm:$0xff] %v2927
    %2930 = vst [vmem:[#allocation3 + $0x8] sm:$0xff] %v2928
    %v2931 = vld [vmem:[#allocation2 + $0x3c0] sm:$0xff]
    %v2932 = vld [vmem:[#allocation2 + $0x3c8] sm:$0xff]
    %v2933 = vld [vmem:[#allocation2 + $0x3d0] sm:$0xff]
    %v2934 = vld [vmem:[#allocation2 + $0x3d8] sm:$0xff]
    %v2935 = vld [vmem:[#allocation2 + $0x3e0] sm:$0xff]
    %v2936 = vld [vmem:[#allocation2 + $0x3e8] sm:$0xff]
    %v2937 = vld [vmem:[#allocation2 + $0x3f0] sm:$0xff]
    %v2938 = vld [vmem:[#allocation2 + $0x3f8] sm:$0xff]
    %v3067 = vunpack.c.l.b16 %v1933
    %v3068 = vunpack.c.h.b16 %v1933
    %v3069 = vunpack.c.l.b16 %v1934
    %v3070 = vunpack.c.h.b16 %v1934
    %v3071 = vunpack.c.l.b16 %v1935
    %v3072 = vunpack.c.h.b16 %v1935
    %v3073 = vunpack.c.l.b16 %v1936
    %v3074 = vunpack.c.h.b16 %v1936
    %v3075 = vunpack.c.l.b16 %v1937
    %v3076 = vunpack.c.h.b16 %v1937
    %v3077 = vunpack.c.l.b16 %v1938
    %v3078 = vunpack.c.h.b16 %v1938
    %v3079 = vunpack.c.l.b16 %v1939
    %v3080 = vunpack.c.h.b16 %v1939
    %v3081 = vunpack.c.l.b16 %v1940
    %v3082 = vunpack.c.h.b16 %v1940
    %v3083 = vunpack.c.l.b16 %v1941
    %v3084 = vunpack.c.h.b16 %v1941
    %v3085 = vunpack.c.l.b16 %v1942
    %v3086 = vunpack.c.h.b16 %v1942
    %v3087 = vunpack.c.l.b16 %v1943
    %v3088 = vunpack.c.h.b16 %v1943
    %v3089 = vunpack.c.l.b16 %v1944
    %v3090 = vunpack.c.h.b16 %v1944
    %v3091 = vunpack.c.l.b16 %v1945
    %v3092 = vunpack.c.h.b16 %v1945
    %v3093 = vunpack.c.l.b16 %v1946
    %v3094 = vunpack.c.h.b16 %v1946
    %v3095 = vunpack.c.l.b16 %v1947
    %v3096 = vunpack.c.h.b16 %v1947
    %v3097 = vunpack.c.l.b16 %v1948
    %v3098 = vunpack.c.h.b16 %v1948
    %v3099 = vunpack.c.l.b16 %v1949
    %v3100 = vunpack.c.h.b16 %v1949
    %v3101 = vunpack.c.l.b16 %v1950
    %v3102 = vunpack.c.h.b16 %v1950
    %v3103 = vunpack.c.l.b16 %v1951
    %v3104 = vunpack.c.h.b16 %v1951
    %v3105 = vunpack.c.l.b16 %v1952
    %v3106 = vunpack.c.h.b16 %v1952
    %v3107 = vunpack.c.l.b16 %v1953
    %v3108 = vunpack.c.h.b16 %v1953
    %v3109 = vunpack.c.l.b16 %v1954
    %v3110 = vunpack.c.h.b16 %v1954
    %v3111 = vunpack.c.l.b16 %v1955
    %v3112 = vunpack.c.h.b16 %v1955
    %v3113 = vunpack.c.l.b16 %v1956
    %v3114 = vunpack.c.h.b16 %v1956
    %v3115 = vunpack.c.l.b16 %v1957
    %v3116 = vunpack.c.h.b16 %v1957
    %v3117 = vunpack.c.l.b16 %v1958
    %v3118 = vunpack.c.h.b16 %v1958
    %v3119 = vunpack.c.l.b16 %v1959
    %v3120 = vunpack.c.h.b16 %v1959
    %v3121 = vunpack.c.l.b16 %v1960
    %v3122 = vunpack.c.h.b16 %v1960
    %v3123 = vunpack.c.l.b16 %v1961
    %v3124 = vunpack.c.h.b16 %v1961
    %v3125 = vunpack.c.l.b16 %v1962
    %v3126 = vunpack.c.h.b16 %v1962
    %v3127 = vunpack.c.l.b16 %v1963
    %v3128 = vunpack.c.h.b16 %v1963
    %v3129 = vunpack.c.l.b16 %v1964
    %v3130 = vunpack.c.h.b16 %v1964
    %v3131 = vunpack.c.l.b16 %v1965
    %v3132 = vunpack.c.h.b16 %v1965
    %v3133 = vunpack.c.l.b16 %v1966
    %v3134 = vunpack.c.h.b16 %v1966
    %v3135 = vunpack.c.l.b16 %v1967
    %v3136 = vunpack.c.h.b16 %v1967
    %v3137 = vunpack.c.l.b16 %v1968
    %v3138 = vunpack.c.h.b16 %v1968
    %v3139 = vunpack.c.l.b16 %v1969
    %v3140 = vunpack.c.h.b16 %v1969
    %v3141 = vunpack.c.l.b16 %v1970
    %v3142 = vunpack.c.h.b16 %v1970
    %v3143 = vunpack.c.l.b16 %v1971
    %v3144 = vunpack.c.h.b16 %v1971
    %v3145 = vunpack.c.l.b16 %v1972
    %v3146 = vunpack.c.h.b16 %v1972
    %v3147 = vunpack.c.l.b16 %v1973
    %v3148 = vunpack.c.h.b16 %v1973
    %v3149 = vunpack.c.l.b16 %v1974
    %v3150 = vunpack.c.h.b16 %v1974
    %v3151 = vunpack.c.l.b16 %v1975
    %v3152 = vunpack.c.h.b16 %v1975
    %v3153 = vunpack.c.l.b16 %v1976
    %v3154 = vunpack.c.h.b16 %v1976
    %v3155 = vunpack.c.l.b16 %v1977
    %v3156 = vunpack.c.h.b16 %v1977
    %v3157 = vunpack.c.l.b16 %v1978
    %v3158 = vunpack.c.h.b16 %v1978
    %v3159 = vunpack.c.l.b16 %v1979
    %v3160 = vunpack.c.h.b16 %v1979
    %v3161 = vunpack.c.l.b16 %v1980
    %v3162 = vunpack.c.h.b16 %v1980
    %v3163 = vunpack.c.l.b16 %v1981
    %v3164 = vunpack.c.h.b16 %v1981
    %v3165 = vunpack.c.l.b16 %v1982
    %v3166 = vunpack.c.h.b16 %v1982
    %v3167 = vunpack.c.l.b16 %v1983
    %v3168 = vunpack.c.h.b16 %v1983
    %v3169 = vunpack.c.l.b16 %v1984
    %v3170 = vunpack.c.h.b16 %v1984
    %v3171 = vunpack.c.l.b16 %v1985
    %v3172 = vunpack.c.h.b16 %v1985
    %v3173 = vunpack.c.l.b16 %v1986
    %v3174 = vunpack.c.h.b16 %v1986
    %v3175 = vunpack.c.l.b16 %v1987
    %v3176 = vunpack.c.h.b16 %v1987
    %v3177 = vunpack.c.l.b16 %v1988
    %v3178 = vunpack.c.h.b16 %v1988
    %v3179 = vunpack.c.l.b16 %v1989
    %v3180 = vunpack.c.h.b16 %v1989
    %v3181 = vunpack.c.l.b16 %v1990
    %v3182 = vunpack.c.h.b16 %v1990
    %v3183 = vunpack.c.l.b16 %v1991
    %v3184 = vunpack.c.h.b16 %v1991
    %v3185 = vunpack.c.l.b16 %v1992
    %v3186 = vunpack.c.h.b16 %v1992
    %v3187 = vunpack.c.l.b16 %v1993
    %v3188 = vunpack.c.h.b16 %v1993
    %v3189 = vunpack.c.l.b16 %v1994
    %v3190 = vunpack.c.h.b16 %v1994
    %v3191 = vunpack.c.l.b16 %v1995
    %v3192 = vunpack.c.h.b16 %v1995
    %v3193 = vunpack.c.l.b16 %v1996
    %v3194 = vunpack.c.h.b16 %v1996
    %v3195 = vunpack.c.l.b16 %v1997
    %v3196 = vunpack.c.h.b16 %v1997
    %v3197 = vunpack.c.l.b16 %v1998
    %v3198 = vunpack.c.h.b16 %v1998
    %v3199 = vunpack.c.l.b16 %v1999
    %v3200 = vunpack.c.h.b16 %v1999
    %v3201 = vunpack.c.l.b16 %v2000
    %v3202 = vunpack.c.h.b16 %v2000
    %v3203 = vunpack.c.l.b16 %v2001
    %v3204 = vunpack.c.h.b16 %v2001
    %v3205 = vunpack.c.l.b16 %v2002
    %v3206 = vunpack.c.h.b16 %v2002
    %v3207 = vunpack.c.l.b16 %v2003
    %v3208 = vunpack.c.h.b16 %v2003
    %v3209 = vunpack.c.l.b16 %v2004
    %v3210 = vunpack.c.h.b16 %v2004
    %v3211 = vunpack.c.l.b16 %v2005
    %v3212 = vunpack.c.h.b16 %v2005
    %v3213 = vunpack.c.l.b16 %v2006
    %v3214 = vunpack.c.h.b16 %v2006
    %v3215 = vunpack.c.l.b16 %v2007
    %v3216 = vunpack.c.h.b16 %v2007
    %v3217 = vunpack.c.l.b16 %v2008
    %v3218 = vunpack.c.h.b16 %v2008
    %v3219 = vunpack.c.l.b16 %v2009
    %v3220 = vunpack.c.h.b16 %v2009
    %v3221 = vunpack.c.l.b16 %v2010
    %v3222 = vunpack.c.h.b16 %v2010
    %v3223 = vunpack.c.l.b16 %v2011
    %v3224 = vunpack.c.h.b16 %v2011
    %v3225 = vunpack.c.l.b16 %v2012
    %v3226 = vunpack.c.h.b16 %v2012
    %v3227 = vunpack.c.l.b16 %v2013
    %v3228 = vunpack.c.h.b16 %v2013
    %v3229 = vunpack.c.l.b16 %v2014
    %v3230 = vunpack.c.h.b16 %v2014
    %v3231 = vunpack.c.l.b16 %v2015
    %v3232 = vunpack.c.h.b16 %v2015
    %v3233 = vunpack.c.l.b16 %v2016
    %v3234 = vunpack.c.h.b16 %v2016
    %v3235 = vunpack.c.l.b16 %v2017
    %v3236 = vunpack.c.h.b16 %v2017
    %v3237 = vunpack.c.l.b16 %v2018
    %v3238 = vunpack.c.h.b16 %v2018
    %v3239 = vunpack.c.l.b16 %v2019
    %v3240 = vunpack.c.h.b16 %v2019
    %v3241 = vunpack.c.l.b16 %v2020
    %v3242 = vunpack.c.h.b16 %v2020
    %v3243 = vunpack.c.l.b16 %v2021
    %v3244 = vunpack.c.h.b16 %v2021
    %v3245 = vunpack.c.l.b16 %v2022
    %v3246 = vunpack.c.h.b16 %v2022
    %v3247 = vunpack.c.l.b16 %v2023
    %v3248 = vunpack.c.h.b16 %v2023
    %v3249 = vunpack.c.l.b16 %v2024
    %v3250 = vunpack.c.h.b16 %v2024
    %v3251 = vunpack.c.l.b16 %v2025
    %v3252 = vunpack.c.h.b16 %v2025
    %v3253 = vunpack.c.l.b16 %v2026
    %v3254 = vunpack.c.h.b16 %v2026
    %v3255 = vunpack.c.l.b16 %v2027
    %v3256 = vunpack.c.h.b16 %v2027
    %v3257 = vunpack.c.l.b16 %v2028
    %v3258 = vunpack.c.h.b16 %v2028
    %v3259 = vunpack.c.l.b16 %v2029
    %v3260 = vunpack.c.h.b16 %v2029
    %v3261 = vunpack.c.l.b16 %v2030
    %v3262 = vunpack.c.h.b16 %v2030
    %v3263 = vunpack.c.l.b16 %v2031
    %v3264 = vunpack.c.h.b16 %v2031
    %v3265 = vunpack.c.l.b16 %v2032
    %v3266 = vunpack.c.h.b16 %v2032
    %v3267 = vunpack.c.l.b16 %v2033
    %v3268 = vunpack.c.h.b16 %v2033
    %v3269 = vunpack.c.l.b16 %v2034
    %v3270 = vunpack.c.h.b16 %v2034
    %v3271 = vunpack.c.l.b16 %v2035
    %v3272 = vunpack.c.h.b16 %v2035
    %v3273 = vunpack.c.l.b16 %v2036
    %v3274 = vunpack.c.h.b16 %v2036
    %v3275 = vunpack.c.l.b16 %v2037
    %v3276 = vunpack.c.h.b16 %v2037
    %v3277 = vunpack.c.l.b16 %v2038
    %v3278 = vunpack.c.h.b16 %v2038
    %v3279 = vunpack.c.l.b16 %v2039
    %v3280 = vunpack.c.h.b16 %v2039
    %v3281 = vunpack.c.l.b16 %v2040
    %v3282 = vunpack.c.h.b16 %v2040
    %v3283 = vunpack.c.l.b16 %v2041
    %v3284 = vunpack.c.h.b16 %v2041
    %v3285 = vunpack.c.l.b16 %v2042
    %v3286 = vunpack.c.h.b16 %v2042
    %v3287 = vunpack.c.l.b16 %v2043
    %v3288 = vunpack.c.h.b16 %v2043
    %v3289 = vunpack.c.l.b16 %v2044
    %v3290 = vunpack.c.h.b16 %v2044
    %v3291 = vunpack.c.l.b16 %v2045
    %v3292 = vunpack.c.h.b16 %v2045
    %v3293 = vunpack.c.l.b16 %v2046
    %v3294 = vunpack.c.h.b16 %v2046
    %v3295 = vunpack.c.l.b16 %v2047
    %v3296 = vunpack.c.h.b16 %v2047
    %v3297 = vunpack.c.l.b16 %v2048
    %v3298 = vunpack.c.h.b16 %v2048
    %v3299 = vunpack.c.l.b16 %v2049
    %v3300 = vunpack.c.h.b16 %v2049
    %v3301 = vunpack.c.l.b16 %v2050
    %v3302 = vunpack.c.h.b16 %v2050
    %v3303 = vunpack.c.l.b16 %v2051
    %v3304 = vunpack.c.h.b16 %v2051
    %v3305 = vunpack.c.l.b16 %v2052
    %v3306 = vunpack.c.h.b16 %v2052
    %v3307 = vunpack.c.l.b16 %v2053
    %v3308 = vunpack.c.h.b16 %v2053
    %v3309 = vunpack.c.l.b16 %v2054
    %v3310 = vunpack.c.h.b16 %v2054
    %v3311 = vunpack.c.l.b16 %v2055
    %v3312 = vunpack.c.h.b16 %v2055
    %v3313 = vunpack.c.l.b16 %v2056
    %v3314 = vunpack.c.h.b16 %v2056
    %v3315 = vunpack.c.l.b16 %v2057
    %v3316 = vunpack.c.h.b16 %v2057
    %v3317 = vunpack.c.l.b16 %v2058
    %v3318 = vunpack.c.h.b16 %v2058
    %v3319 = vunpack.c.l.b16 %v2059
    %v3320 = vunpack.c.h.b16 %v2059
    %v3321 = vunpack.c.l.b16 %v2060
    %v3322 = vunpack.c.h.b16 %v2060
    %v3323 = vpack.c.b16 %v3075, %v3067
    %v3324 = vpack.c.b16 %v3076, %v3068
    %v3325 = vpack.c.b16 %v3077, %v3069
    %v3326 = vpack.c.b16 %v3078, %v3070
    %v3327 = vpack.c.b16 %v3079, %v3071
    %v3328 = vpack.c.b16 %v3080, %v3072
    %v3329 = vpack.c.b16 %v3081, %v3073
    %v3330 = vpack.c.b16 %v3082, %v3074
    %v3331 = vpack.c.b16 %v3091, %v3083
    %v3332 = vpack.c.b16 %v3092, %v3084
    %v3333 = vpack.c.b16 %v3093, %v3085
    %v3334 = vpack.c.b16 %v3094, %v3086
    %v3335 = vpack.c.b16 %v3095, %v3087
    %v3336 = vpack.c.b16 %v3096, %v3088
    %v3337 = vpack.c.b16 %v3097, %v3089
    %v3338 = vpack.c.b16 %v3098, %v3090
    %v3339 = vpack.c.b16 %v3107, %v3099
    %v3340 = vpack.c.b16 %v3108, %v3100
    %v3341 = vpack.c.b16 %v3109, %v3101
    %v3342 = vpack.c.b16 %v3110, %v3102
    %v3343 = vpack.c.b16 %v3111, %v3103
    %v3344 = vpack.c.b16 %v3112, %v3104
    %v3345 = vpack.c.b16 %v3113, %v3105
    %v3346 = vpack.c.b16 %v3114, %v3106
    %v3347 = vpack.c.b16 %v3123, %v3115
    %v3348 = vpack.c.b16 %v3124, %v3116
    %v3349 = vpack.c.b16 %v3125, %v3117
    %v3350 = vpack.c.b16 %v3126, %v3118
    %v3351 = vpack.c.b16 %v3127, %v3119
    %v3352 = vpack.c.b16 %v3128, %v3120
    %v3353 = vpack.c.b16 %v3129, %v3121
    %v3354 = vpack.c.b16 %v3130, %v3122
    %v3355 = vpack.c.b16 %v3139, %v3131
    %v3356 = vpack.c.b16 %v3140, %v3132
    %v3357 = vpack.c.b16 %v3141, %v3133
    %v3358 = vpack.c.b16 %v3142, %v3134
    %v3359 = vpack.c.b16 %v3143, %v3135
    %v3360 = vpack.c.b16 %v3144, %v3136
    %v3361 = vpack.c.b16 %v3145, %v3137
    %v3362 = vpack.c.b16 %v3146, %v3138
    %v3363 = vpack.c.b16 %v3155, %v3147
    %v3364 = vpack.c.b16 %v3156, %v3148
    %v3365 = vpack.c.b16 %v3157, %v3149
    %v3366 = vpack.c.b16 %v3158, %v3150
    %v3367 = vpack.c.b16 %v3159, %v3151
    %v3368 = vpack.c.b16 %v3160, %v3152
    %v3369 = vpack.c.b16 %v3161, %v3153
    %v3370 = vpack.c.b16 %v3162, %v3154
    %v3371 = vpack.c.b16 %v3171, %v3163
    %v3372 = vpack.c.b16 %v3172, %v3164
    %v3373 = vpack.c.b16 %v3173, %v3165
    %v3374 = vpack.c.b16 %v3174, %v3166
    %v3375 = vpack.c.b16 %v3175, %v3167
    %v3376 = vpack.c.b16 %v3176, %v3168
    %v3377 = vpack.c.b16 %v3177, %v3169
    %v3378 = vpack.c.b16 %v3178, %v3170
    %v3379 = vpack.c.b16 %v3187, %v3179
    %v3380 = vpack.c.b16 %v3188, %v3180
    %v3381 = vpack.c.b16 %v3189, %v3181
    %v3382 = vpack.c.b16 %v3190, %v3182
    %v3383 = vpack.c.b16 %v3191, %v3183
    %v3384 = vpack.c.b16 %v3192, %v3184
    %v3385 = vpack.c.b16 %v3193, %v3185
    %v3386 = vpack.c.b16 %v3194, %v3186
    %v3387 = vpack.c.b16 %v3203, %v3195
    %v3388 = vpack.c.b16 %v3204, %v3196
    %v3389 = vpack.c.b16 %v3205, %v3197
    %v3390 = vpack.c.b16 %v3206, %v3198
    %v3391 = vpack.c.b16 %v3207, %v3199
    %v3392 = vpack.c.b16 %v3208, %v3200
    %v3393 = vpack.c.b16 %v3209, %v3201
    %v3394 = vpack.c.b16 %v3210, %v3202
    %v3395 = vpack.c.b16 %v3219, %v3211
    %v3396 = vpack.c.b16 %v3220, %v3212
    %v3397 = vpack.c.b16 %v3221, %v3213
    %v3398 = vpack.c.b16 %v3222, %v3214
    %v3399 = vpack.c.b16 %v3223, %v3215
    %v3400 = vpack.c.b16 %v3224, %v3216
    %v3401 = vpack.c.b16 %v3225, %v3217
    %v3402 = vpack.c.b16 %v3226, %v3218
    %v3403 = vpack.c.b16 %v3235, %v3227
    %v3404 = vpack.c.b16 %v3236, %v3228
    %v3405 = vpack.c.b16 %v3237, %v3229
    %v3406 = vpack.c.b16 %v3238, %v3230
    %v3407 = vpack.c.b16 %v3239, %v3231
    %v3408 = vpack.c.b16 %v3240, %v3232
    %v3409 = vpack.c.b16 %v3241, %v3233
    %v3410 = vpack.c.b16 %v3242, %v3234
    %v3411 = vpack.c.b16 %v3251, %v3243
    %v3412 = vpack.c.b16 %v3252, %v3244
    %v3413 = vpack.c.b16 %v3253, %v3245
    %v3414 = vpack.c.b16 %v3254, %v3246
    %v3415 = vpack.c.b16 %v3255, %v3247
    %v3416 = vpack.c.b16 %v3256, %v3248
    %v3417 = vpack.c.b16 %v3257, %v3249
    %v3418 = vpack.c.b16 %v3258, %v3250
    %v3419 = vpack.c.b16 %v3267, %v3259
    %v3420 = vpack.c.b16 %v3268, %v3260
    %v3421 = vpack.c.b16 %v3269, %v3261
    %v3422 = vpack.c.b16 %v3270, %v3262
    %v3423 = vpack.c.b16 %v3271, %v3263
    %v3424 = vpack.c.b16 %v3272, %v3264
    %v3425 = vpack.c.b16 %v3273, %v3265
    %v3426 = vpack.c.b16 %v3274, %v3266
    %v3427 = vpack.c.b16 %v3283, %v3275
    %v3428 = vpack.c.b16 %v3284, %v3276
    %v3429 = vpack.c.b16 %v3285, %v3277
    %v3430 = vpack.c.b16 %v3286, %v3278
    %v3431 = vpack.c.b16 %v3287, %v3279
    %v3432 = vpack.c.b16 %v3288, %v3280
    %v3433 = vpack.c.b16 %v3289, %v3281
    %v3434 = vpack.c.b16 %v3290, %v3282
    %v3435 = vpack.c.b16 %v3299, %v3291
    %v3436 = vpack.c.b16 %v3300, %v3292
    %v3437 = vpack.c.b16 %v3301, %v3293
    %v3438 = vpack.c.b16 %v3302, %v3294
    %v3439 = vpack.c.b16 %v3303, %v3295
    %v3440 = vpack.c.b16 %v3304, %v3296
    %v3441 = vpack.c.b16 %v3305, %v3297
    %v3442 = vpack.c.b16 %v3306, %v3298
    %v3443 = vpack.c.b16 %v3315, %v3307
    %v3444 = vpack.c.b16 %v3316, %v3308
    %v3445 = vpack.c.b16 %v3317, %v3309
    %v3446 = vpack.c.b16 %v3318, %v3310
    %v3447 = vpack.c.b16 %v3319, %v3311
    %v3448 = vpack.c.b16 %v3320, %v3312
    %v3449 = vpack.c.b16 %v3321, %v3313
    %v3450 = vpack.c.b16 %v3322, %v3314
    %3579 = vmatprep.subr.bf16.mxu0 %v3380
    %3580 = vmatpush1.bf16.msra.mxu0 %v3379
    %3581 = vmatprep.subr.bf16.mxu0 %v3372
    %3582 = vmatpush1.bf16.msra.mxu0 %v3371
    %3583 = vmatprep.subr.bf16.mxu0 %v3364
    %3584 = vmatpush1.bf16.msra.mxu0 %v3363
    %3585 = vmatprep.subr.bf16.mxu0 %v3356
    %3586 = vmatpush1.bf16.msra.mxu0 %v3355
    %3587 = vmatprep.subr.bf16.mxu0 %v3348
    %3588 = vmatpush1.bf16.msra.mxu0 %v3347
    %3589 = vmatprep.subr.bf16.mxu0 %v3340
    %3590 = vmatpush1.bf16.msra.mxu0 %v3339
    %3591 = vmatprep.subr.bf16.mxu0 %v3332
    %3592 = vmatpush1.bf16.msra.mxu0 %v3331
    %3593 = vmatprep.subr.bf16.mxu0 %v3324
    %3594 = vmatpush1.bf16.msra.mxu0 %v3323
    %3595 = vmatprep.subr.bf16.mxu0 %v3444
    %3596 = vmatpush2.bf16.msra.mxu0 %v3443
    %3597 = vmatprep.subr.bf16.mxu0 %v3436
    %3598 = vmatpush2.bf16.msra.mxu0 %v3435
    %3599 = vmatprep.subr.bf16.mxu0 %v3428
    %3600 = vmatpush2.bf16.msra.mxu0 %v3427
    %3601 = vmatprep.subr.bf16.mxu0 %v3420
    %3602 = vmatpush2.bf16.msra.mxu0 %v3419
    %3603 = vmatprep.subr.bf16.mxu0 %v3412
    %3604 = vmatpush2.bf16.msra.mxu0 %v3411
    %3605 = vmatprep.subr.bf16.mxu0 %v3404
    %3606 = vmatpush2.bf16.msra.mxu0 %v3403
    %3607 = vmatprep.subr.bf16.mxu0 %v3396
    %3608 = vmatpush2.bf16.msra.mxu0 %v3395
    %3609 = vmatprep.subr.bf16.mxu0 %v3388
    %3610 = vmatpush2.bf16.msra.mxu0 %v3387
    %3611 = vmatprep.mubr.bf16.mxu0 0
    %3612 = vmatmul.mubr.bf16.gmra.mxu0 0
    %v3613 = vpop.f32.mrf.mxu0
    %v3614 = vadd.f32 0.0, %v3613
    %v3615 = vpop.f32.mrf.mxu0
    %v3616 = vadd.f32 0.0, %v3615
    %v3617 = vpop.f32.mrf.mxu0
    %v3618 = vpop.f32.mrf.mxu0
    %3619 = vdwg.mxu0
    %3620 = vmatprep.subr.bf16.mxu0 %v3382
    %3621 = vmatpush1.bf16.msra.mxu0 %v3381
    %3622 = vmatprep.subr.bf16.mxu0 %v3374
    %3623 = vmatpush1.bf16.msra.mxu0 %v3373
    %3624 = vmatprep.subr.bf16.mxu0 %v3366
    %3625 = vmatpush1.bf16.msra.mxu0 %v3365
    %3626 = vmatprep.subr.bf16.mxu0 %v3358
    %3627 = vmatpush1.bf16.msra.mxu0 %v3357
    %3628 = vmatprep.subr.bf16.mxu0 %v3350
    %3629 = vmatpush1.bf16.msra.mxu0 %v3349
    %3630 = vmatprep.subr.bf16.mxu0 %v3342
    %3631 = vmatpush1.bf16.msra.mxu0 %v3341
    %3632 = vmatprep.subr.bf16.mxu0 %v3334
    %3633 = vmatpush1.bf16.msra.mxu0 %v3333
    %3634 = vmatprep.subr.bf16.mxu0 %v3326
    %3635 = vmatpush1.bf16.msra.mxu0 %v3325
    %3636 = vmatprep.subr.bf16.mxu0 %v3446
    %3637 = vmatpush2.bf16.msra.mxu0 %v3445
    %3638 = vmatprep.subr.bf16.mxu0 %v3438
    %3639 = vmatpush2.bf16.msra.mxu0 %v3437
    %3640 = vmatprep.subr.bf16.mxu0 %v3430
    %3641 = vmatpush2.bf16.msra.mxu0 %v3429
    %3642 = vmatprep.subr.bf16.mxu0 %v3422
    %3643 = vmatpush2.bf16.msra.mxu0 %v3421
    %3644 = vmatprep.subr.bf16.mxu0 %v3414
    %3645 = vmatpush2.bf16.msra.mxu0 %v3413
    %3646 = vmatprep.subr.bf16.mxu0 %v3406
    %3647 = vmatpush2.bf16.msra.mxu0 %v3405
    %3648 = vmatprep.subr.bf16.mxu0 %v3398
    %3649 = vmatpush2.bf16.msra.mxu0 %v3397
    %3650 = vmatprep.subr.bf16.mxu0 %v3390
    %3651 = vmatpush2.bf16.msra.mxu0 %v3389
    %3652 = vmatprep.mubr.bf16.mxu0 0
    %3653 = vmatmul.mubr.bf16.gmra.mxu0 0
    %v3654 = vpop.f32.mrf.mxu0
    %v3655 = vadd.f32 0.0, %v3654
    %v3656 = vpop.f32.mrf.mxu0
    %v3657 = vadd.f32 0.0, %v3656
    %v3658 = vpop.f32.mrf.mxu0
    %v3659 = vpop.f32.mrf.mxu0
    %3660 = vdwg.mxu0
    %3661 = vmatprep.subr.bf16.mxu0 %v3384
    %3662 = vmatpush1.bf16.msra.mxu0 %v3383
    %3663 = vmatprep.subr.bf16.mxu0 %v3376
    %3664 = vmatpush1.bf16.msra.mxu0 %v3375
    %3665 = vmatprep.subr.bf16.mxu0 %v3368
    %3666 = vmatpush1.bf16.msra.mxu0 %v3367
    %3667 = vmatprep.subr.bf16.mxu0 %v3360
    %3668 = vmatpush1.bf16.msra.mxu0 %v3359
    %3669 = vmatprep.subr.bf16.mxu0 %v3352
    %3670 = vmatpush1.bf16.msra.mxu0 %v3351
    %3671 = vmatprep.subr.bf16.mxu0 %v3344
    %3672 = vmatpush1.bf16.msra.mxu0 %v3343
    %3673 = vmatprep.subr.bf16.mxu0 %v3336
    %3674 = vmatpush1.bf16.msra.mxu0 %v3335
    %3675 = vmatprep.subr.bf16.mxu0 %v3328
    %3676 = vmatpush1.bf16.msra.mxu0 %v3327
    %3677 = vmatprep.subr.bf16.mxu0 %v3448
    %3678 = vmatpush2.bf16.msra.mxu0 %v3447
    %3679 = vmatprep.subr.bf16.mxu0 %v3440
    %3680 = vmatpush2.bf16.msra.mxu0 %v3439
    %3681 = vmatprep.subr.bf16.mxu0 %v3432
    %3682 = vmatpush2.bf16.msra.mxu0 %v3431
    %3683 = vmatprep.subr.bf16.mxu0 %v3424
    %3684 = vmatpush2.bf16.msra.mxu0 %v3423
    %3685 = vmatprep.subr.bf16.mxu0 %v3416
    %3686 = vmatpush2.bf16.msra.mxu0 %v3415
    %3687 = vmatprep.subr.bf16.mxu0 %v3408
    %3688 = vmatpush2.bf16.msra.mxu0 %v3407
    %3689 = vmatprep.subr.bf16.mxu0 %v3400
    %3690 = vmatpush2.bf16.msra.mxu0 %v3399
    %3691 = vmatprep.subr.bf16.mxu0 %v3392
    %3692 = vmatpush2.bf16.msra.mxu0 %v3391
    %3693 = vmatprep.mubr.bf16.mxu0 0
    %3694 = vmatmul.mubr.bf16.gmra.mxu0 0
    %v3695 = vpop.f32.mrf.mxu0
    %v3696 = vadd.f32 0.0, %v3695
    %v3697 = vpop.f32.mrf.mxu0
    %v3698 = vadd.f32 0.0, %v3697
    %v3699 = vpop.f32.mrf.mxu0
    %v3700 = vpop.f32.mrf.mxu0
    %3701 = vdwg.mxu0
    %3702 = vmatprep.subr.bf16.mxu0 %v3386
    %3703 = vmatpush1.bf16.msra.mxu0 %v3385
    %3704 = vmatprep.subr.bf16.mxu0 %v3378
    %3705 = vmatpush1.bf16.msra.mxu0 %v3377
    %3706 = vmatprep.subr.bf16.mxu0 %v3370
    %3707 = vmatpush1.bf16.msra.mxu0 %v3369
    %3708 = vmatprep.subr.bf16.mxu0 %v3362
    %3709 = vmatpush1.bf16.msra.mxu0 %v3361
    %3710 = vmatprep.subr.bf16.mxu0 %v3354
    %3711 = vmatpush1.bf16.msra.mxu0 %v3353
    %3712 = vmatprep.subr.bf16.mxu0 %v3346
    %3713 = vmatpush1.bf16.msra.mxu0 %v3345
    %3714 = vmatprep.subr.bf16.mxu0 %v3338
    %3715 = vmatpush1.bf16.msra.mxu0 %v3337
    %3716 = vmatprep.subr.bf16.mxu0 %v3330
    %3717 = vmatpush1.bf16.msra.mxu0 %v3329
    %3718 = vmatprep.subr.bf16.mxu0 %v3450
    %3719 = vmatpush2.bf16.msra.mxu0 %v3449
    %3720 = vmatprep.subr.bf16.mxu0 %v3442
    %3721 = vmatpush2.bf16.msra.mxu0 %v3441
    %3722 = vmatprep.subr.bf16.mxu0 %v3434
    %3723 = vmatpush2.bf16.msra.mxu0 %v3433
    %3724 = vmatprep.subr.bf16.mxu0 %v3426
    %3725 = vmatpush2.bf16.msra.mxu0 %v3425
    %3726 = vmatprep.subr.bf16.mxu0 %v3418
    %3727 = vmatpush2.bf16.msra.mxu0 %v3417
    %3728 = vmatprep.subr.bf16.mxu0 %v3410
    %3729 = vmatpush2.bf16.msra.mxu0 %v3409
    %3730 = vmatprep.subr.bf16.mxu0 %v3402
    %3731 = vmatpush2.bf16.msra.mxu0 %v3401
    %3732 = vmatprep.subr.bf16.mxu0 %v3394
    %3733 = vmatpush2.bf16.msra.mxu0 %v3393
    %3734 = vmatprep.mubr.bf16.mxu0 0
    %3735 = vmatmul.mubr.bf16.gmra.mxu0 0
    %v3736 = vpop.f32.mrf.mxu0
    %v3737 = vadd.f32 0.0, %v3736
    %v3738 = vpop.f32.mrf.mxu0
    %v3739 = vadd.f32 0.0, %v3738
    %v3740 = vpop.f32.mrf.mxu0
    %v3741 = vpop.f32.mrf.mxu0
    %3742 = vdwg.mxu0
    %v3743 = vadd.f32 %v2931, %v3614
    %v3744 = vadd.f32 %v2932, %v3616
    %v3745 = vadd.f32 %v2933, %v3655
    %v3746 = vadd.f32 %v2934, %v3657
    %v3747 = vadd.f32 %v2935, %v3696
    %v3748 = vadd.f32 %v2936, %v3698
    %v3749 = vadd.f32 %v2937, %v3737
    %v3750 = vadd.f32 %v2938, %v3739
    %v3751 = vxor.u32 %v3743, 2147483648
    %v3752 = vxor.u32 %v3744, 2147483648
    %v3753 = vxor.u32 %v3745, 2147483648
    %v3754 = vxor.u32 %v3746, 2147483648
    %v3755 = vxor.u32 %v3747, 2147483648
    %v3756 = vxor.u32 %v3748, 2147483648
    %v3757 = vmul.f32 %v3751, 1.442695
    %v3758 = vpow.pop %v3757
    %v3759 = vmul.f32 %v3752, 1.442695
    %v3760 = vpow.pop %v3759
    %v3761 = vmul.f32 %v3753, 1.442695
    %v3762 = vpow.pop %v3761
    %v3763 = vmul.f32 %v3754, 1.442695
    %v3764 = vpow.pop %v3763
    %v3765 = vmul.f32 %v3755, 1.442695
    %v3766 = vpow.pop %v3765
    %v3767 = vmul.f32 %v3756, 1.442695
    %v3768 = vpow.pop %v3767
    %v3769 = vadd.f32 %v3758, 1.0
    %v3770 = vadd.f32 %v3760, 1.0
    %v3771 = vadd.f32 %v3762, 1.0
    %v3772 = vadd.f32 %v3764, 1.0
    %v3773 = vadd.f32 %v3766, 1.0
    %v3774 = vadd.f32 %v3768, 1.0
    %v3775 = vrcp.pop %v3769
    %v3776 = vmul.f32 1.0, %v3775
    %v3777 = vrcp.pop %v3770
    %v3778 = vmul.f32 1.0, %v3777
    %v3779 = vrcp.pop %v3771
    %v3780 = vmul.f32 1.0, %v3779
    %v3781 = vrcp.pop %v3772
    %v3782 = vmul.f32 1.0, %v3781
    %v3783 = vrcp.pop %v3773
    %v3784 = vmul.f32 1.0, %v3783
    %v3785 = vrcp.pop %v3774
    %v3786 = vmul.f32 1.0, %v3785
    %v3787 = vtanh.pop %v3749
    %v3788 = vtanh.pop %v3750
    %v3789 = vmul.f32 %v3780, 0.0
    %v3790 = vmul.f32 %v3782, 0.0
    %v3791 = vmul.f32 %v3776, %v3787
    %v3792 = vmul.f32 %v3778, %v3788
    %v3793 = vadd.f32 %v3789, %v3791
    %v3794 = vadd.f32 %v3790, %v3792
    %v3795 = vtanh.pop %v3793
    %v3796 = vtanh.pop %v3794
    %v3797 = vmul.f32 %v3784, %v3795
    %v3798 = vmul.f32 %v3786, %v3796
    %3799 = vst [vmem:[#allocation3 + $0xf0] sm:$0xff] %v3797
    %3800 = vst [vmem:[#allocation3 + $0xf8] sm:$0xff] %v3798
    %v3801 = vld [vmem:[#allocation2 + $0x80] sm:$0xff]
    %v3802 = vld [vmem:[#allocation2 + $0x88] sm:$0xff]
    %v3803 = vld [vmem:[#allocation2 + $0x90] sm:$0xff]
    %v3804 = vld [vmem:[#allocation2 + $0x98] sm:$0xff]
    %v3805 = vld [vmem:[#allocation2 + $0xa0] sm:$0xff]
    %v3806 = vld [vmem:[#allocation2 + $0xa8] sm:$0xff]
    %v3807 = vld [vmem:[#allocation2 + $0xb0] sm:$0xff]
    %v3808 = vld [vmem:[#allocation2 + $0xb8] sm:$0xff]
    %v3809 = vpack.c.bf16 %v2927, %v2927
    %v3810 = vpack.c.bf16 %v2928, %v2928
    %3811 = vmatprep.subr.bf16.mxu0 %v2510
    %3812 = vmatpush1.bf16.msra.mxu0 %v2509
    %3813 = vmatprep.subr.bf16.mxu0 %v2502
    %3814 = vmatpush1.bf16.msra.mxu0 %v2501
    %3815 = vmatprep.subr.bf16.mxu0 %v2494
    %3816 = vmatpush1.bf16.msra.mxu0 %v2493
    %3817 = vmatprep.subr.bf16.mxu0 %v2486
    %3818 = vmatpush1.bf16.msra.mxu0 %v2485
    %3819 = vmatprep.subr.bf16.mxu0 %v2478
    %3820 = vmatpush1.bf16.msra.mxu0 %v2477
    %3821 = vmatprep.subr.bf16.mxu0 %v2470
    %3822 = vmatpush1.bf16.msra.mxu0 %v2469
    %3823 = vmatprep.subr.bf16.mxu0 %v2462
    %3824 = vmatpush1.bf16.msra.mxu0 %v2461
    %3825 = vmatprep.subr.bf16.mxu0 %v2454
    %3826 = vmatpush1.bf16.msra.mxu0 %v2453
    %3827 = vmatprep.subr.bf16.mxu0 %v2574
    %3828 = vmatpush2.bf16.msra.mxu0 %v2573
    %3829 = vmatprep.subr.bf16.mxu0 %v2566
    %3830 = vmatpush2.bf16.msra.mxu0 %v2565
    %3831 = vmatprep.subr.bf16.mxu0 %v2558
    %3832 = vmatpush2.bf16.msra.mxu0 %v2557
    %3833 = vmatprep.subr.bf16.mxu0 %v2550
    %3834 = vmatpush2.bf16.msra.mxu0 %v2549
    %3835 = vmatprep.subr.bf16.mxu0 %v2542
    %3836 = vmatpush2.bf16.msra.mxu0 %v2541
    %3837 = vmatprep.subr.bf16.mxu0 %v2534
    %3838 = vmatpush2.bf16.msra.mxu0 %v2533
    %3839 = vmatprep.subr.bf16.mxu0 %v2526
    %3840 = vmatpush2.bf16.msra.mxu0 %v2525
    %3841 = vmatprep.subr.bf16.mxu0 %v2518
    %3842 = vmatpush2.bf16.msra.mxu0 %v2517
    %3843 = vmatprep.mubr.bf16.mxu0 %v3810
    %3844 = vmatmul.mubr.bf16.gmra.mxu0 %v3809
    %v3845 = vpop.f32.mrf.mxu0
    %v3846 = vadd.f32 0.0, %v3845
    %v3847 = vpop.f32.mrf.mxu0
    %v3848 = vadd.f32 0.0, %v3847
    %v3849 = vpop.f32.mrf.mxu0
    %v3850 = vpop.f32.mrf.mxu0
    %3851 = vdwg.mxu0
    %3852 = vmatprep.subr.bf16.mxu0 %v2512
    %3853 = vmatpush1.bf16.msra.mxu0 %v2511
    %3854 = vmatprep.subr.bf16.mxu0 %v2504
    %3855 = vmatpush1.bf16.msra.mxu0 %v2503
    %3856 = vmatprep.subr.bf16.mxu0 %v2496
    %3857 = vmatpush1.bf16.msra.mxu0 %v2495
    %3858 = vmatprep.subr.bf16.mxu0 %v2488
    %3859 = vmatpush1.bf16.msra.mxu0 %v2487
    %3860 = vmatprep.subr.bf16.mxu0 %v2480
    %3861 = vmatpush1.bf16.msra.mxu0 %v2479
    %3862 = vmatprep.subr.bf16.mxu0 %v2472
    %3863 = vmatpush1.bf16.msra.mxu0 %v2471
    %3864 = vmatprep.subr.bf16.mxu0 %v2464
    %3865 = vmatpush1.bf16.msra.mxu0 %v2463
    %3866 = vmatprep.subr.bf16.mxu0 %v2456
    %3867 = vmatpush1.bf16.msra.mxu0 %v2455
    %3868 = vmatprep.subr.bf16.mxu0 %v2576
    %3869 = vmatpush2.bf16.msra.mxu0 %v2575
    %3870 = vmatprep.subr.bf16.mxu0 %v2568
    %3871 = vmatpush2.bf16.msra.mxu0 %v2567
    %3872 = vmatprep.subr.bf16.mxu0 %v2560
    %3873 = vmatpush2.bf16.msra.mxu0 %v2559
    %3874 = vmatprep.subr.bf16.mxu0 %v2552
    %3875 = vmatpush2.bf16.msra.mxu0 %v2551
    %3876 = vmatprep.subr.bf16.mxu0 %v2544
    %3877 = vmatpush2.bf16.msra.mxu0 %v2543
    %3878 = vmatprep.subr.bf16.mxu0 %v2536
    %3879 = vmatpush2.bf16.msra.mxu0 %v2535
    %3880 = vmatprep.subr.bf16.mxu0 %v2528
    %3881 = vmatpush2.bf16.msra.mxu0 %v2527
    %3882 = vmatprep.subr.bf16.mxu0 %v2520
    %3883 = vmatpush2.bf16.msra.mxu0 %v2519
    %3884 = vmatprep.mubr.bf16.mxu0 %v3810
    %3885 = vmatmul.mubr.bf16.gmra.mxu0 %v3809
    %v3886 = vpop.f32.mrf.mxu0
    %v3887 = vadd.f32 0.0, %v3886
    %v3888 = vpop.f32.mrf.mxu0
    %v3889 = vadd.f32 0.0, %v3888
    %v3890 = vpop.f32.mrf.mxu0
    %v3891 = vpop.f32.mrf.mxu0
    %3892 = vdwg.mxu0
    %3893 = vmatprep.subr.bf16.mxu0 %v2514
    %3894 = vmatpush1.bf16.msra.mxu0 %v2513
    %3895 = vmatprep.subr.bf16.mxu0 %v2506
    %3896 = vmatpush1.bf16.msra.mxu0 %v2505
    %3897 = vmatprep.subr.bf16.mxu0 %v2498
    %3898 = vmatpush1.bf16.msra.mxu0 %v2497
    %3899 = vmatprep.subr.bf16.mxu0 %v2490
    %3900 = vmatpush1.bf16.msra.mxu0 %v2489
    %3901 = vmatprep.subr.bf16.mxu0 %v2482
    %3902 = vmatpush1.bf16.msra.mxu0 %v2481
    %3903 = vmatprep.subr.bf16.mxu0 %v2474
    %3904 = vmatpush1.bf16.msra.mxu0 %v2473
    %3905 = vmatprep.subr.bf16.mxu0 %v2466
    %3906 = vmatpush1.bf16.msra.mxu0 %v2465
    %3907 = vmatprep.subr.bf16.mxu0 %v2458
    %3908 = vmatpush1.bf16.msra.mxu0 %v2457
    %3909 = vmatprep.subr.bf16.mxu0 %v2578
    %3910 = vmatpush2.bf16.msra.mxu0 %v2577
    %3911 = vmatprep.subr.bf16.mxu0 %v2570
    %3912 = vmatpush2.bf16.msra.mxu0 %v2569
    %3913 = vmatprep.subr.bf16.mxu0 %v2562
    %3914 = vmatpush2.bf16.msra.mxu0 %v2561
    %3915 = vmatprep.subr.bf16.mxu0 %v2554
    %3916 = vmatpush2.bf16.msra.mxu0 %v2553
    %3917 = vmatprep.subr.bf16.mxu0 %v2546
    %3918 = vmatpush2.bf16.msra.mxu0 %v2545
    %3919 = vmatprep.subr.bf16.mxu0 %v2538
    %3920 = vmatpush2.bf16.msra.mxu0 %v2537
    %3921 = vmatprep.subr.bf16.mxu0 %v2530
    %3922 = vmatpush2.bf16.msra.mxu0 %v2529
    %3923 = vmatprep.subr.bf16.mxu0 %v2522
    %3924 = vmatpush2.bf16.msra.mxu0 %v2521
    %3925 = vmatprep.mubr.bf16.mxu0 %v3810
    %3926 = vmatmul.mubr.bf16.gmra.mxu0 %v3809
    %v3927 = vpop.f32.mrf.mxu0
    %v3928 = vadd.f32 0.0, %v3927
    %v3929 = vpop.f32.mrf.mxu0
    %v3930 = vadd.f32 0.0, %v3929
    %v3931 = vpop.f32.mrf.mxu0
    %v3932 = vpop.f32.mrf.mxu0
    %3933 = vdwg.mxu0
    %3934 = vmatprep.subr.bf16.mxu0 %v2516
    %3935 = vmatpush1.bf16.msra.mxu0 %v2515
    %3936 = vmatprep.subr.bf16.mxu0 %v2508
    %3937 = vmatpush1.bf16.msra.mxu0 %v2507
    %3938 = vmatprep.subr.bf16.mxu0 %v2500
    %3939 = vmatpush1.bf16.msra.mxu0 %v2499
    %3940 = vmatprep.subr.bf16.mxu0 %v2492
    %3941 = vmatpush1.bf16.msra.mxu0 %v2491
    %3942 = vmatprep.subr.bf16.mxu0 %v2484
    %3943 = vmatpush1.bf16.msra.mxu0 %v2483
    %3944 = vmatprep.subr.bf16.mxu0 %v2476
    %3945 = vmatpush1.bf16.msra.mxu0 %v2475
    %3946 = vmatprep.subr.bf16.mxu0 %v2468
    %3947 = vmatpush1.bf16.msra.mxu0 %v2467
    %3948 = vmatprep.subr.bf16.mxu0 %v2460
    %3949 = vmatpush1.bf16.msra.mxu0 %v2459
    %3950 = vmatprep.subr.bf16.mxu0 %v2580
    %3951 = vmatpush2.bf16.msra.mxu0 %v2579
    %3952 = vmatprep.subr.bf16.mxu0 %v2572
    %3953 = vmatpush2.bf16.msra.mxu0 %v2571
    %3954 = vmatprep.subr.bf16.mxu0 %v2564
    %3955 = vmatpush2.bf16.msra.mxu0 %v2563
    %3956 = vmatprep.subr.bf16.mxu0 %v2556
    %3957 = vmatpush2.bf16.msra.mxu0 %v2555
    %3958 = vmatprep.subr.bf16.mxu0 %v2548
    %3959 = vmatpush2.bf16.msra.mxu0 %v2547
    %3960 = vmatprep.subr.bf16.mxu0 %v2540
    %3961 = vmatpush2.bf16.msra.mxu0 %v2539
    %3962 = vmatprep.subr.bf16.mxu0 %v2532
    %3963 = vmatpush2.bf16.msra.mxu0 %v2531
    %3964 = vmatprep.subr.bf16.mxu0 %v2524
    %3965 = vmatpush2.bf16.msra.mxu0 %v2523
    %3966 = vmatprep.mubr.bf16.mxu0 %v3810
    %3967 = vmatmul.mubr.bf16.gmra.mxu0 %v3809
    %v3968 = vpop.f32.mrf.mxu0
    %v3969 = vadd.f32 0.0, %v3968
    %v3970 = vpop.f32.mrf.mxu0
    %v3971 = vadd.f32 0.0, %v3970
    %v3972 = vpop.f32.mrf.mxu0
    %v3973 = vpop.f32.mrf.mxu0
    %3974 = vdwg.mxu0
    %v3975 = vadd.f32 %v3801, %v3846
    %v3976 = vadd.f32 %v3802, %v3848
    %v3977 = vadd.f32 %v3803, %v3887
    %v3978 = vadd.f32 %v3804, %v3889
    %v3979 = vadd.f32 %v3805, %v3928
    %v3980 = vadd.f32 %v3806, %v3930
    %v3981 = vadd.f32 %v3807, %v3969
    %v3982 = vadd.f32 %v3808, %v3971
    %v3983 = vxor.u32 %v3975, 2147483648
    %v3984 = vxor.u32 %v3976, 2147483648
    %v3985 = vxor.u32 %v3977, 2147483648
    %v3986 = vxor.u32 %v3978, 2147483648
    %v3987 = vxor.u32 %v3979, 2147483648
    %v3988 = vxor.u32 %v3980, 2147483648
    %v3989 = vmul.f32 %v3983, 1.442695
    %v3990 = vpow.pop %v3989
    %v3991 = vmul.f32 %v3984, 1.442695
    %v3992 = vpow.pop %v3991
    %v3993 = vmul.f32 %v3985, 1.442695
    %v3994 = vpow.pop %v3993
    %v3995 = vmul.f32 %v3986, 1.442695
    %v3996 = vpow.pop %v3995
    %v3997 = vmul.f32 %v3987, 1.442695
    %v3998 = vpow.pop %v3997
    %v3999 = vmul.f32 %v3988, 1.442695
    %v4000 = vpow.pop %v3999
    %v4001 = vadd.f32 %v3990, 1.0
    %v4002 = vadd.f32 %v3992, 1.0
    %v4003 = vadd.f32 %v3994, 1.0
    %v4004 = vadd.f32 %v3996, 1.0
    %v4005 = vadd.f32 %v3998, 1.0
    %v4006 = vadd.f32 %v4000, 1.0
    %v4007 = vrcp.pop %v4001
    %v4008 = vmul.f32 1.0, %v4007
    %v4009 = vrcp.pop %v4002
    %v4010 = vmul.f32 1.0, %v4009
    %v4011 = vrcp.pop %v4003
    %v4012 = vmul.f32 1.0, %v4011
    %v4013 = vrcp.pop %v4004
    %v4014 = vmul.f32 1.0, %v4013
    %v4015 = vrcp.pop %v4005
    %v4016 = vmul.f32 1.0, %v4015
    %v4017 = vrcp.pop %v4006
    %v4018 = vmul.f32 1.0, %v4017
    %v4019 = vtanh.pop %v3981
    %v4020 = vtanh.pop %v3982
    %v4021 = vmul.f32 %v4012, %v2923
    %v4022 = vmul.f32 %v4014, %v2924
    %v4023 = vmul.f32 %v4008, %v4019
    %v4024 = vmul.f32 %v4010, %v4020
    %v4025 = vadd.f32 %v4021, %v4023
    %v4026 = vadd.f32 %v4022, %v4024
    %v4027 = vtanh.pop %v4025
    %v4028 = vtanh.pop %v4026
    %v4029 = vmul.f32 %v4016, %v4027
    %v4030 = vmul.f32 %v4018, %v4028
    %4031 = vst [vmem:[#allocation3 + $0x20] sm:$0xff] %v4029
    %4032 = vst [vmem:[#allocation3 + $0x28] sm:$0xff] %v4030
    %v4033 = vld [vmem:[#allocation2 + $0x340] sm:$0xff]
    %v4034 = vld [vmem:[#allocation2 + $0x348] sm:$0xff]
    %v4035 = vld [vmem:[#allocation2 + $0x350] sm:$0xff]
    %v4036 = vld [vmem:[#allocation2 + $0x358] sm:$0xff]
    %v4037 = vld [vmem:[#allocation2 + $0x360] sm:$0xff]
    %v4038 = vld [vmem:[#allocation2 + $0x368] sm:$0xff]
    %v4039 = vld [vmem:[#allocation2 + $0x370] sm:$0xff]
    %v4040 = vld [vmem:[#allocation2 + $0x378] sm:$0xff]
    %v4041 = vpack.c.bf16 %v3797, %v3797
    %v4042 = vpack.c.bf16 %v3798, %v3798
    %4043 = vmatprep.subr.bf16.mxu0 %v3380
    %4044 = vmatpush1.bf16.msra.mxu0 %v3379
    %4045 = vmatprep.subr.bf16.mxu0 %v3372
    %4046 = vmatpush1.bf16.msra.mxu0 %v3371
    %4047 = vmatprep.subr.bf16.mxu0 %v3364
    %4048 = vmatpush1.bf16.msra.mxu0 %v3363
    %4049 = vmatprep.subr.bf16.mxu0 %v3356
    %4050 = vmatpush1.bf16.msra.mxu0 %v3355
    %4051 = vmatprep.subr.bf16.mxu0 %v3348
    %4052 = vmatpush1.bf16.msra.mxu0 %v3347
    %4053 = vmatprep.subr.bf16.mxu0 %v3340
    %4054 = vmatpush1.bf16.msra.mxu0 %v3339
    %4055 = vmatprep.subr.bf16.mxu0 %v3332
    %4056 = vmatpush1.bf16.msra.mxu0 %v3331
    %4057 = vmatprep.subr.bf16.mxu0 %v3324
    %4058 = vmatpush1.bf16.msra.mxu0 %v3323
    %4059 = vmatprep.subr.bf16.mxu0 %v3444
    %4060 = vmatpush2.bf16.msra.mxu0 %v3443
    %4061 = vmatprep.subr.bf16.mxu0 %v3436
    %4062 = vmatpush2.bf16.msra.mxu0 %v3435
    %4063 = vmatprep.subr.bf16.mxu0 %v3428
    %4064 = vmatpush2.bf16.msra.mxu0 %v3427
    %4065 = vmatprep.subr.bf16.mxu0 %v3420
    %4066 = vmatpush2.bf16.msra.mxu0 %v3419
    %4067 = vmatprep.subr.bf16.mxu0 %v3412
    %4068 = vmatpush2.bf16.msra.mxu0 %v3411
    %4069 = vmatprep.subr.bf16.mxu0 %v3404
    %4070 = vmatpush2.bf16.msra.mxu0 %v3403
    %4071 = vmatprep.subr.bf16.mxu0 %v3396
    %4072 = vmatpush2.bf16.msra.mxu0 %v3395
    %4073 = vmatprep.subr.bf16.mxu0 %v3388
    %4074 = vmatpush2.bf16.msra.mxu0 %v3387
    %4075 = vmatprep.mubr.bf16.mxu0 %v4042
    %4076 = vmatmul.mubr.bf16.gmra.mxu0 %v4041
    %v4077 = vpop.f32.mrf.mxu0
    %v4078 = vadd.f32 0.0, %v4077
    %v4079 = vpop.f32.mrf.mxu0
    %v4080 = vadd.f32 0.0, %v4079
    %v4081 = vpop.f32.mrf.mxu0
    %v4082 = vpop.f32.mrf.mxu0
    %4083 = vdwg.mxu0
    %4084 = vmatprep.subr.bf16.mxu0 %v3382
    %4085 = vmatpush1.bf16.msra.mxu0 %v3381
    %4086 = vmatprep.subr.bf16.mxu0 %v3374
    %4087 = vmatpush1.bf16.msra.mxu0 %v3373
    %4088 = vmatprep.subr.bf16.mxu0 %v3366
    %4089 = vmatpush1.bf16.msra.mxu0 %v3365
    %4090 = vmatprep.subr.bf16.mxu0 %v3358
    %4091 = vmatpush1.bf16.msra.mxu0 %v3357
    %4092 = vmatprep.subr.bf16.mxu0 %v3350
    %4093 = vmatpush1.bf16.msra.mxu0 %v3349
    %4094 = vmatprep.subr.bf16.mxu0 %v3342
    %4095 = vmatpush1.bf16.msra.mxu0 %v3341
    %4096 = vmatprep.subr.bf16.mxu0 %v3334
    %4097 = vmatpush1.bf16.msra.mxu0 %v3333
    %4098 = vmatprep.subr.bf16.mxu0 %v3326
    %4099 = vmatpush1.bf16.msra.mxu0 %v3325
    %4100 = vmatprep.subr.bf16.mxu0 %v3446
    %4101 = vmatpush2.bf16.msra.mxu0 %v3445
    %4102 = vmatprep.subr.bf16.mxu0 %v3438
    %4103 = vmatpush2.bf16.msra.mxu0 %v3437
    %4104 = vmatprep.subr.bf16.mxu0 %v3430
    %4105 = vmatpush2.bf16.msra.mxu0 %v3429
    %4106 = vmatprep.subr.bf16.mxu0 %v3422
    %4107 = vmatpush2.bf16.msra.mxu0 %v3421
    %4108 = vmatprep.subr.bf16.mxu0 %v3414
    %4109 = vmatpush2.bf16.msra.mxu0 %v3413
    %4110 = vmatprep.subr.bf16.mxu0 %v3406
    %4111 = vmatpush2.bf16.msra.mxu0 %v3405
    %4112 = vmatprep.subr.bf16.mxu0 %v3398
    %4113 = vmatpush2.bf16.msra.mxu0 %v3397
    %4114 = vmatprep.subr.bf16.mxu0 %v3390
    %4115 = vmatpush2.bf16.msra.mxu0 %v3389
    %4116 = vmatprep.mubr.bf16.mxu0 %v4042
    %4117 = vmatmul.mubr.bf16.gmra.mxu0 %v4041
    %v4118 = vpop.f32.mrf.mxu0
    %v4119 = vadd.f32 0.0, %v4118
    %v4120 = vpop.f32.mrf.mxu0
    %v4121 = vadd.f32 0.0, %v4120
    %v4122 = vpop.f32.mrf.mxu0
    %v4123 = vpop.f32.mrf.mxu0
    %4124 = vdwg.mxu0
    %4125 = vmatprep.subr.bf16.mxu0 %v3384
    %4126 = vmatpush1.bf16.msra.mxu0 %v3383
    %4127 = vmatprep.subr.bf16.mxu0 %v3376
    %4128 = vmatpush1.bf16.msra.mxu0 %v3375
    %4129 = vmatprep.subr.bf16.mxu0 %v3368
    %4130 = vmatpush1.bf16.msra.mxu0 %v3367
    %4131 = vmatprep.subr.bf16.mxu0 %v3360
    %4132 = vmatpush1.bf16.msra.mxu0 %v3359
    %4133 = vmatprep.subr.bf16.mxu0 %v3352
    %4134 = vmatpush1.bf16.msra.mxu0 %v3351
    %4135 = vmatprep.subr.bf16.mxu0 %v3344
    %4136 = vmatpush1.bf16.msra.mxu0 %v3343
    %4137 = vmatprep.subr.bf16.mxu0 %v3336
    %4138 = vmatpush1.bf16.msra.mxu0 %v3335
    %4139 = vmatprep.subr.bf16.mxu0 %v3328
    %4140 = vmatpush1.bf16.msra.mxu0 %v3327
    %4141 = vmatprep.subr.bf16.mxu0 %v3448
    %4142 = vmatpush2.bf16.msra.mxu0 %v3447
    %4143 = vmatprep.subr.bf16.mxu0 %v3440
    %4144 = vmatpush2.bf16.msra.mxu0 %v3439
    %4145 = vmatprep.subr.bf16.mxu0 %v3432
    %4146 = vmatpush2.bf16.msra.mxu0 %v3431
    %4147 = vmatprep.subr.bf16.mxu0 %v3424
    %4148 = vmatpush2.bf16.msra.mxu0 %v3423
    %4149 = vmatprep.subr.bf16.mxu0 %v3416
    %4150 = vmatpush2.bf16.msra.mxu0 %v3415
    %4151 = vmatprep.subr.bf16.mxu0 %v3408
    %4152 = vmatpush2.bf16.msra.mxu0 %v3407
    %4153 = vmatprep.subr.bf16.mxu0 %v3400
    %4154 = vmatpush2.bf16.msra.mxu0 %v3399
    %4155 = vmatprep.subr.bf16.mxu0 %v3392
    %4156 = vmatpush2.bf16.msra.mxu0 %v3391
    %4157 = vmatprep.mubr.bf16.mxu0 %v4042
    %4158 = vmatmul.mubr.bf16.gmra.mxu0 %v4041
    %v4159 = vpop.f32.mrf.mxu0
    %v4160 = vadd.f32 0.0, %v4159
    %v4161 = vpop.f32.mrf.mxu0
    %v4162 = vadd.f32 0.0, %v4161
    %v4163 = vpop.f32.mrf.mxu0
    %v4164 = vpop.f32.mrf.mxu0
    %4165 = vdwg.mxu0
    %4166 = vmatprep.subr.bf16.mxu0 %v3386
    %4167 = vmatpush1.bf16.msra.mxu0 %v3385
    %4168 = vmatprep.subr.bf16.mxu0 %v3378
    %4169 = vmatpush1.bf16.msra.mxu0 %v3377
    %4170 = vmatprep.subr.bf16.mxu0 %v3370
    %4171 = vmatpush1.bf16.msra.mxu0 %v3369
    %4172 = vmatprep.subr.bf16.mxu0 %v3362
    %4173 = vmatpush1.bf16.msra.mxu0 %v3361
    %4174 = vmatprep.subr.bf16.mxu0 %v3354
    %4175 = vmatpush1.bf16.msra.mxu0 %v3353
    %4176 = vmatprep.subr.bf16.mxu0 %v3346
    %4177 = vmatpush1.bf16.msra.mxu0 %v3345
    %4178 = vmatprep.subr.bf16.mxu0 %v3338
    %4179 = vmatpush1.bf16.msra.mxu0 %v3337
    %4180 = vmatprep.subr.bf16.mxu0 %v3330
    %4181 = vmatpush1.bf16.msra.mxu0 %v3329
    %4182 = vmatprep.subr.bf16.mxu0 %v3450
    %4183 = vmatpush2.bf16.msra.mxu0 %v3449
    %4184 = vmatprep.subr.bf16.mxu0 %v3442
    %4185 = vmatpush2.bf16.msra.mxu0 %v3441
    %4186 = vmatprep.subr.bf16.mxu0 %v3434
    %4187 = vmatpush2.bf16.msra.mxu0 %v3433
    %4188 = vmatprep.subr.bf16.mxu0 %v3426
    %4189 = vmatpush2.bf16.msra.mxu0 %v3425
    %4190 = vmatprep.subr.bf16.mxu0 %v3418
    %4191 = vmatpush2.bf16.msra.mxu0 %v3417
    %4192 = vmatprep.subr.bf16.mxu0 %v3410
    %4193 = vmatpush2.bf16.msra.mxu0 %v3409
    %4194 = vmatprep.subr.bf16.mxu0 %v3402
    %4195 = vmatpush2.bf16.msra.mxu0 %v3401
    %4196 = vmatprep.subr.bf16.mxu0 %v3394
    %4197 = vmatpush2.bf16.msra.mxu0 %v3393
    %4198 = vmatprep.mubr.bf16.mxu0 %v4042
    %4199 = vmatmul.mubr.bf16.gmra.mxu0 %v4041
    %v4200 = vpop.f32.mrf.mxu0
    %v4201 = vadd.f32 0.0, %v4200
    %v4202 = vpop.f32.mrf.mxu0
    %v4203 = vadd.f32 0.0, %v4202
    %v4204 = vpop.f32.mrf.mxu0
    %v4205 = vpop.f32.mrf.mxu0
    %4206 = vdwg.mxu0
    %v4207 = vadd.f32 %v4033, %v4078
    %v4208 = vadd.f32 %v4034, %v4080
    %v4209 = vadd.f32 %v4035, %v4119
    %v4210 = vadd.f32 %v4036, %v4121
    %v4211 = vadd.f32 %v4037, %v4160
    %v4212 = vadd.f32 %v4038, %v4162
    %v4213 = vadd.f32 %v4039, %v4201
    %v4214 = vadd.f32 %v4040, %v4203
    %v4215 = vxor.u32 %v4207, 2147483648
    %v4216 = vxor.u32 %v4208, 2147483648
    %v4217 = vxor.u32 %v4209, 2147483648
    %v4218 = vxor.u32 %v4210, 2147483648
    %v4219 = vxor.u32 %v4211, 2147483648
    %v4220 = vxor.u32 %v4212, 2147483648
    %v4221 = vmul.f32 %v4215, 1.442695
    %v4222 = vpow.pop %v4221
    %v4223 = vmul.f32 %v4216, 1.442695
    %v4224 = vpow.pop %v4223
    %v4225 = vmul.f32 %v4217, 1.442695
    %v4226 = vpow.pop %v4225
    %v4227 = vmul.f32 %v4218, 1.442695
    %v4228 = vpow.pop %v4227
    %v4229 = vmul.f32 %v4219, 1.442695
    %v4230 = vpow.pop %v4229
    %v4231 = vmul.f32 %v4220, 1.442695
    %v4232 = vpow.pop %v4231
    %v4233 = vadd.f32 %v4222, 1.0
    %v4234 = vadd.f32 %v4224, 1.0
    %v4235 = vadd.f32 %v4226, 1.0
    %v4236 = vadd.f32 %v4228, 1.0
    %v4237 = vadd.f32 %v4230, 1.0
    %v4238 = vadd.f32 %v4232, 1.0
    %v4239 = vrcp.pop %v4233
    %v4240 = vmul.f32 1.0, %v4239
    %v4241 = vrcp.pop %v4234
    %v4242 = vmul.f32 1.0, %v4241
    %v4243 = vrcp.pop %v4235
    %v4244 = vmul.f32 1.0, %v4243
    %v4245 = vrcp.pop %v4236
    %v4246 = vmul.f32 1.0, %v4245
    %v4247 = vrcp.pop %v4237
    %v4248 = vmul.f32 1.0, %v4247
    %v4249 = vrcp.pop %v4238
    %v4250 = vmul.f32 1.0, %v4249
    %v4251 = vtanh.pop %v4213
    %v4252 = vtanh.pop %v4214
    %v4253 = vmul.f32 %v4244, %v3793
    %v4254 = vmul.f32 %v4246, %v3794
    %v4255 = vmul.f32 %v4240, %v4251
    %v4256 = vmul.f32 %v4242, %v4252
    %v4257 = vadd.f32 %v4253, %v4255
    %v4258 = vadd.f32 %v4254, %v4256
    %v4259 = vtanh.pop %v4257
    %v4260 = vtanh.pop %v4258
    %v4261 = vmul.f32 %v4248, %v4259
    %v4262 = vmul.f32 %v4250, %v4260
    %4263 = vst [vmem:[#allocation3 + $0xd0] sm:$0xff] %v4261
    %4264 = vst [vmem:[#allocation3 + $0xd8] sm:$0xff] %v4262
    %v4265 = vld [vmem:[#allocation2 + $0x100] sm:$0xff]
    %v4266 = vld [vmem:[#allocation2 + $0x108] sm:$0xff]
    %v4267 = vld [vmem:[#allocation2 + $0x110] sm:$0xff]
    %v4268 = vld [vmem:[#allocation2 + $0x118] sm:$0xff]
    %v4269 = vld [vmem:[#allocation2 + $0x120] sm:$0xff]
    %v4270 = vld [vmem:[#allocation2 + $0x128] sm:$0xff]
    %v4271 = vld [vmem:[#allocation2 + $0x130] sm:$0xff]
    %v4272 = vld [vmem:[#allocation2 + $0x138] sm:$0xff]
    %v4273 = vpack.c.bf16 %v4029, %v4029
    %v4274 = vpack.c.bf16 %v4030, %v4030
    %4275 = vmatprep.subr.bf16.mxu0 %v2510
    %4276 = vmatpush1.bf16.msra.mxu0 %v2509
    %4277 = vmatprep.subr.bf16.mxu0 %v2502
    %4278 = vmatpush1.bf16.msra.mxu0 %v2501
    %4279 = vmatprep.subr.bf16.mxu0 %v2494
    %4280 = vmatpush1.bf16.msra.mxu0 %v2493
    %4281 = vmatprep.subr.bf16.mxu0 %v2486
    %4282 = vmatpush1.bf16.msra.mxu0 %v2485
    %4283 = vmatprep.subr.bf16.mxu0 %v2478
    %4284 = vmatpush1.bf16.msra.mxu0 %v2477
    %4285 = vmatprep.subr.bf16.mxu0 %v2470
    %4286 = vmatpush1.bf16.msra.mxu0 %v2469
    %4287 = vmatprep.subr.bf16.mxu0 %v2462
    %4288 = vmatpush1.bf16.msra.mxu0 %v2461
    %4289 = vmatprep.subr.bf16.mxu0 %v2454
    %4290 = vmatpush1.bf16.msra.mxu0 %v2453
    %4291 = vmatprep.subr.bf16.mxu0 %v2574
    %4292 = vmatpush2.bf16.msra.mxu0 %v2573
    %4293 = vmatprep.subr.bf16.mxu0 %v2566
    %4294 = vmatpush2.bf16.msra.mxu0 %v2565
    %4295 = vmatprep.subr.bf16.mxu0 %v2558
    %4296 = vmatpush2.bf16.msra.mxu0 %v2557
    %4297 = vmatprep.subr.bf16.mxu0 %v2550
    %4298 = vmatpush2.bf16.msra.mxu0 %v2549
    %4299 = vmatprep.subr.bf16.mxu0 %v2542
    %4300 = vmatpush2.bf16.msra.mxu0 %v2541
    %4301 = vmatprep.subr.bf16.mxu0 %v2534
    %4302 = vmatpush2.bf16.msra.mxu0 %v2533
    %4303 = vmatprep.subr.bf16.mxu0 %v2526
    %4304 = vmatpush2.bf16.msra.mxu0 %v2525
    %4305 = vmatprep.subr.bf16.mxu0 %v2518
    %4306 = vmatpush2.bf16.msra.mxu0 %v2517
    %4307 = vmatprep.mubr.bf16.mxu0 %v4274
    %4308 = vmatmul.mubr.bf16.gmra.mxu0 %v4273
    %v4309 = vpop.f32.mrf.mxu0
    %v4310 = vadd.f32 0.0, %v4309
    %v4311 = vpop.f32.mrf.mxu0
    %v4312 = vadd.f32 0.0, %v4311
    %v4313 = vpop.f32.mrf.mxu0
    %v4314 = vpop.f32.mrf.mxu0
    %4315 = vdwg.mxu0
    %4316 = vmatprep.subr.bf16.mxu0 %v2512
    %4317 = vmatpush1.bf16.msra.mxu0 %v2511
    %4318 = vmatprep.subr.bf16.mxu0 %v2504
    %4319 = vmatpush1.bf16.msra.mxu0 %v2503
    %4320 = vmatprep.subr.bf16.mxu0 %v2496
    %4321 = vmatpush1.bf16.msra.mxu0 %v2495
    %4322 = vmatprep.subr.bf16.mxu0 %v2488
    %4323 = vmatpush1.bf16.msra.mxu0 %v2487
    %4324 = vmatprep.subr.bf16.mxu0 %v2480
    %4325 = vmatpush1.bf16.msra.mxu0 %v2479
    %4326 = vmatprep.subr.bf16.mxu0 %v2472
    %4327 = vmatpush1.bf16.msra.mxu0 %v2471
    %4328 = vmatprep.subr.bf16.mxu0 %v2464
    %4329 = vmatpush1.bf16.msra.mxu0 %v2463
    %4330 = vmatprep.subr.bf16.mxu0 %v2456
    %4331 = vmatpush1.bf16.msra.mxu0 %v2455
    %4332 = vmatprep.subr.bf16.mxu0 %v2576
    %4333 = vmatpush2.bf16.msra.mxu0 %v2575
    %4334 = vmatprep.subr.bf16.mxu0 %v2568
    %4335 = vmatpush2.bf16.msra.mxu0 %v2567
    %4336 = vmatprep.subr.bf16.mxu0 %v2560
    %4337 = vmatpush2.bf16.msra.mxu0 %v2559
    %4338 = vmatprep.subr.bf16.mxu0 %v2552
    %4339 = vmatpush2.bf16.msra.mxu0 %v2551
    %4340 = vmatprep.subr.bf16.mxu0 %v2544
    %4341 = vmatpush2.bf16.msra.mxu0 %v2543
    %4342 = vmatprep.subr.bf16.mxu0 %v2536
    %4343 = vmatpush2.bf16.msra.mxu0 %v2535
    %4344 = vmatprep.subr.bf16.mxu0 %v2528
    %4345 = vmatpush2.bf16.msra.mxu0 %v2527
    %4346 = vmatprep.subr.bf16.mxu0 %v2520
    %4347 = vmatpush2.bf16.msra.mxu0 %v2519
    %4348 = vmatprep.mubr.bf16.mxu0 %v4274
    %4349 = vmatmul.mubr.bf16.gmra.mxu0 %v4273
    %v4350 = vpop.f32.mrf.mxu0
    %v4351 = vadd.f32 0.0, %v4350
    %v4352 = vpop.f32.mrf.mxu0
    %v4353 = vadd.f32 0.0, %v4352
    %v4354 = vpop.f32.mrf.mxu0
    %v4355 = vpop.f32.mrf.mxu0
    %4356 = vdwg.mxu0
    %4357 = vmatprep.subr.bf16.mxu0 %v2514
    %4358 = vmatpush1.bf16.msra.mxu0 %v2513
    %4359 = vmatprep.subr.bf16.mxu0 %v2506
    %4360 = vmatpush1.bf16.msra.mxu0 %v2505
    %4361 = vmatprep.subr.bf16.mxu0 %v2498
    %4362 = vmatpush1.bf16.msra.mxu0 %v2497
    %4363 = vmatprep.subr.bf16.mxu0 %v2490
    %4364 = vmatpush1.bf16.msra.mxu0 %v2489
    %4365 = vmatprep.subr.bf16.mxu0 %v2482
    %4366 = vmatpush1.bf16.msra.mxu0 %v2481
    %4367 = vmatprep.subr.bf16.mxu0 %v2474
    %4368 = vmatpush1.bf16.msra.mxu0 %v2473
    %4369 = vmatprep.subr.bf16.mxu0 %v2466
    %4370 = vmatpush1.bf16.msra.mxu0 %v2465
    %4371 = vmatprep.subr.bf16.mxu0 %v2458
    %4372 = vmatpush1.bf16.msra.mxu0 %v2457
    %4373 = vmatprep.subr.bf16.mxu0 %v2578
    %4374 = vmatpush2.bf16.msra.mxu0 %v2577
    %4375 = vmatprep.subr.bf16.mxu0 %v2570
    %4376 = vmatpush2.bf16.msra.mxu0 %v2569
    %4377 = vmatprep.subr.bf16.mxu0 %v2562
    %4378 = vmatpush2.bf16.msra.mxu0 %v2561
    %4379 = vmatprep.subr.bf16.mxu0 %v2554
    %4380 = vmatpush2.bf16.msra.mxu0 %v2553
    %4381 = vmatprep.subr.bf16.mxu0 %v2546
    %4382 = vmatpush2.bf16.msra.mxu0 %v2545
    %4383 = vmatprep.subr.bf16.mxu0 %v2538
    %4384 = vmatpush2.bf16.msra.mxu0 %v2537
    %4385 = vmatprep.subr.bf16.mxu0 %v2530
    %4386 = vmatpush2.bf16.msra.mxu0 %v2529
    %4387 = vmatprep.subr.bf16.mxu0 %v2522
    %4388 = vmatpush2.bf16.msra.mxu0 %v2521
    %4389 = vmatprep.mubr.bf16.mxu0 %v4274
    %4390 = vmatmul.mubr.bf16.gmra.mxu0 %v4273
    %v4391 = vpop.f32.mrf.mxu0
    %v4392 = vadd.f32 0.0, %v4391
    %v4393 = vpop.f32.mrf.mxu0
    %v4394 = vadd.f32 0.0, %v4393
    %v4395 = vpop.f32.mrf.mxu0
    %v4396 = vpop.f32.mrf.mxu0
    %4397 = vdwg.mxu0
    %4398 = vmatprep.subr.bf16.mxu0 %v2516
    %4399 = vmatpush1.bf16.msra.mxu0 %v2515
    %4400 = vmatprep.subr.bf16.mxu0 %v2508
    %4401 = vmatpush1.bf16.msra.mxu0 %v2507
    %4402 = vmatprep.subr.bf16.mxu0 %v2500
    %4403 = vmatpush1.bf16.msra.mxu0 %v2499
    %4404 = vmatprep.subr.bf16.mxu0 %v2492
    %4405 = vmatpush1.bf16.msra.mxu0 %v2491
    %4406 = vmatprep.subr.bf16.mxu0 %v2484
    %4407 = vmatpush1.bf16.msra.mxu0 %v2483
    %4408 = vmatprep.subr.bf16.mxu0 %v2476
    %4409 = vmatpush1.bf16.msra.mxu0 %v2475
    %4410 = vmatprep.subr.bf16.mxu0 %v2468
    %4411 = vmatpush1.bf16.msra.mxu0 %v2467
    %4412 = vmatprep.subr.bf16.mxu0 %v2460
    %4413 = vmatpush1.bf16.msra.mxu0 %v2459
    %4414 = vmatprep.subr.bf16.mxu0 %v2580
    %4415 = vmatpush2.bf16.msra.mxu0 %v2579
    %4416 = vmatprep.subr.bf16.mxu0 %v2572
    %4417 = vmatpush2.bf16.msra.mxu0 %v2571
    %4418 = vmatprep.subr.bf16.mxu0 %v2564
    %4419 = vmatpush2.bf16.msra.mxu0 %v2563
    %4420 = vmatprep.subr.bf16.mxu0 %v2556
    %4421 = vmatpush2.bf16.msra.mxu0 %v2555
    %4422 = vmatprep.subr.bf16.mxu0 %v2548
    %4423 = vmatpush2.bf16.msra.mxu0 %v2547
    %4424 = vmatprep.subr.bf16.mxu0 %v2540
    %4425 = vmatpush2.bf16.msra.mxu0 %v2539
    %4426 = vmatprep.subr.bf16.mxu0 %v2532
    %4427 = vmatpush2.bf16.msra.mxu0 %v2531
    %4428 = vmatprep.subr.bf16.mxu0 %v2524
    %4429 = vmatpush2.bf16.msra.mxu0 %v2523
    %4430 = vmatprep.mubr.bf16.mxu0 %v4274
    %4431 = vmatmul.mubr.bf16.gmra.mxu0 %v4273
    %v4432 = vpop.f32.mrf.mxu0
    %v4433 = vadd.f32 0.0, %v4432
    %v4434 = vpop.f32.mrf.mxu0
    %v4435 = vadd.f32 0.0, %v4434
    %v4436 = vpop.f32.mrf.mxu0
    %v4437 = vpop.f32.mrf.mxu0
    %4438 = vdwg.mxu0
    %v4439 = vadd.f32 %v4265, %v4310
    %v4440 = vadd.f32 %v4266, %v4312
    %v4441 = vadd.f32 %v4267, %v4351
    %v4442 = vadd.f32 %v4268, %v4353
    %v4443 = vadd.f32 %v4269, %v4392
    %v4444 = vadd.f32 %v4270, %v4394
    %v4445 = vadd.f32 %v4271, %v4433
    %v4446 = vadd.f32 %v4272, %v4435
    %v4447 = vxor.u32 %v4439, 2147483648
    %v4448 = vxor.u32 %v4440, 2147483648
    %v4449 = vxor.u32 %v4441, 2147483648
    %v4450 = vxor.u32 %v4442, 2147483648
    %v4451 = vxor.u32 %v4443, 2147483648
    %v4452 = vxor.u32 %v4444, 2147483648
    %v4453 = vmul.f32 %v4447, 1.442695
    %v4454 = vpow.pop %v4453
    %v4455 = vmul.f32 %v4448, 1.442695
    %v4456 = vpow.pop %v4455
    %v4457 = vmul.f32 %v4449, 1.442695
    %v4458 = vpow.pop %v4457
    %v4459 = vmul.f32 %v4450, 1.442695
    %v4460 = vpow.pop %v4459
    %v4461 = vmul.f32 %v4451, 1.442695
    %v4462 = vpow.pop %v4461
    %v4463 = vmul.f32 %v4452, 1.442695
    %v4464 = vpow.pop %v4463
    %v4465 = vadd.f32 %v4454, 1.0
    %v4466 = vadd.f32 %v4456, 1.0
    %v4467 = vadd.f32 %v4458, 1.0
    %v4468 = vadd.f32 %v4460, 1.0
    %v4469 = vadd.f32 %v4462, 1.0
    %v4470 = vadd.f32 %v4464, 1.0
    %v4471 = vrcp.pop %v4465
    %v4472 = vmul.f32 1.0, %v4471
    %v4473 = vrcp.pop %v4466
    %v4474 = vmul.f32 1.0, %v4473
    %v4475 = vrcp.pop %v4467
    %v4476 = vmul.f32 1.0, %v4475
    %v4477 = vrcp.pop %v4468
    %v4478 = vmul.f32 1.0, %v4477
    %v4479 = vrcp.pop %v4469
    %v4480 = vmul.f32 1.0, %v4479
    %v4481 = vrcp.pop %v4470
    %v4482 = vmul.f32 1.0, %v4481
    %v4483 = vtanh.pop %v4445
    %v4484 = vtanh.pop %v4446
    %v4485 = vmul.f32 %v4476, %v4025
    %v4486 = vmul.f32 %v4478, %v4026
    %v4487 = vmul.f32 %v4472, %v4483
    %v4488 = vmul.f32 %v4474, %v4484
    %v4489 = vadd.f32 %v4485, %v4487
    %v4490 = vadd.f32 %v4486, %v4488
    %v4491 = vtanh.pop %v4489
    %v4492 = vtanh.pop %v4490
    %v4493 = vmul.f32 %v4480, %v4491
    %v4494 = vmul.f32 %v4482, %v4492
    %4495 = vst [vmem:[#allocation3 + $0x40] sm:$0xff] %v4493
    %4496 = vst [vmem:[#allocation3 + $0x48] sm:$0xff] %v4494
    %v4497 = vld [vmem:[#allocation2 + $0x2c0] sm:$0xff]
    %v4498 = vld [vmem:[#allocation2 + $0x2c8] sm:$0xff]
    %v4499 = vld [vmem:[#allocation2 + $0x2d0] sm:$0xff]
    %v4500 = vld [vmem:[#allocation2 + $0x2d8] sm:$0xff]
    %v4501 = vld [vmem:[#allocation2 + $0x2e0] sm:$0xff]
    %v4502 = vld [vmem:[#allocation2 + $0x2e8] sm:$0xff]
    %v4503 = vld [vmem:[#allocation2 + $0x2f0] sm:$0xff]
    %v4504 = vld [vmem:[#allocation2 + $0x2f8] sm:$0xff]
    %v4505 = vpack.c.bf16 %v4261, %v4261
    %v4506 = vpack.c.bf16 %v4262, %v4262
    %4507 = vmatprep.subr.bf16.mxu0 %v3380
    %4508 = vmatpush1.bf16.msra.mxu0 %v3379
    %4509 = vmatprep.subr.bf16.mxu0 %v3372
    %4510 = vmatpush1.bf16.msra.mxu0 %v3371
    %4511 = vmatprep.subr.bf16.mxu0 %v3364
    %4512 = vmatpush1.bf16.msra.mxu0 %v3363
    %4513 = vmatprep.subr.bf16.mxu0 %v3356
    %4514 = vmatpush1.bf16.msra.mxu0 %v3355
    %4515 = vmatprep.subr.bf16.mxu0 %v3348
    %4516 = vmatpush1.bf16.msra.mxu0 %v3347
    %4517 = vmatprep.subr.bf16.mxu0 %v3340
    %4518 = vmatpush1.bf16.msra.mxu0 %v3339
    %4519 = vmatprep.subr.bf16.mxu0 %v3332
    %4520 = vmatpush1.bf16.msra.mxu0 %v3331
    %4521 = vmatprep.subr.bf16.mxu0 %v3324
    %4522 = vmatpush1.bf16.msra.mxu0 %v3323
    %4523 = vmatprep.subr.bf16.mxu0 %v3444
    %4524 = vmatpush2.bf16.msra.mxu0 %v3443
    %4525 = vmatprep.subr.bf16.mxu0 %v3436
    %4526 = vmatpush2.bf16.msra.mxu0 %v3435
    %4527 = vmatprep.subr.bf16.mxu0 %v3428
    %4528 = vmatpush2.bf16.msra.mxu0 %v3427
    %4529 = vmatprep.subr.bf16.mxu0 %v3420
    %4530 = vmatpush2.bf16.msra.mxu0 %v3419
    %4531 = vmatprep.subr.bf16.mxu0 %v3412
    %4532 = vmatpush2.bf16.msra.mxu0 %v3411
    %4533 = vmatprep.subr.bf16.mxu0 %v3404
    %4534 = vmatpush2.bf16.msra.mxu0 %v3403
    %4535 = vmatprep.subr.bf16.mxu0 %v3396
    %4536 = vmatpush2.bf16.msra.mxu0 %v3395
    %4537 = vmatprep.subr.bf16.mxu0 %v3388
    %4538 = vmatpush2.bf16.msra.mxu0 %v3387
    %4539 = vmatprep.mubr.bf16.mxu0 %v4506
    %4540 = vmatmul.mubr.bf16.gmra.mxu0 %v4505
    %v4541 = vpop.f32.mrf.mxu0
    %v4542 = vadd.f32 0.0, %v4541
    %v4543 = vpop.f32.mrf.mxu0
    %v4544 = vadd.f32 0.0, %v4543
    %v4545 = vpop.f32.mrf.mxu0
    %v4546 = vpop.f32.mrf.mxu0
    %4547 = vdwg.mxu0
    %4548 = vmatprep.subr.bf16.mxu0 %v3382
    %4549 = vmatpush1.bf16.msra.mxu0 %v3381
    %4550 = vmatprep.subr.bf16.mxu0 %v3374
    %4551 = vmatpush1.bf16.msra.mxu0 %v3373
    %4552 = vmatprep.subr.bf16.mxu0 %v3366
    %4553 = vmatpush1.bf16.msra.mxu0 %v3365
    %4554 = vmatprep.subr.bf16.mxu0 %v3358
    %4555 = vmatpush1.bf16.msra.mxu0 %v3357
    %4556 = vmatprep.subr.bf16.mxu0 %v3350
    %4557 = vmatpush1.bf16.msra.mxu0 %v3349
    %4558 = vmatprep.subr.bf16.mxu0 %v3342
    %4559 = vmatpush1.bf16.msra.mxu0 %v3341
    %4560 = vmatprep.subr.bf16.mxu0 %v3334
    %4561 = vmatpush1.bf16.msra.mxu0 %v3333
    %4562 = vmatprep.subr.bf16.mxu0 %v3326
    %4563 = vmatpush1.bf16.msra.mxu0 %v3325
    %4564 = vmatprep.subr.bf16.mxu0 %v3446
    %4565 = vmatpush2.bf16.msra.mxu0 %v3445
    %4566 = vmatprep.subr.bf16.mxu0 %v3438
    %4567 = vmatpush2.bf16.msra.mxu0 %v3437
    %4568 = vmatprep.subr.bf16.mxu0 %v3430
    %4569 = vmatpush2.bf16.msra.mxu0 %v3429
    %4570 = vmatprep.subr.bf16.mxu0 %v3422
    %4571 = vmatpush2.bf16.msra.mxu0 %v3421
    %4572 = vmatprep.subr.bf16.mxu0 %v3414
    %4573 = vmatpush2.bf16.msra.mxu0 %v3413
    %4574 = vmatprep.subr.bf16.mxu0 %v3406
    %4575 = vmatpush2.bf16.msra.mxu0 %v3405
    %4576 = vmatprep.subr.bf16.mxu0 %v3398
    %4577 = vmatpush2.bf16.msra.mxu0 %v3397
    %4578 = vmatprep.subr.bf16.mxu0 %v3390
    %4579 = vmatpush2.bf16.msra.mxu0 %v3389
    %4580 = vmatprep.mubr.bf16.mxu0 %v4506
    %4581 = vmatmul.mubr.bf16.gmra.mxu0 %v4505
    %v4582 = vpop.f32.mrf.mxu0
    %v4583 = vadd.f32 0.0, %v4582
    %v4584 = vpop.f32.mrf.mxu0
    %v4585 = vadd.f32 0.0, %v4584
    %v4586 = vpop.f32.mrf.mxu0
    %v4587 = vpop.f32.mrf.mxu0
    %4588 = vdwg.mxu0
    %4589 = vmatprep.subr.bf16.mxu0 %v3384
    %4590 = vmatpush1.bf16.msra.mxu0 %v3383
    %4591 = vmatprep.subr.bf16.mxu0 %v3376
    %4592 = vmatpush1.bf16.msra.mxu0 %v3375
    %4593 = vmatprep.subr.bf16.mxu0 %v3368
    %4594 = vmatpush1.bf16.msra.mxu0 %v3367
    %4595 = vmatprep.subr.bf16.mxu0 %v3360
    %4596 = vmatpush1.bf16.msra.mxu0 %v3359
    %4597 = vmatprep.subr.bf16.mxu0 %v3352
    %4598 = vmatpush1.bf16.msra.mxu0 %v3351
    %4599 = vmatprep.subr.bf16.mxu0 %v3344
    %4600 = vmatpush1.bf16.msra.mxu0 %v3343
    %4601 = vmatprep.subr.bf16.mxu0 %v3336
    %4602 = vmatpush1.bf16.msra.mxu0 %v3335
    %4603 = vmatprep.subr.bf16.mxu0 %v3328
    %4604 = vmatpush1.bf16.msra.mxu0 %v3327
    %4605 = vmatprep.subr.bf16.mxu0 %v3448
    %4606 = vmatpush2.bf16.msra.mxu0 %v3447
    %4607 = vmatprep.subr.bf16.mxu0 %v3440
    %4608 = vmatpush2.bf16.msra.mxu0 %v3439
    %4609 = vmatprep.subr.bf16.mxu0 %v3432
    %4610 = vmatpush2.bf16.msra.mxu0 %v3431
    %4611 = vmatprep.subr.bf16.mxu0 %v3424
    %4612 = vmatpush2.bf16.msra.mxu0 %v3423
    %4613 = vmatprep.subr.bf16.mxu0 %v3416
    %4614 = vmatpush2.bf16.msra.mxu0 %v3415
    %4615 = vmatprep.subr.bf16.mxu0 %v3408
    %4616 = vmatpush2.bf16.msra.mxu0 %v3407
    %4617 = vmatprep.subr.bf16.mxu0 %v3400
    %4618 = vmatpush2.bf16.msra.mxu0 %v3399
    %4619 = vmatprep.subr.bf16.mxu0 %v3392
    %4620 = vmatpush2.bf16.msra.mxu0 %v3391
    %4621 = vmatprep.mubr.bf16.mxu0 %v4506
    %4622 = vmatmul.mubr.bf16.gmra.mxu0 %v4505
    %v4623 = vpop.f32.mrf.mxu0
    %v4624 = vadd.f32 0.0, %v4623
    %v4625 = vpop.f32.mrf.mxu0
    %v4626 = vadd.f32 0.0, %v4625
    %v4627 = vpop.f32.mrf.mxu0
    %v4628 = vpop.f32.mrf.mxu0
    %4629 = vdwg.mxu0
    %4630 = vmatprep.subr.bf16.mxu0 %v3386
    %4631 = vmatpush1.bf16.msra.mxu0 %v3385
    %4632 = vmatprep.subr.bf16.mxu0 %v3378
    %4633 = vmatpush1.bf16.msra.mxu0 %v3377
    %4634 = vmatprep.subr.bf16.mxu0 %v3370
    %4635 = vmatpush1.bf16.msra.mxu0 %v3369
    %4636 = vmatprep.subr.bf16.mxu0 %v3362
    %4637 = vmatpush1.bf16.msra.mxu0 %v3361
    %4638 = vmatprep.subr.bf16.mxu0 %v3354
    %4639 = vmatpush1.bf16.msra.mxu0 %v3353
    %4640 = vmatprep.subr.bf16.mxu0 %v3346
    %4641 = vmatpush1.bf16.msra.mxu0 %v3345
    %4642 = vmatprep.subr.bf16.mxu0 %v3338
    %4643 = vmatpush1.bf16.msra.mxu0 %v3337
    %4644 = vmatprep.subr.bf16.mxu0 %v3330
    %4645 = vmatpush1.bf16.msra.mxu0 %v3329
    %4646 = vmatprep.subr.bf16.mxu0 %v3450
    %4647 = vmatpush2.bf16.msra.mxu0 %v3449
    %4648 = vmatprep.subr.bf16.mxu0 %v3442
    %4649 = vmatpush2.bf16.msra.mxu0 %v3441
    %4650 = vmatprep.subr.bf16.mxu0 %v3434
    %4651 = vmatpush2.bf16.msra.mxu0 %v3433
    %4652 = vmatprep.subr.bf16.mxu0 %v3426
    %4653 = vmatpush2.bf16.msra.mxu0 %v3425
    %4654 = vmatprep.subr.bf16.mxu0 %v3418
    %4655 = vmatpush2.bf16.msra.mxu0 %v3417
    %4656 = vmatprep.subr.bf16.mxu0 %v3410
    %4657 = vmatpush2.bf16.msra.mxu0 %v3409
    %4658 = vmatprep.subr.bf16.mxu0 %v3402
    %4659 = vmatpush2.bf16.msra.mxu0 %v3401
    %4660 = vmatprep.subr.bf16.mxu0 %v3394
    %4661 = vmatpush2.bf16.msra.mxu0 %v3393
    %4662 = vmatprep.mubr.bf16.mxu0 %v4506
    %4663 = vmatmul.mubr.bf16.gmra.mxu0 %v4505
    %v4664 = vpop.f32.mrf.mxu0
    %v4665 = vadd.f32 0.0, %v4664
    %v4666 = vpop.f32.mrf.mxu0
    %v4667 = vadd.f32 0.0, %v4666
    %v4668 = vpop.f32.mrf.mxu0
    %v4669 = vpop.f32.mrf.mxu0
    %4670 = vdwg.mxu0
    %v4671 = vadd.f32 %v4497, %v4542
    %v4672 = vadd.f32 %v4498, %v4544
    %v4673 = vadd.f32 %v4499, %v4583
    %v4674 = vadd.f32 %v4500, %v4585
    %v4675 = vadd.f32 %v4501, %v4624
    %v4676 = vadd.f32 %v4502, %v4626
    %v4677 = vadd.f32 %v4503, %v4665
    %v4678 = vadd.f32 %v4504, %v4667
    %v4679 = vxor.u32 %v4671, 2147483648
    %v4680 = vxor.u32 %v4672, 2147483648
    %v4681 = vxor.u32 %v4673, 2147483648
    %v4682 = vxor.u32 %v4674, 2147483648
    %v4683 = vxor.u32 %v4675, 2147483648
    %v4684 = vxor.u32 %v4676, 2147483648
    %v4685 = vmul.f32 %v4679, 1.442695
    %v4686 = vpow.pop %v4685
    %v4687 = vmul.f32 %v4680, 1.442695
    %v4688 = vpow.pop %v4687
    %v4689 = vmul.f32 %v4681, 1.442695
    %v4690 = vpow.pop %v4689
    %v4691 = vmul.f32 %v4682, 1.442695
    %v4692 = vpow.pop %v4691
    %v4693 = vmul.f32 %v4683, 1.442695
    %v4694 = vpow.pop %v4693
    %v4695 = vmul.f32 %v4684, 1.442695
    %v4696 = vpow.pop %v4695
    %v4697 = vadd.f32 %v4686, 1.0
    %v4698 = vadd.f32 %v4688, 1.0
    %v4699 = vadd.f32 %v4690, 1.0
    %v4700 = vadd.f32 %v4692, 1.0
    %v4701 = vadd.f32 %v4694, 1.0
    %v4702 = vadd.f32 %v4696, 1.0
    %v4703 = vrcp.pop %v4697
    %v4704 = vmul.f32 1.0, %v4703
    %v4705 = vrcp.pop %v4698
    %v4706 = vmul.f32 1.0, %v4705
    %v4707 = vrcp.pop %v4699
    %v4708 = vmul.f32 1.0, %v4707
    %v4709 = vrcp.pop %v4700
    %v4710 = vmul.f32 1.0, %v4709
    %v4711 = vrcp.pop %v4701
    %v4712 = vmul.f32 1.0, %v4711
    %v4713 = vrcp.pop %v4702
    %v4714 = vmul.f32 1.0, %v4713
    %v4715 = vtanh.pop %v4677
    %v4716 = vtanh.pop %v4678
    %v4717 = vmul.f32 %v4708, %v4257
    %v4718 = vmul.f32 %v4710, %v4258
    %v4719 = vmul.f32 %v4704, %v4715
    %v4720 = vmul.f32 %v4706, %v4716
    %v4721 = vadd.f32 %v4717, %v4719
    %v4722 = vadd.f32 %v4718, %v4720
    %v4723 = vtanh.pop %v4721
    %v4724 = vtanh.pop %v4722
    %v4725 = vmul.f32 %v4712, %v4723
    %v4726 = vmul.f32 %v4714, %v4724
    %4727 = vst [vmem:[#allocation3 + $0xb0] sm:$0xff] %v4725
    %4728 = vst [vmem:[#allocation3 + $0xb8] sm:$0xff] %v4726
    %v4729 = vld [vmem:[#allocation2 + $0x180] sm:$0xff]
    %v4730 = vld [vmem:[#allocation2 + $0x188] sm:$0xff]
    %v4731 = vld [vmem:[#allocation2 + $0x190] sm:$0xff]
    %v4732 = vld [vmem:[#allocation2 + $0x198] sm:$0xff]
    %v4733 = vld [vmem:[#allocation2 + $0x1a0] sm:$0xff]
    %v4734 = vld [vmem:[#allocation2 + $0x1a8] sm:$0xff]
    %v4735 = vld [vmem:[#allocation2 + $0x1b0] sm:$0xff]
    %v4736 = vld [vmem:[#allocation2 + $0x1b8] sm:$0xff]
    %v4737 = vpack.c.bf16 %v4493, %v4493
    %v4738 = vpack.c.bf16 %v4494, %v4494
    %4739 = vmatprep.subr.bf16.mxu0 %v2510
    %4740 = vmatpush1.bf16.msra.mxu0 %v2509
    %4741 = vmatprep.subr.bf16.mxu0 %v2502
    %4742 = vmatpush1.bf16.msra.mxu0 %v2501
    %4743 = vmatprep.subr.bf16.mxu0 %v2494
    %4744 = vmatpush1.bf16.msra.mxu0 %v2493
    %4745 = vmatprep.subr.bf16.mxu0 %v2486
    %4746 = vmatpush1.bf16.msra.mxu0 %v2485
    %4747 = vmatprep.subr.bf16.mxu0 %v2478
    %4748 = vmatpush1.bf16.msra.mxu0 %v2477
    %4749 = vmatprep.subr.bf16.mxu0 %v2470
    %4750 = vmatpush1.bf16.msra.mxu0 %v2469
    %4751 = vmatprep.subr.bf16.mxu0 %v2462
    %4752 = vmatpush1.bf16.msra.mxu0 %v2461
    %4753 = vmatprep.subr.bf16.mxu0 %v2454
    %4754 = vmatpush1.bf16.msra.mxu0 %v2453
    %4755 = vmatprep.subr.bf16.mxu0 %v2574
    %4756 = vmatpush2.bf16.msra.mxu0 %v2573
    %4757 = vmatprep.subr.bf16.mxu0 %v2566
    %4758 = vmatpush2.bf16.msra.mxu0 %v2565
    %4759 = vmatprep.subr.bf16.mxu0 %v2558
    %4760 = vmatpush2.bf16.msra.mxu0 %v2557
    %4761 = vmatprep.subr.bf16.mxu0 %v2550
    %4762 = vmatpush2.bf16.msra.mxu0 %v2549
    %4763 = vmatprep.subr.bf16.mxu0 %v2542
    %4764 = vmatpush2.bf16.msra.mxu0 %v2541
    %4765 = vmatprep.subr.bf16.mxu0 %v2534
    %4766 = vmatpush2.bf16.msra.mxu0 %v2533
    %4767 = vmatprep.subr.bf16.mxu0 %v2526
    %4768 = vmatpush2.bf16.msra.mxu0 %v2525
    %4769 = vmatprep.subr.bf16.mxu0 %v2518
    %4770 = vmatpush2.bf16.msra.mxu0 %v2517
    %4771 = vmatprep.mubr.bf16.mxu0 %v4738
    %4772 = vmatmul.mubr.bf16.gmra.mxu0 %v4737
    %v4773 = vpop.f32.mrf.mxu0
    %v4774 = vadd.f32 0.0, %v4773
    %v4775 = vpop.f32.mrf.mxu0
    %v4776 = vadd.f32 0.0, %v4775
    %v4777 = vpop.f32.mrf.mxu0
    %v4778 = vpop.f32.mrf.mxu0
    %4779 = vdwg.mxu0
    %4780 = vmatprep.subr.bf16.mxu0 %v2512
    %4781 = vmatpush1.bf16.msra.mxu0 %v2511
    %4782 = vmatprep.subr.bf16.mxu0 %v2504
    %4783 = vmatpush1.bf16.msra.mxu0 %v2503
    %4784 = vmatprep.subr.bf16.mxu0 %v2496
    %4785 = vmatpush1.bf16.msra.mxu0 %v2495
    %4786 = vmatprep.subr.bf16.mxu0 %v2488
    %4787 = vmatpush1.bf16.msra.mxu0 %v2487
    %4788 = vmatprep.subr.bf16.mxu0 %v2480
    %4789 = vmatpush1.bf16.msra.mxu0 %v2479
    %4790 = vmatprep.subr.bf16.mxu0 %v2472
    %4791 = vmatpush1.bf16.msra.mxu0 %v2471
    %4792 = vmatprep.subr.bf16.mxu0 %v2464
    %4793 = vmatpush1.bf16.msra.mxu0 %v2463
    %4794 = vmatprep.subr.bf16.mxu0 %v2456
    %4795 = vmatpush1.bf16.msra.mxu0 %v2455
    %4796 = vmatprep.subr.bf16.mxu0 %v2576
    %4797 = vmatpush2.bf16.msra.mxu0 %v2575
    %4798 = vmatprep.subr.bf16.mxu0 %v2568
    %4799 = vmatpush2.bf16.msra.mxu0 %v2567
    %4800 = vmatprep.subr.bf16.mxu0 %v2560
    %4801 = vmatpush2.bf16.msra.mxu0 %v2559
    %4802 = vmatprep.subr.bf16.mxu0 %v2552
    %4803 = vmatpush2.bf16.msra.mxu0 %v2551
    %4804 = vmatprep.subr.bf16.mxu0 %v2544
    %4805 = vmatpush2.bf16.msra.mxu0 %v2543
    %4806 = vmatprep.subr.bf16.mxu0 %v2536
    %4807 = vmatpush2.bf16.msra.mxu0 %v2535
    %4808 = vmatprep.subr.bf16.mxu0 %v2528
    %4809 = vmatpush2.bf16.msra.mxu0 %v2527
    %4810 = vmatprep.subr.bf16.mxu0 %v2520
    %4811 = vmatpush2.bf16.msra.mxu0 %v2519
    %4812 = vmatprep.mubr.bf16.mxu0 %v4738
    %4813 = vmatmul.mubr.bf16.gmra.mxu0 %v4737
    %v4814 = vpop.f32.mrf.mxu0
    %v4815 = vadd.f32 0.0, %v4814
    %v4816 = vpop.f32.mrf.mxu0
    %v4817 = vadd.f32 0.0, %v4816
    %v4818 = vpop.f32.mrf.mxu0
    %v4819 = vpop.f32.mrf.mxu0
    %4820 = vdwg.mxu0
    %4821 = vmatprep.subr.bf16.mxu0 %v2514
    %4822 = vmatpush1.bf16.msra.mxu0 %v2513
    %4823 = vmatprep.subr.bf16.mxu0 %v2506
    %4824 = vmatpush1.bf16.msra.mxu0 %v2505
    %4825 = vmatprep.subr.bf16.mxu0 %v2498
    %4826 = vmatpush1.bf16.msra.mxu0 %v2497
    %4827 = vmatprep.subr.bf16.mxu0 %v2490
    %4828 = vmatpush1.bf16.msra.mxu0 %v2489
    %4829 = vmatprep.subr.bf16.mxu0 %v2482
    %4830 = vmatpush1.bf16.msra.mxu0 %v2481
    %4831 = vmatprep.subr.bf16.mxu0 %v2474
    %4832 = vmatpush1.bf16.msra.mxu0 %v2473
    %4833 = vmatprep.subr.bf16.mxu0 %v2466
    %4834 = vmatpush1.bf16.msra.mxu0 %v2465
    %4835 = vmatprep.subr.bf16.mxu0 %v2458
    %4836 = vmatpush1.bf16.msra.mxu0 %v2457
    %4837 = vmatprep.subr.bf16.mxu0 %v2578
    %4838 = vmatpush2.bf16.msra.mxu0 %v2577
    %4839 = vmatprep.subr.bf16.mxu0 %v2570
    %4840 = vmatpush2.bf16.msra.mxu0 %v2569
    %4841 = vmatprep.subr.bf16.mxu0 %v2562
    %4842 = vmatpush2.bf16.msra.mxu0 %v2561
    %4843 = vmatprep.subr.bf16.mxu0 %v2554
    %4844 = vmatpush2.bf16.msra.mxu0 %v2553
    %4845 = vmatprep.subr.bf16.mxu0 %v2546
    %4846 = vmatpush2.bf16.msra.mxu0 %v2545
    %4847 = vmatprep.subr.bf16.mxu0 %v2538
    %4848 = vmatpush2.bf16.msra.mxu0 %v2537
    %4849 = vmatprep.subr.bf16.mxu0 %v2530
    %4850 = vmatpush2.bf16.msra.mxu0 %v2529
    %4851 = vmatprep.subr.bf16.mxu0 %v2522
    %4852 = vmatpush2.bf16.msra.mxu0 %v2521
    %4853 = vmatprep.mubr.bf16.mxu0 %v4738
    %4854 = vmatmul.mubr.bf16.gmra.mxu0 %v4737
    %v4855 = vpop.f32.mrf.mxu0
    %v4856 = vadd.f32 0.0, %v4855
    %v4857 = vpop.f32.mrf.mxu0
    %v4858 = vadd.f32 0.0, %v4857
    %v4859 = vpop.f32.mrf.mxu0
    %v4860 = vpop.f32.mrf.mxu0
    %4861 = vdwg.mxu0
    %4862 = vmatprep.subr.bf16.mxu0 %v2516
    %4863 = vmatpush1.bf16.msra.mxu0 %v2515
    %4864 = vmatprep.subr.bf16.mxu0 %v2508
    %4865 = vmatpush1.bf16.msra.mxu0 %v2507
    %4866 = vmatprep.subr.bf16.mxu0 %v2500
    %4867 = vmatpush1.bf16.msra.mxu0 %v2499
    %4868 = vmatprep.subr.bf16.mxu0 %v2492
    %4869 = vmatpush1.bf16.msra.mxu0 %v2491
    %4870 = vmatprep.subr.bf16.mxu0 %v2484
    %4871 = vmatpush1.bf16.msra.mxu0 %v2483
    %4872 = vmatprep.subr.bf16.mxu0 %v2476
    %4873 = vmatpush1.bf16.msra.mxu0 %v2475
    %4874 = vmatprep.subr.bf16.mxu0 %v2468
    %4875 = vmatpush1.bf16.msra.mxu0 %v2467
    %4876 = vmatprep.subr.bf16.mxu0 %v2460
    %4877 = vmatpush1.bf16.msra.mxu0 %v2459
    %4878 = vmatprep.subr.bf16.mxu0 %v2580
    %4879 = vmatpush2.bf16.msra.mxu0 %v2579
    %4880 = vmatprep.subr.bf16.mxu0 %v2572
    %4881 = vmatpush2.bf16.msra.mxu0 %v2571
    %4882 = vmatprep.subr.bf16.mxu0 %v2564
    %4883 = vmatpush2.bf16.msra.mxu0 %v2563
    %4884 = vmatprep.subr.bf16.mxu0 %v2556
    %4885 = vmatpush2.bf16.msra.mxu0 %v2555
    %4886 = vmatprep.subr.bf16.mxu0 %v2548
    %4887 = vmatpush2.bf16.msra.mxu0 %v2547
    %4888 = vmatprep.subr.bf16.mxu0 %v2540
    %4889 = vmatpush2.bf16.msra.mxu0 %v2539
    %4890 = vmatprep.subr.bf16.mxu0 %v2532
    %4891 = vmatpush2.bf16.msra.mxu0 %v2531
    %4892 = vmatprep.subr.bf16.mxu0 %v2524
    %4893 = vmatpush2.bf16.msra.mxu0 %v2523
    %4894 = vmatprep.mubr.bf16.mxu0 %v4738
    %4895 = vmatmul.mubr.bf16.gmra.mxu0 %v4737
    %v4896 = vpop.f32.mrf.mxu0
    %v4897 = vadd.f32 0.0, %v4896
    %v4898 = vpop.f32.mrf.mxu0
    %v4899 = vadd.f32 0.0, %v4898
    %v4900 = vpop.f32.mrf.mxu0
    %v4901 = vpop.f32.mrf.mxu0
    %4902 = vdwg.mxu0
    %v4903 = vadd.f32 %v4729, %v4774
    %v4904 = vadd.f32 %v4730, %v4776
    %v4905 = vadd.f32 %v4731, %v4815
    %v4906 = vadd.f32 %v4732, %v4817
    %v4907 = vadd.f32 %v4733, %v4856
    %v4908 = vadd.f32 %v4734, %v4858
    %v4909 = vadd.f32 %v4735, %v4897
    %v4910 = vadd.f32 %v4736, %v4899
    %v4911 = vxor.u32 %v4903, 2147483648
    %v4912 = vxor.u32 %v4904, 2147483648
    %v4913 = vxor.u32 %v4905, 2147483648
    %v4914 = vxor.u32 %v4906, 2147483648
    %v4915 = vxor.u32 %v4907, 2147483648
    %v4916 = vxor.u32 %v4908, 2147483648
    %v4917 = vmul.f32 %v4911, 1.442695
    %v4918 = vpow.pop %v4917
    %v4919 = vmul.f32 %v4912, 1.442695
    %v4920 = vpow.pop %v4919
    %v4921 = vmul.f32 %v4913, 1.442695
    %v4922 = vpow.pop %v4921
    %v4923 = vmul.f32 %v4914, 1.442695
    %v4924 = vpow.pop %v4923
    %v4925 = vmul.f32 %v4915, 1.442695
    %v4926 = vpow.pop %v4925
    %v4927 = vmul.f32 %v4916, 1.442695
    %v4928 = vpow.pop %v4927
    %v4929 = vadd.f32 %v4918, 1.0
    %v4930 = vadd.f32 %v4920, 1.0
    %v4931 = vadd.f32 %v4922, 1.0
    %v4932 = vadd.f32 %v4924, 1.0
    %v4933 = vadd.f32 %v4926, 1.0
    %v4934 = vadd.f32 %v4928, 1.0
    %v4935 = vrcp.pop %v4929
    %v4936 = vmul.f32 1.0, %v4935
    %v4937 = vrcp.pop %v4930
    %v4938 = vmul.f32 1.0, %v4937
    %v4939 = vrcp.pop %v4931
    %v4940 = vmul.f32 1.0, %v4939
    %v4941 = vrcp.pop %v4932
    %v4942 = vmul.f32 1.0, %v4941
    %v4943 = vrcp.pop %v4933
    %v4944 = vmul.f32 1.0, %v4943
    %v4945 = vrcp.pop %v4934
    %v4946 = vmul.f32 1.0, %v4945
    %v4947 = vtanh.pop %v4909
    %v4948 = vtanh.pop %v4910
    %v4949 = vmul.f32 %v4940, %v4489
    %v4950 = vmul.f32 %v4942, %v4490
    %v4951 = vmul.f32 %v4936, %v4947
    %v4952 = vmul.f32 %v4938, %v4948
    %v4953 = vadd.f32 %v4949, %v4951
    %v4954 = vadd.f32 %v4950, %v4952
    %v4955 = vtanh.pop %v4953
    %v4956 = vtanh.pop %v4954
    %v4957 = vmul.f32 %v4944, %v4955
    %v4958 = vmul.f32 %v4946, %v4956
    %4959 = vst [vmem:[#allocation3 + $0x60] sm:$0xff] %v4957
    %4960 = vst [vmem:[#allocation3 + $0x68] sm:$0xff] %v4958
    %v4961 = vld [vmem:[#allocation2 + $0x240] sm:$0xff]
    %v4962 = vld [vmem:[#allocation2 + $0x248] sm:$0xff]
    %v4963 = vld [vmem:[#allocation2 + $0x250] sm:$0xff]
    %v4964 = vld [vmem:[#allocation2 + $0x258] sm:$0xff]
    %v4965 = vld [vmem:[#allocation2 + $0x260] sm:$0xff]
    %v4966 = vld [vmem:[#allocation2 + $0x268] sm:$0xff]
    %v4967 = vld [vmem:[#allocation2 + $0x270] sm:$0xff]
    %v4968 = vld [vmem:[#allocation2 + $0x278] sm:$0xff]
    %v4969 = vpack.c.bf16 %v4725, %v4725
    %v4970 = vpack.c.bf16 %v4726, %v4726
    %4971 = vmatprep.subr.bf16.mxu0 %v3380
    %4972 = vmatpush1.bf16.msra.mxu0 %v3379
    %4973 = vmatprep.subr.bf16.mxu0 %v3372
    %4974 = vmatpush1.bf16.msra.mxu0 %v3371
    %4975 = vmatprep.subr.bf16.mxu0 %v3364
    %4976 = vmatpush1.bf16.msra.mxu0 %v3363
    %4977 = vmatprep.subr.bf16.mxu0 %v3356
    %4978 = vmatpush1.bf16.msra.mxu0 %v3355
    %4979 = vmatprep.subr.bf16.mxu0 %v3348
    %4980 = vmatpush1.bf16.msra.mxu0 %v3347
    %4981 = vmatprep.subr.bf16.mxu0 %v3340
    %4982 = vmatpush1.bf16.msra.mxu0 %v3339
    %4983 = vmatprep.subr.bf16.mxu0 %v3332
    %4984 = vmatpush1.bf16.msra.mxu0 %v3331
    %4985 = vmatprep.subr.bf16.mxu0 %v3324
    %4986 = vmatpush1.bf16.msra.mxu0 %v3323
    %4987 = vmatprep.subr.bf16.mxu0 %v3444
    %4988 = vmatpush2.bf16.msra.mxu0 %v3443
    %4989 = vmatprep.subr.bf16.mxu0 %v3436
    %4990 = vmatpush2.bf16.msra.mxu0 %v3435
    %4991 = vmatprep.subr.bf16.mxu0 %v3428
    %4992 = vmatpush2.bf16.msra.mxu0 %v3427
    %4993 = vmatprep.subr.bf16.mxu0 %v3420
    %4994 = vmatpush2.bf16.msra.mxu0 %v3419
    %4995 = vmatprep.subr.bf16.mxu0 %v3412
    %4996 = vmatpush2.bf16.msra.mxu0 %v3411
    %4997 = vmatprep.subr.bf16.mxu0 %v3404
    %4998 = vmatpush2.bf16.msra.mxu0 %v3403
    %4999 = vmatprep.subr.bf16.mxu0 %v3396
    %5000 = vmatpush2.bf16.msra.mxu0 %v3395
    %5001 = vmatprep.subr.bf16.mxu0 %v3388
    %5002 = vmatpush2.bf16.msra.mxu0 %v3387
    %5003 = vmatprep.mubr.bf16.mxu0 %v4970
    %5004 = vmatmul.mubr.bf16.gmra.mxu0 %v4969
    %v5005 = vpop.f32.mrf.mxu0
    %v5006 = vadd.f32 0.0, %v5005
    %v5007 = vpop.f32.mrf.mxu0
    %v5008 = vadd.f32 0.0, %v5007
    %v5009 = vpop.f32.mrf.mxu0
    %v5010 = vpop.f32.mrf.mxu0
    %5011 = vdwg.mxu0
    %5012 = vmatprep.subr.bf16.mxu0 %v3382
    %5013 = vmatpush1.bf16.msra.mxu0 %v3381
    %5014 = vmatprep.subr.bf16.mxu0 %v3374
    %5015 = vmatpush1.bf16.msra.mxu0 %v3373
    %5016 = vmatprep.subr.bf16.mxu0 %v3366
    %5017 = vmatpush1.bf16.msra.mxu0 %v3365
    %5018 = vmatprep.subr.bf16.mxu0 %v3358
    %5019 = vmatpush1.bf16.msra.mxu0 %v3357
    %5020 = vmatprep.subr.bf16.mxu0 %v3350
    %5021 = vmatpush1.bf16.msra.mxu0 %v3349
    %5022 = vmatprep.subr.bf16.mxu0 %v3342
    %5023 = vmatpush1.bf16.msra.mxu0 %v3341
    %5024 = vmatprep.subr.bf16.mxu0 %v3334
    %5025 = vmatpush1.bf16.msra.mxu0 %v3333
    %5026 = vmatprep.subr.bf16.mxu0 %v3326
    %5027 = vmatpush1.bf16.msra.mxu0 %v3325
    %5028 = vmatprep.subr.bf16.mxu0 %v3446
    %5029 = vmatpush2.bf16.msra.mxu0 %v3445
    %5030 = vmatprep.subr.bf16.mxu0 %v3438
    %5031 = vmatpush2.bf16.msra.mxu0 %v3437
    %5032 = vmatprep.subr.bf16.mxu0 %v3430
    %5033 = vmatpush2.bf16.msra.mxu0 %v3429
    %5034 = vmatprep.subr.bf16.mxu0 %v3422
    %5035 = vmatpush2.bf16.msra.mxu0 %v3421
    %5036 = vmatprep.subr.bf16.mxu0 %v3414
    %5037 = vmatpush2.bf16.msra.mxu0 %v3413
    %5038 = vmatprep.subr.bf16.mxu0 %v3406
    %5039 = vmatpush2.bf16.msra.mxu0 %v3405
    %5040 = vmatprep.subr.bf16.mxu0 %v3398
    %5041 = vmatpush2.bf16.msra.mxu0 %v3397
    %5042 = vmatprep.subr.bf16.mxu0 %v3390
    %5043 = vmatpush2.bf16.msra.mxu0 %v3389
    %5044 = vmatprep.mubr.bf16.mxu0 %v4970
    %5045 = vmatmul.mubr.bf16.gmra.mxu0 %v4969
    %v5046 = vpop.f32.mrf.mxu0
    %v5047 = vadd.f32 0.0, %v5046
    %v5048 = vpop.f32.mrf.mxu0
    %v5049 = vadd.f32 0.0, %v5048
    %v5050 = vpop.f32.mrf.mxu0
    %v5051 = vpop.f32.mrf.mxu0
    %5052 = vdwg.mxu0
    %5053 = vmatprep.subr.bf16.mxu0 %v3384
    %5054 = vmatpush1.bf16.msra.mxu0 %v3383
    %5055 = vmatprep.subr.bf16.mxu0 %v3376
    %5056 = vmatpush1.bf16.msra.mxu0 %v3375
    %5057 = vmatprep.subr.bf16.mxu0 %v3368
    %5058 = vmatpush1.bf16.msra.mxu0 %v3367
    %5059 = vmatprep.subr.bf16.mxu0 %v3360
    %5060 = vmatpush1.bf16.msra.mxu0 %v3359
    %5061 = vmatprep.subr.bf16.mxu0 %v3352
    %5062 = vmatpush1.bf16.msra.mxu0 %v3351
    %5063 = vmatprep.subr.bf16.mxu0 %v3344
    %5064 = vmatpush1.bf16.msra.mxu0 %v3343
    %5065 = vmatprep.subr.bf16.mxu0 %v3336
    %5066 = vmatpush1.bf16.msra.mxu0 %v3335
    %5067 = vmatprep.subr.bf16.mxu0 %v3328
    %5068 = vmatpush1.bf16.msra.mxu0 %v3327
    %5069 = vmatprep.subr.bf16.mxu0 %v3448
    %5070 = vmatpush2.bf16.msra.mxu0 %v3447
    %5071 = vmatprep.subr.bf16.mxu0 %v3440
    %5072 = vmatpush2.bf16.msra.mxu0 %v3439
    %5073 = vmatprep.subr.bf16.mxu0 %v3432
    %5074 = vmatpush2.bf16.msra.mxu0 %v3431
    %5075 = vmatprep.subr.bf16.mxu0 %v3424
    %5076 = vmatpush2.bf16.msra.mxu0 %v3423
    %5077 = vmatprep.subr.bf16.mxu0 %v3416
    %5078 = vmatpush2.bf16.msra.mxu0 %v3415
    %5079 = vmatprep.subr.bf16.mxu0 %v3408
    %5080 = vmatpush2.bf16.msra.mxu0 %v3407
    %5081 = vmatprep.subr.bf16.mxu0 %v3400
    %5082 = vmatpush2.bf16.msra.mxu0 %v3399
    %5083 = vmatprep.subr.bf16.mxu0 %v3392
    %5084 = vmatpush2.bf16.msra.mxu0 %v3391
    %5085 = vmatprep.mubr.bf16.mxu0 %v4970
    %5086 = vmatmul.mubr.bf16.gmra.mxu0 %v4969
    %v5087 = vpop.f32.mrf.mxu0
    %v5088 = vadd.f32 0.0, %v5087
    %v5089 = vpop.f32.mrf.mxu0
    %v5090 = vadd.f32 0.0, %v5089
    %v5091 = vpop.f32.mrf.mxu0
    %v5092 = vpop.f32.mrf.mxu0
    %5093 = vdwg.mxu0
    %5094 = vmatprep.subr.bf16.mxu0 %v3386
    %5095 = vmatpush1.bf16.msra.mxu0 %v3385
    %5096 = vmatprep.subr.bf16.mxu0 %v3378
    %5097 = vmatpush1.bf16.msra.mxu0 %v3377
    %5098 = vmatprep.subr.bf16.mxu0 %v3370
    %5099 = vmatpush1.bf16.msra.mxu0 %v3369
    %5100 = vmatprep.subr.bf16.mxu0 %v3362
    %5101 = vmatpush1.bf16.msra.mxu0 %v3361
    %5102 = vmatprep.subr.bf16.mxu0 %v3354
    %5103 = vmatpush1.bf16.msra.mxu0 %v3353
    %5104 = vmatprep.subr.bf16.mxu0 %v3346
    %5105 = vmatpush1.bf16.msra.mxu0 %v3345
    %5106 = vmatprep.subr.bf16.mxu0 %v3338
    %5107 = vmatpush1.bf16.msra.mxu0 %v3337
    %5108 = vmatprep.subr.bf16.mxu0 %v3330
    %5109 = vmatpush1.bf16.msra.mxu0 %v3329
    %5110 = vmatprep.subr.bf16.mxu0 %v3450
    %5111 = vmatpush2.bf16.msra.mxu0 %v3449
    %5112 = vmatprep.subr.bf16.mxu0 %v3442
    %5113 = vmatpush2.bf16.msra.mxu0 %v3441
    %5114 = vmatprep.subr.bf16.mxu0 %v3434
    %5115 = vmatpush2.bf16.msra.mxu0 %v3433
    %5116 = vmatprep.subr.bf16.mxu0 %v3426
    %5117 = vmatpush2.bf16.msra.mxu0 %v3425
    %5118 = vmatprep.subr.bf16.mxu0 %v3418
    %5119 = vmatpush2.bf16.msra.mxu0 %v3417
    %5120 = vmatprep.subr.bf16.mxu0 %v3410
    %5121 = vmatpush2.bf16.msra.mxu0 %v3409
    %5122 = vmatprep.subr.bf16.mxu0 %v3402
    %5123 = vmatpush2.bf16.msra.mxu0 %v3401
    %5124 = vmatprep.subr.bf16.mxu0 %v3394
    %5125 = vmatpush2.bf16.msra.mxu0 %v3393
    %5126 = vmatprep.mubr.bf16.mxu0 %v4970
    %5127 = vmatmul.mubr.bf16.gmra.mxu0 %v4969
    %v5128 = vpop.f32.mrf.mxu0
    %v5129 = vadd.f32 0.0, %v5128
    %v5130 = vpop.f32.mrf.mxu0
    %v5131 = vadd.f32 0.0, %v5130
    %v5132 = vpop.f32.mrf.mxu0
    %v5133 = vpop.f32.mrf.mxu0
    %5134 = vdwg.mxu0
    %v5135 = vadd.f32 %v4961, %v5006
    %v5136 = vadd.f32 %v4962, %v5008
    %v5137 = vadd.f32 %v4963, %v5047
    %v5138 = vadd.f32 %v4964, %v5049
    %v5139 = vadd.f32 %v4965, %v5088
    %v5140 = vadd.f32 %v4966, %v5090
    %v5141 = vadd.f32 %v4967, %v5129
    %v5142 = vadd.f32 %v4968, %v5131
    %v5143 = vxor.u32 %v5135, 2147483648
    %v5144 = vxor.u32 %v5136, 2147483648
    %v5145 = vxor.u32 %v5137, 2147483648
    %v5146 = vxor.u32 %v5138, 2147483648
    %v5147 = vxor.u32 %v5139, 2147483648
    %v5148 = vxor.u32 %v5140, 2147483648
    %v5149 = vmul.f32 %v5143, 1.442695
    %v5150 = vpow.pop %v5149
    %v5151 = vmul.f32 %v5144, 1.442695
    %v5152 = vpow.pop %v5151
    %v5153 = vmul.f32 %v5145, 1.442695
    %v5154 = vpow.pop %v5153
    %v5155 = vmul.f32 %v5146, 1.442695
    %v5156 = vpow.pop %v5155
    %v5157 = vmul.f32 %v5147, 1.442695
    %v5158 = vpow.pop %v5157
    %v5159 = vmul.f32 %v5148, 1.442695
    %v5160 = vpow.pop %v5159
    %v5161 = vadd.f32 %v5150, 1.0
    %v5162 = vadd.f32 %v5152, 1.0
    %v5163 = vadd.f32 %v5154, 1.0
    %v5164 = vadd.f32 %v5156, 1.0
    %v5165 = vadd.f32 %v5158, 1.0
    %v5166 = vadd.f32 %v5160, 1.0
    %v5167 = vrcp.pop %v5161
    %v5168 = vmul.f32 1.0, %v5167
    %v5169 = vrcp.pop %v5162
    %v5170 = vmul.f32 1.0, %v5169
    %v5171 = vrcp.pop %v5163
    %v5172 = vmul.f32 1.0, %v5171
    %v5173 = vrcp.pop %v5164
    %v5174 = vmul.f32 1.0, %v5173
    %v5175 = vrcp.pop %v5165
    %v5176 = vmul.f32 1.0, %v5175
    %v5177 = vrcp.pop %v5166
    %v5178 = vmul.f32 1.0, %v5177
    %v5179 = vtanh.pop %v5141
    %v5180 = vtanh.pop %v5142
    %v5181 = vmul.f32 %v5172, %v4721
    %v5182 = vmul.f32 %v5174, %v4722
    %v5183 = vmul.f32 %v5168, %v5179
    %v5184 = vmul.f32 %v5170, %v5180
    %v5185 = vadd.f32 %v5181, %v5183
    %v5186 = vadd.f32 %v5182, %v5184
    %v5187 = vtanh.pop %v5185
    %v5188 = vtanh.pop %v5186
    %v5189 = vmul.f32 %v5176, %v5187
    %v5190 = vmul.f32 %v5178, %v5188
    %5191 = vst [vmem:[#allocation3 + $0x90] sm:$0xff] %v5189
    %5192 = vst [vmem:[#allocation3 + $0x98] sm:$0xff] %v5190
    %v5193 = vld [vmem:[#allocation2 + $0x200] sm:$0xff]
    %v5194 = vld [vmem:[#allocation2 + $0x208] sm:$0xff]
    %v5195 = vld [vmem:[#allocation2 + $0x210] sm:$0xff]
    %v5196 = vld [vmem:[#allocation2 + $0x218] sm:$0xff]
    %v5197 = vld [vmem:[#allocation2 + $0x220] sm:$0xff]
    %v5198 = vld [vmem:[#allocation2 + $0x228] sm:$0xff]
    %v5199 = vld [vmem:[#allocation2 + $0x230] sm:$0xff]
    %v5200 = vld [vmem:[#allocation2 + $0x238] sm:$0xff]
    %v5201 = vpack.c.bf16 %v4957, %v4957
    %v5202 = vpack.c.bf16 %v4958, %v4958
    %5203 = vmatprep.subr.bf16.mxu0 %v2510
    %5204 = vmatpush1.bf16.msra.mxu0 %v2509
    %5205 = vmatprep.subr.bf16.mxu0 %v2502
    %5206 = vmatpush1.bf16.msra.mxu0 %v2501
    %5207 = vmatprep.subr.bf16.mxu0 %v2494
    %5208 = vmatpush1.bf16.msra.mxu0 %v2493
    %5209 = vmatprep.subr.bf16.mxu0 %v2486
    %5210 = vmatpush1.bf16.msra.mxu0 %v2485
    %5211 = vmatprep.subr.bf16.mxu0 %v2478
    %5212 = vmatpush1.bf16.msra.mxu0 %v2477
    %5213 = vmatprep.subr.bf16.mxu0 %v2470
    %5214 = vmatpush1.bf16.msra.mxu0 %v2469
    %5215 = vmatprep.subr.bf16.mxu0 %v2462
    %5216 = vmatpush1.bf16.msra.mxu0 %v2461
    %5217 = vmatprep.subr.bf16.mxu0 %v2454
    %5218 = vmatpush1.bf16.msra.mxu0 %v2453
    %5219 = vmatprep.subr.bf16.mxu0 %v2574
    %5220 = vmatpush2.bf16.msra.mxu0 %v2573
    %5221 = vmatprep.subr.bf16.mxu0 %v2566
    %5222 = vmatpush2.bf16.msra.mxu0 %v2565
    %5223 = vmatprep.subr.bf16.mxu0 %v2558
    %5224 = vmatpush2.bf16.msra.mxu0 %v2557
    %5225 = vmatprep.subr.bf16.mxu0 %v2550
    %5226 = vmatpush2.bf16.msra.mxu0 %v2549
    %5227 = vmatprep.subr.bf16.mxu0 %v2542
    %5228 = vmatpush2.bf16.msra.mxu0 %v2541
    %5229 = vmatprep.subr.bf16.mxu0 %v2534
    %5230 = vmatpush2.bf16.msra.mxu0 %v2533
    %5231 = vmatprep.subr.bf16.mxu0 %v2526
    %5232 = vmatpush2.bf16.msra.mxu0 %v2525
    %5233 = vmatprep.subr.bf16.mxu0 %v2518
    %5234 = vmatpush2.bf16.msra.mxu0 %v2517
    %5235 = vmatprep.mubr.bf16.mxu0 %v5202
    %5236 = vmatmul.mubr.bf16.gmra.mxu0 %v5201
    %v5237 = vpop.f32.mrf.mxu0
    %v5238 = vadd.f32 0.0, %v5237
    %v5239 = vpop.f32.mrf.mxu0
    %v5240 = vadd.f32 0.0, %v5239
    %v5241 = vpop.f32.mrf.mxu0
    %v5242 = vpop.f32.mrf.mxu0
    %5243 = vdwg.mxu0
    %5244 = vmatprep.subr.bf16.mxu0 %v2512
    %5245 = vmatpush1.bf16.msra.mxu0 %v2511
    %5246 = vmatprep.subr.bf16.mxu0 %v2504
    %5247 = vmatpush1.bf16.msra.mxu0 %v2503
    %5248 = vmatprep.subr.bf16.mxu0 %v2496
    %5249 = vmatpush1.bf16.msra.mxu0 %v2495
    %5250 = vmatprep.subr.bf16.mxu0 %v2488
    %5251 = vmatpush1.bf16.msra.mxu0 %v2487
    %5252 = vmatprep.subr.bf16.mxu0 %v2480
    %5253 = vmatpush1.bf16.msra.mxu0 %v2479
    %5254 = vmatprep.subr.bf16.mxu0 %v2472
    %5255 = vmatpush1.bf16.msra.mxu0 %v2471
    %5256 = vmatprep.subr.bf16.mxu0 %v2464
    %5257 = vmatpush1.bf16.msra.mxu0 %v2463
    %5258 = vmatprep.subr.bf16.mxu0 %v2456
    %5259 = vmatpush1.bf16.msra.mxu0 %v2455
    %5260 = vmatprep.subr.bf16.mxu0 %v2576
    %5261 = vmatpush2.bf16.msra.mxu0 %v2575
    %5262 = vmatprep.subr.bf16.mxu0 %v2568
    %5263 = vmatpush2.bf16.msra.mxu0 %v2567
    %5264 = vmatprep.subr.bf16.mxu0 %v2560
    %5265 = vmatpush2.bf16.msra.mxu0 %v2559
    %5266 = vmatprep.subr.bf16.mxu0 %v2552
    %5267 = vmatpush2.bf16.msra.mxu0 %v2551
    %5268 = vmatprep.subr.bf16.mxu0 %v2544
    %5269 = vmatpush2.bf16.msra.mxu0 %v2543
    %5270 = vmatprep.subr.bf16.mxu0 %v2536
    %5271 = vmatpush2.bf16.msra.mxu0 %v2535
    %5272 = vmatprep.subr.bf16.mxu0 %v2528
    %5273 = vmatpush2.bf16.msra.mxu0 %v2527
    %5274 = vmatprep.subr.bf16.mxu0 %v2520
    %5275 = vmatpush2.bf16.msra.mxu0 %v2519
    %5276 = vmatprep.mubr.bf16.mxu0 %v5202
    %5277 = vmatmul.mubr.bf16.gmra.mxu0 %v5201
    %v5278 = vpop.f32.mrf.mxu0
    %v5279 = vadd.f32 0.0, %v5278
    %v5280 = vpop.f32.mrf.mxu0
    %v5281 = vadd.f32 0.0, %v5280
    %v5282 = vpop.f32.mrf.mxu0
    %v5283 = vpop.f32.mrf.mxu0
    %5284 = vdwg.mxu0
    %5285 = vmatprep.subr.bf16.mxu0 %v2514
    %5286 = vmatpush1.bf16.msra.mxu0 %v2513
    %5287 = vmatprep.subr.bf16.mxu0 %v2506
    %5288 = vmatpush1.bf16.msra.mxu0 %v2505
    %5289 = vmatprep.subr.bf16.mxu0 %v2498
    %5290 = vmatpush1.bf16.msra.mxu0 %v2497
    %5291 = vmatprep.subr.bf16.mxu0 %v2490
    %5292 = vmatpush1.bf16.msra.mxu0 %v2489
    %5293 = vmatprep.subr.bf16.mxu0 %v2482
    %5294 = vmatpush1.bf16.msra.mxu0 %v2481
    %5295 = vmatprep.subr.bf16.mxu0 %v2474
    %5296 = vmatpush1.bf16.msra.mxu0 %v2473
    %5297 = vmatprep.subr.bf16.mxu0 %v2466
    %5298 = vmatpush1.bf16.msra.mxu0 %v2465
    %5299 = vmatprep.subr.bf16.mxu0 %v2458
    %5300 = vmatpush1.bf16.msra.mxu0 %v2457
    %5301 = vmatprep.subr.bf16.mxu0 %v2578
    %5302 = vmatpush2.bf16.msra.mxu0 %v2577
    %5303 = vmatprep.subr.bf16.mxu0 %v2570
    %5304 = vmatpush2.bf16.msra.mxu0 %v2569
    %5305 = vmatprep.subr.bf16.mxu0 %v2562
    %5306 = vmatpush2.bf16.msra.mxu0 %v2561
    %5307 = vmatprep.subr.bf16.mxu0 %v2554
    %5308 = vmatpush2.bf16.msra.mxu0 %v2553
    %5309 = vmatprep.subr.bf16.mxu0 %v2546
    %5310 = vmatpush2.bf16.msra.mxu0 %v2545
    %5311 = vmatprep.subr.bf16.mxu0 %v2538
    %5312 = vmatpush2.bf16.msra.mxu0 %v2537
    %5313 = vmatprep.subr.bf16.mxu0 %v2530
    %5314 = vmatpush2.bf16.msra.mxu0 %v2529
    %5315 = vmatprep.subr.bf16.mxu0 %v2522
    %5316 = vmatpush2.bf16.msra.mxu0 %v2521
    %5317 = vmatprep.mubr.bf16.mxu0 %v5202
    %5318 = vmatmul.mubr.bf16.gmra.mxu0 %v5201
    %v5319 = vpop.f32.mrf.mxu0
    %v5320 = vadd.f32 0.0, %v5319
    %v5321 = vpop.f32.mrf.mxu0
    %v5322 = vadd.f32 0.0, %v5321
    %v5323 = vpop.f32.mrf.mxu0
    %v5324 = vpop.f32.mrf.mxu0
    %5325 = vdwg.mxu0
    %5326 = vmatprep.subr.bf16.mxu0 %v2516
    %5327 = vmatpush1.bf16.msra.mxu0 %v2515
    %5328 = vmatprep.subr.bf16.mxu0 %v2508
    %5329 = vmatpush1.bf16.msra.mxu0 %v2507
    %5330 = vmatprep.subr.bf16.mxu0 %v2500
    %5331 = vmatpush1.bf16.msra.mxu0 %v2499
    %5332 = vmatprep.subr.bf16.mxu0 %v2492
    %5333 = vmatpush1.bf16.msra.mxu0 %v2491
    %5334 = vmatprep.subr.bf16.mxu0 %v2484
    %5335 = vmatpush1.bf16.msra.mxu0 %v2483
    %5336 = vmatprep.subr.bf16.mxu0 %v2476
    %5337 = vmatpush1.bf16.msra.mxu0 %v2475
    %5338 = vmatprep.subr.bf16.mxu0 %v2468
    %5339 = vmatpush1.bf16.msra.mxu0 %v2467
    %5340 = vmatprep.subr.bf16.mxu0 %v2460
    %5341 = vmatpush1.bf16.msra.mxu0 %v2459
    %5342 = vmatprep.subr.bf16.mxu0 %v2580
    %5343 = vmatpush2.bf16.msra.mxu0 %v2579
    %5344 = vmatprep.subr.bf16.mxu0 %v2572
    %5345 = vmatpush2.bf16.msra.mxu0 %v2571
    %5346 = vmatprep.subr.bf16.mxu0 %v2564
    %5347 = vmatpush2.bf16.msra.mxu0 %v2563
    %5348 = vmatprep.subr.bf16.mxu0 %v2556
    %5349 = vmatpush2.bf16.msra.mxu0 %v2555
    %5350 = vmatprep.subr.bf16.mxu0 %v2548
    %5351 = vmatpush2.bf16.msra.mxu0 %v2547
    %5352 = vmatprep.subr.bf16.mxu0 %v2540
    %5353 = vmatpush2.bf16.msra.mxu0 %v2539
    %5354 = vmatprep.subr.bf16.mxu0 %v2532
    %5355 = vmatpush2.bf16.msra.mxu0 %v2531
    %5356 = vmatprep.subr.bf16.mxu0 %v2524
    %5357 = vmatpush2.bf16.msra.mxu0 %v2523
    %5358 = vmatprep.mubr.bf16.mxu0 %v5202
    %5359 = vmatmul.mubr.bf16.gmra.mxu0 %v5201
    %v5360 = vpop.f32.mrf.mxu0
    %v5361 = vadd.f32 0.0, %v5360
    %v5362 = vpop.f32.mrf.mxu0
    %v5363 = vadd.f32 0.0, %v5362
    %v5364 = vpop.f32.mrf.mxu0
    %v5365 = vpop.f32.mrf.mxu0
    %5366 = vdwg.mxu0
    %v5367 = vadd.f32 %v5193, %v5238
    %v5368 = vadd.f32 %v5194, %v5240
    %v5369 = vadd.f32 %v5195, %v5279
    %v5370 = vadd.f32 %v5196, %v5281
    %v5371 = vadd.f32 %v5197, %v5320
    %v5372 = vadd.f32 %v5198, %v5322
    %v5373 = vadd.f32 %v5199, %v5361
    %v5374 = vadd.f32 %v5200, %v5363
    %v5375 = vxor.u32 %v5367, 2147483648
    %v5376 = vxor.u32 %v5368, 2147483648
    %v5377 = vxor.u32 %v5369, 2147483648
    %v5378 = vxor.u32 %v5370, 2147483648
    %v5379 = vxor.u32 %v5371, 2147483648
    %v5380 = vxor.u32 %v5372, 2147483648
    %v5381 = vmul.f32 %v5375, 1.442695
    %v5382 = vpow.pop %v5381
    %v5383 = vmul.f32 %v5376, 1.442695
    %v5384 = vpow.pop %v5383
    %v5385 = vmul.f32 %v5377, 1.442695
    %v5386 = vpow.pop %v5385
    %v5387 = vmul.f32 %v5378, 1.442695
    %v5388 = vpow.pop %v5387
    %v5389 = vmul.f32 %v5379, 1.442695
    %v5390 = vpow.pop %v5389
    %v5391 = vmul.f32 %v5380, 1.442695
    %v5392 = vpow.pop %v5391
    %v5393 = vadd.f32 %v5382, 1.0
    %v5394 = vadd.f32 %v5384, 1.0
    %v5395 = vadd.f32 %v5386, 1.0
    %v5396 = vadd.f32 %v5388, 1.0
    %v5397 = vadd.f32 %v5390, 1.0
    %v5398 = vadd.f32 %v5392, 1.0
    %v5399 = vrcp.pop %v5393
    %v5400 = vmul.f32 1.0, %v5399
    %v5401 = vrcp.pop %v5394
    %v5402 = vmul.f32 1.0, %v5401
    %v5403 = vrcp.pop %v5395
    %v5404 = vmul.f32 1.0, %v5403
    %v5405 = vrcp.pop %v5396
    %v5406 = vmul.f32 1.0, %v5405
    %v5407 = vrcp.pop %v5397
    %v5408 = vmul.f32 1.0, %v5407
    %v5409 = vrcp.pop %v5398
    %v5410 = vmul.f32 1.0, %v5409
    %v5411 = vtanh.pop %v5373
    %v5412 = vtanh.pop %v5374
    %v5413 = vmul.f32 %v5404, %v4953
    %v5414 = vmul.f32 %v5406, %v4954
    %v5415 = vmul.f32 %v5400, %v5411
    %v5416 = vmul.f32 %v5402, %v5412
    %v5417 = vadd.f32 %v5413, %v5415
    %v5418 = vadd.f32 %v5414, %v5416
    %v5419 = vtanh.pop %v5417
    %v5420 = vtanh.pop %v5418
    %v5421 = vmul.f32 %v5408, %v5419
    %v5422 = vmul.f32 %v5410, %v5420
    %5423 = vst [vmem:[#allocation3 + $0x80] sm:$0xff] %v5421
    %5424 = vst [vmem:[#allocation3 + $0x88] sm:$0xff] %v5422
    %v5425 = vld [vmem:[#allocation2 + $0x1c0] sm:$0xff]
    %v5426 = vld [vmem:[#allocation2 + $0x1c8] sm:$0xff]
    %v5427 = vld [vmem:[#allocation2 + $0x1d0] sm:$0xff]
    %v5428 = vld [vmem:[#allocation2 + $0x1d8] sm:$0xff]
    %v5429 = vld [vmem:[#allocation2 + $0x1e0] sm:$0xff]
    %v5430 = vld [vmem:[#allocation2 + $0x1e8] sm:$0xff]
    %v5431 = vld [vmem:[#allocation2 + $0x1f0] sm:$0xff]
    %v5432 = vld [vmem:[#allocation2 + $0x1f8] sm:$0xff]
    %v5433 = vpack.c.bf16 %v5189, %v5189
    %v5434 = vpack.c.bf16 %v5190, %v5190
    %5435 = vmatprep.subr.bf16.mxu0 %v3380
    %5436 = vmatpush1.bf16.msra.mxu0 %v3379
    %5437 = vmatprep.subr.bf16.mxu0 %v3372
    %5438 = vmatpush1.bf16.msra.mxu0 %v3371
    %5439 = vmatprep.subr.bf16.mxu0 %v3364
    %5440 = vmatpush1.bf16.msra.mxu0 %v3363
    %5441 = vmatprep.subr.bf16.mxu0 %v3356
    %5442 = vmatpush1.bf16.msra.mxu0 %v3355
    %5443 = vmatprep.subr.bf16.mxu0 %v3348
    %5444 = vmatpush1.bf16.msra.mxu0 %v3347
    %5445 = vmatprep.subr.bf16.mxu0 %v3340
    %5446 = vmatpush1.bf16.msra.mxu0 %v3339
    %5447 = vmatprep.subr.bf16.mxu0 %v3332
    %5448 = vmatpush1.bf16.msra.mxu0 %v3331
    %5449 = vmatprep.subr.bf16.mxu0 %v3324
    %5450 = vmatpush1.bf16.msra.mxu0 %v3323
    %5451 = vmatprep.subr.bf16.mxu0 %v3444
    %5452 = vmatpush2.bf16.msra.mxu0 %v3443
    %5453 = vmatprep.subr.bf16.mxu0 %v3436
    %5454 = vmatpush2.bf16.msra.mxu0 %v3435
    %5455 = vmatprep.subr.bf16.mxu0 %v3428
    %5456 = vmatpush2.bf16.msra.mxu0 %v3427
    %5457 = vmatprep.subr.bf16.mxu0 %v3420
    %5458 = vmatpush2.bf16.msra.mxu0 %v3419
    %5459 = vmatprep.subr.bf16.mxu0 %v3412
    %5460 = vmatpush2.bf16.msra.mxu0 %v3411
    %5461 = vmatprep.subr.bf16.mxu0 %v3404
    %5462 = vmatpush2.bf16.msra.mxu0 %v3403
    %5463 = vmatprep.subr.bf16.mxu0 %v3396
    %5464 = vmatpush2.bf16.msra.mxu0 %v3395
    %5465 = vmatprep.subr.bf16.mxu0 %v3388
    %5466 = vmatpush2.bf16.msra.mxu0 %v3387
    %5467 = vmatprep.mubr.bf16.mxu0 %v5434
    %5468 = vmatmul.mubr.bf16.gmra.mxu0 %v5433
    %v5469 = vpop.f32.mrf.mxu0
    %v5470 = vadd.f32 0.0, %v5469
    %v5471 = vpop.f32.mrf.mxu0
    %v5472 = vadd.f32 0.0, %v5471
    %v5473 = vpop.f32.mrf.mxu0
    %v5474 = vpop.f32.mrf.mxu0
    %5475 = vdwg.mxu0
    %5476 = vmatprep.subr.bf16.mxu0 %v3382
    %5477 = vmatpush1.bf16.msra.mxu0 %v3381
    %5478 = vmatprep.subr.bf16.mxu0 %v3374
    %5479 = vmatpush1.bf16.msra.mxu0 %v3373
    %5480 = vmatprep.subr.bf16.mxu0 %v3366
    %5481 = vmatpush1.bf16.msra.mxu0 %v3365
    %5482 = vmatprep.subr.bf16.mxu0 %v3358
    %5483 = vmatpush1.bf16.msra.mxu0 %v3357
    %5484 = vmatprep.subr.bf16.mxu0 %v3350
    %5485 = vmatpush1.bf16.msra.mxu0 %v3349
    %5486 = vmatprep.subr.bf16.mxu0 %v3342
    %5487 = vmatpush1.bf16.msra.mxu0 %v3341
    %5488 = vmatprep.subr.bf16.mxu0 %v3334
    %5489 = vmatpush1.bf16.msra.mxu0 %v3333
    %5490 = vmatprep.subr.bf16.mxu0 %v3326
    %5491 = vmatpush1.bf16.msra.mxu0 %v3325
    %5492 = vmatprep.subr.bf16.mxu0 %v3446
    %5493 = vmatpush2.bf16.msra.mxu0 %v3445
    %5494 = vmatprep.subr.bf16.mxu0 %v3438
    %5495 = vmatpush2.bf16.msra.mxu0 %v3437
    %5496 = vmatprep.subr.bf16.mxu0 %v3430
    %5497 = vmatpush2.bf16.msra.mxu0 %v3429
    %5498 = vmatprep.subr.bf16.mxu0 %v3422
    %5499 = vmatpush2.bf16.msra.mxu0 %v3421
    %5500 = vmatprep.subr.bf16.mxu0 %v3414
    %5501 = vmatpush2.bf16.msra.mxu0 %v3413
    %5502 = vmatprep.subr.bf16.mxu0 %v3406
    %5503 = vmatpush2.bf16.msra.mxu0 %v3405
    %5504 = vmatprep.subr.bf16.mxu0 %v3398
    %5505 = vmatpush2.bf16.msra.mxu0 %v3397
    %5506 = vmatprep.subr.bf16.mxu0 %v3390
    %5507 = vmatpush2.bf16.msra.mxu0 %v3389
    %5508 = vmatprep.mubr.bf16.mxu0 %v5434
    %5509 = vmatmul.mubr.bf16.gmra.mxu0 %v5433
    %v5510 = vpop.f32.mrf.mxu0
    %v5511 = vadd.f32 0.0, %v5510
    %v5512 = vpop.f32.mrf.mxu0
    %v5513 = vadd.f32 0.0, %v5512
    %v5514 = vpop.f32.mrf.mxu0
    %v5515 = vpop.f32.mrf.mxu0
    %5516 = vdwg.mxu0
    %5517 = vmatprep.subr.bf16.mxu0 %v3384
    %5518 = vmatpush1.bf16.msra.mxu0 %v3383
    %5519 = vmatprep.subr.bf16.mxu0 %v3376
    %5520 = vmatpush1.bf16.msra.mxu0 %v3375
    %5521 = vmatprep.subr.bf16.mxu0 %v3368
    %5522 = vmatpush1.bf16.msra.mxu0 %v3367
    %5523 = vmatprep.subr.bf16.mxu0 %v3360
    %5524 = vmatpush1.bf16.msra.mxu0 %v3359
    %5525 = vmatprep.subr.bf16.mxu0 %v3352
    %5526 = vmatpush1.bf16.msra.mxu0 %v3351
    %5527 = vmatprep.subr.bf16.mxu0 %v3344
    %5528 = vmatpush1.bf16.msra.mxu0 %v3343
    %5529 = vmatprep.subr.bf16.mxu0 %v3336
    %5530 = vmatpush1.bf16.msra.mxu0 %v3335
    %5531 = vmatprep.subr.bf16.mxu0 %v3328
    %5532 = vmatpush1.bf16.msra.mxu0 %v3327
    %5533 = vmatprep.subr.bf16.mxu0 %v3448
    %5534 = vmatpush2.bf16.msra.mxu0 %v3447
    %5535 = vmatprep.subr.bf16.mxu0 %v3440
    %5536 = vmatpush2.bf16.msra.mxu0 %v3439
    %5537 = vmatprep.subr.bf16.mxu0 %v3432
    %5538 = vmatpush2.bf16.msra.mxu0 %v3431
    %5539 = vmatprep.subr.bf16.mxu0 %v3424
    %5540 = vmatpush2.bf16.msra.mxu0 %v3423
    %5541 = vmatprep.subr.bf16.mxu0 %v3416
    %5542 = vmatpush2.bf16.msra.mxu0 %v3415
    %5543 = vmatprep.subr.bf16.mxu0 %v3408
    %5544 = vmatpush2.bf16.msra.mxu0 %v3407
    %5545 = vmatprep.subr.bf16.mxu0 %v3400
    %5546 = vmatpush2.bf16.msra.mxu0 %v3399
    %5547 = vmatprep.subr.bf16.mxu0 %v3392
    %5548 = vmatpush2.bf16.msra.mxu0 %v3391
    %5549 = vmatprep.mubr.bf16.mxu0 %v5434
    %5550 = vmatmul.mubr.bf16.gmra.mxu0 %v5433
    %v5551 = vpop.f32.mrf.mxu0
    %v5552 = vadd.f32 0.0, %v5551
    %v5553 = vpop.f32.mrf.mxu0
    %v5554 = vadd.f32 0.0, %v5553
    %v5555 = vpop.f32.mrf.mxu0
    %v5556 = vpop.f32.mrf.mxu0
    %5557 = vdwg.mxu0
    %5558 = vmatprep.subr.bf16.mxu0 %v3386
    %5559 = vmatpush1.bf16.msra.mxu0 %v3385
    %5560 = vmatprep.subr.bf16.mxu0 %v3378
    %5561 = vmatpush1.bf16.msra.mxu0 %v3377
    %5562 = vmatprep.subr.bf16.mxu0 %v3370
    %5563 = vmatpush1.bf16.msra.mxu0 %v3369
    %5564 = vmatprep.subr.bf16.mxu0 %v3362
    %5565 = vmatpush1.bf16.msra.mxu0 %v3361
    %5566 = vmatprep.subr.bf16.mxu0 %v3354
    %5567 = vmatpush1.bf16.msra.mxu0 %v3353
    %5568 = vmatprep.subr.bf16.mxu0 %v3346
    %5569 = vmatpush1.bf16.msra.mxu0 %v3345
    %5570 = vmatprep.subr.bf16.mxu0 %v3338
    %5571 = vmatpush1.bf16.msra.mxu0 %v3337
    %5572 = vmatprep.subr.bf16.mxu0 %v3330
    %5573 = vmatpush1.bf16.msra.mxu0 %v3329
    %5574 = vmatprep.subr.bf16.mxu0 %v3450
    %5575 = vmatpush2.bf16.msra.mxu0 %v3449
    %5576 = vmatprep.subr.bf16.mxu0 %v3442
    %5577 = vmatpush2.bf16.msra.mxu0 %v3441
    %5578 = vmatprep.subr.bf16.mxu0 %v3434
    %5579 = vmatpush2.bf16.msra.mxu0 %v3433
    %5580 = vmatprep.subr.bf16.mxu0 %v3426
    %5581 = vmatpush2.bf16.msra.mxu0 %v3425
    %5582 = vmatprep.subr.bf16.mxu0 %v3418
    %5583 = vmatpush2.bf16.msra.mxu0 %v3417
    %5584 = vmatprep.subr.bf16.mxu0 %v3410
    %5585 = vmatpush2.bf16.msra.mxu0 %v3409
    %5586 = vmatprep.subr.bf16.mxu0 %v3402
    %5587 = vmatpush2.bf16.msra.mxu0 %v3401
    %5588 = vmatprep.subr.bf16.mxu0 %v3394
    %5589 = vmatpush2.bf16.msra.mxu0 %v3393
    %5590 = vmatprep.mubr.bf16.mxu0 %v5434
    %5591 = vmatmul.mubr.bf16.gmra.mxu0 %v5433
    %v5592 = vpop.f32.mrf.mxu0
    %v5593 = vadd.f32 0.0, %v5592
    %v5594 = vpop.f32.mrf.mxu0
    %v5595 = vadd.f32 0.0, %v5594
    %v5596 = vpop.f32.mrf.mxu0
    %v5597 = vpop.f32.mrf.mxu0
    %5598 = vdwg.mxu0
    %v5599 = vadd.f32 %v5425, %v5470
    %v5600 = vadd.f32 %v5426, %v5472
    %v5601 = vadd.f32 %v5427, %v5511
    %v5602 = vadd.f32 %v5428, %v5513
    %v5603 = vadd.f32 %v5429, %v5552
    %v5604 = vadd.f32 %v5430, %v5554
    %v5605 = vadd.f32 %v5431, %v5593
    %v5606 = vadd.f32 %v5432, %v5595
    %v5607 = vxor.u32 %v5599, 2147483648
    %v5608 = vxor.u32 %v5600, 2147483648
    %v5609 = vxor.u32 %v5601, 2147483648
    %v5610 = vxor.u32 %v5602, 2147483648
    %v5611 = vxor.u32 %v5603, 2147483648
    %v5612 = vxor.u32 %v5604, 2147483648
    %v5613 = vmul.f32 %v5607, 1.442695
    %v5614 = vpow.pop %v5613
    %v5615 = vmul.f32 %v5608, 1.442695
    %v5616 = vpow.pop %v5615
    %v5617 = vmul.f32 %v5609, 1.442695
    %v5618 = vpow.pop %v5617
    %v5619 = vmul.f32 %v5610, 1.442695
    %v5620 = vpow.pop %v5619
    %v5621 = vmul.f32 %v5611, 1.442695
    %v5622 = vpow.pop %v5621
    %v5623 = vmul.f32 %v5612, 1.442695
    %v5624 = vpow.pop %v5623
    %v5625 = vadd.f32 %v5614, 1.0
    %v5626 = vadd.f32 %v5616, 1.0
    %v5627 = vadd.f32 %v5618, 1.0
    %v5628 = vadd.f32 %v5620, 1.0
    %v5629 = vadd.f32 %v5622, 1.0
    %v5630 = vadd.f32 %v5624, 1.0
    %v5631 = vrcp.pop %v5625
    %v5632 = vmul.f32 1.0, %v5631
    %v5633 = vrcp.pop %v5626
    %v5634 = vmul.f32 1.0, %v5633
    %v5635 = vrcp.pop %v5627
    %v5636 = vmul.f32 1.0, %v5635
    %v5637 = vrcp.pop %v5628
    %v5638 = vmul.f32 1.0, %v5637
    %v5639 = vrcp.pop %v5629
    %v5640 = vmul.f32 1.0, %v5639
    %v5641 = vrcp.pop %v5630
    %v5642 = vmul.f32 1.0, %v5641
    %v5643 = vtanh.pop %v5605
    %v5644 = vtanh.pop %v5606
    %v5645 = vmul.f32 %v5636, %v5185
    %v5646 = vmul.f32 %v5638, %v5186
    %v5647 = vmul.f32 %v5632, %v5643
    %v5648 = vmul.f32 %v5634, %v5644
    %v5649 = vadd.f32 %v5645, %v5647
    %v5650 = vadd.f32 %v5646, %v5648
    %v5651 = vtanh.pop %v5649
    %v5652 = vtanh.pop %v5650
    %v5653 = vmul.f32 %v5640, %v5651
    %v5654 = vmul.f32 %v5642, %v5652
    %5655 = vst [vmem:[#allocation3 + $0x70] sm:$0xff] %v5653
    %5656 = vst [vmem:[#allocation3 + $0x78] sm:$0xff] %v5654
    %v5657 = vld [vmem:[#allocation2 + $0x280] sm:$0xff]
    %v5658 = vld [vmem:[#allocation2 + $0x288] sm:$0xff]
    %v5659 = vld [vmem:[#allocation2 + $0x290] sm:$0xff]
    %v5660 = vld [vmem:[#allocation2 + $0x298] sm:$0xff]
    %v5661 = vld [vmem:[#allocation2 + $0x2a0] sm:$0xff]
    %v5662 = vld [vmem:[#allocation2 + $0x2a8] sm:$0xff]
    %v5663 = vld [vmem:[#allocation2 + $0x2b0] sm:$0xff]
    %v5664 = vld [vmem:[#allocation2 + $0x2b8] sm:$0xff]
    %v5665 = vpack.c.bf16 %v5421, %v5421
    %v5666 = vpack.c.bf16 %v5422, %v5422
    %5667 = vmatprep.subr.bf16.mxu0 %v2510
    %5668 = vmatpush1.bf16.msra.mxu0 %v2509
    %5669 = vmatprep.subr.bf16.mxu0 %v2502
    %5670 = vmatpush1.bf16.msra.mxu0 %v2501
    %5671 = vmatprep.subr.bf16.mxu0 %v2494
    %5672 = vmatpush1.bf16.msra.mxu0 %v2493
    %5673 = vmatprep.subr.bf16.mxu0 %v2486
    %5674 = vmatpush1.bf16.msra.mxu0 %v2485
    %5675 = vmatprep.subr.bf16.mxu0 %v2478
    %5676 = vmatpush1.bf16.msra.mxu0 %v2477
    %5677 = vmatprep.subr.bf16.mxu0 %v2470
    %5678 = vmatpush1.bf16.msra.mxu0 %v2469
    %5679 = vmatprep.subr.bf16.mxu0 %v2462
    %5680 = vmatpush1.bf16.msra.mxu0 %v2461
    %5681 = vmatprep.subr.bf16.mxu0 %v2454
    %5682 = vmatpush1.bf16.msra.mxu0 %v2453
    %5683 = vmatprep.subr.bf16.mxu0 %v2574
    %5684 = vmatpush2.bf16.msra.mxu0 %v2573
    %5685 = vmatprep.subr.bf16.mxu0 %v2566
    %5686 = vmatpush2.bf16.msra.mxu0 %v2565
    %5687 = vmatprep.subr.bf16.mxu0 %v2558
    %5688 = vmatpush2.bf16.msra.mxu0 %v2557
    %5689 = vmatprep.subr.bf16.mxu0 %v2550
    %5690 = vmatpush2.bf16.msra.mxu0 %v2549
    %5691 = vmatprep.subr.bf16.mxu0 %v2542
    %5692 = vmatpush2.bf16.msra.mxu0 %v2541
    %5693 = vmatprep.subr.bf16.mxu0 %v2534
    %5694 = vmatpush2.bf16.msra.mxu0 %v2533
    %5695 = vmatprep.subr.bf16.mxu0 %v2526
    %5696 = vmatpush2.bf16.msra.mxu0 %v2525
    %5697 = vmatprep.subr.bf16.mxu0 %v2518
    %5698 = vmatpush2.bf16.msra.mxu0 %v2517
    %5699 = vmatprep.mubr.bf16.mxu0 %v5666
    %5700 = vmatmul.mubr.bf16.gmra.mxu0 %v5665
    %v5701 = vpop.f32.mrf.mxu0
    %v5702 = vadd.f32 0.0, %v5701
    %v5703 = vpop.f32.mrf.mxu0
    %v5704 = vadd.f32 0.0, %v5703
    %v5705 = vpop.f32.mrf.mxu0
    %v5706 = vpop.f32.mrf.mxu0
    %5707 = vdwg.mxu0
    %5708 = vmatprep.subr.bf16.mxu0 %v2512
    %5709 = vmatpush1.bf16.msra.mxu0 %v2511
    %5710 = vmatprep.subr.bf16.mxu0 %v2504
    %5711 = vmatpush1.bf16.msra.mxu0 %v2503
    %5712 = vmatprep.subr.bf16.mxu0 %v2496
    %5713 = vmatpush1.bf16.msra.mxu0 %v2495
    %5714 = vmatprep.subr.bf16.mxu0 %v2488
    %5715 = vmatpush1.bf16.msra.mxu0 %v2487
    %5716 = vmatprep.subr.bf16.mxu0 %v2480
    %5717 = vmatpush1.bf16.msra.mxu0 %v2479
    %5718 = vmatprep.subr.bf16.mxu0 %v2472
    %5719 = vmatpush1.bf16.msra.mxu0 %v2471
    %5720 = vmatprep.subr.bf16.mxu0 %v2464
    %5721 = vmatpush1.bf16.msra.mxu0 %v2463
    %5722 = vmatprep.subr.bf16.mxu0 %v2456
    %5723 = vmatpush1.bf16.msra.mxu0 %v2455
    %5724 = vmatprep.subr.bf16.mxu0 %v2576
    %5725 = vmatpush2.bf16.msra.mxu0 %v2575
    %5726 = vmatprep.subr.bf16.mxu0 %v2568
    %5727 = vmatpush2.bf16.msra.mxu0 %v2567
    %5728 = vmatprep.subr.bf16.mxu0 %v2560
    %5729 = vmatpush2.bf16.msra.mxu0 %v2559
    %5730 = vmatprep.subr.bf16.mxu0 %v2552
    %5731 = vmatpush2.bf16.msra.mxu0 %v2551
    %5732 = vmatprep.subr.bf16.mxu0 %v2544
    %5733 = vmatpush2.bf16.msra.mxu0 %v2543
    %5734 = vmatprep.subr.bf16.mxu0 %v2536
    %5735 = vmatpush2.bf16.msra.mxu0 %v2535
    %5736 = vmatprep.subr.bf16.mxu0 %v2528
    %5737 = vmatpush2.bf16.msra.mxu0 %v2527
    %5738 = vmatprep.subr.bf16.mxu0 %v2520
    %5739 = vmatpush2.bf16.msra.mxu0 %v2519
    %5740 = vmatprep.mubr.bf16.mxu0 %v5666
    %5741 = vmatmul.mubr.bf16.gmra.mxu0 %v5665
    %v5742 = vpop.f32.mrf.mxu0
    %v5743 = vadd.f32 0.0, %v5742
    %v5744 = vpop.f32.mrf.mxu0
    %v5745 = vadd.f32 0.0, %v5744
    %v5746 = vpop.f32.mrf.mxu0
    %v5747 = vpop.f32.mrf.mxu0
    %5748 = vdwg.mxu0
    %5749 = vmatprep.subr.bf16.mxu0 %v2514
    %5750 = vmatpush1.bf16.msra.mxu0 %v2513
    %5751 = vmatprep.subr.bf16.mxu0 %v2506
    %5752 = vmatpush1.bf16.msra.mxu0 %v2505
    %5753 = vmatprep.subr.bf16.mxu0 %v2498
    %5754 = vmatpush1.bf16.msra.mxu0 %v2497
    %5755 = vmatprep.subr.bf16.mxu0 %v2490
    %5756 = vmatpush1.bf16.msra.mxu0 %v2489
    %5757 = vmatprep.subr.bf16.mxu0 %v2482
    %5758 = vmatpush1.bf16.msra.mxu0 %v2481
    %5759 = vmatprep.subr.bf16.mxu0 %v2474
    %5760 = vmatpush1.bf16.msra.mxu0 %v2473
    %5761 = vmatprep.subr.bf16.mxu0 %v2466
    %5762 = vmatpush1.bf16.msra.mxu0 %v2465
    %5763 = vmatprep.subr.bf16.mxu0 %v2458
    %5764 = vmatpush1.bf16.msra.mxu0 %v2457
    %5765 = vmatprep.subr.bf16.mxu0 %v2578
    %5766 = vmatpush2.bf16.msra.mxu0 %v2577
    %5767 = vmatprep.subr.bf16.mxu0 %v2570
    %5768 = vmatpush2.bf16.msra.mxu0 %v2569
    %5769 = vmatprep.subr.bf16.mxu0 %v2562
    %5770 = vmatpush2.bf16.msra.mxu0 %v2561
    %5771 = vmatprep.subr.bf16.mxu0 %v2554
    %5772 = vmatpush2.bf16.msra.mxu0 %v2553
    %5773 = vmatprep.subr.bf16.mxu0 %v2546
    %5774 = vmatpush2.bf16.msra.mxu0 %v2545
    %5775 = vmatprep.subr.bf16.mxu0 %v2538
    %5776 = vmatpush2.bf16.msra.mxu0 %v2537
    %5777 = vmatprep.subr.bf16.mxu0 %v2530
    %5778 = vmatpush2.bf16.msra.mxu0 %v2529
    %5779 = vmatprep.subr.bf16.mxu0 %v2522
    %5780 = vmatpush2.bf16.msra.mxu0 %v2521
    %5781 = vmatprep.mubr.bf16.mxu0 %v5666
    %5782 = vmatmul.mubr.bf16.gmra.mxu0 %v5665
    %v5783 = vpop.f32.mrf.mxu0
    %v5784 = vadd.f32 0.0, %v5783
    %v5785 = vpop.f32.mrf.mxu0
    %v5786 = vadd.f32 0.0, %v5785
    %v5787 = vpop.f32.mrf.mxu0
    %v5788 = vpop.f32.mrf.mxu0
    %5789 = vdwg.mxu0
    %5790 = vmatprep.subr.bf16.mxu0 %v2516
    %5791 = vmatpush1.bf16.msra.mxu0 %v2515
    %5792 = vmatprep.subr.bf16.mxu0 %v2508
    %5793 = vmatpush1.bf16.msra.mxu0 %v2507
    %5794 = vmatprep.subr.bf16.mxu0 %v2500
    %5795 = vmatpush1.bf16.msra.mxu0 %v2499
    %5796 = vmatprep.subr.bf16.mxu0 %v2492
    %5797 = vmatpush1.bf16.msra.mxu0 %v2491
    %5798 = vmatprep.subr.bf16.mxu0 %v2484
    %5799 = vmatpush1.bf16.msra.mxu0 %v2483
    %5800 = vmatprep.subr.bf16.mxu0 %v2476
    %5801 = vmatpush1.bf16.msra.mxu0 %v2475
    %5802 = vmatprep.subr.bf16.mxu0 %v2468
    %5803 = vmatpush1.bf16.msra.mxu0 %v2467
    %5804 = vmatprep.subr.bf16.mxu0 %v2460
    %5805 = vmatpush1.bf16.msra.mxu0 %v2459
    %5806 = vmatprep.subr.bf16.mxu0 %v2580
    %5807 = vmatpush2.bf16.msra.mxu0 %v2579
    %5808 = vmatprep.subr.bf16.mxu0 %v2572
    %5809 = vmatpush2.bf16.msra.mxu0 %v2571
    %5810 = vmatprep.subr.bf16.mxu0 %v2564
    %5811 = vmatpush2.bf16.msra.mxu0 %v2563
    %5812 = vmatprep.subr.bf16.mxu0 %v2556
    %5813 = vmatpush2.bf16.msra.mxu0 %v2555
    %5814 = vmatprep.subr.bf16.mxu0 %v2548
    %5815 = vmatpush2.bf16.msra.mxu0 %v2547
    %5816 = vmatprep.subr.bf16.mxu0 %v2540
    %5817 = vmatpush2.bf16.msra.mxu0 %v2539
    %5818 = vmatprep.subr.bf16.mxu0 %v2532
    %5819 = vmatpush2.bf16.msra.mxu0 %v2531
    %5820 = vmatprep.subr.bf16.mxu0 %v2524
    %5821 = vmatpush2.bf16.msra.mxu0 %v2523
    %5822 = vmatprep.mubr.bf16.mxu0 %v5666
    %5823 = vmatmul.mubr.bf16.gmra.mxu0 %v5665
    %v5824 = vpop.f32.mrf.mxu0
    %v5825 = vadd.f32 0.0, %v5824
    %v5826 = vpop.f32.mrf.mxu0
    %v5827 = vadd.f32 0.0, %v5826
    %v5828 = vpop.f32.mrf.mxu0
    %v5829 = vpop.f32.mrf.mxu0
    %5830 = vdwg.mxu0
    %v5831 = vadd.f32 %v5657, %v5702
    %v5832 = vadd.f32 %v5658, %v5704
    %v5833 = vadd.f32 %v5659, %v5743
    %v5834 = vadd.f32 %v5660, %v5745
    %v5835 = vadd.f32 %v5661, %v5784
    %v5836 = vadd.f32 %v5662, %v5786
    %v5837 = vadd.f32 %v5663, %v5825
    %v5838 = vadd.f32 %v5664, %v5827
    %v5839 = vxor.u32 %v5831, 2147483648
    %v5840 = vxor.u32 %v5832, 2147483648
    %v5841 = vxor.u32 %v5833, 2147483648
    %v5842 = vxor.u32 %v5834, 2147483648
    %v5843 = vxor.u32 %v5835, 2147483648
    %v5844 = vxor.u32 %v5836, 2147483648
    %v5845 = vmul.f32 %v5839, 1.442695
    %v5846 = vpow.pop %v5845
    %v5847 = vmul.f32 %v5840, 1.442695
    %v5848 = vpow.pop %v5847
    %v5849 = vmul.f32 %v5841, 1.442695
    %v5850 = vpow.pop %v5849
    %v5851 = vmul.f32 %v5842, 1.442695
    %v5852 = vpow.pop %v5851
    %v5853 = vmul.f32 %v5843, 1.442695
    %v5854 = vpow.pop %v5853
    %v5855 = vmul.f32 %v5844, 1.442695
    %v5856 = vpow.pop %v5855
    %v5857 = vadd.f32 %v5846, 1.0
    %v5858 = vadd.f32 %v5848, 1.0
    %v5859 = vadd.f32 %v5850, 1.0
    %v5860 = vadd.f32 %v5852, 1.0
    %v5861 = vadd.f32 %v5854, 1.0
    %v5862 = vadd.f32 %v5856, 1.0
    %v5863 = vrcp.pop %v5857
    %v5864 = vmul.f32 1.0, %v5863
    %v5865 = vrcp.pop %v5858
    %v5866 = vmul.f32 1.0, %v5865
    %v5867 = vrcp.pop %v5859
    %v5868 = vmul.f32 1.0, %v5867
    %v5869 = vrcp.pop %v5860
    %v5870 = vmul.f32 1.0, %v5869
    %v5871 = vrcp.pop %v5861
    %v5872 = vmul.f32 1.0, %v5871
    %v5873 = vrcp.pop %v5862
    %v5874 = vmul.f32 1.0, %v5873
    %v5875 = vtanh.pop %v5837
    %v5876 = vtanh.pop %v5838
    %v5877 = vmul.f32 %v5868, %v5417
    %v5878 = vmul.f32 %v5870, %v5418
    %v5879 = vmul.f32 %v5864, %v5875
    %v5880 = vmul.f32 %v5866, %v5876
    %v5881 = vadd.f32 %v5877, %v5879
    %v5882 = vadd.f32 %v5878, %v5880
    %v5883 = vtanh.pop %v5881
    %v5884 = vtanh.pop %v5882
    %v5885 = vmul.f32 %v5872, %v5883
    %v5886 = vmul.f32 %v5874, %v5884
    %5887 = vst [vmem:[#allocation3 + $0xa0] sm:$0xff] %v5885
    %5888 = vst [vmem:[#allocation3 + $0xa8] sm:$0xff] %v5886
    %v5889 = vld [vmem:[#allocation2 + $0x140] sm:$0xff]
    %v5890 = vld [vmem:[#allocation2 + $0x148] sm:$0xff]
    %v5891 = vld [vmem:[#allocation2 + $0x150] sm:$0xff]
    %v5892 = vld [vmem:[#allocation2 + $0x158] sm:$0xff]
    %v5893 = vld [vmem:[#allocation2 + $0x160] sm:$0xff]
    %v5894 = vld [vmem:[#allocation2 + $0x168] sm:$0xff]
    %v5895 = vld [vmem:[#allocation2 + $0x170] sm:$0xff]
    %v5896 = vld [vmem:[#allocation2 + $0x178] sm:$0xff]
    %v5897 = vpack.c.bf16 %v5653, %v5653
    %v5898 = vpack.c.bf16 %v5654, %v5654
    %5899 = vmatprep.subr.bf16.mxu0 %v3380
    %5900 = vmatpush1.bf16.msra.mxu0 %v3379
    %5901 = vmatprep.subr.bf16.mxu0 %v3372
    %5902 = vmatpush1.bf16.msra.mxu0 %v3371
    %5903 = vmatprep.subr.bf16.mxu0 %v3364
    %5904 = vmatpush1.bf16.msra.mxu0 %v3363
    %5905 = vmatprep.subr.bf16.mxu0 %v3356
    %5906 = vmatpush1.bf16.msra.mxu0 %v3355
    %5907 = vmatprep.subr.bf16.mxu0 %v3348
    %5908 = vmatpush1.bf16.msra.mxu0 %v3347
    %5909 = vmatprep.subr.bf16.mxu0 %v3340
    %5910 = vmatpush1.bf16.msra.mxu0 %v3339
    %5911 = vmatprep.subr.bf16.mxu0 %v3332
    %5912 = vmatpush1.bf16.msra.mxu0 %v3331
    %5913 = vmatprep.subr.bf16.mxu0 %v3324
    %5914 = vmatpush1.bf16.msra.mxu0 %v3323
    %5915 = vmatprep.subr.bf16.mxu0 %v3444
    %5916 = vmatpush2.bf16.msra.mxu0 %v3443
    %5917 = vmatprep.subr.bf16.mxu0 %v3436
    %5918 = vmatpush2.bf16.msra.mxu0 %v3435
    %5919 = vmatprep.subr.bf16.mxu0 %v3428
    %5920 = vmatpush2.bf16.msra.mxu0 %v3427
    %5921 = vmatprep.subr.bf16.mxu0 %v3420
    %5922 = vmatpush2.bf16.msra.mxu0 %v3419
    %5923 = vmatprep.subr.bf16.mxu0 %v3412
    %5924 = vmatpush2.bf16.msra.mxu0 %v3411
    %5925 = vmatprep.subr.bf16.mxu0 %v3404
    %5926 = vmatpush2.bf16.msra.mxu0 %v3403
    %5927 = vmatprep.subr.bf16.mxu0 %v3396
    %5928 = vmatpush2.bf16.msra.mxu0 %v3395
    %5929 = vmatprep.subr.bf16.mxu0 %v3388
    %5930 = vmatpush2.bf16.msra.mxu0 %v3387
    %5931 = vmatprep.mubr.bf16.mxu0 %v5898
    %5932 = vmatmul.mubr.bf16.gmra.mxu0 %v5897
    %v5933 = vpop.f32.mrf.mxu0
    %v5934 = vadd.f32 0.0, %v5933
    %v5935 = vpop.f32.mrf.mxu0
    %v5936 = vadd.f32 0.0, %v5935
    %v5937 = vpop.f32.mrf.mxu0
    %v5938 = vpop.f32.mrf.mxu0
    %5939 = vdwg.mxu0
    %5940 = vmatprep.subr.bf16.mxu0 %v3382
    %5941 = vmatpush1.bf16.msra.mxu0 %v3381
    %5942 = vmatprep.subr.bf16.mxu0 %v3374
    %5943 = vmatpush1.bf16.msra.mxu0 %v3373
    %5944 = vmatprep.subr.bf16.mxu0 %v3366
    %5945 = vmatpush1.bf16.msra.mxu0 %v3365
    %5946 = vmatprep.subr.bf16.mxu0 %v3358
    %5947 = vmatpush1.bf16.msra.mxu0 %v3357
    %5948 = vmatprep.subr.bf16.mxu0 %v3350
    %5949 = vmatpush1.bf16.msra.mxu0 %v3349
    %5950 = vmatprep.subr.bf16.mxu0 %v3342
    %5951 = vmatpush1.bf16.msra.mxu0 %v3341
    %5952 = vmatprep.subr.bf16.mxu0 %v3334
    %5953 = vmatpush1.bf16.msra.mxu0 %v3333
    %5954 = vmatprep.subr.bf16.mxu0 %v3326
    %5955 = vmatpush1.bf16.msra.mxu0 %v3325
    %5956 = vmatprep.subr.bf16.mxu0 %v3446
    %5957 = vmatpush2.bf16.msra.mxu0 %v3445
    %5958 = vmatprep.subr.bf16.mxu0 %v3438
    %5959 = vmatpush2.bf16.msra.mxu0 %v3437
    %5960 = vmatprep.subr.bf16.mxu0 %v3430
    %5961 = vmatpush2.bf16.msra.mxu0 %v3429
    %5962 = vmatprep.subr.bf16.mxu0 %v3422
    %5963 = vmatpush2.bf16.msra.mxu0 %v3421
    %5964 = vmatprep.subr.bf16.mxu0 %v3414
    %5965 = vmatpush2.bf16.msra.mxu0 %v3413
    %5966 = vmatprep.subr.bf16.mxu0 %v3406
    %5967 = vmatpush2.bf16.msra.mxu0 %v3405
    %5968 = vmatprep.subr.bf16.mxu0 %v3398
    %5969 = vmatpush2.bf16.msra.mxu0 %v3397
    %5970 = vmatprep.subr.bf16.mxu0 %v3390
    %5971 = vmatpush2.bf16.msra.mxu0 %v3389
    %5972 = vmatprep.mubr.bf16.mxu0 %v5898
    %5973 = vmatmul.mubr.bf16.gmra.mxu0 %v5897
    %v5974 = vpop.f32.mrf.mxu0
    %v5975 = vadd.f32 0.0, %v5974
    %v5976 = vpop.f32.mrf.mxu0
    %v5977 = vadd.f32 0.0, %v5976
    %v5978 = vpop.f32.mrf.mxu0
    %v5979 = vpop.f32.mrf.mxu0
    %5980 = vdwg.mxu0
    %5981 = vmatprep.subr.bf16.mxu0 %v3384
    %5982 = vmatpush1.bf16.msra.mxu0 %v3383
    %5983 = vmatprep.subr.bf16.mxu0 %v3376
    %5984 = vmatpush1.bf16.msra.mxu0 %v3375
    %5985 = vmatprep.subr.bf16.mxu0 %v3368
    %5986 = vmatpush1.bf16.msra.mxu0 %v3367
    %5987 = vmatprep.subr.bf16.mxu0 %v3360
    %5988 = vmatpush1.bf16.msra.mxu0 %v3359
    %5989 = vmatprep.subr.bf16.mxu0 %v3352
    %5990 = vmatpush1.bf16.msra.mxu0 %v3351
    %5991 = vmatprep.subr.bf16.mxu0 %v3344
    %5992 = vmatpush1.bf16.msra.mxu0 %v3343
    %5993 = vmatprep.subr.bf16.mxu0 %v3336
    %5994 = vmatpush1.bf16.msra.mxu0 %v3335
    %5995 = vmatprep.subr.bf16.mxu0 %v3328
    %5996 = vmatpush1.bf16.msra.mxu0 %v3327
    %5997 = vmatprep.subr.bf16.mxu0 %v3448
    %5998 = vmatpush2.bf16.msra.mxu0 %v3447
    %5999 = vmatprep.subr.bf16.mxu0 %v3440
    %6000 = vmatpush2.bf16.msra.mxu0 %v3439
    %6001 = vmatprep.subr.bf16.mxu0 %v3432
    %6002 = vmatpush2.bf16.msra.mxu0 %v3431
    %6003 = vmatprep.subr.bf16.mxu0 %v3424
    %6004 = vmatpush2.bf16.msra.mxu0 %v3423
    %6005 = vmatprep.subr.bf16.mxu0 %v3416
    %6006 = vmatpush2.bf16.msra.mxu0 %v3415
    %6007 = vmatprep.subr.bf16.mxu0 %v3408
    %6008 = vmatpush2.bf16.msra.mxu0 %v3407
    %6009 = vmatprep.subr.bf16.mxu0 %v3400
    %6010 = vmatpush2.bf16.msra.mxu0 %v3399
    %6011 = vmatprep.subr.bf16.mxu0 %v3392
    %6012 = vmatpush2.bf16.msra.mxu0 %v3391
    %6013 = vmatprep.mubr.bf16.mxu0 %v5898
    %6014 = vmatmul.mubr.bf16.gmra.mxu0 %v5897
    %v6015 = vpop.f32.mrf.mxu0
    %v6016 = vadd.f32 0.0, %v6015
    %v6017 = vpop.f32.mrf.mxu0
    %v6018 = vadd.f32 0.0, %v6017
    %v6019 = vpop.f32.mrf.mxu0
    %v6020 = vpop.f32.mrf.mxu0
    %6021 = vdwg.mxu0
    %6022 = vmatprep.subr.bf16.mxu0 %v3386
    %6023 = vmatpush1.bf16.msra.mxu0 %v3385
    %6024 = vmatprep.subr.bf16.mxu0 %v3378
    %6025 = vmatpush1.bf16.msra.mxu0 %v3377
    %6026 = vmatprep.subr.bf16.mxu0 %v3370
    %6027 = vmatpush1.bf16.msra.mxu0 %v3369
    %6028 = vmatprep.subr.bf16.mxu0 %v3362
    %6029 = vmatpush1.bf16.msra.mxu0 %v3361
    %6030 = vmatprep.subr.bf16.mxu0 %v3354
    %6031 = vmatpush1.bf16.msra.mxu0 %v3353
    %6032 = vmatprep.subr.bf16.mxu0 %v3346
    %6033 = vmatpush1.bf16.msra.mxu0 %v3345
    %6034 = vmatprep.subr.bf16.mxu0 %v3338
    %6035 = vmatpush1.bf16.msra.mxu0 %v3337
    %6036 = vmatprep.subr.bf16.mxu0 %v3330
    %6037 = vmatpush1.bf16.msra.mxu0 %v3329
    %6038 = vmatprep.subr.bf16.mxu0 %v3450
    %6039 = vmatpush2.bf16.msra.mxu0 %v3449
    %6040 = vmatprep.subr.bf16.mxu0 %v3442
    %6041 = vmatpush2.bf16.msra.mxu0 %v3441
    %6042 = vmatprep.subr.bf16.mxu0 %v3434
    %6043 = vmatpush2.bf16.msra.mxu0 %v3433
    %6044 = vmatprep.subr.bf16.mxu0 %v3426
    %6045 = vmatpush2.bf16.msra.mxu0 %v3425
    %6046 = vmatprep.subr.bf16.mxu0 %v3418
    %6047 = vmatpush2.bf16.msra.mxu0 %v3417
    %6048 = vmatprep.subr.bf16.mxu0 %v3410
    %6049 = vmatpush2.bf16.msra.mxu0 %v3409
    %6050 = vmatprep.subr.bf16.mxu0 %v3402
    %6051 = vmatpush2.bf16.msra.mxu0 %v3401
    %6052 = vmatprep.subr.bf16.mxu0 %v3394
    %6053 = vmatpush2.bf16.msra.mxu0 %v3393
    %6054 = vmatprep.mubr.bf16.mxu0 %v5898
    %6055 = vmatmul.mubr.bf16.gmra.mxu0 %v5897
    %v6056 = vpop.f32.mrf.mxu0
    %v6057 = vadd.f32 0.0, %v6056
    %v6058 = vpop.f32.mrf.mxu0
    %v6059 = vadd.f32 0.0, %v6058
    %v6060 = vpop.f32.mrf.mxu0
    %v6061 = vpop.f32.mrf.mxu0
    %6062 = vdwg.mxu0
    %v6063 = vadd.f32 %v5889, %v5934
    %v6064 = vadd.f32 %v5890, %v5936
    %v6065 = vadd.f32 %v5891, %v5975
    %v6066 = vadd.f32 %v5892, %v5977
    %v6067 = vadd.f32 %v5893, %v6016
    %v6068 = vadd.f32 %v5894, %v6018
    %v6069 = vadd.f32 %v5895, %v6057
    %v6070 = vadd.f32 %v5896, %v6059
    %v6071 = vxor.u32 %v6063, 2147483648
    %v6072 = vxor.u32 %v6064, 2147483648
    %v6073 = vxor.u32 %v6065, 2147483648
    %v6074 = vxor.u32 %v6066, 2147483648
    %v6075 = vxor.u32 %v6067, 2147483648
    %v6076 = vxor.u32 %v6068, 2147483648
    %v6077 = vmul.f32 %v6071, 1.442695
    %v6078 = vpow.pop %v6077
    %v6079 = vmul.f32 %v6072, 1.442695
    %v6080 = vpow.pop %v6079
    %v6081 = vmul.f32 %v6073, 1.442695
    %v6082 = vpow.pop %v6081
    %v6083 = vmul.f32 %v6074, 1.442695
    %v6084 = vpow.pop %v6083
    %v6085 = vmul.f32 %v6075, 1.442695
    %v6086 = vpow.pop %v6085
    %v6087 = vmul.f32 %v6076, 1.442695
    %v6088 = vpow.pop %v6087
    %v6089 = vadd.f32 %v6078, 1.0
    %v6090 = vadd.f32 %v6080, 1.0
    %v6091 = vadd.f32 %v6082, 1.0
    %v6092 = vadd.f32 %v6084, 1.0
    %v6093 = vadd.f32 %v6086, 1.0
    %v6094 = vadd.f32 %v6088, 1.0
    %v6095 = vrcp.pop %v6089
    %v6096 = vmul.f32 1.0, %v6095
    %v6097 = vrcp.pop %v6090
    %v6098 = vmul.f32 1.0, %v6097
    %v6099 = vrcp.pop %v6091
    %v6100 = vmul.f32 1.0, %v6099
    %v6101 = vrcp.pop %v6092
    %v6102 = vmul.f32 1.0, %v6101
    %v6103 = vrcp.pop %v6093
    %v6104 = vmul.f32 1.0, %v6103
    %v6105 = vrcp.pop %v6094
    %v6106 = vmul.f32 1.0, %v6105
    %v6107 = vtanh.pop %v6069
    %v6108 = vtanh.pop %v6070
    %v6109 = vmul.f32 %v6100, %v5649
    %v6110 = vmul.f32 %v6102, %v5650
    %v6111 = vmul.f32 %v6096, %v6107
    %v6112 = vmul.f32 %v6098, %v6108
    %v6113 = vadd.f32 %v6109, %v6111
    %v6114 = vadd.f32 %v6110, %v6112
    %v6115 = vtanh.pop %v6113
    %v6116 = vtanh.pop %v6114
    %v6117 = vmul.f32 %v6104, %v6115
    %v6118 = vmul.f32 %v6106, %v6116
    %6119 = vst [vmem:[#allocation3 + $0x50] sm:$0xff] %v6117
    %6120 = vst [vmem:[#allocation3 + $0x58] sm:$0xff] %v6118
    %v6121 = vld [vmem:[#allocation2 + $0x300] sm:$0xff]
    %v6122 = vld [vmem:[#allocation2 + $0x308] sm:$0xff]
    %v6123 = vld [vmem:[#allocation2 + $0x310] sm:$0xff]
    %v6124 = vld [vmem:[#allocation2 + $0x318] sm:$0xff]
    %v6125 = vld [vmem:[#allocation2 + $0x320] sm:$0xff]
    %v6126 = vld [vmem:[#allocation2 + $0x328] sm:$0xff]
    %v6127 = vld [vmem:[#allocation2 + $0x330] sm:$0xff]
    %v6128 = vld [vmem:[#allocation2 + $0x338] sm:$0xff]
    %v6129 = vpack.c.bf16 %v5885, %v5885
    %v6130 = vpack.c.bf16 %v5886, %v5886
    %6131 = vmatprep.subr.bf16.mxu0 %v2510
    %6132 = vmatpush1.bf16.msra.mxu0 %v2509
    %6133 = vmatprep.subr.bf16.mxu0 %v2502
    %6134 = vmatpush1.bf16.msra.mxu0 %v2501
    %6135 = vmatprep.subr.bf16.mxu0 %v2494
    %6136 = vmatpush1.bf16.msra.mxu0 %v2493
    %6137 = vmatprep.subr.bf16.mxu0 %v2486
    %6138 = vmatpush1.bf16.msra.mxu0 %v2485
    %6139 = vmatprep.subr.bf16.mxu0 %v2478
    %6140 = vmatpush1.bf16.msra.mxu0 %v2477
    %6141 = vmatprep.subr.bf16.mxu0 %v2470
    %6142 = vmatpush1.bf16.msra.mxu0 %v2469
    %6143 = vmatprep.subr.bf16.mxu0 %v2462
    %6144 = vmatpush1.bf16.msra.mxu0 %v2461
    %6145 = vmatprep.subr.bf16.mxu0 %v2454
    %6146 = vmatpush1.bf16.msra.mxu0 %v2453
    %6147 = vmatprep.subr.bf16.mxu0 %v2574
    %6148 = vmatpush2.bf16.msra.mxu0 %v2573
    %6149 = vmatprep.subr.bf16.mxu0 %v2566
    %6150 = vmatpush2.bf16.msra.mxu0 %v2565
    %6151 = vmatprep.subr.bf16.mxu0 %v2558
    %6152 = vmatpush2.bf16.msra.mxu0 %v2557
    %6153 = vmatprep.subr.bf16.mxu0 %v2550
    %6154 = vmatpush2.bf16.msra.mxu0 %v2549
    %6155 = vmatprep.subr.bf16.mxu0 %v2542
    %6156 = vmatpush2.bf16.msra.mxu0 %v2541
    %6157 = vmatprep.subr.bf16.mxu0 %v2534
    %6158 = vmatpush2.bf16.msra.mxu0 %v2533
    %6159 = vmatprep.subr.bf16.mxu0 %v2526
    %6160 = vmatpush2.bf16.msra.mxu0 %v2525
    %6161 = vmatprep.subr.bf16.mxu0 %v2518
    %6162 = vmatpush2.bf16.msra.mxu0 %v2517
    %6163 = vmatprep.mubr.bf16.mxu0 %v6130
    %6164 = vmatmul.mubr.bf16.gmra.mxu0 %v6129
    %v6165 = vpop.f32.mrf.mxu0
    %v6166 = vadd.f32 0.0, %v6165
    %v6167 = vpop.f32.mrf.mxu0
    %v6168 = vadd.f32 0.0, %v6167
    %v6169 = vpop.f32.mrf.mxu0
    %v6170 = vpop.f32.mrf.mxu0
    %6171 = vdwg.mxu0
    %6172 = vmatprep.subr.bf16.mxu0 %v2512
    %6173 = vmatpush1.bf16.msra.mxu0 %v2511
    %6174 = vmatprep.subr.bf16.mxu0 %v2504
    %6175 = vmatpush1.bf16.msra.mxu0 %v2503
    %6176 = vmatprep.subr.bf16.mxu0 %v2496
    %6177 = vmatpush1.bf16.msra.mxu0 %v2495
    %6178 = vmatprep.subr.bf16.mxu0 %v2488
    %6179 = vmatpush1.bf16.msra.mxu0 %v2487
    %6180 = vmatprep.subr.bf16.mxu0 %v2480
    %6181 = vmatpush1.bf16.msra.mxu0 %v2479
    %6182 = vmatprep.subr.bf16.mxu0 %v2472
    %6183 = vmatpush1.bf16.msra.mxu0 %v2471
    %6184 = vmatprep.subr.bf16.mxu0 %v2464
    %6185 = vmatpush1.bf16.msra.mxu0 %v2463
    %6186 = vmatprep.subr.bf16.mxu0 %v2456
    %6187 = vmatpush1.bf16.msra.mxu0 %v2455
    %6188 = vmatprep.subr.bf16.mxu0 %v2576
    %6189 = vmatpush2.bf16.msra.mxu0 %v2575
    %6190 = vmatprep.subr.bf16.mxu0 %v2568
    %6191 = vmatpush2.bf16.msra.mxu0 %v2567
    %6192 = vmatprep.subr.bf16.mxu0 %v2560
    %6193 = vmatpush2.bf16.msra.mxu0 %v2559
    %6194 = vmatprep.subr.bf16.mxu0 %v2552
    %6195 = vmatpush2.bf16.msra.mxu0 %v2551
    %6196 = vmatprep.subr.bf16.mxu0 %v2544
    %6197 = vmatpush2.bf16.msra.mxu0 %v2543
    %6198 = vmatprep.subr.bf16.mxu0 %v2536
    %6199 = vmatpush2.bf16.msra.mxu0 %v2535
    %6200 = vmatprep.subr.bf16.mxu0 %v2528
    %6201 = vmatpush2.bf16.msra.mxu0 %v2527
    %6202 = vmatprep.subr.bf16.mxu0 %v2520
    %6203 = vmatpush2.bf16.msra.mxu0 %v2519
    %6204 = vmatprep.mubr.bf16.mxu0 %v6130
    %6205 = vmatmul.mubr.bf16.gmra.mxu0 %v6129
    %v6206 = vpop.f32.mrf.mxu0
    %v6207 = vadd.f32 0.0, %v6206
    %v6208 = vpop.f32.mrf.mxu0
    %v6209 = vadd.f32 0.0, %v6208
    %v6210 = vpop.f32.mrf.mxu0
    %v6211 = vpop.f32.mrf.mxu0
    %6212 = vdwg.mxu0
    %6213 = vmatprep.subr.bf16.mxu0 %v2514
    %6214 = vmatpush1.bf16.msra.mxu0 %v2513
    %6215 = vmatprep.subr.bf16.mxu0 %v2506
    %6216 = vmatpush1.bf16.msra.mxu0 %v2505
    %6217 = vmatprep.subr.bf16.mxu0 %v2498
    %6218 = vmatpush1.bf16.msra.mxu0 %v2497
    %6219 = vmatprep.subr.bf16.mxu0 %v2490
    %6220 = vmatpush1.bf16.msra.mxu0 %v2489
    %6221 = vmatprep.subr.bf16.mxu0 %v2482
    %6222 = vmatpush1.bf16.msra.mxu0 %v2481
    %6223 = vmatprep.subr.bf16.mxu0 %v2474
    %6224 = vmatpush1.bf16.msra.mxu0 %v2473
    %6225 = vmatprep.subr.bf16.mxu0 %v2466
    %6226 = vmatpush1.bf16.msra.mxu0 %v2465
    %6227 = vmatprep.subr.bf16.mxu0 %v2458
    %6228 = vmatpush1.bf16.msra.mxu0 %v2457
    %6229 = vmatprep.subr.bf16.mxu0 %v2578
    %6230 = vmatpush2.bf16.msra.mxu0 %v2577
    %6231 = vmatprep.subr.bf16.mxu0 %v2570
    %6232 = vmatpush2.bf16.msra.mxu0 %v2569
    %6233 = vmatprep.subr.bf16.mxu0 %v2562
    %6234 = vmatpush2.bf16.msra.mxu0 %v2561
    %6235 = vmatprep.subr.bf16.mxu0 %v2554
    %6236 = vmatpush2.bf16.msra.mxu0 %v2553
    %6237 = vmatprep.subr.bf16.mxu0 %v2546
    %6238 = vmatpush2.bf16.msra.mxu0 %v2545
    %6239 = vmatprep.subr.bf16.mxu0 %v2538
    %6240 = vmatpush2.bf16.msra.mxu0 %v2537
    %6241 = vmatprep.subr.bf16.mxu0 %v2530
    %6242 = vmatpush2.bf16.msra.mxu0 %v2529
    %6243 = vmatprep.subr.bf16.mxu0 %v2522
    %6244 = vmatpush2.bf16.msra.mxu0 %v2521
    %6245 = vmatprep.mubr.bf16.mxu0 %v6130
    %6246 = vmatmul.mubr.bf16.gmra.mxu0 %v6129
    %v6247 = vpop.f32.mrf.mxu0
    %v6248 = vadd.f32 0.0, %v6247
    %v6249 = vpop.f32.mrf.mxu0
    %v6250 = vadd.f32 0.0, %v6249
    %v6251 = vpop.f32.mrf.mxu0
    %v6252 = vpop.f32.mrf.mxu0
    %6253 = vdwg.mxu0
    %6254 = vmatprep.subr.bf16.mxu0 %v2516
    %6255 = vmatpush1.bf16.msra.mxu0 %v2515
    %6256 = vmatprep.subr.bf16.mxu0 %v2508
    %6257 = vmatpush1.bf16.msra.mxu0 %v2507
    %6258 = vmatprep.subr.bf16.mxu0 %v2500
    %6259 = vmatpush1.bf16.msra.mxu0 %v2499
    %6260 = vmatprep.subr.bf16.mxu0 %v2492
    %6261 = vmatpush1.bf16.msra.mxu0 %v2491
    %6262 = vmatprep.subr.bf16.mxu0 %v2484
    %6263 = vmatpush1.bf16.msra.mxu0 %v2483
    %6264 = vmatprep.subr.bf16.mxu0 %v2476
    %6265 = vmatpush1.bf16.msra.mxu0 %v2475
    %6266 = vmatprep.subr.bf16.mxu0 %v2468
    %6267 = vmatpush1.bf16.msra.mxu0 %v2467
    %6268 = vmatprep.subr.bf16.mxu0 %v2460
    %6269 = vmatpush1.bf16.msra.mxu0 %v2459
    %6270 = vmatprep.subr.bf16.mxu0 %v2580
    %6271 = vmatpush2.bf16.msra.mxu0 %v2579
    %6272 = vmatprep.subr.bf16.mxu0 %v2572
    %6273 = vmatpush2.bf16.msra.mxu0 %v2571
    %6274 = vmatprep.subr.bf16.mxu0 %v2564
    %6275 = vmatpush2.bf16.msra.mxu0 %v2563
    %6276 = vmatprep.subr.bf16.mxu0 %v2556
    %6277 = vmatpush2.bf16.msra.mxu0 %v2555
    %6278 = vmatprep.subr.bf16.mxu0 %v2548
    %6279 = vmatpush2.bf16.msra.mxu0 %v2547
    %6280 = vmatprep.subr.bf16.mxu0 %v2540
    %6281 = vmatpush2.bf16.msra.mxu0 %v2539
    %6282 = vmatprep.subr.bf16.mxu0 %v2532
    %6283 = vmatpush2.bf16.msra.mxu0 %v2531
    %6284 = vmatprep.subr.bf16.mxu0 %v2524
    %6285 = vmatpush2.bf16.msra.mxu0 %v2523
    %6286 = vmatprep.mubr.bf16.mxu0 %v6130
    %6287 = vmatmul.mubr.bf16.gmra.mxu0 %v6129
    %v6288 = vpop.f32.mrf.mxu0
    %v6289 = vadd.f32 0.0, %v6288
    %v6290 = vpop.f32.mrf.mxu0
    %v6291 = vadd.f32 0.0, %v6290
    %v6292 = vpop.f32.mrf.mxu0
    %v6293 = vpop.f32.mrf.mxu0
    %6294 = vdwg.mxu0
    %v6295 = vadd.f32 %v6121, %v6166
    %v6296 = vadd.f32 %v6122, %v6168
    %v6297 = vadd.f32 %v6123, %v6207
    %v6298 = vadd.f32 %v6124, %v6209
    %v6299 = vadd.f32 %v6125, %v6248
    %v6300 = vadd.f32 %v6126, %v6250
    %v6301 = vadd.f32 %v6127, %v6289
    %v6302 = vadd.f32 %v6128, %v6291
    %v6303 = vxor.u32 %v6295, 2147483648
    %v6304 = vxor.u32 %v6296, 2147483648
    %v6305 = vxor.u32 %v6297, 2147483648
    %v6306 = vxor.u32 %v6298, 2147483648
    %v6307 = vxor.u32 %v6299, 2147483648
    %v6308 = vxor.u32 %v6300, 2147483648
    %v6309 = vmul.f32 %v6303, 1.442695
    %v6310 = vpow.pop %v6309
    %v6311 = vmul.f32 %v6304, 1.442695
    %v6312 = vpow.pop %v6311
    %v6313 = vmul.f32 %v6305, 1.442695
    %v6314 = vpow.pop %v6313
    %v6315 = vmul.f32 %v6306, 1.442695
    %v6316 = vpow.pop %v6315
    %v6317 = vmul.f32 %v6307, 1.442695
    %v6318 = vpow.pop %v6317
    %v6319 = vmul.f32 %v6308, 1.442695
    %v6320 = vpow.pop %v6319
    %v6321 = vadd.f32 %v6310, 1.0
    %v6322 = vadd.f32 %v6312, 1.0
    %v6323 = vadd.f32 %v6314, 1.0
    %v6324 = vadd.f32 %v6316, 1.0
    %v6325 = vadd.f32 %v6318, 1.0
    %v6326 = vadd.f32 %v6320, 1.0
    %v6327 = vrcp.pop %v6321
    %v6328 = vmul.f32 1.0, %v6327
    %v6329 = vrcp.pop %v6322
    %v6330 = vmul.f32 1.0, %v6329
    %v6331 = vrcp.pop %v6323
    %v6332 = vmul.f32 1.0, %v6331
    %v6333 = vrcp.pop %v6324
    %v6334 = vmul.f32 1.0, %v6333
    %v6335 = vrcp.pop %v6325
    %v6336 = vmul.f32 1.0, %v6335
    %v6337 = vrcp.pop %v6326
    %v6338 = vmul.f32 1.0, %v6337
    %v6339 = vtanh.pop %v6301
    %v6340 = vtanh.pop %v6302
    %v6341 = vmul.f32 %v6332, %v5881
    %v6342 = vmul.f32 %v6334, %v5882
    %v6343 = vmul.f32 %v6328, %v6339
    %v6344 = vmul.f32 %v6330, %v6340
    %v6345 = vadd.f32 %v6341, %v6343
    %v6346 = vadd.f32 %v6342, %v6344
    %v6347 = vtanh.pop %v6345
    %v6348 = vtanh.pop %v6346
    %v6349 = vmul.f32 %v6336, %v6347
    %v6350 = vmul.f32 %v6338, %v6348
    %6351 = vst [vmem:[#allocation3 + $0xc0] sm:$0xff] %v6349
    %6352 = vst [vmem:[#allocation3 + $0xc8] sm:$0xff] %v6350
    %v6353 = vld [vmem:[#allocation2 + $0xc0] sm:$0xff]
    %v6354 = vld [vmem:[#allocation2 + $0xc8] sm:$0xff]
    %v6355 = vld [vmem:[#allocation2 + $0xd0] sm:$0xff]
    %v6356 = vld [vmem:[#allocation2 + $0xd8] sm:$0xff]
    %v6357 = vld [vmem:[#allocation2 + $0xe0] sm:$0xff]
    %v6358 = vld [vmem:[#allocation2 + $0xe8] sm:$0xff]
    %v6359 = vld [vmem:[#allocation2 + $0xf0] sm:$0xff]
    %v6360 = vld [vmem:[#allocation2 + $0xf8] sm:$0xff]
    %v6361 = vpack.c.bf16 %v6117, %v6117
    %v6362 = vpack.c.bf16 %v6118, %v6118
    %6363 = vmatprep.subr.bf16.mxu0 %v3380
    %6364 = vmatpush1.bf16.msra.mxu0 %v3379
    %6365 = vmatprep.subr.bf16.mxu0 %v3372
    %6366 = vmatpush1.bf16.msra.mxu0 %v3371
    %6367 = vmatprep.subr.bf16.mxu0 %v3364
    %6368 = vmatpush1.bf16.msra.mxu0 %v3363
    %6369 = vmatprep.subr.bf16.mxu0 %v3356
    %6370 = vmatpush1.bf16.msra.mxu0 %v3355
    %6371 = vmatprep.subr.bf16.mxu0 %v3348
    %6372 = vmatpush1.bf16.msra.mxu0 %v3347
    %6373 = vmatprep.subr.bf16.mxu0 %v3340
    %6374 = vmatpush1.bf16.msra.mxu0 %v3339
    %6375 = vmatprep.subr.bf16.mxu0 %v3332
    %6376 = vmatpush1.bf16.msra.mxu0 %v3331
    %6377 = vmatprep.subr.bf16.mxu0 %v3324
    %6378 = vmatpush1.bf16.msra.mxu0 %v3323
    %6379 = vmatprep.subr.bf16.mxu0 %v3444
    %6380 = vmatpush2.bf16.msra.mxu0 %v3443
    %6381 = vmatprep.subr.bf16.mxu0 %v3436
    %6382 = vmatpush2.bf16.msra.mxu0 %v3435
    %6383 = vmatprep.subr.bf16.mxu0 %v3428
    %6384 = vmatpush2.bf16.msra.mxu0 %v3427
    %6385 = vmatprep.subr.bf16.mxu0 %v3420
    %6386 = vmatpush2.bf16.msra.mxu0 %v3419
    %6387 = vmatprep.subr.bf16.mxu0 %v3412
    %6388 = vmatpush2.bf16.msra.mxu0 %v3411
    %6389 = vmatprep.subr.bf16.mxu0 %v3404
    %6390 = vmatpush2.bf16.msra.mxu0 %v3403
    %6391 = vmatprep.subr.bf16.mxu0 %v3396
    %6392 = vmatpush2.bf16.msra.mxu0 %v3395
    %6393 = vmatprep.subr.bf16.mxu0 %v3388
    %6394 = vmatpush2.bf16.msra.mxu0 %v3387
    %6395 = vmatprep.mubr.bf16.mxu0 %v6362
    %6396 = vmatmul.mubr.bf16.gmra.mxu0 %v6361
    %v6397 = vpop.f32.mrf.mxu0
    %v6398 = vadd.f32 0.0, %v6397
    %v6399 = vpop.f32.mrf.mxu0
    %v6400 = vadd.f32 0.0, %v6399
    %v6401 = vpop.f32.mrf.mxu0
    %v6402 = vpop.f32.mrf.mxu0
    %6403 = vdwg.mxu0
    %6404 = vmatprep.subr.bf16.mxu0 %v3382
    %6405 = vmatpush1.bf16.msra.mxu0 %v3381
    %6406 = vmatprep.subr.bf16.mxu0 %v3374
    %6407 = vmatpush1.bf16.msra.mxu0 %v3373
    %6408 = vmatprep.subr.bf16.mxu0 %v3366
    %6409 = vmatpush1.bf16.msra.mxu0 %v3365
    %6410 = vmatprep.subr.bf16.mxu0 %v3358
    %6411 = vmatpush1.bf16.msra.mxu0 %v3357
    %6412 = vmatprep.subr.bf16.mxu0 %v3350
    %6413 = vmatpush1.bf16.msra.mxu0 %v3349
    %6414 = vmatprep.subr.bf16.mxu0 %v3342
    %6415 = vmatpush1.bf16.msra.mxu0 %v3341
    %6416 = vmatprep.subr.bf16.mxu0 %v3334
    %6417 = vmatpush1.bf16.msra.mxu0 %v3333
    %6418 = vmatprep.subr.bf16.mxu0 %v3326
    %6419 = vmatpush1.bf16.msra.mxu0 %v3325
    %6420 = vmatprep.subr.bf16.mxu0 %v3446
    %6421 = vmatpush2.bf16.msra.mxu0 %v3445
    %6422 = vmatprep.subr.bf16.mxu0 %v3438
    %6423 = vmatpush2.bf16.msra.mxu0 %v3437
    %6424 = vmatprep.subr.bf16.mxu0 %v3430
    %6425 = vmatpush2.bf16.msra.mxu0 %v3429
    %6426 = vmatprep.subr.bf16.mxu0 %v3422
    %6427 = vmatpush2.bf16.msra.mxu0 %v3421
    %6428 = vmatprep.subr.bf16.mxu0 %v3414
    %6429 = vmatpush2.bf16.msra.mxu0 %v3413
    %6430 = vmatprep.subr.bf16.mxu0 %v3406
    %6431 = vmatpush2.bf16.msra.mxu0 %v3405
    %6432 = vmatprep.subr.bf16.mxu0 %v3398
    %6433 = vmatpush2.bf16.msra.mxu0 %v3397
    %6434 = vmatprep.subr.bf16.mxu0 %v3390
    %6435 = vmatpush2.bf16.msra.mxu0 %v3389
    %6436 = vmatprep.mubr.bf16.mxu0 %v6362
    %6437 = vmatmul.mubr.bf16.gmra.mxu0 %v6361
    %v6438 = vpop.f32.mrf.mxu0
    %v6439 = vadd.f32 0.0, %v6438
    %v6440 = vpop.f32.mrf.mxu0
    %v6441 = vadd.f32 0.0, %v6440
    %v6442 = vpop.f32.mrf.mxu0
    %v6443 = vpop.f32.mrf.mxu0
    %6444 = vdwg.mxu0
    %6445 = vmatprep.subr.bf16.mxu0 %v3384
    %6446 = vmatpush1.bf16.msra.mxu0 %v3383
    %6447 = vmatprep.subr.bf16.mxu0 %v3376
    %6448 = vmatpush1.bf16.msra.mxu0 %v3375
    %6449 = vmatprep.subr.bf16.mxu0 %v3368
    %6450 = vmatpush1.bf16.msra.mxu0 %v3367
    %6451 = vmatprep.subr.bf16.mxu0 %v3360
    %6452 = vmatpush1.bf16.msra.mxu0 %v3359
    %6453 = vmatprep.subr.bf16.mxu0 %v3352
    %6454 = vmatpush1.bf16.msra.mxu0 %v3351
    %6455 = vmatprep.subr.bf16.mxu0 %v3344
    %6456 = vmatpush1.bf16.msra.mxu0 %v3343
    %6457 = vmatprep.subr.bf16.mxu0 %v3336
    %6458 = vmatpush1.bf16.msra.mxu0 %v3335
    %6459 = vmatprep.subr.bf16.mxu0 %v3328
    %6460 = vmatpush1.bf16.msra.mxu0 %v3327
    %6461 = vmatprep.subr.bf16.mxu0 %v3448
    %6462 = vmatpush2.bf16.msra.mxu0 %v3447
    %6463 = vmatprep.subr.bf16.mxu0 %v3440
    %6464 = vmatpush2.bf16.msra.mxu0 %v3439
    %6465 = vmatprep.subr.bf16.mxu0 %v3432
    %6466 = vmatpush2.bf16.msra.mxu0 %v3431
    %6467 = vmatprep.subr.bf16.mxu0 %v3424
    %6468 = vmatpush2.bf16.msra.mxu0 %v3423
    %6469 = vmatprep.subr.bf16.mxu0 %v3416
    %6470 = vmatpush2.bf16.msra.mxu0 %v3415
    %6471 = vmatprep.subr.bf16.mxu0 %v3408
    %6472 = vmatpush2.bf16.msra.mxu0 %v3407
    %6473 = vmatprep.subr.bf16.mxu0 %v3400
    %6474 = vmatpush2.bf16.msra.mxu0 %v3399
    %6475 = vmatprep.subr.bf16.mxu0 %v3392
    %6476 = vmatpush2.bf16.msra.mxu0 %v3391
    %6477 = vmatprep.mubr.bf16.mxu0 %v6362
    %6478 = vmatmul.mubr.bf16.gmra.mxu0 %v6361
    %v6479 = vpop.f32.mrf.mxu0
    %v6480 = vadd.f32 0.0, %v6479
    %v6481 = vpop.f32.mrf.mxu0
    %v6482 = vadd.f32 0.0, %v6481
    %v6483 = vpop.f32.mrf.mxu0
    %v6484 = vpop.f32.mrf.mxu0
    %6485 = vdwg.mxu0
    %6486 = vmatprep.subr.bf16.mxu0 %v3386
    %6487 = vmatpush1.bf16.msra.mxu0 %v3385
    %6488 = vmatprep.subr.bf16.mxu0 %v3378
    %6489 = vmatpush1.bf16.msra.mxu0 %v3377
    %6490 = vmatprep.subr.bf16.mxu0 %v3370
    %6491 = vmatpush1.bf16.msra.mxu0 %v3369
    %6492 = vmatprep.subr.bf16.mxu0 %v3362
    %6493 = vmatpush1.bf16.msra.mxu0 %v3361
    %6494 = vmatprep.subr.bf16.mxu0 %v3354
    %6495 = vmatpush1.bf16.msra.mxu0 %v3353
    %6496 = vmatprep.subr.bf16.mxu0 %v3346
    %6497 = vmatpush1.bf16.msra.mxu0 %v3345
    %6498 = vmatprep.subr.bf16.mxu0 %v3338
    %6499 = vmatpush1.bf16.msra.mxu0 %v3337
    %6500 = vmatprep.subr.bf16.mxu0 %v3330
    %6501 = vmatpush1.bf16.msra.mxu0 %v3329
    %6502 = vmatprep.subr.bf16.mxu0 %v3450
    %6503 = vmatpush2.bf16.msra.mxu0 %v3449
    %6504 = vmatprep.subr.bf16.mxu0 %v3442
    %6505 = vmatpush2.bf16.msra.mxu0 %v3441
    %6506 = vmatprep.subr.bf16.mxu0 %v3434
    %6507 = vmatpush2.bf16.msra.mxu0 %v3433
    %6508 = vmatprep.subr.bf16.mxu0 %v3426
    %6509 = vmatpush2.bf16.msra.mxu0 %v3425
    %6510 = vmatprep.subr.bf16.mxu0 %v3418
    %6511 = vmatpush2.bf16.msra.mxu0 %v3417
    %6512 = vmatprep.subr.bf16.mxu0 %v3410
    %6513 = vmatpush2.bf16.msra.mxu0 %v3409
    %6514 = vmatprep.subr.bf16.mxu0 %v3402
    %6515 = vmatpush2.bf16.msra.mxu0 %v3401
    %6516 = vmatprep.subr.bf16.mxu0 %v3394
    %6517 = vmatpush2.bf16.msra.mxu0 %v3393
    %6518 = vmatprep.mubr.bf16.mxu0 %v6362
    %6519 = vmatmul.mubr.bf16.gmra.mxu0 %v6361
    %v6520 = vpop.f32.mrf.mxu0
    %v6521 = vadd.f32 0.0, %v6520
    %v6522 = vpop.f32.mrf.mxu0
    %v6523 = vadd.f32 0.0, %v6522
    %v6524 = vpop.f32.mrf.mxu0
    %v6525 = vpop.f32.mrf.mxu0
    %6526 = vdwg.mxu0
    %v6527 = vadd.f32 %v6353, %v6398
    %v6528 = vadd.f32 %v6354, %v6400
    %v6529 = vadd.f32 %v6355, %v6439
    %v6530 = vadd.f32 %v6356, %v6441
    %v6531 = vadd.f32 %v6357, %v6480
    %v6532 = vadd.f32 %v6358, %v6482
    %v6533 = vadd.f32 %v6359, %v6521
    %v6534 = vadd.f32 %v6360, %v6523
    %v6535 = vxor.u32 %v6527, 2147483648
    %v6536 = vxor.u32 %v6528, 2147483648
    %v6537 = vxor.u32 %v6529, 2147483648
    %v6538 = vxor.u32 %v6530, 2147483648
    %v6539 = vxor.u32 %v6531, 2147483648
    %v6540 = vxor.u32 %v6532, 2147483648
    %v6541 = vmul.f32 %v6535, 1.442695
    %v6542 = vpow.pop %v6541
    %v6543 = vmul.f32 %v6536, 1.442695
    %v6544 = vpow.pop %v6543
    %v6545 = vmul.f32 %v6537, 1.442695
    %v6546 = vpow.pop %v6545
    %v6547 = vmul.f32 %v6538, 1.442695
    %v6548 = vpow.pop %v6547
    %v6549 = vmul.f32 %v6539, 1.442695
    %v6550 = vpow.pop %v6549
    %v6551 = vmul.f32 %v6540, 1.442695
    %v6552 = vpow.pop %v6551
    %v6553 = vadd.f32 %v6542, 1.0
    %v6554 = vadd.f32 %v6544, 1.0
    %v6555 = vadd.f32 %v6546, 1.0
    %v6556 = vadd.f32 %v6548, 1.0
    %v6557 = vadd.f32 %v6550, 1.0
    %v6558 = vadd.f32 %v6552, 1.0
    %v6559 = vrcp.pop %v6553
    %v6560 = vmul.f32 1.0, %v6559
    %v6561 = vrcp.pop %v6554
    %v6562 = vmul.f32 1.0, %v6561
    %v6563 = vrcp.pop %v6555
    %v6564 = vmul.f32 1.0, %v6563
    %v6565 = vrcp.pop %v6556
    %v6566 = vmul.f32 1.0, %v6565
    %v6567 = vrcp.pop %v6557
    %v6568 = vmul.f32 1.0, %v6567
    %v6569 = vrcp.pop %v6558
    %v6570 = vmul.f32 1.0, %v6569
    %v6571 = vtanh.pop %v6533
    %v6572 = vtanh.pop %v6534
    %v6573 = vmul.f32 %v6564, %v6113
    %v6574 = vmul.f32 %v6566, %v6114
    %v6575 = vmul.f32 %v6560, %v6571
    %v6576 = vmul.f32 %v6562, %v6572
    %v6577 = vadd.f32 %v6573, %v6575
    %v6578 = vadd.f32 %v6574, %v6576
    %v6579 = vtanh.pop %v6577
    %v6580 = vtanh.pop %v6578
    %v6581 = vmul.f32 %v6568, %v6579
    %v6582 = vmul.f32 %v6570, %v6580
    %6583 = vst [vmem:[#allocation3 + $0x30] sm:$0xff] %v6581
    %6584 = vst [vmem:[#allocation3 + $0x38] sm:$0xff] %v6582
    %v6585 = vld [vmem:[#allocation2 + $0x380] sm:$0xff]
    %v6586 = vld [vmem:[#allocation2 + $0x388] sm:$0xff]
    %v6587 = vld [vmem:[#allocation2 + $0x390] sm:$0xff]
    %v6588 = vld [vmem:[#allocation2 + $0x398] sm:$0xff]
    %v6589 = vld [vmem:[#allocation2 + $0x3a0] sm:$0xff]
    %v6590 = vld [vmem:[#allocation2 + $0x3a8] sm:$0xff]
    %v6591 = vld [vmem:[#allocation2 + $0x3b0] sm:$0xff]
    %v6592 = vld [vmem:[#allocation2 + $0x3b8] sm:$0xff]
    %v6593 = vpack.c.bf16 %v6349, %v6349
    %v6594 = vpack.c.bf16 %v6350, %v6350
    %6595 = vmatprep.subr.bf16.mxu0 %v2510
    %6596 = vmatpush1.bf16.msra.mxu0 %v2509
    %6597 = vmatprep.subr.bf16.mxu0 %v2502
    %6598 = vmatpush1.bf16.msra.mxu0 %v2501
    %6599 = vmatprep.subr.bf16.mxu0 %v2494
    %6600 = vmatpush1.bf16.msra.mxu0 %v2493
    %6601 = vmatprep.subr.bf16.mxu0 %v2486
    %6602 = vmatpush1.bf16.msra.mxu0 %v2485
    %6603 = vmatprep.subr.bf16.mxu0 %v2478
    %6604 = vmatpush1.bf16.msra.mxu0 %v2477
    %6605 = vmatprep.subr.bf16.mxu0 %v2470
    %6606 = vmatpush1.bf16.msra.mxu0 %v2469
    %6607 = vmatprep.subr.bf16.mxu0 %v2462
    %6608 = vmatpush1.bf16.msra.mxu0 %v2461
    %6609 = vmatprep.subr.bf16.mxu0 %v2454
    %6610 = vmatpush1.bf16.msra.mxu0 %v2453
    %6611 = vmatprep.subr.bf16.mxu0 %v2574
    %6612 = vmatpush2.bf16.msra.mxu0 %v2573
    %6613 = vmatprep.subr.bf16.mxu0 %v2566
    %6614 = vmatpush2.bf16.msra.mxu0 %v2565
    %6615 = vmatprep.subr.bf16.mxu0 %v2558
    %6616 = vmatpush2.bf16.msra.mxu0 %v2557
    %6617 = vmatprep.subr.bf16.mxu0 %v2550
    %6618 = vmatpush2.bf16.msra.mxu0 %v2549
    %6619 = vmatprep.subr.bf16.mxu0 %v2542
    %6620 = vmatpush2.bf16.msra.mxu0 %v2541
    %6621 = vmatprep.subr.bf16.mxu0 %v2534
    %6622 = vmatpush2.bf16.msra.mxu0 %v2533
    %6623 = vmatprep.subr.bf16.mxu0 %v2526
    %6624 = vmatpush2.bf16.msra.mxu0 %v2525
    %6625 = vmatprep.subr.bf16.mxu0 %v2518
    %6626 = vmatpush2.bf16.msra.mxu0 %v2517
    %6627 = vmatprep.mubr.bf16.mxu0 %v6594
    %6628 = vmatmul.mubr.bf16.gmra.mxu0 %v6593
    %v6629 = vpop.f32.mrf.mxu0
    %v6630 = vadd.f32 0.0, %v6629
    %v6631 = vpop.f32.mrf.mxu0
    %v6632 = vadd.f32 0.0, %v6631
    %v6633 = vpop.f32.mrf.mxu0
    %v6634 = vpop.f32.mrf.mxu0
    %6635 = vdwg.mxu0
    %6636 = vmatprep.subr.bf16.mxu0 %v2512
    %6637 = vmatpush1.bf16.msra.mxu0 %v2511
    %6638 = vmatprep.subr.bf16.mxu0 %v2504
    %6639 = vmatpush1.bf16.msra.mxu0 %v2503
    %6640 = vmatprep.subr.bf16.mxu0 %v2496
    %6641 = vmatpush1.bf16.msra.mxu0 %v2495
    %6642 = vmatprep.subr.bf16.mxu0 %v2488
    %6643 = vmatpush1.bf16.msra.mxu0 %v2487
    %6644 = vmatprep.subr.bf16.mxu0 %v2480
    %6645 = vmatpush1.bf16.msra.mxu0 %v2479
    %6646 = vmatprep.subr.bf16.mxu0 %v2472
    %6647 = vmatpush1.bf16.msra.mxu0 %v2471
    %6648 = vmatprep.subr.bf16.mxu0 %v2464
    %6649 = vmatpush1.bf16.msra.mxu0 %v2463
    %6650 = vmatprep.subr.bf16.mxu0 %v2456
    %6651 = vmatpush1.bf16.msra.mxu0 %v2455
    %6652 = vmatprep.subr.bf16.mxu0 %v2576
    %6653 = vmatpush2.bf16.msra.mxu0 %v2575
    %6654 = vmatprep.subr.bf16.mxu0 %v2568
    %6655 = vmatpush2.bf16.msra.mxu0 %v2567
    %6656 = vmatprep.subr.bf16.mxu0 %v2560
    %6657 = vmatpush2.bf16.msra.mxu0 %v2559
    %6658 = vmatprep.subr.bf16.mxu0 %v2552
    %6659 = vmatpush2.bf16.msra.mxu0 %v2551
    %6660 = vmatprep.subr.bf16.mxu0 %v2544
    %6661 = vmatpush2.bf16.msra.mxu0 %v2543
    %6662 = vmatprep.subr.bf16.mxu0 %v2536
    %6663 = vmatpush2.bf16.msra.mxu0 %v2535
    %6664 = vmatprep.subr.bf16.mxu0 %v2528
    %6665 = vmatpush2.bf16.msra.mxu0 %v2527
    %6666 = vmatprep.subr.bf16.mxu0 %v2520
    %6667 = vmatpush2.bf16.msra.mxu0 %v2519
    %6668 = vmatprep.mubr.bf16.mxu0 %v6594
    %6669 = vmatmul.mubr.bf16.gmra.mxu0 %v6593
    %v6670 = vpop.f32.mrf.mxu0
    %v6671 = vadd.f32 0.0, %v6670
    %v6672 = vpop.f32.mrf.mxu0
    %v6673 = vadd.f32 0.0, %v6672
    %v6674 = vpop.f32.mrf.mxu0
    %v6675 = vpop.f32.mrf.mxu0
    %6676 = vdwg.mxu0
    %6677 = vmatprep.subr.bf16.mxu0 %v2514
    %6678 = vmatpush1.bf16.msra.mxu0 %v2513
    %6679 = vmatprep.subr.bf16.mxu0 %v2506
    %6680 = vmatpush1.bf16.msra.mxu0 %v2505
    %6681 = vmatprep.subr.bf16.mxu0 %v2498
    %6682 = vmatpush1.bf16.msra.mxu0 %v2497
    %6683 = vmatprep.subr.bf16.mxu0 %v2490
    %6684 = vmatpush1.bf16.msra.mxu0 %v2489
    %6685 = vmatprep.subr.bf16.mxu0 %v2482
    %6686 = vmatpush1.bf16.msra.mxu0 %v2481
    %6687 = vmatprep.subr.bf16.mxu0 %v2474
    %6688 = vmatpush1.bf16.msra.mxu0 %v2473
    %6689 = vmatprep.subr.bf16.mxu0 %v2466
    %6690 = vmatpush1.bf16.msra.mxu0 %v2465
    %6691 = vmatprep.subr.bf16.mxu0 %v2458
    %6692 = vmatpush1.bf16.msra.mxu0 %v2457
    %6693 = vmatprep.subr.bf16.mxu0 %v2578
    %6694 = vmatpush2.bf16.msra.mxu0 %v2577
    %6695 = vmatprep.subr.bf16.mxu0 %v2570
    %6696 = vmatpush2.bf16.msra.mxu0 %v2569
    %6697 = vmatprep.subr.bf16.mxu0 %v2562
    %6698 = vmatpush2.bf16.msra.mxu0 %v2561
    %6699 = vmatprep.subr.bf16.mxu0 %v2554
    %6700 = vmatpush2.bf16.msra.mxu0 %v2553
    %6701 = vmatprep.subr.bf16.mxu0 %v2546
    %6702 = vmatpush2.bf16.msra.mxu0 %v2545
    %6703 = vmatprep.subr.bf16.mxu0 %v2538
    %6704 = vmatpush2.bf16.msra.mxu0 %v2537
    %6705 = vmatprep.subr.bf16.mxu0 %v2530
    %6706 = vmatpush2.bf16.msra.mxu0 %v2529
    %6707 = vmatprep.subr.bf16.mxu0 %v2522
    %6708 = vmatpush2.bf16.msra.mxu0 %v2521
    %6709 = vmatprep.mubr.bf16.mxu0 %v6594
    %6710 = vmatmul.mubr.bf16.gmra.mxu0 %v6593
    %v6711 = vpop.f32.mrf.mxu0
    %v6712 = vadd.f32 0.0, %v6711
    %v6713 = vpop.f32.mrf.mxu0
    %v6714 = vadd.f32 0.0, %v6713
    %v6715 = vpop.f32.mrf.mxu0
    %v6716 = vpop.f32.mrf.mxu0
    %6717 = vdwg.mxu0
    %6718 = vmatprep.subr.bf16.mxu0 %v2516
    %6719 = vmatpush1.bf16.msra.mxu0 %v2515
    %6720 = vmatprep.subr.bf16.mxu0 %v2508
    %6721 = vmatpush1.bf16.msra.mxu0 %v2507
    %6722 = vmatprep.subr.bf16.mxu0 %v2500
    %6723 = vmatpush1.bf16.msra.mxu0 %v2499
    %6724 = vmatprep.subr.bf16.mxu0 %v2492
    %6725 = vmatpush1.bf16.msra.mxu0 %v2491
    %6726 = vmatprep.subr.bf16.mxu0 %v2484
    %6727 = vmatpush1.bf16.msra.mxu0 %v2483
    %6728 = vmatprep.subr.bf16.mxu0 %v2476
    %6729 = vmatpush1.bf16.msra.mxu0 %v2475
    %6730 = vmatprep.subr.bf16.mxu0 %v2468
    %6731 = vmatpush1.bf16.msra.mxu0 %v2467
    %6732 = vmatprep.subr.bf16.mxu0 %v2460
    %6733 = vmatpush1.bf16.msra.mxu0 %v2459
    %6734 = vmatprep.subr.bf16.mxu0 %v2580
    %6735 = vmatpush2.bf16.msra.mxu0 %v2579
    %6736 = vmatprep.subr.bf16.mxu0 %v2572
    %6737 = vmatpush2.bf16.msra.mxu0 %v2571
    %6738 = vmatprep.subr.bf16.mxu0 %v2564
    %6739 = vmatpush2.bf16.msra.mxu0 %v2563
    %6740 = vmatprep.subr.bf16.mxu0 %v2556
    %6741 = vmatpush2.bf16.msra.mxu0 %v2555
    %6742 = vmatprep.subr.bf16.mxu0 %v2548
    %6743 = vmatpush2.bf16.msra.mxu0 %v2547
    %6744 = vmatprep.subr.bf16.mxu0 %v2540
    %6745 = vmatpush2.bf16.msra.mxu0 %v2539
    %6746 = vmatprep.subr.bf16.mxu0 %v2532
    %6747 = vmatpush2.bf16.msra.mxu0 %v2531
    %6748 = vmatprep.subr.bf16.mxu0 %v2524
    %6749 = vmatpush2.bf16.msra.mxu0 %v2523
    %6750 = vmatprep.mubr.bf16.mxu0 %v6594
    %6751 = vmatmul.mubr.bf16.gmra.mxu0 %v6593
    %v6752 = vpop.f32.mrf.mxu0
    %v6753 = vadd.f32 0.0, %v6752
    %v6754 = vpop.f32.mrf.mxu0
    %v6755 = vadd.f32 0.0, %v6754
    %v6756 = vpop.f32.mrf.mxu0
    %v6757 = vpop.f32.mrf.mxu0
    %6758 = vdwg.mxu0
    %v6759 = vadd.f32 %v6585, %v6630
    %v6760 = vadd.f32 %v6586, %v6632
    %v6761 = vadd.f32 %v6587, %v6671
    %v6762 = vadd.f32 %v6588, %v6673
    %v6763 = vadd.f32 %v6589, %v6712
    %v6764 = vadd.f32 %v6590, %v6714
    %v6765 = vadd.f32 %v6591, %v6753
    %v6766 = vadd.f32 %v6592, %v6755
    %v6767 = vxor.u32 %v6759, 2147483648
    %v6768 = vxor.u32 %v6760, 2147483648
    %v6769 = vxor.u32 %v6761, 2147483648
    %v6770 = vxor.u32 %v6762, 2147483648
    %v6771 = vxor.u32 %v6763, 2147483648
    %v6772 = vxor.u32 %v6764, 2147483648
    %v6773 = vmul.f32 %v6767, 1.442695
    %v6774 = vpow.pop %v6773
    %v6775 = vmul.f32 %v6768, 1.442695
    %v6776 = vpow.pop %v6775
    %v6777 = vmul.f32 %v6769, 1.442695
    %v6778 = vpow.pop %v6777
    %v6779 = vmul.f32 %v6770, 1.442695
    %v6780 = vpow.pop %v6779
    %v6781 = vmul.f32 %v6771, 1.442695
    %v6782 = vpow.pop %v6781
    %v6783 = vmul.f32 %v6772, 1.442695
    %v6784 = vpow.pop %v6783
    %v6785 = vadd.f32 %v6774, 1.0
    %v6786 = vadd.f32 %v6776, 1.0
    %v6787 = vadd.f32 %v6778, 1.0
    %v6788 = vadd.f32 %v6780, 1.0
    %v6789 = vadd.f32 %v6782, 1.0
    %v6790 = vadd.f32 %v6784, 1.0
    %v6791 = vrcp.pop %v6785
    %v6792 = vmul.f32 1.0, %v6791
    %v6793 = vrcp.pop %v6786
    %v6794 = vmul.f32 1.0, %v6793
    %v6795 = vrcp.pop %v6787
    %v6796 = vmul.f32 1.0, %v6795
    %v6797 = vrcp.pop %v6788
    %v6798 = vmul.f32 1.0, %v6797
    %v6799 = vrcp.pop %v6789
    %v6800 = vmul.f32 1.0, %v6799
    %v6801 = vrcp.pop %v6790
    %v6802 = vmul.f32 1.0, %v6801
    %v6803 = vtanh.pop %v6765
    %v6804 = vtanh.pop %v6766
    %v6805 = vmul.f32 %v6796, %v6345
    %v6806 = vmul.f32 %v6798, %v6346
    %v6807 = vmul.f32 %v6792, %v6803
    %v6808 = vmul.f32 %v6794, %v6804
    %v6809 = vadd.f32 %v6805, %v6807
    %v6810 = vadd.f32 %v6806, %v6808
    %v6811 = vtanh.pop %v6809
    %v6812 = vtanh.pop %v6810
    %v6813 = vmul.f32 %v6800, %v6811
    %v6814 = vmul.f32 %v6802, %v6812
    %6815 = vst [vmem:[#allocation3 + $0xe0] sm:$0xff] %v6813
    %6816 = vst [vmem:[#allocation3 + $0xe8] sm:$0xff] %v6814
    %v6817 = vld [vmem:[#allocation2 + $0x40] sm:$0xff]
    %v6818 = vld [vmem:[#allocation2 + $0x48] sm:$0xff]
    %v6819 = vld [vmem:[#allocation2 + $0x50] sm:$0xff]
    %v6820 = vld [vmem:[#allocation2 + $0x58] sm:$0xff]
    %v6821 = vld [vmem:[#allocation2 + $0x60] sm:$0xff]
    %v6822 = vld [vmem:[#allocation2 + $0x68] sm:$0xff]
    %v6823 = vld [vmem:[#allocation2 + $0x70] sm:$0xff]
    %v6824 = vld [vmem:[#allocation2 + $0x78] sm:$0xff]
    %v6825 = vpack.c.bf16 %v6581, %v6581
    %v6826 = vpack.c.bf16 %v6582, %v6582
    %6827 = vmatprep.subr.bf16.mxu0 %v3380
    %6828 = vmatpush1.bf16.msra.mxu0 %v3379
    %6829 = vmatprep.subr.bf16.mxu0 %v3372
    %6830 = vmatpush1.bf16.msra.mxu0 %v3371
    %6831 = vmatprep.subr.bf16.mxu0 %v3364
    %6832 = vmatpush1.bf16.msra.mxu0 %v3363
    %6833 = vmatprep.subr.bf16.mxu0 %v3356
    %6834 = vmatpush1.bf16.msra.mxu0 %v3355
    %6835 = vmatprep.subr.bf16.mxu0 %v3348
    %6836 = vmatpush1.bf16.msra.mxu0 %v3347
    %6837 = vmatprep.subr.bf16.mxu0 %v3340
    %6838 = vmatpush1.bf16.msra.mxu0 %v3339
    %6839 = vmatprep.subr.bf16.mxu0 %v3332
    %6840 = vmatpush1.bf16.msra.mxu0 %v3331
    %6841 = vmatprep.subr.bf16.mxu0 %v3324
    %6842 = vmatpush1.bf16.msra.mxu0 %v3323
    %6843 = vmatprep.subr.bf16.mxu0 %v3444
    %6844 = vmatpush2.bf16.msra.mxu0 %v3443
    %6845 = vmatprep.subr.bf16.mxu0 %v3436
    %6846 = vmatpush2.bf16.msra.mxu0 %v3435
    %6847 = vmatprep.subr.bf16.mxu0 %v3428
    %6848 = vmatpush2.bf16.msra.mxu0 %v3427
    %6849 = vmatprep.subr.bf16.mxu0 %v3420
    %6850 = vmatpush2.bf16.msra.mxu0 %v3419
    %6851 = vmatprep.subr.bf16.mxu0 %v3412
    %6852 = vmatpush2.bf16.msra.mxu0 %v3411
    %6853 = vmatprep.subr.bf16.mxu0 %v3404
    %6854 = vmatpush2.bf16.msra.mxu0 %v3403
    %6855 = vmatprep.subr.bf16.mxu0 %v3396
    %6856 = vmatpush2.bf16.msra.mxu0 %v3395
    %6857 = vmatprep.subr.bf16.mxu0 %v3388
    %6858 = vmatpush2.bf16.msra.mxu0 %v3387
    %6859 = vmatprep.mubr.bf16.mxu0 %v6826
    %6860 = vmatmul.mubr.bf16.gmra.mxu0 %v6825
    %v6861 = vpop.f32.mrf.mxu0
    %v6862 = vadd.f32 0.0, %v6861
    %v6863 = vpop.f32.mrf.mxu0
    %v6864 = vadd.f32 0.0, %v6863
    %v6865 = vpop.f32.mrf.mxu0
    %v6866 = vpop.f32.mrf.mxu0
    %6867 = vdwg.mxu0
    %6868 = vmatprep.subr.bf16.mxu0 %v3382
    %6869 = vmatpush1.bf16.msra.mxu0 %v3381
    %6870 = vmatprep.subr.bf16.mxu0 %v3374
    %6871 = vmatpush1.bf16.msra.mxu0 %v3373
    %6872 = vmatprep.subr.bf16.mxu0 %v3366
    %6873 = vmatpush1.bf16.msra.mxu0 %v3365
    %6874 = vmatprep.subr.bf16.mxu0 %v3358
    %6875 = vmatpush1.bf16.msra.mxu0 %v3357
    %6876 = vmatprep.subr.bf16.mxu0 %v3350
    %6877 = vmatpush1.bf16.msra.mxu0 %v3349
    %6878 = vmatprep.subr.bf16.mxu0 %v3342
    %6879 = vmatpush1.bf16.msra.mxu0 %v3341
    %6880 = vmatprep.subr.bf16.mxu0 %v3334
    %6881 = vmatpush1.bf16.msra.mxu0 %v3333
    %6882 = vmatprep.subr.bf16.mxu0 %v3326
    %6883 = vmatpush1.bf16.msra.mxu0 %v3325
    %6884 = vmatprep.subr.bf16.mxu0 %v3446
    %6885 = vmatpush2.bf16.msra.mxu0 %v3445
    %6886 = vmatprep.subr.bf16.mxu0 %v3438
    %6887 = vmatpush2.bf16.msra.mxu0 %v3437
    %6888 = vmatprep.subr.bf16.mxu0 %v3430
    %6889 = vmatpush2.bf16.msra.mxu0 %v3429
    %6890 = vmatprep.subr.bf16.mxu0 %v3422
    %6891 = vmatpush2.bf16.msra.mxu0 %v3421
    %6892 = vmatprep.subr.bf16.mxu0 %v3414
    %6893 = vmatpush2.bf16.msra.mxu0 %v3413
    %6894 = vmatprep.subr.bf16.mxu0 %v3406
    %6895 = vmatpush2.bf16.msra.mxu0 %v3405
    %6896 = vmatprep.subr.bf16.mxu0 %v3398
    %6897 = vmatpush2.bf16.msra.mxu0 %v3397
    %6898 = vmatprep.subr.bf16.mxu0 %v3390
    %6899 = vmatpush2.bf16.msra.mxu0 %v3389
    %6900 = vmatprep.mubr.bf16.mxu0 %v6826
    %6901 = vmatmul.mubr.bf16.gmra.mxu0 %v6825
    %v6902 = vpop.f32.mrf.mxu0
    %v6903 = vadd.f32 0.0, %v6902
    %v6904 = vpop.f32.mrf.mxu0
    %v6905 = vadd.f32 0.0, %v6904
    %v6906 = vpop.f32.mrf.mxu0
    %v6907 = vpop.f32.mrf.mxu0
    %6908 = vdwg.mxu0
    %6909 = vmatprep.subr.bf16.mxu0 %v3384
    %6910 = vmatpush1.bf16.msra.mxu0 %v3383
    %6911 = vmatprep.subr.bf16.mxu0 %v3376
    %6912 = vmatpush1.bf16.msra.mxu0 %v3375
    %6913 = vmatprep.subr.bf16.mxu0 %v3368
    %6914 = vmatpush1.bf16.msra.mxu0 %v3367
    %6915 = vmatprep.subr.bf16.mxu0 %v3360
    %6916 = vmatpush1.bf16.msra.mxu0 %v3359
    %6917 = vmatprep.subr.bf16.mxu0 %v3352
    %6918 = vmatpush1.bf16.msra.mxu0 %v3351
    %6919 = vmatprep.subr.bf16.mxu0 %v3344
    %6920 = vmatpush1.bf16.msra.mxu0 %v3343
    %6921 = vmatprep.subr.bf16.mxu0 %v3336
    %6922 = vmatpush1.bf16.msra.mxu0 %v3335
    %6923 = vmatprep.subr.bf16.mxu0 %v3328
    %6924 = vmatpush1.bf16.msra.mxu0 %v3327
    %6925 = vmatprep.subr.bf16.mxu0 %v3448
    %6926 = vmatpush2.bf16.msra.mxu0 %v3447
    %6927 = vmatprep.subr.bf16.mxu0 %v3440
    %6928 = vmatpush2.bf16.msra.mxu0 %v3439
    %6929 = vmatprep.subr.bf16.mxu0 %v3432
    %6930 = vmatpush2.bf16.msra.mxu0 %v3431
    %6931 = vmatprep.subr.bf16.mxu0 %v3424
    %6932 = vmatpush2.bf16.msra.mxu0 %v3423
    %6933 = vmatprep.subr.bf16.mxu0 %v3416
    %6934 = vmatpush2.bf16.msra.mxu0 %v3415
    %6935 = vmatprep.subr.bf16.mxu0 %v3408
    %6936 = vmatpush2.bf16.msra.mxu0 %v3407
    %6937 = vmatprep.subr.bf16.mxu0 %v3400
    %6938 = vmatpush2.bf16.msra.mxu0 %v3399
    %6939 = vmatprep.subr.bf16.mxu0 %v3392
    %6940 = vmatpush2.bf16.msra.mxu0 %v3391
    %6941 = vmatprep.mubr.bf16.mxu0 %v6826
    %6942 = vmatmul.mubr.bf16.gmra.mxu0 %v6825
    %v6943 = vpop.f32.mrf.mxu0
    %v6944 = vadd.f32 0.0, %v6943
    %v6945 = vpop.f32.mrf.mxu0
    %v6946 = vadd.f32 0.0, %v6945
    %v6947 = vpop.f32.mrf.mxu0
    %v6948 = vpop.f32.mrf.mxu0
    %6949 = vdwg.mxu0
    %6950 = vmatprep.subr.bf16.mxu0 %v3386
    %6951 = vmatpush1.bf16.msra.mxu0 %v3385
    %6952 = vmatprep.subr.bf16.mxu0 %v3378
    %6953 = vmatpush1.bf16.msra.mxu0 %v3377
    %6954 = vmatprep.subr.bf16.mxu0 %v3370
    %6955 = vmatpush1.bf16.msra.mxu0 %v3369
    %6956 = vmatprep.subr.bf16.mxu0 %v3362
    %6957 = vmatpush1.bf16.msra.mxu0 %v3361
    %6958 = vmatprep.subr.bf16.mxu0 %v3354
    %6959 = vmatpush1.bf16.msra.mxu0 %v3353
    %6960 = vmatprep.subr.bf16.mxu0 %v3346
    %6961 = vmatpush1.bf16.msra.mxu0 %v3345
    %6962 = vmatprep.subr.bf16.mxu0 %v3338
    %6963 = vmatpush1.bf16.msra.mxu0 %v3337
    %6964 = vmatprep.subr.bf16.mxu0 %v3330
    %6965 = vmatpush1.bf16.msra.mxu0 %v3329
    %6966 = vmatprep.subr.bf16.mxu0 %v3450
    %6967 = vmatpush2.bf16.msra.mxu0 %v3449
    %6968 = vmatprep.subr.bf16.mxu0 %v3442
    %6969 = vmatpush2.bf16.msra.mxu0 %v3441
    %6970 = vmatprep.subr.bf16.mxu0 %v3434
    %6971 = vmatpush2.bf16.msra.mxu0 %v3433
    %6972 = vmatprep.subr.bf16.mxu0 %v3426
    %6973 = vmatpush2.bf16.msra.mxu0 %v3425
    %6974 = vmatprep.subr.bf16.mxu0 %v3418
    %6975 = vmatpush2.bf16.msra.mxu0 %v3417
    %6976 = vmatprep.subr.bf16.mxu0 %v3410
    %6977 = vmatpush2.bf16.msra.mxu0 %v3409
    %6978 = vmatprep.subr.bf16.mxu0 %v3402
    %6979 = vmatpush2.bf16.msra.mxu0 %v3401
    %6980 = vmatprep.subr.bf16.mxu0 %v3394
    %6981 = vmatpush2.bf16.msra.mxu0 %v3393
    %6982 = vmatprep.mubr.bf16.mxu0 %v6826
    %6983 = vmatmul.mubr.bf16.gmra.mxu0 %v6825
    %v6984 = vpop.f32.mrf.mxu0
    %v6985 = vadd.f32 0.0, %v6984
    %v6986 = vpop.f32.mrf.mxu0
    %v6987 = vadd.f32 0.0, %v6986
    %v6988 = vpop.f32.mrf.mxu0
    %v6989 = vpop.f32.mrf.mxu0
    %6990 = vdwg.mxu0
    %v6991 = vadd.f32 %v6817, %v6862
    %v6992 = vadd.f32 %v6818, %v6864
    %v6993 = vadd.f32 %v6819, %v6903
    %v6994 = vadd.f32 %v6820, %v6905
    %v6995 = vadd.f32 %v6821, %v6944
    %v6996 = vadd.f32 %v6822, %v6946
    %v6997 = vadd.f32 %v6823, %v6985
    %v6998 = vadd.f32 %v6824, %v6987
    %v6999 = vxor.u32 %v6991, 2147483648
    %v7000 = vxor.u32 %v6992, 2147483648
    %v7001 = vxor.u32 %v6993, 2147483648
    %v7002 = vxor.u32 %v6994, 2147483648
    %v7003 = vxor.u32 %v6995, 2147483648
    %v7004 = vxor.u32 %v6996, 2147483648
    %v7005 = vmul.f32 %v6999, 1.442695
    %v7006 = vpow.pop %v7005
    %v7007 = vmul.f32 %v7000, 1.442695
    %v7008 = vpow.pop %v7007
    %v7009 = vmul.f32 %v7001, 1.442695
    %v7010 = vpow.pop %v7009
    %v7011 = vmul.f32 %v7002, 1.442695
    %v7012 = vpow.pop %v7011
    %v7013 = vmul.f32 %v7003, 1.442695
    %v7014 = vpow.pop %v7013
    %v7015 = vmul.f32 %v7004, 1.442695
    %v7016 = vpow.pop %v7015
    %v7017 = vadd.f32 %v7006, 1.0
    %v7018 = vadd.f32 %v7008, 1.0
    %v7019 = vadd.f32 %v7010, 1.0
    %v7020 = vadd.f32 %v7012, 1.0
    %v7021 = vadd.f32 %v7014, 1.0
    %v7022 = vadd.f32 %v7016, 1.0
    %v7023 = vrcp.pop %v7017
    %v7024 = vmul.f32 1.0, %v7023
    %v7025 = vrcp.pop %v7018
    %v7026 = vmul.f32 1.0, %v7025
    %v7027 = vrcp.pop %v7019
    %v7028 = vmul.f32 1.0, %v7027
    %v7029 = vrcp.pop %v7020
    %v7030 = vmul.f32 1.0, %v7029
    %v7031 = vrcp.pop %v7021
    %v7032 = vmul.f32 1.0, %v7031
    %v7033 = vrcp.pop %v7022
    %v7034 = vmul.f32 1.0, %v7033
    %v7035 = vtanh.pop %v6997
    %v7036 = vtanh.pop %v6998
    %v7037 = vmul.f32 %v7028, %v6577
    %v7038 = vmul.f32 %v7030, %v6578
    %v7039 = vmul.f32 %v7024, %v7035
    %v7040 = vmul.f32 %v7026, %v7036
    %v7041 = vadd.f32 %v7037, %v7039
    %v7042 = vadd.f32 %v7038, %v7040
    %v7043 = vtanh.pop %v7041
    %v7044 = vtanh.pop %v7042
    %v7045 = vmul.f32 %v7032, %v7043
    %v7046 = vmul.f32 %v7034, %v7044
    %7047 = vst [vmem:[#allocation3 + $0x10] sm:$0xff] %v7045
    %7048 = vst [vmem:[#allocation3 + $0x18] sm:$0xff] %v7046
    %s7049 = smul.u32 4, 64
    %s7050 = smul.u32 %s7049, 8
    %s7051 = sshll.u32 %s7050, 4
    %7052 = dma.done [#allocation9], %s7051
    %s7053 = smul.u32 4, 16
    %s7054 = smul.u32 %s7053, 4
    %s7055 = sshll.u32 %s7054, 4
    %7056 = dma.done %s101, %s7055
    %v7057 = vld [vmem:[#allocation3] sm:$0xff]
    %v7058 = vld [vmem:[#allocation3 + $0x8] sm:$0xff]
    %v7059 = vld [vmem:[#allocation3 + $0x10] sm:$0xff]
    %v7060 = vld [vmem:[#allocation3 + $0x18] sm:$0xff]
    %v7061 = vld [vmem:[#allocation3 + $0x20] sm:$0xff]
    %v7062 = vld [vmem:[#allocation3 + $0x28] sm:$0xff]
    %v7063 = vld [vmem:[#allocation3 + $0x30] sm:$0xff]
    %v7064 = vld [vmem:[#allocation3 + $0x38] sm:$0xff]
    %v7065 = vld [vmem:[#allocation3 + $0x40] sm:$0xff]
    %v7066 = vld [vmem:[#allocation3 + $0x48] sm:$0xff]
    %v7067 = vld [vmem:[#allocation3 + $0x50] sm:$0xff]
    %v7068 = vld [vmem:[#allocation3 + $0x58] sm:$0xff]
    %v7069 = vld [vmem:[#allocation3 + $0x60] sm:$0xff]
    %v7070 = vld [vmem:[#allocation3 + $0x68] sm:$0xff]
    %v7071 = vld [vmem:[#allocation3 + $0x70] sm:$0xff]
    %v7072 = vld [vmem:[#allocation3 + $0x78] sm:$0xff]
    %v7073 = vld [vmem:[#allocation3 + $0x80] sm:$0xff]
    %v7074 = vld [vmem:[#allocation3 + $0x88] sm:$0xff]
    %v7075 = vld [vmem:[#allocation3 + $0x90] sm:$0xff]
    %v7076 = vld [vmem:[#allocation3 + $0x98] sm:$0xff]
    %v7077 = vld [vmem:[#allocation3 + $0xa0] sm:$0xff]
    %v7078 = vld [vmem:[#allocation3 + $0xa8] sm:$0xff]
    %v7079 = vld [vmem:[#allocation3 + $0xb0] sm:$0xff]
    %v7080 = vld [vmem:[#allocation3 + $0xb8] sm:$0xff]
    %v7081 = vld [vmem:[#allocation3 + $0xc0] sm:$0xff]
    %v7082 = vld [vmem:[#allocation3 + $0xc8] sm:$0xff]
    %v7083 = vld [vmem:[#allocation3 + $0xd0] sm:$0xff]
    %v7084 = vld [vmem:[#allocation3 + $0xd8] sm:$0xff]
    %v7085 = vld [vmem:[#allocation3 + $0xe0] sm:$0xff]
    %v7086 = vld [vmem:[#allocation3 + $0xe8] sm:$0xff]
    %v7087 = vld [vmem:[#allocation3 + $0xf0] sm:$0xff]
    %v7088 = vld [vmem:[#allocation3 + $0xf8] sm:$0xff]
    %v7089 = vpack.c.bf16 %v7061, %v7057
    %v7090 = vpack.c.bf16 %v7062, %v7058
    %v7091 = vpack.c.bf16 %v7063, %v7059
    %v7092 = vpack.c.bf16 %v7064, %v7060
    %v7093 = vpack.c.bf16 %v7069, %v7065
    %v7094 = vpack.c.bf16 %v7070, %v7066
    %v7095 = vpack.c.bf16 %v7071, %v7067
    %v7096 = vpack.c.bf16 %v7072, %v7068
    %v7097 = vpack.c.bf16 %v7077, %v7073
    %v7098 = vpack.c.bf16 %v7078, %v7074
    %v7099 = vpack.c.bf16 %v7079, %v7075
    %v7100 = vpack.c.bf16 %v7080, %v7076
    %v7101 = vpack.c.bf16 %v7085, %v7081
    %v7102 = vpack.c.bf16 %v7086, %v7082
    %v7103 = vpack.c.bf16 %v7087, %v7083
    %v7104 = vpack.c.bf16 %v7088, %v7084
    %v7105 = vld [vmem:[#allocation5] sm:$0xff]
    %v7106 = vld [vmem:[#allocation5 + $0x8] sm:$0xff]
    %v7107 = vld [vmem:[#allocation5 + $0x10] sm:$0xff]
    %v7108 = vld [vmem:[#allocation5 + $0x18] sm:$0xff]
    %v7109 = vld [vmem:[#allocation5 + $0x20] sm:$0xff]
    %v7110 = vld [vmem:[#allocation5 + $0x28] sm:$0xff]
    %v7111 = vld [vmem:[#allocation5 + $0x30] sm:$0xff]
    %v7112 = vld [vmem:[#allocation5 + $0x38] sm:$0xff]
    %v7113 = vld [vmem:[#allocation5 + $0x40] sm:$0xff]
    %v7114 = vld [vmem:[#allocation5 + $0x48] sm:$0xff]
    %v7115 = vld [vmem:[#allocation5 + $0x50] sm:$0xff]
    %v7116 = vld [vmem:[#allocation5 + $0x58] sm:$0xff]
    %v7117 = vld [vmem:[#allocation5 + $0x60] sm:$0xff]
    %v7118 = vld [vmem:[#allocation5 + $0x68] sm:$0xff]
    %v7119 = vld [vmem:[#allocation5 + $0x70] sm:$0xff]
    %v7120 = vld [vmem:[#allocation5 + $0x78] sm:$0xff]
    %v7121 = vld [vmem:[#allocation5 + $0x80] sm:$0xff]
    %v7122 = vld [vmem:[#allocation5 + $0x88] sm:$0xff]
    %v7123 = vld [vmem:[#allocation5 + $0x90] sm:$0xff]
    %v7124 = vld [vmem:[#allocation5 + $0x98] sm:$0xff]
    %v7125 = vld [vmem:[#allocation5 + $0xa0] sm:$0xff]
    %v7126 = vld [vmem:[#allocation5 + $0xa8] sm:$0xff]
    %v7127 = vld [vmem:[#allocation5 + $0xb0] sm:$0xff]
    %v7128 = vld [vmem:[#allocation5 + $0xb8] sm:$0xff]
    %v7129 = vld [vmem:[#allocation5 + $0xc0] sm:$0xff]
    %v7130 = vld [vmem:[#allocation5 + $0xc8] sm:$0xff]
    %v7131 = vld [vmem:[#allocation5 + $0xd0] sm:$0xff]
    %v7132 = vld [vmem:[#allocation5 + $0xd8] sm:$0xff]
    %v7133 = vld [vmem:[#allocation5 + $0xe0] sm:$0xff]
    %v7134 = vld [vmem:[#allocation5 + $0xe8] sm:$0xff]
    %v7135 = vld [vmem:[#allocation5 + $0xf0] sm:$0xff]
    %v7136 = vld [vmem:[#allocation5 + $0xf8] sm:$0xff]
    %v7137 = vld [vmem:[#allocation5 + $0x100] sm:$0xff]
    %v7138 = vld [vmem:[#allocation5 + $0x108] sm:$0xff]
    %v7139 = vld [vmem:[#allocation5 + $0x110] sm:$0xff]
    %v7140 = vld [vmem:[#allocation5 + $0x118] sm:$0xff]
    %v7141 = vld [vmem:[#allocation5 + $0x120] sm:$0xff]
    %v7142 = vld [vmem:[#allocation5 + $0x128] sm:$0xff]
    %v7143 = vld [vmem:[#allocation5 + $0x130] sm:$0xff]
    %v7144 = vld [vmem:[#allocation5 + $0x138] sm:$0xff]
    %v7145 = vld [vmem:[#allocation5 + $0x140] sm:$0xff]
    %v7146 = vld [vmem:[#allocation5 + $0x148] sm:$0xff]
    %v7147 = vld [vmem:[#allocation5 + $0x150] sm:$0xff]
    %v7148 = vld [vmem:[#allocation5 + $0x158] sm:$0xff]
    %v7149 = vld [vmem:[#allocation5 + $0x160] sm:$0xff]
    %v7150 = vld [vmem:[#allocation5 + $0x168] sm:$0xff]
    %v7151 = vld [vmem:[#allocation5 + $0x170] sm:$0xff]
    %v7152 = vld [vmem:[#allocation5 + $0x178] sm:$0xff]
    %v7153 = vld [vmem:[#allocation5 + $0x180] sm:$0xff]
    %v7154 = vld [vmem:[#allocation5 + $0x188] sm:$0xff]
    %v7155 = vld [vmem:[#allocation5 + $0x190] sm:$0xff]
    %v7156 = vld [vmem:[#allocation5 + $0x198] sm:$0xff]
    %v7157 = vld [vmem:[#allocation5 + $0x1a0] sm:$0xff]
    %v7158 = vld [vmem:[#allocation5 + $0x1a8] sm:$0xff]
    %v7159 = vld [vmem:[#allocation5 + $0x1b0] sm:$0xff]
    %v7160 = vld [vmem:[#allocation5 + $0x1b8] sm:$0xff]
    %v7161 = vld [vmem:[#allocation5 + $0x1c0] sm:$0xff]
    %v7162 = vld [vmem:[#allocation5 + $0x1c8] sm:$0xff]
    %v7163 = vld [vmem:[#allocation5 + $0x1d0] sm:$0xff]
    %v7164 = vld [vmem:[#allocation5 + $0x1d8] sm:$0xff]
    %v7165 = vld [vmem:[#allocation5 + $0x1e0] sm:$0xff]
    %v7166 = vld [vmem:[#allocation5 + $0x1e8] sm:$0xff]
    %v7167 = vld [vmem:[#allocation5 + $0x1f0] sm:$0xff]
    %v7168 = vld [vmem:[#allocation5 + $0x1f8] sm:$0xff]
    %v7169 = vld [vmem:[#allocation5 + $0x200] sm:$0xff]
    %v7170 = vld [vmem:[#allocation5 + $0x208] sm:$0xff]
    %v7171 = vld [vmem:[#allocation5 + $0x210] sm:$0xff]
    %v7172 = vld [vmem:[#allocation5 + $0x218] sm:$0xff]
    %v7173 = vld [vmem:[#allocation5 + $0x220] sm:$0xff]
    %v7174 = vld [vmem:[#allocation5 + $0x228] sm:$0xff]
    %v7175 = vld [vmem:[#allocation5 + $0x230] sm:$0xff]
    %v7176 = vld [vmem:[#allocation5 + $0x238] sm:$0xff]
    %v7177 = vld [vmem:[#allocation5 + $0x240] sm:$0xff]
    %v7178 = vld [vmem:[#allocation5 + $0x248] sm:$0xff]
    %v7179 = vld [vmem:[#allocation5 + $0x250] sm:$0xff]
    %v7180 = vld [vmem:[#allocation5 + $0x258] sm:$0xff]
    %v7181 = vld [vmem:[#allocation5 + $0x260] sm:$0xff]
    %v7182 = vld [vmem:[#allocation5 + $0x268] sm:$0xff]
    %v7183 = vld [vmem:[#allocation5 + $0x270] sm:$0xff]
    %v7184 = vld [vmem:[#allocation5 + $0x278] sm:$0xff]
    %v7185 = vld [vmem:[#allocation5 + $0x280] sm:$0xff]
    %v7186 = vld [vmem:[#allocation5 + $0x288] sm:$0xff]
    %v7187 = vld [vmem:[#allocation5 + $0x290] sm:$0xff]
    %v7188 = vld [vmem:[#allocation5 + $0x298] sm:$0xff]
    %v7189 = vld [vmem:[#allocation5 + $0x2a0] sm:$0xff]
    %v7190 = vld [vmem:[#allocation5 + $0x2a8] sm:$0xff]
    %v7191 = vld [vmem:[#allocation5 + $0x2b0] sm:$0xff]
    %v7192 = vld [vmem:[#allocation5 + $0x2b8] sm:$0xff]
    %v7193 = vld [vmem:[#allocation5 + $0x2c0] sm:$0xff]
    %v7194 = vld [vmem:[#allocation5 + $0x2c8] sm:$0xff]
    %v7195 = vld [vmem:[#allocation5 + $0x2d0] sm:$0xff]
    %v7196 = vld [vmem:[#allocation5 + $0x2d8] sm:$0xff]
    %v7197 = vld [vmem:[#allocation5 + $0x2e0] sm:$0xff]
    %v7198 = vld [vmem:[#allocation5 + $0x2e8] sm:$0xff]
    %v7199 = vld [vmem:[#allocation5 + $0x2f0] sm:$0xff]
    %v7200 = vld [vmem:[#allocation5 + $0x2f8] sm:$0xff]
    %v7201 = vld [vmem:[#allocation5 + $0x300] sm:$0xff]
    %v7202 = vld [vmem:[#allocation5 + $0x308] sm:$0xff]
    %v7203 = vld [vmem:[#allocation5 + $0x310] sm:$0xff]
    %v7204 = vld [vmem:[#allocation5 + $0x318] sm:$0xff]
    %v7205 = vld [vmem:[#allocation5 + $0x320] sm:$0xff]
    %v7206 = vld [vmem:[#allocation5 + $0x328] sm:$0xff]
    %v7207 = vld [vmem:[#allocation5 + $0x330] sm:$0xff]
    %v7208 = vld [vmem:[#allocation5 + $0x338] sm:$0xff]
    %v7209 = vld [vmem:[#allocation5 + $0x340] sm:$0xff]
    %v7210 = vld [vmem:[#allocation5 + $0x348] sm:$0xff]
    %v7211 = vld [vmem:[#allocation5 + $0x350] sm:$0xff]
    %v7212 = vld [vmem:[#allocation5 + $0x358] sm:$0xff]
    %v7213 = vld [vmem:[#allocation5 + $0x360] sm:$0xff]
    %v7214 = vld [vmem:[#allocation5 + $0x368] sm:$0xff]
    %v7215 = vld [vmem:[#allocation5 + $0x370] sm:$0xff]
    %v7216 = vld [vmem:[#allocation5 + $0x378] sm:$0xff]
    %v7217 = vld [vmem:[#allocation5 + $0x380] sm:$0xff]
    %v7218 = vld [vmem:[#allocation5 + $0x388] sm:$0xff]
    %v7219 = vld [vmem:[#allocation5 + $0x390] sm:$0xff]
    %v7220 = vld [vmem:[#allocation5 + $0x398] sm:$0xff]
    %v7221 = vld [vmem:[#allocation5 + $0x3a0] sm:$0xff]
    %v7222 = vld [vmem:[#allocation5 + $0x3a8] sm:$0xff]
    %v7223 = vld [vmem:[#allocation5 + $0x3b0] sm:$0xff]
    %v7224 = vld [vmem:[#allocation5 + $0x3b8] sm:$0xff]
    %v7225 = vld [vmem:[#allocation5 + $0x3c0] sm:$0xff]
    %v7226 = vld [vmem:[#allocation5 + $0x3c8] sm:$0xff]
    %v7227 = vld [vmem:[#allocation5 + $0x3d0] sm:$0xff]
    %v7228 = vld [vmem:[#allocation5 + $0x3d8] sm:$0xff]
    %v7229 = vld [vmem:[#allocation5 + $0x3e0] sm:$0xff]
    %v7230 = vld [vmem:[#allocation5 + $0x3e8] sm:$0xff]
    %v7231 = vld [vmem:[#allocation5 + $0x3f0] sm:$0xff]
    %v7232 = vld [vmem:[#allocation5 + $0x3f8] sm:$0xff]
    %v7233 = vld [vmem:[#allocation5 + $0x400] sm:$0xff]
    %v7234 = vld [vmem:[#allocation5 + $0x408] sm:$0xff]
    %v7235 = vld [vmem:[#allocation5 + $0x410] sm:$0xff]
    %v7236 = vld [vmem:[#allocation5 + $0x418] sm:$0xff]
    %v7237 = vld [vmem:[#allocation5 + $0x420] sm:$0xff]
    %v7238 = vld [vmem:[#allocation5 + $0x428] sm:$0xff]
    %v7239 = vld [vmem:[#allocation5 + $0x430] sm:$0xff]
    %v7240 = vld [vmem:[#allocation5 + $0x438] sm:$0xff]
    %v7241 = vld [vmem:[#allocation5 + $0x440] sm:$0xff]
    %v7242 = vld [vmem:[#allocation5 + $0x448] sm:$0xff]
    %v7243 = vld [vmem:[#allocation5 + $0x450] sm:$0xff]
    %v7244 = vld [vmem:[#allocation5 + $0x458] sm:$0xff]
    %v7245 = vld [vmem:[#allocation5 + $0x460] sm:$0xff]
    %v7246 = vld [vmem:[#allocation5 + $0x468] sm:$0xff]
    %v7247 = vld [vmem:[#allocation5 + $0x470] sm:$0xff]
    %v7248 = vld [vmem:[#allocation5 + $0x478] sm:$0xff]
    %v7249 = vld [vmem:[#allocation5 + $0x480] sm:$0xff]
    %v7250 = vld [vmem:[#allocation5 + $0x488] sm:$0xff]
    %v7251 = vld [vmem:[#allocation5 + $0x490] sm:$0xff]
    %v7252 = vld [vmem:[#allocation5 + $0x498] sm:$0xff]
    %v7253 = vld [vmem:[#allocation5 + $0x4a0] sm:$0xff]
    %v7254 = vld [vmem:[#allocation5 + $0x4a8] sm:$0xff]
    %v7255 = vld [vmem:[#allocation5 + $0x4b0] sm:$0xff]
    %v7256 = vld [vmem:[#allocation5 + $0x4b8] sm:$0xff]
    %v7257 = vld [vmem:[#allocation5 + $0x4c0] sm:$0xff]
    %v7258 = vld [vmem:[#allocation5 + $0x4c8] sm:$0xff]
    %v7259 = vld [vmem:[#allocation5 + $0x4d0] sm:$0xff]
    %v7260 = vld [vmem:[#allocation5 + $0x4d8] sm:$0xff]
    %v7261 = vld [vmem:[#allocation5 + $0x4e0] sm:$0xff]
    %v7262 = vld [vmem:[#allocation5 + $0x4e8] sm:$0xff]
    %v7263 = vld [vmem:[#allocation5 + $0x4f0] sm:$0xff]
    %v7264 = vld [vmem:[#allocation5 + $0x4f8] sm:$0xff]
    %v7265 = vld [vmem:[#allocation5 + $0x500] sm:$0xff]
    %v7266 = vld [vmem:[#allocation5 + $0x508] sm:$0xff]
    %v7267 = vld [vmem:[#allocation5 + $0x510] sm:$0xff]
    %v7268 = vld [vmem:[#allocation5 + $0x518] sm:$0xff]
    %v7269 = vld [vmem:[#allocation5 + $0x520] sm:$0xff]
    %v7270 = vld [vmem:[#allocation5 + $0x528] sm:$0xff]
    %v7271 = vld [vmem:[#allocation5 + $0x530] sm:$0xff]
    %v7272 = vld [vmem:[#allocation5 + $0x538] sm:$0xff]
    %v7273 = vld [vmem:[#allocation5 + $0x540] sm:$0xff]
    %v7274 = vld [vmem:[#allocation5 + $0x548] sm:$0xff]
    %v7275 = vld [vmem:[#allocation5 + $0x550] sm:$0xff]
    %v7276 = vld [vmem:[#allocation5 + $0x558] sm:$0xff]
    %v7277 = vld [vmem:[#allocation5 + $0x560] sm:$0xff]
    %v7278 = vld [vmem:[#allocation5 + $0x568] sm:$0xff]
    %v7279 = vld [vmem:[#allocation5 + $0x570] sm:$0xff]
    %v7280 = vld [vmem:[#allocation5 + $0x578] sm:$0xff]
    %v7281 = vld [vmem:[#allocation5 + $0x580] sm:$0xff]
    %v7282 = vld [vmem:[#allocation5 + $0x588] sm:$0xff]
    %v7283 = vld [vmem:[#allocation5 + $0x590] sm:$0xff]
    %v7284 = vld [vmem:[#allocation5 + $0x598] sm:$0xff]
    %v7285 = vld [vmem:[#allocation5 + $0x5a0] sm:$0xff]
    %v7286 = vld [vmem:[#allocation5 + $0x5a8] sm:$0xff]
    %v7287 = vld [vmem:[#allocation5 + $0x5b0] sm:$0xff]
    %v7288 = vld [vmem:[#allocation5 + $0x5b8] sm:$0xff]
    %v7289 = vld [vmem:[#allocation5 + $0x5c0] sm:$0xff]
    %v7290 = vld [vmem:[#allocation5 + $0x5c8] sm:$0xff]
    %v7291 = vld [vmem:[#allocation5 + $0x5d0] sm:$0xff]
    %v7292 = vld [vmem:[#allocation5 + $0x5d8] sm:$0xff]
    %v7293 = vld [vmem:[#allocation5 + $0x5e0] sm:$0xff]
    %v7294 = vld [vmem:[#allocation5 + $0x5e8] sm:$0xff]
    %v7295 = vld [vmem:[#allocation5 + $0x5f0] sm:$0xff]
    %v7296 = vld [vmem:[#allocation5 + $0x5f8] sm:$0xff]
    %v7297 = vld [vmem:[#allocation5 + $0x600] sm:$0xff]
    %v7298 = vld [vmem:[#allocation5 + $0x608] sm:$0xff]
    %v7299 = vld [vmem:[#allocation5 + $0x610] sm:$0xff]
    %v7300 = vld [vmem:[#allocation5 + $0x618] sm:$0xff]
    %v7301 = vld [vmem:[#allocation5 + $0x620] sm:$0xff]
    %v7302 = vld [vmem:[#allocation5 + $0x628] sm:$0xff]
    %v7303 = vld [vmem:[#allocation5 + $0x630] sm:$0xff]
    %v7304 = vld [vmem:[#allocation5 + $0x638] sm:$0xff]
    %v7305 = vld [vmem:[#allocation5 + $0x640] sm:$0xff]
    %v7306 = vld [vmem:[#allocation5 + $0x648] sm:$0xff]
    %v7307 = vld [vmem:[#allocation5 + $0x650] sm:$0xff]
    %v7308 = vld [vmem:[#allocation5 + $0x658] sm:$0xff]
    %v7309 = vld [vmem:[#allocation5 + $0x660] sm:$0xff]
    %v7310 = vld [vmem:[#allocation5 + $0x668] sm:$0xff]
    %v7311 = vld [vmem:[#allocation5 + $0x670] sm:$0xff]
    %v7312 = vld [vmem:[#allocation5 + $0x678] sm:$0xff]
    %v7313 = vld [vmem:[#allocation5 + $0x680] sm:$0xff]
    %v7314 = vld [vmem:[#allocation5 + $0x688] sm:$0xff]
    %v7315 = vld [vmem:[#allocation5 + $0x690] sm:$0xff]
    %v7316 = vld [vmem:[#allocation5 + $0x698] sm:$0xff]
    %v7317 = vld [vmem:[#allocation5 + $0x6a0] sm:$0xff]
    %v7318 = vld [vmem:[#allocation5 + $0x6a8] sm:$0xff]
    %v7319 = vld [vmem:[#allocation5 + $0x6b0] sm:$0xff]
    %v7320 = vld [vmem:[#allocation5 + $0x6b8] sm:$0xff]
    %v7321 = vld [vmem:[#allocation5 + $0x6c0] sm:$0xff]
    %v7322 = vld [vmem:[#allocation5 + $0x6c8] sm:$0xff]
    %v7323 = vld [vmem:[#allocation5 + $0x6d0] sm:$0xff]
    %v7324 = vld [vmem:[#allocation5 + $0x6d8] sm:$0xff]
    %v7325 = vld [vmem:[#allocation5 + $0x6e0] sm:$0xff]
    %v7326 = vld [vmem:[#allocation5 + $0x6e8] sm:$0xff]
    %v7327 = vld [vmem:[#allocation5 + $0x6f0] sm:$0xff]
    %v7328 = vld [vmem:[#allocation5 + $0x6f8] sm:$0xff]
    %v7329 = vld [vmem:[#allocation5 + $0x700] sm:$0xff]
    %v7330 = vld [vmem:[#allocation5 + $0x708] sm:$0xff]
    %v7331 = vld [vmem:[#allocation5 + $0x710] sm:$0xff]
    %v7332 = vld [vmem:[#allocation5 + $0x718] sm:$0xff]
    %v7333 = vld [vmem:[#allocation5 + $0x720] sm:$0xff]
    %v7334 = vld [vmem:[#allocation5 + $0x728] sm:$0xff]
    %v7335 = vld [vmem:[#allocation5 + $0x730] sm:$0xff]
    %v7336 = vld [vmem:[#allocation5 + $0x738] sm:$0xff]
    %v7337 = vld [vmem:[#allocation5 + $0x740] sm:$0xff]
    %v7338 = vld [vmem:[#allocation5 + $0x748] sm:$0xff]
    %v7339 = vld [vmem:[#allocation5 + $0x750] sm:$0xff]
    %v7340 = vld [vmem:[#allocation5 + $0x758] sm:$0xff]
    %v7341 = vld [vmem:[#allocation5 + $0x760] sm:$0xff]
    %v7342 = vld [vmem:[#allocation5 + $0x768] sm:$0xff]
    %v7343 = vld [vmem:[#allocation5 + $0x770] sm:$0xff]
    %v7344 = vld [vmem:[#allocation5 + $0x778] sm:$0xff]
    %v7345 = vld [vmem:[#allocation5 + $0x780] sm:$0xff]
    %v7346 = vld [vmem:[#allocation5 + $0x788] sm:$0xff]
    %v7347 = vld [vmem:[#allocation5 + $0x790] sm:$0xff]
    %v7348 = vld [vmem:[#allocation5 + $0x798] sm:$0xff]
    %v7349 = vld [vmem:[#allocation5 + $0x7a0] sm:$0xff]
    %v7350 = vld [vmem:[#allocation5 + $0x7a8] sm:$0xff]
    %v7351 = vld [vmem:[#allocation5 + $0x7b0] sm:$0xff]
    %v7352 = vld [vmem:[#allocation5 + $0x7b8] sm:$0xff]
    %v7353 = vld [vmem:[#allocation5 + $0x7c0] sm:$0xff]
    %v7354 = vld [vmem:[#allocation5 + $0x7c8] sm:$0xff]
    %v7355 = vld [vmem:[#allocation5 + $0x7d0] sm:$0xff]
    %v7356 = vld [vmem:[#allocation5 + $0x7d8] sm:$0xff]
    %v7357 = vld [vmem:[#allocation5 + $0x7e0] sm:$0xff]
    %v7358 = vld [vmem:[#allocation5 + $0x7e8] sm:$0xff]
    %v7359 = vld [vmem:[#allocation5 + $0x7f0] sm:$0xff]
    %v7360 = vld [vmem:[#allocation5 + $0x7f8] sm:$0xff]
    %v7617 = vunpack.c.l.b16 %v7105
    %v7618 = vunpack.c.h.b16 %v7105
    %v7619 = vunpack.c.l.b16 %v7106
    %v7620 = vunpack.c.h.b16 %v7106
    %v7621 = vunpack.c.l.b16 %v7107
    %v7622 = vunpack.c.h.b16 %v7107
    %v7623 = vunpack.c.l.b16 %v7108
    %v7624 = vunpack.c.h.b16 %v7108
    %v7625 = vunpack.c.l.b16 %v7109
    %v7626 = vunpack.c.h.b16 %v7109
    %v7627 = vunpack.c.l.b16 %v7110
    %v7628 = vunpack.c.h.b16 %v7110
    %v7629 = vunpack.c.l.b16 %v7111
    %v7630 = vunpack.c.h.b16 %v7111
    %v7631 = vunpack.c.l.b16 %v7112
    %v7632 = vunpack.c.h.b16 %v7112
    %v7633 = vunpack.c.l.b16 %v7113
    %v7634 = vunpack.c.h.b16 %v7113
    %v7635 = vunpack.c.l.b16 %v7114
    %v7636 = vunpack.c.h.b16 %v7114
    %v7637 = vunpack.c.l.b16 %v7115
    %v7638 = vunpack.c.h.b16 %v7115
    %v7639 = vunpack.c.l.b16 %v7116
    %v7640 = vunpack.c.h.b16 %v7116
    %v7641 = vunpack.c.l.b16 %v7117
    %v7642 = vunpack.c.h.b16 %v7117
    %v7643 = vunpack.c.l.b16 %v7118
    %v7644 = vunpack.c.h.b16 %v7118
    %v7645 = vunpack.c.l.b16 %v7119
    %v7646 = vunpack.c.h.b16 %v7119
    %v7647 = vunpack.c.l.b16 %v7120
    %v7648 = vunpack.c.h.b16 %v7120
    %v7649 = vunpack.c.l.b16 %v7121
    %v7650 = vunpack.c.h.b16 %v7121
    %v7651 = vunpack.c.l.b16 %v7122
    %v7652 = vunpack.c.h.b16 %v7122
    %v7653 = vunpack.c.l.b16 %v7123
    %v7654 = vunpack.c.h.b16 %v7123
    %v7655 = vunpack.c.l.b16 %v7124
    %v7656 = vunpack.c.h.b16 %v7124
    %v7657 = vunpack.c.l.b16 %v7125
    %v7658 = vunpack.c.h.b16 %v7125
    %v7659 = vunpack.c.l.b16 %v7126
    %v7660 = vunpack.c.h.b16 %v7126
    %v7661 = vunpack.c.l.b16 %v7127
    %v7662 = vunpack.c.h.b16 %v7127
    %v7663 = vunpack.c.l.b16 %v7128
    %v7664 = vunpack.c.h.b16 %v7128
    %v7665 = vunpack.c.l.b16 %v7129
    %v7666 = vunpack.c.h.b16 %v7129
    %v7667 = vunpack.c.l.b16 %v7130
    %v7668 = vunpack.c.h.b16 %v7130
    %v7669 = vunpack.c.l.b16 %v7131
    %v7670 = vunpack.c.h.b16 %v7131
    %v7671 = vunpack.c.l.b16 %v7132
    %v7672 = vunpack.c.h.b16 %v7132
    %v7673 = vunpack.c.l.b16 %v7133
    %v7674 = vunpack.c.h.b16 %v7133
    %v7675 = vunpack.c.l.b16 %v7134
    %v7676 = vunpack.c.h.b16 %v7134
    %v7677 = vunpack.c.l.b16 %v7135
    %v7678 = vunpack.c.h.b16 %v7135
    %v7679 = vunpack.c.l.b16 %v7136
    %v7680 = vunpack.c.h.b16 %v7136
    %v7681 = vunpack.c.l.b16 %v7137
    %v7682 = vunpack.c.h.b16 %v7137
    %v7683 = vunpack.c.l.b16 %v7138
    %v7684 = vunpack.c.h.b16 %v7138
    %v7685 = vunpack.c.l.b16 %v7139
    %v7686 = vunpack.c.h.b16 %v7139
    %v7687 = vunpack.c.l.b16 %v7140
    %v7688 = vunpack.c.h.b16 %v7140
    %v7689 = vunpack.c.l.b16 %v7141
    %v7690 = vunpack.c.h.b16 %v7141
    %v7691 = vunpack.c.l.b16 %v7142
    %v7692 = vunpack.c.h.b16 %v7142
    %v7693 = vunpack.c.l.b16 %v7143
    %v7694 = vunpack.c.h.b16 %v7143
    %v7695 = vunpack.c.l.b16 %v7144
    %v7696 = vunpack.c.h.b16 %v7144
    %v7697 = vunpack.c.l.b16 %v7145
    %v7698 = vunpack.c.h.b16 %v7145
    %v7699 = vunpack.c.l.b16 %v7146
    %v7700 = vunpack.c.h.b16 %v7146
    %v7701 = vunpack.c.l.b16 %v7147
    %v7702 = vunpack.c.h.b16 %v7147
    %v7703 = vunpack.c.l.b16 %v7148
    %v7704 = vunpack.c.h.b16 %v7148
    %v7705 = vunpack.c.l.b16 %v7149
    %v7706 = vunpack.c.h.b16 %v7149
    %v7707 = vunpack.c.l.b16 %v7150
    %v7708 = vunpack.c.h.b16 %v7150
    %v7709 = vunpack.c.l.b16 %v7151
    %v7710 = vunpack.c.h.b16 %v7151
    %v7711 = vunpack.c.l.b16 %v7152
    %v7712 = vunpack.c.h.b16 %v7152
    %v7713 = vunpack.c.l.b16 %v7153
    %v7714 = vunpack.c.h.b16 %v7153
    %v7715 = vunpack.c.l.b16 %v7154
    %v7716 = vunpack.c.h.b16 %v7154
    %v7717 = vunpack.c.l.b16 %v7155
    %v7718 = vunpack.c.h.b16 %v7155
    %v7719 = vunpack.c.l.b16 %v7156
    %v7720 = vunpack.c.h.b16 %v7156
    %v7721 = vunpack.c.l.b16 %v7157
    %v7722 = vunpack.c.h.b16 %v7157
    %v7723 = vunpack.c.l.b16 %v7158
    %v7724 = vunpack.c.h.b16 %v7158
    %v7725 = vunpack.c.l.b16 %v7159
    %v7726 = vunpack.c.h.b16 %v7159
    %v7727 = vunpack.c.l.b16 %v7160
    %v7728 = vunpack.c.h.b16 %v7160
    %v7729 = vunpack.c.l.b16 %v7161
    %v7730 = vunpack.c.h.b16 %v7161
    %v7731 = vunpack.c.l.b16 %v7162
    %v7732 = vunpack.c.h.b16 %v7162
    %v7733 = vunpack.c.l.b16 %v7163
    %v7734 = vunpack.c.h.b16 %v7163
    %v7735 = vunpack.c.l.b16 %v7164
    %v7736 = vunpack.c.h.b16 %v7164
    %v7737 = vunpack.c.l.b16 %v7165
    %v7738 = vunpack.c.h.b16 %v7165
    %v7739 = vunpack.c.l.b16 %v7166
    %v7740 = vunpack.c.h.b16 %v7166
    %v7741 = vunpack.c.l.b16 %v7167
    %v7742 = vunpack.c.h.b16 %v7167
    %v7743 = vunpack.c.l.b16 %v7168
    %v7744 = vunpack.c.h.b16 %v7168
    %v7745 = vunpack.c.l.b16 %v7169
    %v7746 = vunpack.c.h.b16 %v7169
    %v7747 = vunpack.c.l.b16 %v7170
    %v7748 = vunpack.c.h.b16 %v7170
    %v7749 = vunpack.c.l.b16 %v7171
    %v7750 = vunpack.c.h.b16 %v7171
    %v7751 = vunpack.c.l.b16 %v7172
    %v7752 = vunpack.c.h.b16 %v7172
    %v7753 = vunpack.c.l.b16 %v7173
    %v7754 = vunpack.c.h.b16 %v7173
    %v7755 = vunpack.c.l.b16 %v7174
    %v7756 = vunpack.c.h.b16 %v7174
    %v7757 = vunpack.c.l.b16 %v7175
    %v7758 = vunpack.c.h.b16 %v7175
    %v7759 = vunpack.c.l.b16 %v7176
    %v7760 = vunpack.c.h.b16 %v7176
    %v7761 = vunpack.c.l.b16 %v7177
    %v7762 = vunpack.c.h.b16 %v7177
    %v7763 = vunpack.c.l.b16 %v7178
    %v7764 = vunpack.c.h.b16 %v7178
    %v7765 = vunpack.c.l.b16 %v7179
    %v7766 = vunpack.c.h.b16 %v7179
    %v7767 = vunpack.c.l.b16 %v7180
    %v7768 = vunpack.c.h.b16 %v7180
    %v7769 = vunpack.c.l.b16 %v7181
    %v7770 = vunpack.c.h.b16 %v7181
    %v7771 = vunpack.c.l.b16 %v7182
    %v7772 = vunpack.c.h.b16 %v7182
    %v7773 = vunpack.c.l.b16 %v7183
    %v7774 = vunpack.c.h.b16 %v7183
    %v7775 = vunpack.c.l.b16 %v7184
    %v7776 = vunpack.c.h.b16 %v7184
    %v7777 = vunpack.c.l.b16 %v7185
    %v7778 = vunpack.c.h.b16 %v7185
    %v7779 = vunpack.c.l.b16 %v7186
    %v7780 = vunpack.c.h.b16 %v7186
    %v7781 = vunpack.c.l.b16 %v7187
    %v7782 = vunpack.c.h.b16 %v7187
    %v7783 = vunpack.c.l.b16 %v7188
    %v7784 = vunpack.c.h.b16 %v7188
    %v7785 = vunpack.c.l.b16 %v7189
    %v7786 = vunpack.c.h.b16 %v7189
    %v7787 = vunpack.c.l.b16 %v7190
    %v7788 = vunpack.c.h.b16 %v7190
    %v7789 = vunpack.c.l.b16 %v7191
    %v7790 = vunpack.c.h.b16 %v7191
    %v7791 = vunpack.c.l.b16 %v7192
    %v7792 = vunpack.c.h.b16 %v7192
    %v7793 = vunpack.c.l.b16 %v7193
    %v7794 = vunpack.c.h.b16 %v7193
    %v7795 = vunpack.c.l.b16 %v7194
    %v7796 = vunpack.c.h.b16 %v7194
    %v7797 = vunpack.c.l.b16 %v7195
    %v7798 = vunpack.c.h.b16 %v7195
    %v7799 = vunpack.c.l.b16 %v7196
    %v7800 = vunpack.c.h.b16 %v7196
    %v7801 = vunpack.c.l.b16 %v7197
    %v7802 = vunpack.c.h.b16 %v7197
    %v7803 = vunpack.c.l.b16 %v7198
    %v7804 = vunpack.c.h.b16 %v7198
    %v7805 = vunpack.c.l.b16 %v7199
    %v7806 = vunpack.c.h.b16 %v7199
    %v7807 = vunpack.c.l.b16 %v7200
    %v7808 = vunpack.c.h.b16 %v7200
    %v7809 = vunpack.c.l.b16 %v7201
    %v7810 = vunpack.c.h.b16 %v7201
    %v7811 = vunpack.c.l.b16 %v7202
    %v7812 = vunpack.c.h.b16 %v7202
    %v7813 = vunpack.c.l.b16 %v7203
    %v7814 = vunpack.c.h.b16 %v7203
    %v7815 = vunpack.c.l.b16 %v7204
    %v7816 = vunpack.c.h.b16 %v7204
    %v7817 = vunpack.c.l.b16 %v7205
    %v7818 = vunpack.c.h.b16 %v7205
    %v7819 = vunpack.c.l.b16 %v7206
    %v7820 = vunpack.c.h.b16 %v7206
    %v7821 = vunpack.c.l.b16 %v7207
    %v7822 = vunpack.c.h.b16 %v7207
    %v7823 = vunpack.c.l.b16 %v7208
    %v7824 = vunpack.c.h.b16 %v7208
    %v7825 = vunpack.c.l.b16 %v7209
    %v7826 = vunpack.c.h.b16 %v7209
    %v7827 = vunpack.c.l.b16 %v7210
    %v7828 = vunpack.c.h.b16 %v7210
    %v7829 = vunpack.c.l.b16 %v7211
    %v7830 = vunpack.c.h.b16 %v7211
    %v7831 = vunpack.c.l.b16 %v7212
    %v7832 = vunpack.c.h.b16 %v7212
    %v7833 = vunpack.c.l.b16 %v7213
    %v7834 = vunpack.c.h.b16 %v7213
    %v7835 = vunpack.c.l.b16 %v7214
    %v7836 = vunpack.c.h.b16 %v7214
    %v7837 = vunpack.c.l.b16 %v7215
    %v7838 = vunpack.c.h.b16 %v7215
    %v7839 = vunpack.c.l.b16 %v7216
    %v7840 = vunpack.c.h.b16 %v7216
    %v7841 = vunpack.c.l.b16 %v7217
    %v7842 = vunpack.c.h.b16 %v7217
    %v7843 = vunpack.c.l.b16 %v7218
    %v7844 = vunpack.c.h.b16 %v7218
    %v7845 = vunpack.c.l.b16 %v7219
    %v7846 = vunpack.c.h.b16 %v7219
    %v7847 = vunpack.c.l.b16 %v7220
    %v7848 = vunpack.c.h.b16 %v7220
    %v7849 = vunpack.c.l.b16 %v7221
    %v7850 = vunpack.c.h.b16 %v7221
    %v7851 = vunpack.c.l.b16 %v7222
    %v7852 = vunpack.c.h.b16 %v7222
    %v7853 = vunpack.c.l.b16 %v7223
    %v7854 = vunpack.c.h.b16 %v7223
    %v7855 = vunpack.c.l.b16 %v7224
    %v7856 = vunpack.c.h.b16 %v7224
    %v7857 = vunpack.c.l.b16 %v7225
    %v7858 = vunpack.c.h.b16 %v7225
    %v7859 = vunpack.c.l.b16 %v7226
    %v7860 = vunpack.c.h.b16 %v7226
    %v7861 = vunpack.c.l.b16 %v7227
    %v7862 = vunpack.c.h.b16 %v7227
    %v7863 = vunpack.c.l.b16 %v7228
    %v7864 = vunpack.c.h.b16 %v7228
    %v7865 = vunpack.c.l.b16 %v7229
    %v7866 = vunpack.c.h.b16 %v7229
    %v7867 = vunpack.c.l.b16 %v7230
    %v7868 = vunpack.c.h.b16 %v7230
    %v7869 = vunpack.c.l.b16 %v7231
    %v7870 = vunpack.c.h.b16 %v7231
    %v7871 = vunpack.c.l.b16 %v7232
    %v7872 = vunpack.c.h.b16 %v7232
    %v7873 = vunpack.c.l.b16 %v7233
    %v7874 = vunpack.c.h.b16 %v7233
    %v7875 = vunpack.c.l.b16 %v7234
    %v7876 = vunpack.c.h.b16 %v7234
    %v7877 = vunpack.c.l.b16 %v7235
    %v7878 = vunpack.c.h.b16 %v7235
    %v7879 = vunpack.c.l.b16 %v7236
    %v7880 = vunpack.c.h.b16 %v7236
    %v7881 = vunpack.c.l.b16 %v7237
    %v7882 = vunpack.c.h.b16 %v7237
    %v7883 = vunpack.c.l.b16 %v7238
    %v7884 = vunpack.c.h.b16 %v7238
    %v7885 = vunpack.c.l.b16 %v7239
    %v7886 = vunpack.c.h.b16 %v7239
    %v7887 = vunpack.c.l.b16 %v7240
    %v7888 = vunpack.c.h.b16 %v7240
    %v7889 = vunpack.c.l.b16 %v7241
    %v7890 = vunpack.c.h.b16 %v7241
    %v7891 = vunpack.c.l.b16 %v7242
    %v7892 = vunpack.c.h.b16 %v7242
    %v7893 = vunpack.c.l.b16 %v7243
    %v7894 = vunpack.c.h.b16 %v7243
    %v7895 = vunpack.c.l.b16 %v7244
    %v7896 = vunpack.c.h.b16 %v7244
    %v7897 = vunpack.c.l.b16 %v7245
    %v7898 = vunpack.c.h.b16 %v7245
    %v7899 = vunpack.c.l.b16 %v7246
    %v7900 = vunpack.c.h.b16 %v7246
    %v7901 = vunpack.c.l.b16 %v7247
    %v7902 = vunpack.c.h.b16 %v7247
    %v7903 = vunpack.c.l.b16 %v7248
    %v7904 = vunpack.c.h.b16 %v7248
    %v7905 = vunpack.c.l.b16 %v7249
    %v7906 = vunpack.c.h.b16 %v7249
    %v7907 = vunpack.c.l.b16 %v7250
    %v7908 = vunpack.c.h.b16 %v7250
    %v7909 = vunpack.c.l.b16 %v7251
    %v7910 = vunpack.c.h.b16 %v7251
    %v7911 = vunpack.c.l.b16 %v7252
    %v7912 = vunpack.c.h.b16 %v7252
    %v7913 = vunpack.c.l.b16 %v7253
    %v7914 = vunpack.c.h.b16 %v7253
    %v7915 = vunpack.c.l.b16 %v7254
    %v7916 = vunpack.c.h.b16 %v7254
    %v7917 = vunpack.c.l.b16 %v7255
    %v7918 = vunpack.c.h.b16 %v7255
    %v7919 = vunpack.c.l.b16 %v7256
    %v7920 = vunpack.c.h.b16 %v7256
    %v7921 = vunpack.c.l.b16 %v7257
    %v7922 = vunpack.c.h.b16 %v7257
    %v7923 = vunpack.c.l.b16 %v7258
    %v7924 = vunpack.c.h.b16 %v7258
    %v7925 = vunpack.c.l.b16 %v7259
    %v7926 = vunpack.c.h.b16 %v7259
    %v7927 = vunpack.c.l.b16 %v7260
    %v7928 = vunpack.c.h.b16 %v7260
    %v7929 = vunpack.c.l.b16 %v7261
    %v7930 = vunpack.c.h.b16 %v7261
    %v7931 = vunpack.c.l.b16 %v7262
    %v7932 = vunpack.c.h.b16 %v7262
    %v7933 = vunpack.c.l.b16 %v7263
    %v7934 = vunpack.c.h.b16 %v7263
    %v7935 = vunpack.c.l.b16 %v7264
    %v7936 = vunpack.c.h.b16 %v7264
    %v7937 = vunpack.c.l.b16 %v7265
    %v7938 = vunpack.c.h.b16 %v7265
    %v7939 = vunpack.c.l.b16 %v7266
    %v7940 = vunpack.c.h.b16 %v7266
    %v7941 = vunpack.c.l.b16 %v7267
    %v7942 = vunpack.c.h.b16 %v7267
    %v7943 = vunpack.c.l.b16 %v7268
    %v7944 = vunpack.c.h.b16 %v7268
    %v7945 = vunpack.c.l.b16 %v7269
    %v7946 = vunpack.c.h.b16 %v7269
    %v7947 = vunpack.c.l.b16 %v7270
    %v7948 = vunpack.c.h.b16 %v7270
    %v7949 = vunpack.c.l.b16 %v7271
    %v7950 = vunpack.c.h.b16 %v7271
    %v7951 = vunpack.c.l.b16 %v7272
    %v7952 = vunpack.c.h.b16 %v7272
    %v7953 = vunpack.c.l.b16 %v7273
    %v7954 = vunpack.c.h.b16 %v7273
    %v7955 = vunpack.c.l.b16 %v7274
    %v7956 = vunpack.c.h.b16 %v7274
    %v7957 = vunpack.c.l.b16 %v7275
    %v7958 = vunpack.c.h.b16 %v7275
    %v7959 = vunpack.c.l.b16 %v7276
    %v7960 = vunpack.c.h.b16 %v7276
    %v7961 = vunpack.c.l.b16 %v7277
    %v7962 = vunpack.c.h.b16 %v7277
    %v7963 = vunpack.c.l.b16 %v7278
    %v7964 = vunpack.c.h.b16 %v7278
    %v7965 = vunpack.c.l.b16 %v7279
    %v7966 = vunpack.c.h.b16 %v7279
    %v7967 = vunpack.c.l.b16 %v7280
    %v7968 = vunpack.c.h.b16 %v7280
    %v7969 = vunpack.c.l.b16 %v7281
    %v7970 = vunpack.c.h.b16 %v7281
    %v7971 = vunpack.c.l.b16 %v7282
    %v7972 = vunpack.c.h.b16 %v7282
    %v7973 = vunpack.c.l.b16 %v7283
    %v7974 = vunpack.c.h.b16 %v7283
    %v7975 = vunpack.c.l.b16 %v7284
    %v7976 = vunpack.c.h.b16 %v7284
    %v7977 = vunpack.c.l.b16 %v7285
    %v7978 = vunpack.c.h.b16 %v7285
    %v7979 = vunpack.c.l.b16 %v7286
    %v7980 = vunpack.c.h.b16 %v7286
    %v7981 = vunpack.c.l.b16 %v7287
    %v7982 = vunpack.c.h.b16 %v7287
    %v7983 = vunpack.c.l.b16 %v7288
    %v7984 = vunpack.c.h.b16 %v7288
    %v7985 = vunpack.c.l.b16 %v7289
    %v7986 = vunpack.c.h.b16 %v7289
    %v7987 = vunpack.c.l.b16 %v7290
    %v7988 = vunpack.c.h.b16 %v7290
    %v7989 = vunpack.c.l.b16 %v7291
    %v7990 = vunpack.c.h.b16 %v7291
    %v7991 = vunpack.c.l.b16 %v7292
    %v7992 = vunpack.c.h.b16 %v7292
    %v7993 = vunpack.c.l.b16 %v7293
    %v7994 = vunpack.c.h.b16 %v7293
    %v7995 = vunpack.c.l.b16 %v7294
    %v7996 = vunpack.c.h.b16 %v7294
    %v7997 = vunpack.c.l.b16 %v7295
    %v7998 = vunpack.c.h.b16 %v7295
    %v7999 = vunpack.c.l.b16 %v7296
    %v8000 = vunpack.c.h.b16 %v7296
    %v8001 = vunpack.c.l.b16 %v7297
    %v8002 = vunpack.c.h.b16 %v7297
    %v8003 = vunpack.c.l.b16 %v7298
    %v8004 = vunpack.c.h.b16 %v7298
    %v8005 = vunpack.c.l.b16 %v7299
    %v8006 = vunpack.c.h.b16 %v7299
    %v8007 = vunpack.c.l.b16 %v7300
    %v8008 = vunpack.c.h.b16 %v7300
    %v8009 = vunpack.c.l.b16 %v7301
    %v8010 = vunpack.c.h.b16 %v7301
    %v8011 = vunpack.c.l.b16 %v7302
    %v8012 = vunpack.c.h.b16 %v7302
    %v8013 = vunpack.c.l.b16 %v7303
    %v8014 = vunpack.c.h.b16 %v7303
    %v8015 = vunpack.c.l.b16 %v7304
    %v8016 = vunpack.c.h.b16 %v7304
    %v8017 = vunpack.c.l.b16 %v7305
    %v8018 = vunpack.c.h.b16 %v7305
    %v8019 = vunpack.c.l.b16 %v7306
    %v8020 = vunpack.c.h.b16 %v7306
    %v8021 = vunpack.c.l.b16 %v7307
    %v8022 = vunpack.c.h.b16 %v7307
    %v8023 = vunpack.c.l.b16 %v7308
    %v8024 = vunpack.c.h.b16 %v7308
    %v8025 = vunpack.c.l.b16 %v7309
    %v8026 = vunpack.c.h.b16 %v7309
    %v8027 = vunpack.c.l.b16 %v7310
    %v8028 = vunpack.c.h.b16 %v7310
    %v8029 = vunpack.c.l.b16 %v7311
    %v8030 = vunpack.c.h.b16 %v7311
    %v8031 = vunpack.c.l.b16 %v7312
    %v8032 = vunpack.c.h.b16 %v7312
    %v8033 = vunpack.c.l.b16 %v7313
    %v8034 = vunpack.c.h.b16 %v7313
    %v8035 = vunpack.c.l.b16 %v7314
    %v8036 = vunpack.c.h.b16 %v7314
    %v8037 = vunpack.c.l.b16 %v7315
    %v8038 = vunpack.c.h.b16 %v7315
    %v8039 = vunpack.c.l.b16 %v7316
    %v8040 = vunpack.c.h.b16 %v7316
    %v8041 = vunpack.c.l.b16 %v7317
    %v8042 = vunpack.c.h.b16 %v7317
    %v8043 = vunpack.c.l.b16 %v7318
    %v8044 = vunpack.c.h.b16 %v7318
    %v8045 = vunpack.c.l.b16 %v7319
    %v8046 = vunpack.c.h.b16 %v7319
    %v8047 = vunpack.c.l.b16 %v7320
    %v8048 = vunpack.c.h.b16 %v7320
    %v8049 = vunpack.c.l.b16 %v7321
    %v8050 = vunpack.c.h.b16 %v7321
    %v8051 = vunpack.c.l.b16 %v7322
    %v8052 = vunpack.c.h.b16 %v7322
    %v8053 = vunpack.c.l.b16 %v7323
    %v8054 = vunpack.c.h.b16 %v7323
    %v8055 = vunpack.c.l.b16 %v7324
    %v8056 = vunpack.c.h.b16 %v7324
    %v8057 = vunpack.c.l.b16 %v7325
    %v8058 = vunpack.c.h.b16 %v7325
    %v8059 = vunpack.c.l.b16 %v7326
    %v8060 = vunpack.c.h.b16 %v7326
    %v8061 = vunpack.c.l.b16 %v7327
    %v8062 = vunpack.c.h.b16 %v7327
    %v8063 = vunpack.c.l.b16 %v7328
    %v8064 = vunpack.c.h.b16 %v7328
    %v8065 = vunpack.c.l.b16 %v7329
    %v8066 = vunpack.c.h.b16 %v7329
    %v8067 = vunpack.c.l.b16 %v7330
    %v8068 = vunpack.c.h.b16 %v7330
    %v8069 = vunpack.c.l.b16 %v7331
    %v8070 = vunpack.c.h.b16 %v7331
    %v8071 = vunpack.c.l.b16 %v7332
    %v8072 = vunpack.c.h.b16 %v7332
    %v8073 = vunpack.c.l.b16 %v7333
    %v8074 = vunpack.c.h.b16 %v7333
    %v8075 = vunpack.c.l.b16 %v7334
    %v8076 = vunpack.c.h.b16 %v7334
    %v8077 = vunpack.c.l.b16 %v7335
    %v8078 = vunpack.c.h.b16 %v7335
    %v8079 = vunpack.c.l.b16 %v7336
    %v8080 = vunpack.c.h.b16 %v7336
    %v8081 = vunpack.c.l.b16 %v7337
    %v8082 = vunpack.c.h.b16 %v7337
    %v8083 = vunpack.c.l.b16 %v7338
    %v8084 = vunpack.c.h.b16 %v7338
    %v8085 = vunpack.c.l.b16 %v7339
    %v8086 = vunpack.c.h.b16 %v7339
    %v8087 = vunpack.c.l.b16 %v7340
    %v8088 = vunpack.c.h.b16 %v7340
    %v8089 = vunpack.c.l.b16 %v7341
    %v8090 = vunpack.c.h.b16 %v7341
    %v8091 = vunpack.c.l.b16 %v7342
    %v8092 = vunpack.c.h.b16 %v7342
    %v8093 = vunpack.c.l.b16 %v7343
    %v8094 = vunpack.c.h.b16 %v7343
    %v8095 = vunpack.c.l.b16 %v7344
    %v8096 = vunpack.c.h.b16 %v7344
    %v8097 = vunpack.c.l.b16 %v7345
    %v8098 = vunpack.c.h.b16 %v7345
    %v8099 = vunpack.c.l.b16 %v7346
    %v8100 = vunpack.c.h.b16 %v7346
    %v8101 = vunpack.c.l.b16 %v7347
    %v8102 = vunpack.c.h.b16 %v7347
    %v8103 = vunpack.c.l.b16 %v7348
    %v8104 = vunpack.c.h.b16 %v7348
    %v8105 = vunpack.c.l.b16 %v7349
    %v8106 = vunpack.c.h.b16 %v7349
    %v8107 = vunpack.c.l.b16 %v7350
    %v8108 = vunpack.c.h.b16 %v7350
    %v8109 = vunpack.c.l.b16 %v7351
    %v8110 = vunpack.c.h.b16 %v7351
    %v8111 = vunpack.c.l.b16 %v7352
    %v8112 = vunpack.c.h.b16 %v7352
    %v8113 = vunpack.c.l.b16 %v7353
    %v8114 = vunpack.c.h.b16 %v7353
    %v8115 = vunpack.c.l.b16 %v7354
    %v8116 = vunpack.c.h.b16 %v7354
    %v8117 = vunpack.c.l.b16 %v7355
    %v8118 = vunpack.c.h.b16 %v7355
    %v8119 = vunpack.c.l.b16 %v7356
    %v8120 = vunpack.c.h.b16 %v7356
    %v8121 = vunpack.c.l.b16 %v7357
    %v8122 = vunpack.c.h.b16 %v7357
    %v8123 = vunpack.c.l.b16 %v7358
    %v8124 = vunpack.c.h.b16 %v7358
    %v8125 = vunpack.c.l.b16 %v7359
    %v8126 = vunpack.c.h.b16 %v7359
    %v8127 = vunpack.c.l.b16 %v7360
    %v8128 = vunpack.c.h.b16 %v7360
    %v8129 = vpack.c.b16 %v7625, %v7617
    %v8130 = vpack.c.b16 %v7626, %v7618
    %v8131 = vpack.c.b16 %v7627, %v7619
    %v8132 = vpack.c.b16 %v7628, %v7620
    %v8133 = vpack.c.b16 %v7629, %v7621
    %v8134 = vpack.c.b16 %v7630, %v7622
    %v8135 = vpack.c.b16 %v7631, %v7623
    %v8136 = vpack.c.b16 %v7632, %v7624
    %v8137 = vpack.c.b16 %v7641, %v7633
    %v8138 = vpack.c.b16 %v7642, %v7634
    %v8139 = vpack.c.b16 %v7643, %v7635
    %v8140 = vpack.c.b16 %v7644, %v7636
    %v8141 = vpack.c.b16 %v7645, %v7637
    %v8142 = vpack.c.b16 %v7646, %v7638
    %v8143 = vpack.c.b16 %v7647, %v7639
    %v8144 = vpack.c.b16 %v7648, %v7640
    %v8145 = vpack.c.b16 %v7657, %v7649
    %v8146 = vpack.c.b16 %v7658, %v7650
    %v8147 = vpack.c.b16 %v7659, %v7651
    %v8148 = vpack.c.b16 %v7660, %v7652
    %v8149 = vpack.c.b16 %v7661, %v7653
    %v8150 = vpack.c.b16 %v7662, %v7654
    %v8151 = vpack.c.b16 %v7663, %v7655
    %v8152 = vpack.c.b16 %v7664, %v7656
    %v8153 = vpack.c.b16 %v7673, %v7665
    %v8154 = vpack.c.b16 %v7674, %v7666
    %v8155 = vpack.c.b16 %v7675, %v7667
    %v8156 = vpack.c.b16 %v7676, %v7668
    %v8157 = vpack.c.b16 %v7677, %v7669
    %v8158 = vpack.c.b16 %v7678, %v7670
    %v8159 = vpack.c.b16 %v7679, %v7671
    %v8160 = vpack.c.b16 %v7680, %v7672
    %v8161 = vpack.c.b16 %v7689, %v7681
    %v8162 = vpack.c.b16 %v7690, %v7682
    %v8163 = vpack.c.b16 %v7691, %v7683
    %v8164 = vpack.c.b16 %v7692, %v7684
    %v8165 = vpack.c.b16 %v7693, %v7685
    %v8166 = vpack.c.b16 %v7694, %v7686
    %v8167 = vpack.c.b16 %v7695, %v7687
    %v8168 = vpack.c.b16 %v7696, %v7688
    %v8169 = vpack.c.b16 %v7705, %v7697
    %v8170 = vpack.c.b16 %v7706, %v7698
    %v8171 = vpack.c.b16 %v7707, %v7699
    %v8172 = vpack.c.b16 %v7708, %v7700
    %v8173 = vpack.c.b16 %v7709, %v7701
    %v8174 = vpack.c.b16 %v7710, %v7702
    %v8175 = vpack.c.b16 %v7711, %v7703
    %v8176 = vpack.c.b16 %v7712, %v7704
    %v8177 = vpack.c.b16 %v7721, %v7713
    %v8178 = vpack.c.b16 %v7722, %v7714
    %v8179 = vpack.c.b16 %v7723, %v7715
    %v8180 = vpack.c.b16 %v7724, %v7716
    %v8181 = vpack.c.b16 %v7725, %v7717
    %v8182 = vpack.c.b16 %v7726, %v7718
    %v8183 = vpack.c.b16 %v7727, %v7719
    %v8184 = vpack.c.b16 %v7728, %v7720
    %v8185 = vpack.c.b16 %v7737, %v7729
    %v8186 = vpack.c.b16 %v7738, %v7730
    %v8187 = vpack.c.b16 %v7739, %v7731
    %v8188 = vpack.c.b16 %v7740, %v7732
    %v8189 = vpack.c.b16 %v7741, %v7733
    %v8190 = vpack.c.b16 %v7742, %v7734
    %v8191 = vpack.c.b16 %v7743, %v7735
    %v8192 = vpack.c.b16 %v7744, %v7736
    %v8193 = vpack.c.b16 %v7753, %v7745
    %v8194 = vpack.c.b16 %v7754, %v7746
    %v8195 = vpack.c.b16 %v7755, %v7747
    %v8196 = vpack.c.b16 %v7756, %v7748
    %v8197 = vpack.c.b16 %v7757, %v7749
    %v8198 = vpack.c.b16 %v7758, %v7750
    %v8199 = vpack.c.b16 %v7759, %v7751
    %v8200 = vpack.c.b16 %v7760, %v7752
    %v8201 = vpack.c.b16 %v7769, %v7761
    %v8202 = vpack.c.b16 %v7770, %v7762
    %v8203 = vpack.c.b16 %v7771, %v7763
    %v8204 = vpack.c.b16 %v7772, %v7764
    %v8205 = vpack.c.b16 %v7773, %v7765
    %v8206 = vpack.c.b16 %v7774, %v7766
    %v8207 = vpack.c.b16 %v7775, %v7767
    %v8208 = vpack.c.b16 %v7776, %v7768
    %v8209 = vpack.c.b16 %v7785, %v7777
    %v8210 = vpack.c.b16 %v7786, %v7778
    %v8211 = vpack.c.b16 %v7787, %v7779
    %v8212 = vpack.c.b16 %v7788, %v7780
    %v8213 = vpack.c.b16 %v7789, %v7781
    %v8214 = vpack.c.b16 %v7790, %v7782
    %v8215 = vpack.c.b16 %v7791, %v7783
    %v8216 = vpack.c.b16 %v7792, %v7784
    %v8217 = vpack.c.b16 %v7801, %v7793
    %v8218 = vpack.c.b16 %v7802, %v7794
    %v8219 = vpack.c.b16 %v7803, %v7795
    %v8220 = vpack.c.b16 %v7804, %v7796
    %v8221 = vpack.c.b16 %v7805, %v7797
    %v8222 = vpack.c.b16 %v7806, %v7798
    %v8223 = vpack.c.b16 %v7807, %v7799
    %v8224 = vpack.c.b16 %v7808, %v7800
    %v8225 = vpack.c.b16 %v7817, %v7809
    %v8226 = vpack.c.b16 %v7818, %v7810
    %v8227 = vpack.c.b16 %v7819, %v7811
    %v8228 = vpack.c.b16 %v7820, %v7812
    %v8229 = vpack.c.b16 %v7821, %v7813
    %v8230 = vpack.c.b16 %v7822, %v7814
    %v8231 = vpack.c.b16 %v7823, %v7815
    %v8232 = vpack.c.b16 %v7824, %v7816
    %v8233 = vpack.c.b16 %v7833, %v7825
    %v8234 = vpack.c.b16 %v7834, %v7826
    %v8235 = vpack.c.b16 %v7835, %v7827
    %v8236 = vpack.c.b16 %v7836, %v7828
    %v8237 = vpack.c.b16 %v7837, %v7829
    %v8238 = vpack.c.b16 %v7838, %v7830
    %v8239 = vpack.c.b16 %v7839, %v7831
    %v8240 = vpack.c.b16 %v7840, %v7832
    %v8241 = vpack.c.b16 %v7849, %v7841
    %v8242 = vpack.c.b16 %v7850, %v7842
    %v8243 = vpack.c.b16 %v7851, %v7843
    %v8244 = vpack.c.b16 %v7852, %v7844
    %v8245 = vpack.c.b16 %v7853, %v7845
    %v8246 = vpack.c.b16 %v7854, %v7846
    %v8247 = vpack.c.b16 %v7855, %v7847
    %v8248 = vpack.c.b16 %v7856, %v7848
    %v8249 = vpack.c.b16 %v7865, %v7857
    %v8250 = vpack.c.b16 %v7866, %v7858
    %v8251 = vpack.c.b16 %v7867, %v7859
    %v8252 = vpack.c.b16 %v7868, %v7860
    %v8253 = vpack.c.b16 %v7869, %v7861
    %v8254 = vpack.c.b16 %v7870, %v7862
    %v8255 = vpack.c.b16 %v7871, %v7863
    %v8256 = vpack.c.b16 %v7872, %v7864
    %v8257 = vpack.c.b16 %v7881, %v7873
    %v8258 = vpack.c.b16 %v7882, %v7874
    %v8259 = vpack.c.b16 %v7883, %v7875
    %v8260 = vpack.c.b16 %v7884, %v7876
    %v8261 = vpack.c.b16 %v7885, %v7877
    %v8262 = vpack.c.b16 %v7886, %v7878
    %v8263 = vpack.c.b16 %v7887, %v7879
    %v8264 = vpack.c.b16 %v7888, %v7880
    %v8265 = vpack.c.b16 %v7897, %v7889
    %v8266 = vpack.c.b16 %v7898, %v7890
    %v8267 = vpack.c.b16 %v7899, %v7891
    %v8268 = vpack.c.b16 %v7900, %v7892
    %v8269 = vpack.c.b16 %v7901, %v7893
    %v8270 = vpack.c.b16 %v7902, %v7894
    %v8271 = vpack.c.b16 %v7903, %v7895
    %v8272 = vpack.c.b16 %v7904, %v7896
    %v8273 = vpack.c.b16 %v7913, %v7905
    %v8274 = vpack.c.b16 %v7914, %v7906
    %v8275 = vpack.c.b16 %v7915, %v7907
    %v8276 = vpack.c.b16 %v7916, %v7908
    %v8277 = vpack.c.b16 %v7917, %v7909
    %v8278 = vpack.c.b16 %v7918, %v7910
    %v8279 = vpack.c.b16 %v7919, %v7911
    %v8280 = vpack.c.b16 %v7920, %v7912
    %v8281 = vpack.c.b16 %v7929, %v7921
    %v8282 = vpack.c.b16 %v7930, %v7922
    %v8283 = vpack.c.b16 %v7931, %v7923
    %v8284 = vpack.c.b16 %v7932, %v7924
    %v8285 = vpack.c.b16 %v7933, %v7925
    %v8286 = vpack.c.b16 %v7934, %v7926
    %v8287 = vpack.c.b16 %v7935, %v7927
    %v8288 = vpack.c.b16 %v7936, %v7928
    %v8289 = vpack.c.b16 %v7945, %v7937
    %v8290 = vpack.c.b16 %v7946, %v7938
    %v8291 = vpack.c.b16 %v7947, %v7939
    %v8292 = vpack.c.b16 %v7948, %v7940
    %v8293 = vpack.c.b16 %v7949, %v7941
    %v8294 = vpack.c.b16 %v7950, %v7942
    %v8295 = vpack.c.b16 %v7951, %v7943
    %v8296 = vpack.c.b16 %v7952, %v7944
    %v8297 = vpack.c.b16 %v7961, %v7953
    %v8298 = vpack.c.b16 %v7962, %v7954
    %v8299 = vpack.c.b16 %v7963, %v7955
    %v8300 = vpack.c.b16 %v7964, %v7956
    %v8301 = vpack.c.b16 %v7965, %v7957
    %v8302 = vpack.c.b16 %v7966, %v7958
    %v8303 = vpack.c.b16 %v7967, %v7959
    %v8304 = vpack.c.b16 %v7968, %v7960
    %v8305 = vpack.c.b16 %v7977, %v7969
    %v8306 = vpack.c.b16 %v7978, %v7970
    %v8307 = vpack.c.b16 %v7979, %v7971
    %v8308 = vpack.c.b16 %v7980, %v7972
    %v8309 = vpack.c.b16 %v7981, %v7973
    %v8310 = vpack.c.b16 %v7982, %v7974
    %v8311 = vpack.c.b16 %v7983, %v7975
    %v8312 = vpack.c.b16 %v7984, %v7976
    %v8313 = vpack.c.b16 %v7993, %v7985
    %v8314 = vpack.c.b16 %v7994, %v7986
    %v8315 = vpack.c.b16 %v7995, %v7987
    %v8316 = vpack.c.b16 %v7996, %v7988
    %v8317 = vpack.c.b16 %v7997, %v7989
    %v8318 = vpack.c.b16 %v7998, %v7990
    %v8319 = vpack.c.b16 %v7999, %v7991
    %v8320 = vpack.c.b16 %v8000, %v7992
    %v8321 = vpack.c.b16 %v8009, %v8001
    %v8322 = vpack.c.b16 %v8010, %v8002
    %v8323 = vpack.c.b16 %v8011, %v8003
    %v8324 = vpack.c.b16 %v8012, %v8004
    %v8325 = vpack.c.b16 %v8013, %v8005
    %v8326 = vpack.c.b16 %v8014, %v8006
    %v8327 = vpack.c.b16 %v8015, %v8007
    %v8328 = vpack.c.b16 %v8016, %v8008
    %v8329 = vpack.c.b16 %v8025, %v8017
    %v8330 = vpack.c.b16 %v8026, %v8018
    %v8331 = vpack.c.b16 %v8027, %v8019
    %v8332 = vpack.c.b16 %v8028, %v8020
    %v8333 = vpack.c.b16 %v8029, %v8021
    %v8334 = vpack.c.b16 %v8030, %v8022
    %v8335 = vpack.c.b16 %v8031, %v8023
    %v8336 = vpack.c.b16 %v8032, %v8024
    %v8337 = vpack.c.b16 %v8041, %v8033
    %v8338 = vpack.c.b16 %v8042, %v8034
    %v8339 = vpack.c.b16 %v8043, %v8035
    %v8340 = vpack.c.b16 %v8044, %v8036
    %v8341 = vpack.c.b16 %v8045, %v8037
    %v8342 = vpack.c.b16 %v8046, %v8038
    %v8343 = vpack.c.b16 %v8047, %v8039
    %v8344 = vpack.c.b16 %v8048, %v8040
    %v8345 = vpack.c.b16 %v8057, %v8049
    %v8346 = vpack.c.b16 %v8058, %v8050
    %v8347 = vpack.c.b16 %v8059, %v8051
    %v8348 = vpack.c.b16 %v8060, %v8052
    %v8349 = vpack.c.b16 %v8061, %v8053
    %v8350 = vpack.c.b16 %v8062, %v8054
    %v8351 = vpack.c.b16 %v8063, %v8055
    %v8352 = vpack.c.b16 %v8064, %v8056
    %v8353 = vpack.c.b16 %v8073, %v8065
    %v8354 = vpack.c.b16 %v8074, %v8066
    %v8355 = vpack.c.b16 %v8075, %v8067
    %v8356 = vpack.c.b16 %v8076, %v8068
    %v8357 = vpack.c.b16 %v8077, %v8069
    %v8358 = vpack.c.b16 %v8078, %v8070
    %v8359 = vpack.c.b16 %v8079, %v8071
    %v8360 = vpack.c.b16 %v8080, %v8072
    %v8361 = vpack.c.b16 %v8089, %v8081
    %v8362 = vpack.c.b16 %v8090, %v8082
    %v8363 = vpack.c.b16 %v8091, %v8083
    %v8364 = vpack.c.b16 %v8092, %v8084
    %v8365 = vpack.c.b16 %v8093, %v8085
    %v8366 = vpack.c.b16 %v8094, %v8086
    %v8367 = vpack.c.b16 %v8095, %v8087
    %v8368 = vpack.c.b16 %v8096, %v8088
    %v8369 = vpack.c.b16 %v8105, %v8097
    %v8370 = vpack.c.b16 %v8106, %v8098
    %v8371 = vpack.c.b16 %v8107, %v8099
    %v8372 = vpack.c.b16 %v8108, %v8100
    %v8373 = vpack.c.b16 %v8109, %v8101
    %v8374 = vpack.c.b16 %v8110, %v8102
    %v8375 = vpack.c.b16 %v8111, %v8103
    %v8376 = vpack.c.b16 %v8112, %v8104
    %v8377 = vpack.c.b16 %v8121, %v8113
    %v8378 = vpack.c.b16 %v8122, %v8114
    %v8379 = vpack.c.b16 %v8123, %v8115
    %v8380 = vpack.c.b16 %v8124, %v8116
    %v8381 = vpack.c.b16 %v8125, %v8117
    %v8382 = vpack.c.b16 %v8126, %v8118
    %v8383 = vpack.c.b16 %v8127, %v8119
    %v8384 = vpack.c.b16 %v8128, %v8120
    %8641 = vmatprep.subr.bf16.mxu0 %v8186
    %8642 = vmatpush1.bf16.msra.mxu0 %v8185
    %8643 = vmatprep.subr.bf16.mxu0 %v8178
    %8644 = vmatpush1.bf16.msra.mxu0 %v8177
    %8645 = vmatprep.subr.bf16.mxu0 %v8170
    %8646 = vmatpush1.bf16.msra.mxu0 %v8169
    %8647 = vmatprep.subr.bf16.mxu0 %v8162
    %8648 = vmatpush1.bf16.msra.mxu0 %v8161
    %8649 = vmatprep.subr.bf16.mxu0 %v8154
    %8650 = vmatpush1.bf16.msra.mxu0 %v8153
    %8651 = vmatprep.subr.bf16.mxu0 %v8146
    %8652 = vmatpush1.bf16.msra.mxu0 %v8145
    %8653 = vmatprep.subr.bf16.mxu0 %v8138
    %8654 = vmatpush1.bf16.msra.mxu0 %v8137
    %8655 = vmatprep.subr.bf16.mxu0 %v8130
    %8656 = vmatpush1.bf16.msra.mxu0 %v8129
    %8657 = vmatprep.subr.bf16.mxu0 %v8250
    %8658 = vmatpush2.bf16.msra.mxu0 %v8249
    %8659 = vmatprep.subr.bf16.mxu0 %v8242
    %8660 = vmatpush2.bf16.msra.mxu0 %v8241
    %8661 = vmatprep.subr.bf16.mxu0 %v8234
    %8662 = vmatpush2.bf16.msra.mxu0 %v8233
    %8663 = vmatprep.subr.bf16.mxu0 %v8226
    %8664 = vmatpush2.bf16.msra.mxu0 %v8225
    %8665 = vmatprep.subr.bf16.mxu0 %v8218
    %8666 = vmatpush2.bf16.msra.mxu0 %v8217
    %8667 = vmatprep.subr.bf16.mxu0 %v8210
    %8668 = vmatpush2.bf16.msra.mxu0 %v8209
    %8669 = vmatprep.subr.bf16.mxu0 %v8202
    %8670 = vmatpush2.bf16.msra.mxu0 %v8201
    %8671 = vmatprep.subr.bf16.mxu0 %v8194
    %8672 = vmatpush2.bf16.msra.mxu0 %v8193
    %8673 = vmatprep.mubr.bf16.mxu0 %v7090
    %8674 = vmatmul.mubr.bf16.gmra.mxu0 %v7089
    %v8675 = vpop.f32.mrf.mxu0
    %v8676 = vadd.f32 0.0, %v8675
    %v8677 = vpop.f32.mrf.mxu0
    %v8678 = vadd.f32 0.0, %v8677
    %v8679 = vpop.f32.mrf.mxu0
    %v8680 = vadd.f32 0.0, %v8679
    %v8681 = vpop.f32.mrf.mxu0
    %v8682 = vadd.f32 0.0, %v8681
    %8683 = vmatprep.mubr.bf16.mxu0 %v7094
    %8684 = vmatmul.mubr.bf16.gmra.mxu0 %v7093
    %v8685 = vpop.f32.mrf.mxu0
    %v8686 = vadd.f32 0.0, %v8685
    %v8687 = vpop.f32.mrf.mxu0
    %v8688 = vadd.f32 0.0, %v8687
    %v8689 = vpop.f32.mrf.mxu0
    %v8690 = vadd.f32 0.0, %v8689
    %v8691 = vpop.f32.mrf.mxu0
    %v8692 = vadd.f32 0.0, %v8691
    %8693 = vmatprep.mubr.bf16.mxu0 %v7098
    %8694 = vmatmul.mubr.bf16.gmra.mxu0 %v7097
    %v8695 = vpop.f32.mrf.mxu0
    %v8696 = vadd.f32 0.0, %v8695
    %v8697 = vpop.f32.mrf.mxu0
    %v8698 = vadd.f32 0.0, %v8697
    %v8699 = vpop.f32.mrf.mxu0
    %v8700 = vadd.f32 0.0, %v8699
    %v8701 = vpop.f32.mrf.mxu0
    %v8702 = vadd.f32 0.0, %v8701
    %8703 = vmatprep.mubr.bf16.mxu0 %v7102
    %8704 = vmatmul.mubr.bf16.gmra.mxu0 %v7101
    %v8705 = vpop.f32.mrf.mxu0
    %v8706 = vadd.f32 0.0, %v8705
    %v8707 = vpop.f32.mrf.mxu0
    %v8708 = vadd.f32 0.0, %v8707
    %v8709 = vpop.f32.mrf.mxu0
    %v8710 = vadd.f32 0.0, %v8709
    %v8711 = vpop.f32.mrf.mxu0
    %v8712 = vadd.f32 0.0, %v8711
    %8713 = vdwg.mxu0
    %8714 = vmatprep.subr.bf16.mxu0 %v8314
    %8715 = vmatpush1.bf16.msra.mxu0 %v8313
    %8716 = vmatprep.subr.bf16.mxu0 %v8306
    %8717 = vmatpush1.bf16.msra.mxu0 %v8305
    %8718 = vmatprep.subr.bf16.mxu0 %v8298
    %8719 = vmatpush1.bf16.msra.mxu0 %v8297
    %8720 = vmatprep.subr.bf16.mxu0 %v8290
    %8721 = vmatpush1.bf16.msra.mxu0 %v8289
    %8722 = vmatprep.subr.bf16.mxu0 %v8282
    %8723 = vmatpush1.bf16.msra.mxu0 %v8281
    %8724 = vmatprep.subr.bf16.mxu0 %v8274
    %8725 = vmatpush1.bf16.msra.mxu0 %v8273
    %8726 = vmatprep.subr.bf16.mxu0 %v8266
    %8727 = vmatpush1.bf16.msra.mxu0 %v8265
    %8728 = vmatprep.subr.bf16.mxu0 %v8258
    %8729 = vmatpush1.bf16.msra.mxu0 %v8257
    %8730 = vmatprep.subr.bf16.mxu0 %v8378
    %8731 = vmatpush2.bf16.msra.mxu0 %v8377
    %8732 = vmatprep.subr.bf16.mxu0 %v8370
    %8733 = vmatpush2.bf16.msra.mxu0 %v8369
    %8734 = vmatprep.subr.bf16.mxu0 %v8362
    %8735 = vmatpush2.bf16.msra.mxu0 %v8361
    %8736 = vmatprep.subr.bf16.mxu0 %v8354
    %8737 = vmatpush2.bf16.msra.mxu0 %v8353
    %8738 = vmatprep.subr.bf16.mxu0 %v8346
    %8739 = vmatpush2.bf16.msra.mxu0 %v8345
    %8740 = vmatprep.subr.bf16.mxu0 %v8338
    %8741 = vmatpush2.bf16.msra.mxu0 %v8337
    %8742 = vmatprep.subr.bf16.mxu0 %v8330
    %8743 = vmatpush2.bf16.msra.mxu0 %v8329
    %8744 = vmatprep.subr.bf16.mxu0 %v8322
    %8745 = vmatpush2.bf16.msra.mxu0 %v8321
    %8746 = vmatprep.mubr.bf16.mxu0 %v7092
    %8747 = vmatmul.mubr.bf16.gmra.mxu0 %v7091
    %v8748 = vpop.f32.mrf.mxu0
    %v8749 = vadd.f32 %v8676, %v8748
    %v8750 = vpop.f32.mrf.mxu0
    %v8751 = vadd.f32 %v8678, %v8750
    %v8752 = vpop.f32.mrf.mxu0
    %v8753 = vadd.f32 %v8680, %v8752
    %v8754 = vpop.f32.mrf.mxu0
    %v8755 = vadd.f32 %v8682, %v8754
    %8756 = vmatprep.mubr.bf16.mxu0 %v7096
    %8757 = vmatmul.mubr.bf16.gmra.mxu0 %v7095
    %v8758 = vpop.f32.mrf.mxu0
    %v8759 = vadd.f32 %v8686, %v8758
    %v8760 = vpop.f32.mrf.mxu0
    %v8761 = vadd.f32 %v8688, %v8760
    %v8762 = vpop.f32.mrf.mxu0
    %v8763 = vadd.f32 %v8690, %v8762
    %v8764 = vpop.f32.mrf.mxu0
    %v8765 = vadd.f32 %v8692, %v8764
    %8766 = vmatprep.mubr.bf16.mxu0 %v7100
    %8767 = vmatmul.mubr.bf16.gmra.mxu0 %v7099
    %v8768 = vpop.f32.mrf.mxu0
    %v8769 = vadd.f32 %v8696, %v8768
    %v8770 = vpop.f32.mrf.mxu0
    %v8771 = vadd.f32 %v8698, %v8770
    %v8772 = vpop.f32.mrf.mxu0
    %v8773 = vadd.f32 %v8700, %v8772
    %v8774 = vpop.f32.mrf.mxu0
    %v8775 = vadd.f32 %v8702, %v8774
    %8776 = vmatprep.mubr.bf16.mxu0 %v7104
    %8777 = vmatmul.mubr.bf16.gmra.mxu0 %v7103
    %v8778 = vpop.f32.mrf.mxu0
    %v8779 = vadd.f32 %v8706, %v8778
    %v8780 = vpop.f32.mrf.mxu0
    %v8781 = vadd.f32 %v8708, %v8780
    %v8782 = vpop.f32.mrf.mxu0
    %v8783 = vadd.f32 %v8710, %v8782
    %v8784 = vpop.f32.mrf.mxu0
    %v8785 = vadd.f32 %v8712, %v8784
    %8786 = vdwg.mxu0
    %8787 = vmatprep.subr.bf16.mxu0 %v8188
    %8788 = vmatpush1.bf16.msra.mxu0 %v8187
    %8789 = vmatprep.subr.bf16.mxu0 %v8180
    %8790 = vmatpush1.bf16.msra.mxu0 %v8179
    %8791 = vmatprep.subr.bf16.mxu0 %v8172
    %8792 = vmatpush1.bf16.msra.mxu0 %v8171
    %8793 = vmatprep.subr.bf16.mxu0 %v8164
    %8794 = vmatpush1.bf16.msra.mxu0 %v8163
    %8795 = vmatprep.subr.bf16.mxu0 %v8156
    %8796 = vmatpush1.bf16.msra.mxu0 %v8155
    %8797 = vmatprep.subr.bf16.mxu0 %v8148
    %8798 = vmatpush1.bf16.msra.mxu0 %v8147
    %8799 = vmatprep.subr.bf16.mxu0 %v8140
    %8800 = vmatpush1.bf16.msra.mxu0 %v8139
    %8801 = vmatprep.subr.bf16.mxu0 %v8132
    %8802 = vmatpush1.bf16.msra.mxu0 %v8131
    %8803 = vmatprep.subr.bf16.mxu0 %v8252
    %8804 = vmatpush2.bf16.msra.mxu0 %v8251
    %8805 = vmatprep.subr.bf16.mxu0 %v8244
    %8806 = vmatpush2.bf16.msra.mxu0 %v8243
    %8807 = vmatprep.subr.bf16.mxu0 %v8236
    %8808 = vmatpush2.bf16.msra.mxu0 %v8235
    %8809 = vmatprep.subr.bf16.mxu0 %v8228
    %8810 = vmatpush2.bf16.msra.mxu0 %v8227
    %8811 = vmatprep.subr.bf16.mxu0 %v8220
    %8812 = vmatpush2.bf16.msra.mxu0 %v8219
    %8813 = vmatprep.subr.bf16.mxu0 %v8212
    %8814 = vmatpush2.bf16.msra.mxu0 %v8211
    %8815 = vmatprep.subr.bf16.mxu0 %v8204
    %8816 = vmatpush2.bf16.msra.mxu0 %v8203
    %8817 = vmatprep.subr.bf16.mxu0 %v8196
    %8818 = vmatpush2.bf16.msra.mxu0 %v8195
    %8819 = vmatprep.mubr.bf16.mxu0 %v7090
    %8820 = vmatmul.mubr.bf16.gmra.mxu0 %v7089
    %v8821 = vpop.f32.mrf.mxu0
    %v8822 = vadd.f32 0.0, %v8821
    %v8823 = vpop.f32.mrf.mxu0
    %v8824 = vadd.f32 0.0, %v8823
    %v8825 = vpop.f32.mrf.mxu0
    %v8826 = vadd.f32 0.0, %v8825
    %v8827 = vpop.f32.mrf.mxu0
    %v8828 = vadd.f32 0.0, %v8827
    %8829 = vmatprep.mubr.bf16.mxu0 %v7094
    %8830 = vmatmul.mubr.bf16.gmra.mxu0 %v7093
    %v8831 = vpop.f32.mrf.mxu0
    %v8832 = vadd.f32 0.0, %v8831
    %v8833 = vpop.f32.mrf.mxu0
    %v8834 = vadd.f32 0.0, %v8833
    %v8835 = vpop.f32.mrf.mxu0
    %v8836 = vadd.f32 0.0, %v8835
    %v8837 = vpop.f32.mrf.mxu0
    %v8838 = vadd.f32 0.0, %v8837
    %8839 = vmatprep.mubr.bf16.mxu0 %v7098
    %8840 = vmatmul.mubr.bf16.gmra.mxu0 %v7097
    %v8841 = vpop.f32.mrf.mxu0
    %v8842 = vadd.f32 0.0, %v8841
    %v8843 = vpop.f32.mrf.mxu0
    %v8844 = vadd.f32 0.0, %v8843
    %v8845 = vpop.f32.mrf.mxu0
    %v8846 = vadd.f32 0.0, %v8845
    %v8847 = vpop.f32.mrf.mxu0
    %v8848 = vadd.f32 0.0, %v8847
    %8849 = vmatprep.mubr.bf16.mxu0 %v7102
    %8850 = vmatmul.mubr.bf16.gmra.mxu0 %v7101
    %v8851 = vpop.f32.mrf.mxu0
    %v8852 = vadd.f32 0.0, %v8851
    %v8853 = vpop.f32.mrf.mxu0
    %v8854 = vadd.f32 0.0, %v8853
    %v8855 = vpop.f32.mrf.mxu0
    %v8856 = vadd.f32 0.0, %v8855
    %v8857 = vpop.f32.mrf.mxu0
    %v8858 = vadd.f32 0.0, %v8857
    %8859 = vdwg.mxu0
    %8860 = vmatprep.subr.bf16.mxu0 %v8316
    %8861 = vmatpush1.bf16.msra.mxu0 %v8315
    %8862 = vmatprep.subr.bf16.mxu0 %v8308
    %8863 = vmatpush1.bf16.msra.mxu0 %v8307
    %8864 = vmatprep.subr.bf16.mxu0 %v8300
    %8865 = vmatpush1.bf16.msra.mxu0 %v8299
    %8866 = vmatprep.subr.bf16.mxu0 %v8292
    %8867 = vmatpush1.bf16.msra.mxu0 %v8291
    %8868 = vmatprep.subr.bf16.mxu0 %v8284
    %8869 = vmatpush1.bf16.msra.mxu0 %v8283
    %8870 = vmatprep.subr.bf16.mxu0 %v8276
    %8871 = vmatpush1.bf16.msra.mxu0 %v8275
    %8872 = vmatprep.subr.bf16.mxu0 %v8268
    %8873 = vmatpush1.bf16.msra.mxu0 %v8267
    %8874 = vmatprep.subr.bf16.mxu0 %v8260
    %8875 = vmatpush1.bf16.msra.mxu0 %v8259
    %8876 = vmatprep.subr.bf16.mxu0 %v8380
    %8877 = vmatpush2.bf16.msra.mxu0 %v8379
    %8878 = vmatprep.subr.bf16.mxu0 %v8372
    %8879 = vmatpush2.bf16.msra.mxu0 %v8371
    %8880 = vmatprep.subr.bf16.mxu0 %v8364
    %8881 = vmatpush2.bf16.msra.mxu0 %v8363
    %8882 = vmatprep.subr.bf16.mxu0 %v8356
    %8883 = vmatpush2.bf16.msra.mxu0 %v8355
    %8884 = vmatprep.subr.bf16.mxu0 %v8348
    %8885 = vmatpush2.bf16.msra.mxu0 %v8347
    %8886 = vmatprep.subr.bf16.mxu0 %v8340
    %8887 = vmatpush2.bf16.msra.mxu0 %v8339
    %8888 = vmatprep.subr.bf16.mxu0 %v8332
    %8889 = vmatpush2.bf16.msra.mxu0 %v8331
    %8890 = vmatprep.subr.bf16.mxu0 %v8324
    %8891 = vmatpush2.bf16.msra.mxu0 %v8323
    %8892 = vmatprep.mubr.bf16.mxu0 %v7092
    %8893 = vmatmul.mubr.bf16.gmra.mxu0 %v7091
    %v8894 = vpop.f32.mrf.mxu0
    %v8895 = vadd.f32 %v8822, %v8894
    %v8896 = vpop.f32.mrf.mxu0
    %v8897 = vadd.f32 %v8824, %v8896
    %v8898 = vpop.f32.mrf.mxu0
    %v8899 = vadd.f32 %v8826, %v8898
    %v8900 = vpop.f32.mrf.mxu0
    %v8901 = vadd.f32 %v8828, %v8900
    %8902 = vmatprep.mubr.bf16.mxu0 %v7096
    %8903 = vmatmul.mubr.bf16.gmra.mxu0 %v7095
    %v8904 = vpop.f32.mrf.mxu0
    %v8905 = vadd.f32 %v8832, %v8904
    %v8906 = vpop.f32.mrf.mxu0
    %v8907 = vadd.f32 %v8834, %v8906
    %v8908 = vpop.f32.mrf.mxu0
    %v8909 = vadd.f32 %v8836, %v8908
    %v8910 = vpop.f32.mrf.mxu0
    %v8911 = vadd.f32 %v8838, %v8910
    %8912 = vmatprep.mubr.bf16.mxu0 %v7100
    %8913 = vmatmul.mubr.bf16.gmra.mxu0 %v7099
    %v8914 = vpop.f32.mrf.mxu0
    %v8915 = vadd.f32 %v8842, %v8914
    %v8916 = vpop.f32.mrf.mxu0
    %v8917 = vadd.f32 %v8844, %v8916
    %v8918 = vpop.f32.mrf.mxu0
    %v8919 = vadd.f32 %v8846, %v8918
    %v8920 = vpop.f32.mrf.mxu0
    %v8921 = vadd.f32 %v8848, %v8920
    %8922 = vmatprep.mubr.bf16.mxu0 %v7104
    %8923 = vmatmul.mubr.bf16.gmra.mxu0 %v7103
    %v8924 = vpop.f32.mrf.mxu0
    %v8925 = vadd.f32 %v8852, %v8924
    %v8926 = vpop.f32.mrf.mxu0
    %v8927 = vadd.f32 %v8854, %v8926
    %v8928 = vpop.f32.mrf.mxu0
    %v8929 = vadd.f32 %v8856, %v8928
    %v8930 = vpop.f32.mrf.mxu0
    %v8931 = vadd.f32 %v8858, %v8930
    %8932 = vdwg.mxu0
    %8933 = vmatprep.subr.bf16.mxu0 %v8190
    %8934 = vmatpush1.bf16.msra.mxu0 %v8189
    %8935 = vmatprep.subr.bf16.mxu0 %v8182
    %8936 = vmatpush1.bf16.msra.mxu0 %v8181
    %8937 = vmatprep.subr.bf16.mxu0 %v8174
    %8938 = vmatpush1.bf16.msra.mxu0 %v8173
    %8939 = vmatprep.subr.bf16.mxu0 %v8166
    %8940 = vmatpush1.bf16.msra.mxu0 %v8165
    %8941 = vmatprep.subr.bf16.mxu0 %v8158
    %8942 = vmatpush1.bf16.msra.mxu0 %v8157
    %8943 = vmatprep.subr.bf16.mxu0 %v8150
    %8944 = vmatpush1.bf16.msra.mxu0 %v8149
    %8945 = vmatprep.subr.bf16.mxu0 %v8142
    %8946 = vmatpush1.bf16.msra.mxu0 %v8141
    %8947 = vmatprep.subr.bf16.mxu0 %v8134
    %8948 = vmatpush1.bf16.msra.mxu0 %v8133
    %8949 = vmatprep.subr.bf16.mxu0 %v8254
    %8950 = vmatpush2.bf16.msra.mxu0 %v8253
    %8951 = vmatprep.subr.bf16.mxu0 %v8246
    %8952 = vmatpush2.bf16.msra.mxu0 %v8245
    %8953 = vmatprep.subr.bf16.mxu0 %v8238
    %8954 = vmatpush2.bf16.msra.mxu0 %v8237
    %8955 = vmatprep.subr.bf16.mxu0 %v8230
    %8956 = vmatpush2.bf16.msra.mxu0 %v8229
    %8957 = vmatprep.subr.bf16.mxu0 %v8222
    %8958 = vmatpush2.bf16.msra.mxu0 %v8221
    %8959 = vmatprep.subr.bf16.mxu0 %v8214
    %8960 = vmatpush2.bf16.msra.mxu0 %v8213
    %8961 = vmatprep.subr.bf16.mxu0 %v8206
    %8962 = vmatpush2.bf16.msra.mxu0 %v8205
    %8963 = vmatprep.subr.bf16.mxu0 %v8198
    %8964 = vmatpush2.bf16.msra.mxu0 %v8197
    %8965 = vmatprep.mubr.bf16.mxu0 %v7090
    %8966 = vmatmul.mubr.bf16.gmra.mxu0 %v7089
    %v8967 = vpop.f32.mrf.mxu0
    %v8968 = vadd.f32 0.0, %v8967
    %v8969 = vpop.f32.mrf.mxu0
    %v8970 = vadd.f32 0.0, %v8969
    %v8971 = vpop.f32.mrf.mxu0
    %v8972 = vadd.f32 0.0, %v8971
    %v8973 = vpop.f32.mrf.mxu0
    %v8974 = vadd.f32 0.0, %v8973
    %8975 = vmatprep.mubr.bf16.mxu0 %v7094
    %8976 = vmatmul.mubr.bf16.gmra.mxu0 %v7093
    %v8977 = vpop.f32.mrf.mxu0
    %v8978 = vadd.f32 0.0, %v8977
    %v8979 = vpop.f32.mrf.mxu0
    %v8980 = vadd.f32 0.0, %v8979
    %v8981 = vpop.f32.mrf.mxu0
    %v8982 = vadd.f32 0.0, %v8981
    %v8983 = vpop.f32.mrf.mxu0
    %v8984 = vadd.f32 0.0, %v8983
    %8985 = vmatprep.mubr.bf16.mxu0 %v7098
    %8986 = vmatmul.mubr.bf16.gmra.mxu0 %v7097
    %v8987 = vpop.f32.mrf.mxu0
    %v8988 = vadd.f32 0.0, %v8987
    %v8989 = vpop.f32.mrf.mxu0
    %v8990 = vadd.f32 0.0, %v8989
    %v8991 = vpop.f32.mrf.mxu0
    %v8992 = vadd.f32 0.0, %v8991
    %v8993 = vpop.f32.mrf.mxu0
    %v8994 = vadd.f32 0.0, %v8993
    %8995 = vmatprep.mubr.bf16.mxu0 %v7102
    %8996 = vmatmul.mubr.bf16.gmra.mxu0 %v7101
    %v8997 = vpop.f32.mrf.mxu0
    %v8998 = vadd.f32 0.0, %v8997
    %v8999 = vpop.f32.mrf.mxu0
    %v9000 = vadd.f32 0.0, %v8999
    %v9001 = vpop.f32.mrf.mxu0
    %v9002 = vadd.f32 0.0, %v9001
    %v9003 = vpop.f32.mrf.mxu0
    %v9004 = vadd.f32 0.0, %v9003
    %9005 = vdwg.mxu0
    %9006 = vmatprep.subr.bf16.mxu0 %v8318
    %9007 = vmatpush1.bf16.msra.mxu0 %v8317
    %9008 = vmatprep.subr.bf16.mxu0 %v8310
    %9009 = vmatpush1.bf16.msra.mxu0 %v8309
    %9010 = vmatprep.subr.bf16.mxu0 %v8302
    %9011 = vmatpush1.bf16.msra.mxu0 %v8301
    %9012 = vmatprep.subr.bf16.mxu0 %v8294
    %9013 = vmatpush1.bf16.msra.mxu0 %v8293
    %9014 = vmatprep.subr.bf16.mxu0 %v8286
    %9015 = vmatpush1.bf16.msra.mxu0 %v8285
    %9016 = vmatprep.subr.bf16.mxu0 %v8278
    %9017 = vmatpush1.bf16.msra.mxu0 %v8277
    %9018 = vmatprep.subr.bf16.mxu0 %v8270
    %9019 = vmatpush1.bf16.msra.mxu0 %v8269
    %9020 = vmatprep.subr.bf16.mxu0 %v8262
    %9021 = vmatpush1.bf16.msra.mxu0 %v8261
    %9022 = vmatprep.subr.bf16.mxu0 %v8382
    %9023 = vmatpush2.bf16.msra.mxu0 %v8381
    %9024 = vmatprep.subr.bf16.mxu0 %v8374
    %9025 = vmatpush2.bf16.msra.mxu0 %v8373
    %9026 = vmatprep.subr.bf16.mxu0 %v8366
    %9027 = vmatpush2.bf16.msra.mxu0 %v8365
    %9028 = vmatprep.subr.bf16.mxu0 %v8358
    %9029 = vmatpush2.bf16.msra.mxu0 %v8357
    %9030 = vmatprep.subr.bf16.mxu0 %v8350
    %9031 = vmatpush2.bf16.msra.mxu0 %v8349
    %9032 = vmatprep.subr.bf16.mxu0 %v8342
    %9033 = vmatpush2.bf16.msra.mxu0 %v8341
    %9034 = vmatprep.subr.bf16.mxu0 %v8334
    %9035 = vmatpush2.bf16.msra.mxu0 %v8333
    %9036 = vmatprep.subr.bf16.mxu0 %v8326
    %9037 = vmatpush2.bf16.msra.mxu0 %v8325
    %9038 = vmatprep.mubr.bf16.mxu0 %v7092
    %9039 = vmatmul.mubr.bf16.gmra.mxu0 %v7091
    %v9040 = vpop.f32.mrf.mxu0
    %v9041 = vadd.f32 %v8968, %v9040
    %v9042 = vpop.f32.mrf.mxu0
    %v9043 = vadd.f32 %v8970, %v9042
    %v9044 = vpop.f32.mrf.mxu0
    %v9045 = vadd.f32 %v8972, %v9044
    %v9046 = vpop.f32.mrf.mxu0
    %v9047 = vadd.f32 %v8974, %v9046
    %9048 = vmatprep.mubr.bf16.mxu0 %v7096
    %9049 = vmatmul.mubr.bf16.gmra.mxu0 %v7095
    %v9050 = vpop.f32.mrf.mxu0
    %v9051 = vadd.f32 %v8978, %v9050
    %v9052 = vpop.f32.mrf.mxu0
    %v9053 = vadd.f32 %v8980, %v9052
    %v9054 = vpop.f32.mrf.mxu0
    %v9055 = vadd.f32 %v8982, %v9054
    %v9056 = vpop.f32.mrf.mxu0
    %v9057 = vadd.f32 %v8984, %v9056
    %9058 = vmatprep.mubr.bf16.mxu0 %v7100
    %9059 = vmatmul.mubr.bf16.gmra.mxu0 %v7099
    %v9060 = vpop.f32.mrf.mxu0
    %v9061 = vadd.f32 %v8988, %v9060
    %v9062 = vpop.f32.mrf.mxu0
    %v9063 = vadd.f32 %v8990, %v9062
    %v9064 = vpop.f32.mrf.mxu0
    %v9065 = vadd.f32 %v8992, %v9064
    %v9066 = vpop.f32.mrf.mxu0
    %v9067 = vadd.f32 %v8994, %v9066
    %9068 = vmatprep.mubr.bf16.mxu0 %v7104
    %9069 = vmatmul.mubr.bf16.gmra.mxu0 %v7103
    %v9070 = vpop.f32.mrf.mxu0
    %v9071 = vadd.f32 %v8998, %v9070
    %v9072 = vpop.f32.mrf.mxu0
    %v9073 = vadd.f32 %v9000, %v9072
    %v9074 = vpop.f32.mrf.mxu0
    %v9075 = vadd.f32 %v9002, %v9074
    %v9076 = vpop.f32.mrf.mxu0
    %v9077 = vadd.f32 %v9004, %v9076
    %9078 = vdwg.mxu0
    %9079 = vmatprep.subr.bf16.mxu0 %v8192
    %9080 = vmatpush1.bf16.msra.mxu0 %v8191
    %9081 = vmatprep.subr.bf16.mxu0 %v8184
    %9082 = vmatpush1.bf16.msra.mxu0 %v8183
    %9083 = vmatprep.subr.bf16.mxu0 %v8176
    %9084 = vmatpush1.bf16.msra.mxu0 %v8175
    %9085 = vmatprep.subr.bf16.mxu0 %v8168
    %9086 = vmatpush1.bf16.msra.mxu0 %v8167
    %9087 = vmatprep.subr.bf16.mxu0 %v8160
    %9088 = vmatpush1.bf16.msra.mxu0 %v8159
    %9089 = vmatprep.subr.bf16.mxu0 %v8152
    %9090 = vmatpush1.bf16.msra.mxu0 %v8151
    %9091 = vmatprep.subr.bf16.mxu0 %v8144
    %9092 = vmatpush1.bf16.msra.mxu0 %v8143
    %9093 = vmatprep.subr.bf16.mxu0 %v8136
    %9094 = vmatpush1.bf16.msra.mxu0 %v8135
    %9095 = vmatprep.subr.bf16.mxu0 %v8256
    %9096 = vmatpush2.bf16.msra.mxu0 %v8255
    %9097 = vmatprep.subr.bf16.mxu0 %v8248
    %9098 = vmatpush2.bf16.msra.mxu0 %v8247
    %9099 = vmatprep.subr.bf16.mxu0 %v8240
    %9100 = vmatpush2.bf16.msra.mxu0 %v8239
    %9101 = vmatprep.subr.bf16.mxu0 %v8232
    %9102 = vmatpush2.bf16.msra.mxu0 %v8231
    %9103 = vmatprep.subr.bf16.mxu0 %v8224
    %9104 = vmatpush2.bf16.msra.mxu0 %v8223
    %9105 = vmatprep.subr.bf16.mxu0 %v8216
    %9106 = vmatpush2.bf16.msra.mxu0 %v8215
    %9107 = vmatprep.subr.bf16.mxu0 %v8208
    %9108 = vmatpush2.bf16.msra.mxu0 %v8207
    %9109 = vmatprep.subr.bf16.mxu0 %v8200
    %9110 = vmatpush2.bf16.msra.mxu0 %v8199
    %9111 = vmatprep.mubr.bf16.mxu0 %v7090
    %9112 = vmatmul.mubr.bf16.gmra.mxu0 %v7089
    %v9113 = vpop.f32.mrf.mxu0
    %v9114 = vadd.f32 0.0, %v9113
    %v9115 = vpop.f32.mrf.mxu0
    %v9116 = vadd.f32 0.0, %v9115
    %v9117 = vpop.f32.mrf.mxu0
    %v9118 = vadd.f32 0.0, %v9117
    %v9119 = vpop.f32.mrf.mxu0
    %v9120 = vadd.f32 0.0, %v9119
    %9121 = vmatprep.mubr.bf16.mxu0 %v7094
    %9122 = vmatmul.mubr.bf16.gmra.mxu0 %v7093
    %v9123 = vpop.f32.mrf.mxu0
    %v9124 = vadd.f32 0.0, %v9123
    %v9125 = vpop.f32.mrf.mxu0
    %v9126 = vadd.f32 0.0, %v9125
    %v9127 = vpop.f32.mrf.mxu0
    %v9128 = vadd.f32 0.0, %v9127
    %v9129 = vpop.f32.mrf.mxu0
    %v9130 = vadd.f32 0.0, %v9129
    %9131 = vmatprep.mubr.bf16.mxu0 %v7098
    %9132 = vmatmul.mubr.bf16.gmra.mxu0 %v7097
    %v9133 = vpop.f32.mrf.mxu0
    %v9134 = vadd.f32 0.0, %v9133
    %v9135 = vpop.f32.mrf.mxu0
    %v9136 = vadd.f32 0.0, %v9135
    %v9137 = vpop.f32.mrf.mxu0
    %v9138 = vadd.f32 0.0, %v9137
    %v9139 = vpop.f32.mrf.mxu0
    %v9140 = vadd.f32 0.0, %v9139
    %9141 = vmatprep.mubr.bf16.mxu0 %v7102
    %9142 = vmatmul.mubr.bf16.gmra.mxu0 %v7101
    %v9143 = vpop.f32.mrf.mxu0
    %v9144 = vadd.f32 0.0, %v9143
    %v9145 = vpop.f32.mrf.mxu0
    %v9146 = vadd.f32 0.0, %v9145
    %v9147 = vpop.f32.mrf.mxu0
    %v9148 = vadd.f32 0.0, %v9147
    %v9149 = vpop.f32.mrf.mxu0
    %v9150 = vadd.f32 0.0, %v9149
    %9151 = vdwg.mxu0
    %9152 = vmatprep.subr.bf16.mxu0 %v8320
    %9153 = vmatpush1.bf16.msra.mxu0 %v8319
    %9154 = vmatprep.subr.bf16.mxu0 %v8312
    %9155 = vmatpush1.bf16.msra.mxu0 %v8311
    %9156 = vmatprep.subr.bf16.mxu0 %v8304
    %9157 = vmatpush1.bf16.msra.mxu0 %v8303
    %9158 = vmatprep.subr.bf16.mxu0 %v8296
    %9159 = vmatpush1.bf16.msra.mxu0 %v8295
    %9160 = vmatprep.subr.bf16.mxu0 %v8288
    %9161 = vmatpush1.bf16.msra.mxu0 %v8287
    %9162 = vmatprep.subr.bf16.mxu0 %v8280
    %9163 = vmatpush1.bf16.msra.mxu0 %v8279
    %9164 = vmatprep.subr.bf16.mxu0 %v8272
    %9165 = vmatpush1.bf16.msra.mxu0 %v8271
    %9166 = vmatprep.subr.bf16.mxu0 %v8264
    %9167 = vmatpush1.bf16.msra.mxu0 %v8263
    %9168 = vmatprep.subr.bf16.mxu0 %v8384
    %9169 = vmatpush2.bf16.msra.mxu0 %v8383
    %9170 = vmatprep.subr.bf16.mxu0 %v8376
    %9171 = vmatpush2.bf16.msra.mxu0 %v8375
    %9172 = vmatprep.subr.bf16.mxu0 %v8368
    %9173 = vmatpush2.bf16.msra.mxu0 %v8367
    %9174 = vmatprep.subr.bf16.mxu0 %v8360
    %9175 = vmatpush2.bf16.msra.mxu0 %v8359
    %9176 = vmatprep.subr.bf16.mxu0 %v8352
    %9177 = vmatpush2.bf16.msra.mxu0 %v8351
    %9178 = vmatprep.subr.bf16.mxu0 %v8344
    %9179 = vmatpush2.bf16.msra.mxu0 %v8343
    %9180 = vmatprep.subr.bf16.mxu0 %v8336
    %9181 = vmatpush2.bf16.msra.mxu0 %v8335
    %9182 = vmatprep.subr.bf16.mxu0 %v8328
    %9183 = vmatpush2.bf16.msra.mxu0 %v8327
    %9184 = vmatprep.mubr.bf16.mxu0 %v7092
    %9185 = vmatmul.mubr.bf16.gmra.mxu0 %v7091
    %v9186 = vpop.f32.mrf.mxu0
    %v9187 = vadd.f32 %v9114, %v9186
    %v9188 = vpop.f32.mrf.mxu0
    %v9189 = vadd.f32 %v9116, %v9188
    %v9190 = vpop.f32.mrf.mxu0
    %v9191 = vadd.f32 %v9118, %v9190
    %v9192 = vpop.f32.mrf.mxu0
    %v9193 = vadd.f32 %v9120, %v9192
    %9194 = vmatprep.mubr.bf16.mxu0 %v7096
    %9195 = vmatmul.mubr.bf16.gmra.mxu0 %v7095
    %v9196 = vpop.f32.mrf.mxu0
    %v9197 = vadd.f32 %v9124, %v9196
    %v9198 = vpop.f32.mrf.mxu0
    %v9199 = vadd.f32 %v9126, %v9198
    %v9200 = vpop.f32.mrf.mxu0
    %v9201 = vadd.f32 %v9128, %v9200
    %v9202 = vpop.f32.mrf.mxu0
    %v9203 = vadd.f32 %v9130, %v9202
    %9204 = vmatprep.mubr.bf16.mxu0 %v7100
    %9205 = vmatmul.mubr.bf16.gmra.mxu0 %v7099
    %v9206 = vpop.f32.mrf.mxu0
    %v9207 = vadd.f32 %v9134, %v9206
    %v9208 = vpop.f32.mrf.mxu0
    %v9209 = vadd.f32 %v9136, %v9208
    %v9210 = vpop.f32.mrf.mxu0
    %v9211 = vadd.f32 %v9138, %v9210
    %v9212 = vpop.f32.mrf.mxu0
    %v9213 = vadd.f32 %v9140, %v9212
    %9214 = vmatprep.mubr.bf16.mxu0 %v7104
    %9215 = vmatmul.mubr.bf16.gmra.mxu0 %v7103
    %v9216 = vpop.f32.mrf.mxu0
    %v9217 = vadd.f32 %v9144, %v9216
    %v9218 = vpop.f32.mrf.mxu0
    %v9219 = vadd.f32 %v9146, %v9218
    %v9220 = vpop.f32.mrf.mxu0
    %v9221 = vadd.f32 %v9148, %v9220
    %v9222 = vpop.f32.mrf.mxu0
    %v9223 = vadd.f32 %v9150, %v9222
    %9224 = vdwg.mxu0
    %v9225 = vld [vmem:[%s5] sm:$0xf]
    %v9226 = vadd.f32 %v8749, %v9075
    %v9227 = vadd.f32 %v8751, %v9077
    %v9228 = vadd.f32 %v8895, %v9221
    %v9229 = vadd.f32 %v8897, %v9223
    %v9231 = vlaneseq
    %v9232 = vshrl.u32 %v9231, 7
    %v9233 = vsub.s32 0, %v9232
    %v9234 = vrot.slane %v9225, %v9233
    %v9235 = vlaneseq
    %v9236 = vshrl.u32 %v9235, 7
    %v9237 = vsub.s32 1, %v9236
    %v9238 = vrot.slane %v9225, %v9237
    %v9239 = vlaneseq
    %v9240 = vshrl.u32 %v9239, 7
    %v9241 = vsub.s32 2, %v9240
    %v9242 = vrot.slane %v9225, %v9241
    %v9243 = vlaneseq
    %v9244 = vshrl.u32 %v9243, 7
    %v9245 = vsub.s32 3, %v9244
    %v9246 = vrot.slane %v9225, %v9245
    %v9251 = vadd.f32 %v9226, %v9234
    %v9252 = vadd.f32 %v9227, %v9238
    %v9253 = vadd.f32 %v9228, %v9242
    %v9254 = vadd.f32 %v9229, %v9246
    %9255 = vst [vmem:[#allocation4] sm:$0xff] %v9251
    %9256 = vst [vmem:[#allocation4 + $0x8] sm:$0xff] %v9252
    %9257 = vst [vmem:[#allocation4 + $0x10] sm:$0xff] %v9253
    %9258 = vst [vmem:[#allocation4 + $0x18] sm:$0xff] %v9254
    %v9259 = vadd.f32 %v8753, %v9071
    %v9260 = vadd.f32 %v8755, %v9073
    %v9261 = vadd.f32 %v8899, %v9217
    %v9262 = vadd.f32 %v8901, %v9219
    %v9263 = vadd.f32 %v9259, %v9234
    %v9264 = vadd.f32 %v9260, %v9238
    %v9265 = vadd.f32 %v9261, %v9242
    %v9266 = vadd.f32 %v9262, %v9246
    %9267 = vst [vmem:[#allocation4 + $0x20] sm:$0xff] %v9263
    %9268 = vst [vmem:[#allocation4 + $0x28] sm:$0xff] %v9264
    %9269 = vst [vmem:[#allocation4 + $0x30] sm:$0xff] %v9265
    %9270 = vst [vmem:[#allocation4 + $0x38] sm:$0xff] %v9266
    %v9271 = vadd.f32 %v8759, %v9065
    %v9272 = vadd.f32 %v8761, %v9067
    %v9273 = vadd.f32 %v8905, %v9211
    %v9274 = vadd.f32 %v8907, %v9213
    %v9275 = vadd.f32 %v9271, %v9234
    %v9276 = vadd.f32 %v9272, %v9238
    %v9277 = vadd.f32 %v9273, %v9242
    %v9278 = vadd.f32 %v9274, %v9246
    %9279 = vst [vmem:[#allocation4 + $0x40] sm:$0xff] %v9275
    %9280 = vst [vmem:[#allocation4 + $0x48] sm:$0xff] %v9276
    %9281 = vst [vmem:[#allocation4 + $0x50] sm:$0xff] %v9277
    %9282 = vst [vmem:[#allocation4 + $0x58] sm:$0xff] %v9278
    %v9283 = vadd.f32 %v8763, %v9061
    %v9284 = vadd.f32 %v8765, %v9063
    %v9285 = vadd.f32 %v8909, %v9207
    %v9286 = vadd.f32 %v8911, %v9209
    %v9287 = vadd.f32 %v9283, %v9234
    %v9288 = vadd.f32 %v9284, %v9238
    %v9289 = vadd.f32 %v9285, %v9242
    %v9290 = vadd.f32 %v9286, %v9246
    %9291 = vst [vmem:[#allocation4 + $0x60] sm:$0xff] %v9287
    %9292 = vst [vmem:[#allocation4 + $0x68] sm:$0xff] %v9288
    %9293 = vst [vmem:[#allocation4 + $0x70] sm:$0xff] %v9289
    %9294 = vst [vmem:[#allocation4 + $0x78] sm:$0xff] %v9290
    %v9295 = vadd.f32 %v8769, %v9055
    %v9296 = vadd.f32 %v8771, %v9057
    %v9297 = vadd.f32 %v8915, %v9201
    %v9298 = vadd.f32 %v8917, %v9203
    %v9299 = vadd.f32 %v9295, %v9234
    %v9300 = vadd.f32 %v9296, %v9238
    %v9301 = vadd.f32 %v9297, %v9242
    %v9302 = vadd.f32 %v9298, %v9246
    %9303 = vst [vmem:[#allocation4 + $0x80] sm:$0xff] %v9299
    %9304 = vst [vmem:[#allocation4 + $0x88] sm:$0xff] %v9300
    %9305 = vst [vmem:[#allocation4 + $0x90] sm:$0xff] %v9301
    %9306 = vst [vmem:[#allocation4 + $0x98] sm:$0xff] %v9302
    %v9307 = vadd.f32 %v8773, %v9051
    %v9308 = vadd.f32 %v8775, %v9053
    %v9309 = vadd.f32 %v8919, %v9197
    %v9310 = vadd.f32 %v8921, %v9199
    %v9311 = vadd.f32 %v9307, %v9234
    %v9312 = vadd.f32 %v9308, %v9238
    %v9313 = vadd.f32 %v9309, %v9242
    %v9314 = vadd.f32 %v9310, %v9246
    %9315 = vst [vmem:[#allocation4 + $0xa0] sm:$0xff] %v9311
    %9316 = vst [vmem:[#allocation4 + $0xa8] sm:$0xff] %v9312
    %9317 = vst [vmem:[#allocation4 + $0xb0] sm:$0xff] %v9313
    %9318 = vst [vmem:[#allocation4 + $0xb8] sm:$0xff] %v9314
    %v9319 = vadd.f32 %v8779, %v9045
    %v9320 = vadd.f32 %v8781, %v9047
    %v9321 = vadd.f32 %v8925, %v9191
    %v9322 = vadd.f32 %v8927, %v9193
    %v9323 = vadd.f32 %v9319, %v9234
    %v9324 = vadd.f32 %v9320, %v9238
    %v9325 = vadd.f32 %v9321, %v9242
    %v9326 = vadd.f32 %v9322, %v9246
    %9327 = vst [vmem:[#allocation4 + $0xc0] sm:$0xff] %v9323
    %9328 = vst [vmem:[#allocation4 + $0xc8] sm:$0xff] %v9324
    %9329 = vst [vmem:[#allocation4 + $0xd0] sm:$0xff] %v9325
    %9330 = vst [vmem:[#allocation4 + $0xd8] sm:$0xff] %v9326
    %v9331 = vadd.f32 %v8783, %v9041
    %v9332 = vadd.f32 %v8785, %v9043
    %v9333 = vadd.f32 %v8929, %v9187
    %v9334 = vadd.f32 %v8931, %v9189
    %v9335 = vadd.f32 %v9331, %v9234
    %v9336 = vadd.f32 %v9332, %v9238
    %v9337 = vadd.f32 %v9333, %v9242
    %v9338 = vadd.f32 %v9334, %v9246
    %9339 = vst [vmem:[#allocation4 + $0xe0] sm:$0xff] %v9335
    %9340 = vst [vmem:[#allocation4 + $0xe8] sm:$0xff] %v9336
    %9341 = vst [vmem:[#allocation4 + $0xf0] sm:$0xff] %v9337
    %9342 = vst [vmem:[#allocation4 + $0xf8] sm:$0xff] %v9338
    %v9343 = vld [vmem:[#allocation6] sm:$0xff]
    %v9344 = vld [vmem:[#allocation6 + $0x8] sm:$0xff]
    %v9345 = vld [vmem:[#allocation6 + $0x10] sm:$0xff]
    %v9346 = vld [vmem:[#allocation6 + $0x18] sm:$0xff]
    %v9347 = vld [vmem:[#allocation6 + $0x20] sm:$0xff]
    %v9348 = vld [vmem:[#allocation6 + $0x28] sm:$0xff]
    %v9349 = vld [vmem:[#allocation6 + $0x30] sm:$0xff]
    %v9350 = vld [vmem:[#allocation6 + $0x38] sm:$0xff]
    %v9351 = vld [vmem:[#allocation6 + $0x40] sm:$0xff]
    %v9352 = vld [vmem:[#allocation6 + $0x48] sm:$0xff]
    %v9353 = vld [vmem:[#allocation6 + $0x50] sm:$0xff]
    %v9354 = vld [vmem:[#allocation6 + $0x58] sm:$0xff]
    %v9355 = vld [vmem:[#allocation6 + $0x60] sm:$0xff]
    %v9356 = vld [vmem:[#allocation6 + $0x68] sm:$0xff]
    %v9357 = vld [vmem:[#allocation6 + $0x70] sm:$0xff]
    %v9358 = vld [vmem:[#allocation6 + $0x78] sm:$0xff]
    %v9359 = vld [vmem:[#allocation6 + $0x80] sm:$0xff]
    %v9360 = vld [vmem:[#allocation6 + $0x88] sm:$0xff]
    %v9361 = vld [vmem:[#allocation6 + $0x90] sm:$0xff]
    %v9362 = vld [vmem:[#allocation6 + $0x98] sm:$0xff]
    %v9363 = vld [vmem:[#allocation6 + $0xa0] sm:$0xff]
    %v9364 = vld [vmem:[#allocation6 + $0xa8] sm:$0xff]
    %v9365 = vld [vmem:[#allocation6 + $0xb0] sm:$0xff]
    %v9366 = vld [vmem:[#allocation6 + $0xb8] sm:$0xff]
    %v9367 = vld [vmem:[#allocation6 + $0xc0] sm:$0xff]
    %v9368 = vld [vmem:[#allocation6 + $0xc8] sm:$0xff]
    %v9369 = vld [vmem:[#allocation6 + $0xd0] sm:$0xff]
    %v9370 = vld [vmem:[#allocation6 + $0xd8] sm:$0xff]
    %v9371 = vld [vmem:[#allocation6 + $0xe0] sm:$0xff]
    %v9372 = vld [vmem:[#allocation6 + $0xe8] sm:$0xff]
    %v9373 = vld [vmem:[#allocation6 + $0xf0] sm:$0xff]
    %v9374 = vld [vmem:[#allocation6 + $0xf8] sm:$0xff]
    %v9375 = vld [vmem:[#allocation4] sm:$0xff]
    %v9376 = vld [vmem:[#allocation4 + $0x8] sm:$0xff]
    %v9377 = vld [vmem:[#allocation4 + $0x10] sm:$0xff]
    %v9378 = vld [vmem:[#allocation4 + $0x18] sm:$0xff]
    %v9411 = vunpack.c.l.b16 %v9343
    %v9412 = vunpack.c.h.b16 %v9343
    %v9413 = vunpack.c.l.b16 %v9344
    %v9414 = vunpack.c.h.b16 %v9344
    %v9415 = vunpack.c.l.b16 %v9345
    %v9416 = vunpack.c.h.b16 %v9345
    %v9417 = vunpack.c.l.b16 %v9346
    %v9418 = vunpack.c.h.b16 %v9346
    %v9419 = vunpack.c.l.b16 %v9347
    %v9420 = vunpack.c.h.b16 %v9347
    %v9421 = vunpack.c.l.b16 %v9348
    %v9422 = vunpack.c.h.b16 %v9348
    %v9423 = vunpack.c.l.b16 %v9349
    %v9424 = vunpack.c.h.b16 %v9349
    %v9425 = vunpack.c.l.b16 %v9350
    %v9426 = vunpack.c.h.b16 %v9350
    %v9427 = vunpack.c.l.b16 %v9351
    %v9428 = vunpack.c.h.b16 %v9351
    %v9429 = vunpack.c.l.b16 %v9352
    %v9430 = vunpack.c.h.b16 %v9352
    %v9431 = vunpack.c.l.b16 %v9353
    %v9432 = vunpack.c.h.b16 %v9353
    %v9433 = vunpack.c.l.b16 %v9354
    %v9434 = vunpack.c.h.b16 %v9354
    %v9435 = vunpack.c.l.b16 %v9355
    %v9436 = vunpack.c.h.b16 %v9355
    %v9437 = vunpack.c.l.b16 %v9356
    %v9438 = vunpack.c.h.b16 %v9356
    %v9439 = vunpack.c.l.b16 %v9357
    %v9440 = vunpack.c.h.b16 %v9357
    %v9441 = vunpack.c.l.b16 %v9358
    %v9442 = vunpack.c.h.b16 %v9358
    %v9443 = vunpack.c.l.b16 %v9359
    %v9444 = vunpack.c.h.b16 %v9359
    %v9445 = vunpack.c.l.b16 %v9360
    %v9446 = vunpack.c.h.b16 %v9360
    %v9447 = vunpack.c.l.b16 %v9361
    %v9448 = vunpack.c.h.b16 %v9361
    %v9449 = vunpack.c.l.b16 %v9362
    %v9450 = vunpack.c.h.b16 %v9362
    %v9451 = vunpack.c.l.b16 %v9363
    %v9452 = vunpack.c.h.b16 %v9363
    %v9453 = vunpack.c.l.b16 %v9364
    %v9454 = vunpack.c.h.b16 %v9364
    %v9455 = vunpack.c.l.b16 %v9365
    %v9456 = vunpack.c.h.b16 %v9365
    %v9457 = vunpack.c.l.b16 %v9366
    %v9458 = vunpack.c.h.b16 %v9366
    %v9459 = vunpack.c.l.b16 %v9367
    %v9460 = vunpack.c.h.b16 %v9367
    %v9461 = vunpack.c.l.b16 %v9368
    %v9462 = vunpack.c.h.b16 %v9368
    %v9463 = vunpack.c.l.b16 %v9369
    %v9464 = vunpack.c.h.b16 %v9369
    %v9465 = vunpack.c.l.b16 %v9370
    %v9466 = vunpack.c.h.b16 %v9370
    %v9467 = vunpack.c.l.b16 %v9371
    %v9468 = vunpack.c.h.b16 %v9371
    %v9469 = vunpack.c.l.b16 %v9372
    %v9470 = vunpack.c.h.b16 %v9372
    %v9471 = vunpack.c.l.b16 %v9373
    %v9472 = vunpack.c.h.b16 %v9373
    %v9473 = vunpack.c.l.b16 %v9374
    %v9474 = vunpack.c.h.b16 %v9374
    %v9475 = vpack.c.b16 %v9415, %v9411
    %v9476 = vpack.c.b16 %v9416, %v9412
    %v9477 = vpack.c.b16 %v9417, %v9413
    %v9478 = vpack.c.b16 %v9418, %v9414
    %v9479 = vpack.c.b16 %v9423, %v9419
    %v9480 = vpack.c.b16 %v9424, %v9420
    %v9481 = vpack.c.b16 %v9425, %v9421
    %v9482 = vpack.c.b16 %v9426, %v9422
    %v9483 = vpack.c.b16 %v9431, %v9427
    %v9484 = vpack.c.b16 %v9432, %v9428
    %v9485 = vpack.c.b16 %v9433, %v9429
    %v9486 = vpack.c.b16 %v9434, %v9430
    %v9487 = vpack.c.b16 %v9439, %v9435
    %v9488 = vpack.c.b16 %v9440, %v9436
    %v9489 = vpack.c.b16 %v9441, %v9437
    %v9490 = vpack.c.b16 %v9442, %v9438
    %v9491 = vpack.c.b16 %v9447, %v9443
    %v9492 = vpack.c.b16 %v9448, %v9444
    %v9493 = vpack.c.b16 %v9449, %v9445
    %v9494 = vpack.c.b16 %v9450, %v9446
    %v9495 = vpack.c.b16 %v9455, %v9451
    %v9496 = vpack.c.b16 %v9456, %v9452
    %v9497 = vpack.c.b16 %v9457, %v9453
    %v9498 = vpack.c.b16 %v9458, %v9454
    %v9499 = vpack.c.b16 %v9463, %v9459
    %v9500 = vpack.c.b16 %v9464, %v9460
    %v9501 = vpack.c.b16 %v9465, %v9461
    %v9502 = vpack.c.b16 %v9466, %v9462
    %v9503 = vpack.c.b16 %v9471, %v9467
    %v9504 = vpack.c.b16 %v9472, %v9468
    %v9505 = vpack.c.b16 %v9473, %v9469
    %v9506 = vpack.c.b16 %v9474, %v9470
    %9539 = vmatprep.subr.bf16.mxu0 %v9504
    %9540 = vmatpush1.bf16.msra.mxu0 %v9503
    %9541 = vmatprep.subr.bf16.mxu0 %v9500
    %9542 = vmatpush1.bf16.msra.mxu0 %v9499
    %9543 = vmatprep.subr.bf16.mxu0 %v9496
    %9544 = vmatpush1.bf16.msra.mxu0 %v9495
    %9545 = vmatprep.subr.bf16.mxu0 %v9492
    %9546 = vmatpush1.bf16.msra.mxu0 %v9491
    %9547 = vmatprep.subr.bf16.mxu0 %v9488
    %9548 = vmatpush1.bf16.msra.mxu0 %v9487
    %9549 = vmatprep.subr.bf16.mxu0 %v9484
    %9550 = vmatpush1.bf16.msra.mxu0 %v9483
    %9551 = vmatprep.subr.bf16.mxu0 %v9480
    %9552 = vmatpush1.bf16.msra.mxu0 %v9479
    %9553 = vmatprep.subr.bf16.mxu0 %v9476
    %9554 = vmatpush1.bf16.msra.mxu0 %v9475
    %9555 = vmatprep.subr.bf16.mxu0 0
    %9556 = vmatpush2.bf16.msra.mxu0 0
    %9557 = vmatprep.subr.bf16.mxu0 0
    %9558 = vmatpush2.bf16.msra.mxu0 0
    %9559 = vmatprep.subr.bf16.mxu0 0
    %9560 = vmatpush2.bf16.msra.mxu0 0
    %9561 = vmatprep.subr.bf16.mxu0 0
    %9562 = vmatpush2.bf16.msra.mxu0 0
    %9563 = vmatprep.subr.bf16.mxu0 0
    %9564 = vmatpush2.bf16.msra.mxu0 0
    %9565 = vmatprep.subr.bf16.mxu0 0
    %9566 = vmatpush2.bf16.msra.mxu0 0
    %9567 = vmatprep.subr.bf16.mxu0 0
    %9568 = vmatpush2.bf16.msra.mxu0 0
    %9569 = vmatprep.subr.bf16.mxu0 0
    %9570 = vmatpush2.bf16.msra.mxu0 0
    %9571 = vmatprep.mubr.bf16.mxu0 0
    %9572 = vmatmul.mubr.bf16.gmra.mxu0 0
    %v9573 = vpop.f32.mrf.mxu0
    %v9574 = vadd.f32 0.0, %v9573
    %v9575 = vpop.f32.mrf.mxu0
    %v9576 = vadd.f32 0.0, %v9575
    %v9577 = vpop.f32.mrf.mxu0
    %v9578 = vpop.f32.mrf.mxu0
    %9579 = vdwg.mxu0
    %9580 = vmatprep.subr.bf16.mxu0 %v9506
    %9581 = vmatpush1.bf16.msra.mxu0 %v9505
    %9582 = vmatprep.subr.bf16.mxu0 %v9502
    %9583 = vmatpush1.bf16.msra.mxu0 %v9501
    %9584 = vmatprep.subr.bf16.mxu0 %v9498
    %9585 = vmatpush1.bf16.msra.mxu0 %v9497
    %9586 = vmatprep.subr.bf16.mxu0 %v9494
    %9587 = vmatpush1.bf16.msra.mxu0 %v9493
    %9588 = vmatprep.subr.bf16.mxu0 %v9490
    %9589 = vmatpush1.bf16.msra.mxu0 %v9489
    %9590 = vmatprep.subr.bf16.mxu0 %v9486
    %9591 = vmatpush1.bf16.msra.mxu0 %v9485
    %9592 = vmatprep.subr.bf16.mxu0 %v9482
    %9593 = vmatpush1.bf16.msra.mxu0 %v9481
    %9594 = vmatprep.subr.bf16.mxu0 %v9478
    %9595 = vmatpush1.bf16.msra.mxu0 %v9477
    %9596 = vmatprep.subr.bf16.mxu0 0
    %9597 = vmatpush2.bf16.msra.mxu0 0
    %9598 = vmatprep.subr.bf16.mxu0 0
    %9599 = vmatpush2.bf16.msra.mxu0 0
    %9600 = vmatprep.subr.bf16.mxu0 0
    %9601 = vmatpush2.bf16.msra.mxu0 0
    %9602 = vmatprep.subr.bf16.mxu0 0
    %9603 = vmatpush2.bf16.msra.mxu0 0
    %9604 = vmatprep.subr.bf16.mxu0 0
    %9605 = vmatpush2.bf16.msra.mxu0 0
    %9606 = vmatprep.subr.bf16.mxu0 0
    %9607 = vmatpush2.bf16.msra.mxu0 0
    %9608 = vmatprep.subr.bf16.mxu0 0
    %9609 = vmatpush2.bf16.msra.mxu0 0
    %9610 = vmatprep.subr.bf16.mxu0 0
    %9611 = vmatpush2.bf16.msra.mxu0 0
    %9612 = vmatprep.mubr.bf16.mxu0 0
    %9613 = vmatmul.mubr.bf16.gmra.mxu0 0
    %v9614 = vpop.f32.mrf.mxu0
    %v9615 = vadd.f32 0.0, %v9614
    %v9616 = vpop.f32.mrf.mxu0
    %v9617 = vadd.f32 0.0, %v9616
    %v9618 = vpop.f32.mrf.mxu0
    %v9619 = vpop.f32.mrf.mxu0
    %9620 = vdwg.mxu0
    %v9621 = vadd.f32 %v9375, %v9574
    %v9622 = vadd.f32 %v9376, %v9576
    %v9623 = vadd.f32 %v9377, %v9615
    %v9624 = vadd.f32 %v9378, %v9617
    %v9625 = vxor.u32 %v9621, 2147483648
    %v9626 = vxor.u32 %v9622, 2147483648
    %v9627 = vxor.u32 %v9623, 2147483648
    %v9628 = vmul.f32 %v9625, 1.442695
    %v9629 = vpow.pop %v9628
    %v9630 = vmul.f32 %v9626, 1.442695
    %v9631 = vpow.pop %v9630
    %v9632 = vmul.f32 %v9627, 1.442695
    %v9633 = vpow.pop %v9632
    %v9634 = vadd.f32 %v9629, 1.0
    %v9635 = vadd.f32 %v9631, 1.0
    %v9636 = vadd.f32 %v9633, 1.0
    %v9637 = vrcp.pop %v9634
    %v9638 = vmul.f32 1.0, %v9637
    %v9639 = vrcp.pop %v9635
    %v9640 = vmul.f32 1.0, %v9639
    %v9641 = vrcp.pop %v9636
    %v9642 = vmul.f32 1.0, %v9641
    %v9643 = vtanh.pop %v9624
    %v9644 = vmul.f32 %v9640, 0.0
    %v9645 = vmul.f32 %v9638, %v9643
    %v9646 = vadd.f32 %v9644, %v9645
    %v9647 = vtanh.pop %v9646
    %v9648 = vmul.f32 %v9642, %v9647
    %v9649 = vld [vmem:[#allocation4 + $0x20] sm:$0xff]
    %v9650 = vld [vmem:[#allocation4 + $0x28] sm:$0xff]
    %v9651 = vld [vmem:[#allocation4 + $0x30] sm:$0xff]
    %v9652 = vld [vmem:[#allocation4 + $0x38] sm:$0xff]
    %v9653 = vpack.c.bf16 %v9648, %v9648
    %9654 = vmatprep.subr.bf16.mxu0 %v9504
    %9655 = vmatpush1.bf16.msra.mxu0 %v9503
    %9656 = vmatprep.subr.bf16.mxu0 %v9500
    %9657 = vmatpush1.bf16.msra.mxu0 %v9499
    %9658 = vmatprep.subr.bf16.mxu0 %v9496
    %9659 = vmatpush1.bf16.msra.mxu0 %v9495
    %9660 = vmatprep.subr.bf16.mxu0 %v9492
    %9661 = vmatpush1.bf16.msra.mxu0 %v9491
    %9662 = vmatprep.subr.bf16.mxu0 %v9488
    %9663 = vmatpush1.bf16.msra.mxu0 %v9487
    %9664 = vmatprep.subr.bf16.mxu0 %v9484
    %9665 = vmatpush1.bf16.msra.mxu0 %v9483
    %9666 = vmatprep.subr.bf16.mxu0 %v9480
    %9667 = vmatpush1.bf16.msra.mxu0 %v9479
    %9668 = vmatprep.subr.bf16.mxu0 %v9476
    %9669 = vmatpush1.bf16.msra.mxu0 %v9475
    %9670 = vmatprep.subr.bf16.mxu0 0
    %9671 = vmatpush2.bf16.msra.mxu0 0
    %9672 = vmatprep.subr.bf16.mxu0 0
    %9673 = vmatpush2.bf16.msra.mxu0 0
    %9674 = vmatprep.subr.bf16.mxu0 0
    %9675 = vmatpush2.bf16.msra.mxu0 0
    %9676 = vmatprep.subr.bf16.mxu0 0
    %9677 = vmatpush2.bf16.msra.mxu0 0
    %9678 = vmatprep.subr.bf16.mxu0 0
    %9679 = vmatpush2.bf16.msra.mxu0 0
    %9680 = vmatprep.subr.bf16.mxu0 0
    %9681 = vmatpush2.bf16.msra.mxu0 0
    %9682 = vmatprep.subr.bf16.mxu0 0
    %9683 = vmatpush2.bf16.msra.mxu0 0
    %9684 = vmatprep.subr.bf16.mxu0 0
    %9685 = vmatpush2.bf16.msra.mxu0 0
    %9686 = vmatprep.mubr.bf16.mxu0 0
    %9687 = vmatmul.mubr.bf16.gmra.mxu0 %v9653
    %v9688 = vpop.f32.mrf.mxu0
    %v9689 = vadd.f32 0.0, %v9688
    %v9690 = vpop.f32.mrf.mxu0
    %v9691 = vadd.f32 0.0, %v9690
    %v9692 = vpop.f32.mrf.mxu0
    %v9693 = vpop.f32.mrf.mxu0
    %9694 = vdwg.mxu0
    %9695 = vmatprep.subr.bf16.mxu0 %v9506
    %9696 = vmatpush1.bf16.msra.mxu0 %v9505
    %9697 = vmatprep.subr.bf16.mxu0 %v9502
    %9698 = vmatpush1.bf16.msra.mxu0 %v9501
    %9699 = vmatprep.subr.bf16.mxu0 %v9498
    %9700 = vmatpush1.bf16.msra.mxu0 %v9497
    %9701 = vmatprep.subr.bf16.mxu0 %v9494
    %9702 = vmatpush1.bf16.msra.mxu0 %v9493
    %9703 = vmatprep.subr.bf16.mxu0 %v9490
    %9704 = vmatpush1.bf16.msra.mxu0 %v9489
    %9705 = vmatprep.subr.bf16.mxu0 %v9486
    %9706 = vmatpush1.bf16.msra.mxu0 %v9485
    %9707 = vmatprep.subr.bf16.mxu0 %v9482
    %9708 = vmatpush1.bf16.msra.mxu0 %v9481
    %9709 = vmatprep.subr.bf16.mxu0 %v9478
    %9710 = vmatpush1.bf16.msra.mxu0 %v9477
    %9711 = vmatprep.subr.bf16.mxu0 0
    %9712 = vmatpush2.bf16.msra.mxu0 0
    %9713 = vmatprep.subr.bf16.mxu0 0
    %9714 = vmatpush2.bf16.msra.mxu0 0
    %9715 = vmatprep.subr.bf16.mxu0 0
    %9716 = vmatpush2.bf16.msra.mxu0 0
    %9717 = vmatprep.subr.bf16.mxu0 0
    %9718 = vmatpush2.bf16.msra.mxu0 0
    %9719 = vmatprep.subr.bf16.mxu0 0
    %9720 = vmatpush2.bf16.msra.mxu0 0
    %9721 = vmatprep.subr.bf16.mxu0 0
    %9722 = vmatpush2.bf16.msra.mxu0 0
    %9723 = vmatprep.subr.bf16.mxu0 0
    %9724 = vmatpush2.bf16.msra.mxu0 0
    %9725 = vmatprep.subr.bf16.mxu0 0
    %9726 = vmatpush2.bf16.msra.mxu0 0
    %9727 = vmatprep.mubr.bf16.mxu0 0
    %9728 = vmatmul.mubr.bf16.gmra.mxu0 %v9653
    %v9729 = vpop.f32.mrf.mxu0
    %v9730 = vadd.f32 0.0, %v9729
    %v9731 = vpop.f32.mrf.mxu0
    %v9732 = vadd.f32 0.0, %v9731
    %v9733 = vpop.f32.mrf.mxu0
    %v9734 = vpop.f32.mrf.mxu0
    %9735 = vdwg.mxu0
    %v9736 = vadd.f32 %v9649, %v9689
    %v9737 = vadd.f32 %v9650, %v9691
    %v9738 = vadd.f32 %v9651, %v9730
    %v9739 = vadd.f32 %v9652, %v9732
    %v9740 = vxor.u32 %v9736, 2147483648
    %v9741 = vxor.u32 %v9737, 2147483648
    %v9742 = vxor.u32 %v9738, 2147483648
    %v9743 = vmul.f32 %v9740, 1.442695
    %v9744 = vpow.pop %v9743
    %v9745 = vmul.f32 %v9741, 1.442695
    %v9746 = vpow.pop %v9745
    %v9747 = vmul.f32 %v9742, 1.442695
    %v9748 = vpow.pop %v9747
    %v9749 = vadd.f32 %v9744, 1.0
    %v9750 = vadd.f32 %v9746, 1.0
    %v9751 = vadd.f32 %v9748, 1.0
    %v9752 = vrcp.pop %v9749
    %v9753 = vmul.f32 1.0, %v9752
    %v9754 = vrcp.pop %v9750
    %v9755 = vmul.f32 1.0, %v9754
    %v9756 = vrcp.pop %v9751
    %v9757 = vmul.f32 1.0, %v9756
    %v9758 = vtanh.pop %v9739
    %v9759 = vmul.f32 %v9755, %v9646
    %v9760 = vmul.f32 %v9753, %v9758
    %v9761 = vadd.f32 %v9759, %v9760
    %v9762 = vtanh.pop %v9761
    %v9763 = vmul.f32 %v9757, %v9762
    %v9764 = vld [vmem:[#allocation4 + $0x40] sm:$0xff]
    %v9765 = vld [vmem:[#allocation4 + $0x48] sm:$0xff]
    %v9766 = vld [vmem:[#allocation4 + $0x50] sm:$0xff]
    %v9767 = vld [vmem:[#allocation4 + $0x58] sm:$0xff]
    %v9768 = vpack.c.bf16 %v9763, %v9763
    %9769 = vmatprep.subr.bf16.mxu0 %v9504
    %9770 = vmatpush1.bf16.msra.mxu0 %v9503
    %9771 = vmatprep.subr.bf16.mxu0 %v9500
    %9772 = vmatpush1.bf16.msra.mxu0 %v9499
    %9773 = vmatprep.subr.bf16.mxu0 %v9496
    %9774 = vmatpush1.bf16.msra.mxu0 %v9495
    %9775 = vmatprep.subr.bf16.mxu0 %v9492
    %9776 = vmatpush1.bf16.msra.mxu0 %v9491
    %9777 = vmatprep.subr.bf16.mxu0 %v9488
    %9778 = vmatpush1.bf16.msra.mxu0 %v9487
    %9779 = vmatprep.subr.bf16.mxu0 %v9484
    %9780 = vmatpush1.bf16.msra.mxu0 %v9483
    %9781 = vmatprep.subr.bf16.mxu0 %v9480
    %9782 = vmatpush1.bf16.msra.mxu0 %v9479
    %9783 = vmatprep.subr.bf16.mxu0 %v9476
    %9784 = vmatpush1.bf16.msra.mxu0 %v9475
    %9785 = vmatprep.subr.bf16.mxu0 0
    %9786 = vmatpush2.bf16.msra.mxu0 0
    %9787 = vmatprep.subr.bf16.mxu0 0
    %9788 = vmatpush2.bf16.msra.mxu0 0
    %9789 = vmatprep.subr.bf16.mxu0 0
    %9790 = vmatpush2.bf16.msra.mxu0 0
    %9791 = vmatprep.subr.bf16.mxu0 0
    %9792 = vmatpush2.bf16.msra.mxu0 0
    %9793 = vmatprep.subr.bf16.mxu0 0
    %9794 = vmatpush2.bf16.msra.mxu0 0
    %9795 = vmatprep.subr.bf16.mxu0 0
    %9796 = vmatpush2.bf16.msra.mxu0 0
    %9797 = vmatprep.subr.bf16.mxu0 0
    %9798 = vmatpush2.bf16.msra.mxu0 0
    %9799 = vmatprep.subr.bf16.mxu0 0
    %9800 = vmatpush2.bf16.msra.mxu0 0
    %9801 = vmatprep.mubr.bf16.mxu0 0
    %9802 = vmatmul.mubr.bf16.gmra.mxu0 %v9768
    %v9803 = vpop.f32.mrf.mxu0
    %v9804 = vadd.f32 0.0, %v9803
    %v9805 = vpop.f32.mrf.mxu0
    %v9806 = vadd.f32 0.0, %v9805
    %v9807 = vpop.f32.mrf.mxu0
    %v9808 = vpop.f32.mrf.mxu0
    %9809 = vdwg.mxu0
    %9810 = vmatprep.subr.bf16.mxu0 %v9506
    %9811 = vmatpush1.bf16.msra.mxu0 %v9505
    %9812 = vmatprep.subr.bf16.mxu0 %v9502
    %9813 = vmatpush1.bf16.msra.mxu0 %v9501
    %9814 = vmatprep.subr.bf16.mxu0 %v9498
    %9815 = vmatpush1.bf16.msra.mxu0 %v9497
    %9816 = vmatprep.subr.bf16.mxu0 %v9494
    %9817 = vmatpush1.bf16.msra.mxu0 %v9493
    %9818 = vmatprep.subr.bf16.mxu0 %v9490
    %9819 = vmatpush1.bf16.msra.mxu0 %v9489
    %9820 = vmatprep.subr.bf16.mxu0 %v9486
    %9821 = vmatpush1.bf16.msra.mxu0 %v9485
    %9822 = vmatprep.subr.bf16.mxu0 %v9482
    %9823 = vmatpush1.bf16.msra.mxu0 %v9481
    %9824 = vmatprep.subr.bf16.mxu0 %v9478
    %9825 = vmatpush1.bf16.msra.mxu0 %v9477
    %9826 = vmatprep.subr.bf16.mxu0 0
    %9827 = vmatpush2.bf16.msra.mxu0 0
    %9828 = vmatprep.subr.bf16.mxu0 0
    %9829 = vmatpush2.bf16.msra.mxu0 0
    %9830 = vmatprep.subr.bf16.mxu0 0
    %9831 = vmatpush2.bf16.msra.mxu0 0
    %9832 = vmatprep.subr.bf16.mxu0 0
    %9833 = vmatpush2.bf16.msra.mxu0 0
    %9834 = vmatprep.subr.bf16.mxu0 0
    %9835 = vmatpush2.bf16.msra.mxu0 0
    %9836 = vmatprep.subr.bf16.mxu0 0
    %9837 = vmatpush2.bf16.msra.mxu0 0
    %9838 = vmatprep.subr.bf16.mxu0 0
    %9839 = vmatpush2.bf16.msra.mxu0 0
    %9840 = vmatprep.subr.bf16.mxu0 0
    %9841 = vmatpush2.bf16.msra.mxu0 0
    %9842 = vmatprep.mubr.bf16.mxu0 0
    %9843 = vmatmul.mubr.bf16.gmra.mxu0 %v9768
    %v9844 = vpop.f32.mrf.mxu0
    %v9845 = vadd.f32 0.0, %v9844
    %v9846 = vpop.f32.mrf.mxu0
    %v9847 = vadd.f32 0.0, %v9846
    %v9848 = vpop.f32.mrf.mxu0
    %v9849 = vpop.f32.mrf.mxu0
    %9850 = vdwg.mxu0
    %v9851 = vadd.f32 %v9764, %v9804
    %v9852 = vadd.f32 %v9765, %v9806
    %v9853 = vadd.f32 %v9766, %v9845
    %v9854 = vadd.f32 %v9767, %v9847
    %v9855 = vxor.u32 %v9851, 2147483648
    %v9856 = vxor.u32 %v9852, 2147483648
    %v9857 = vxor.u32 %v9853, 2147483648
    %v9858 = vmul.f32 %v9855, 1.442695
    %v9859 = vpow.pop %v9858
    %v9860 = vmul.f32 %v9856, 1.442695
    %v9861 = vpow.pop %v9860
    %v9862 = vmul.f32 %v9857, 1.442695
    %v9863 = vpow.pop %v9862
    %v9864 = vadd.f32 %v9859, 1.0
    %v9865 = vadd.f32 %v9861, 1.0
    %v9866 = vadd.f32 %v9863, 1.0
    %v9867 = vrcp.pop %v9864
    %v9868 = vmul.f32 1.0, %v9867
    %v9869 = vrcp.pop %v9865
    %v9870 = vmul.f32 1.0, %v9869
    %v9871 = vrcp.pop %v9866
    %v9872 = vmul.f32 1.0, %v9871
    %v9873 = vtanh.pop %v9854
    %v9874 = vmul.f32 %v9870, %v9761
    %v9875 = vmul.f32 %v9868, %v9873
    %v9876 = vadd.f32 %v9874, %v9875
    %v9877 = vtanh.pop %v9876
    %v9878 = vmul.f32 %v9872, %v9877
    %v9879 = vld [vmem:[#allocation4 + $0x60] sm:$0xff]
    %v9880 = vld [vmem:[#allocation4 + $0x68] sm:$0xff]
    %v9881 = vld [vmem:[#allocation4 + $0x70] sm:$0xff]
    %v9882 = vld [vmem:[#allocation4 + $0x78] sm:$0xff]
    %v9883 = vpack.c.bf16 %v9878, %v9878
    %9884 = vmatprep.subr.bf16.mxu0 %v9504
    %9885 = vmatpush1.bf16.msra.mxu0 %v9503
    %9886 = vmatprep.subr.bf16.mxu0 %v9500
    %9887 = vmatpush1.bf16.msra.mxu0 %v9499
    %9888 = vmatprep.subr.bf16.mxu0 %v9496
    %9889 = vmatpush1.bf16.msra.mxu0 %v9495
    %9890 = vmatprep.subr.bf16.mxu0 %v9492
    %9891 = vmatpush1.bf16.msra.mxu0 %v9491
    %9892 = vmatprep.subr.bf16.mxu0 %v9488
    %9893 = vmatpush1.bf16.msra.mxu0 %v9487
    %9894 = vmatprep.subr.bf16.mxu0 %v9484
    %9895 = vmatpush1.bf16.msra.mxu0 %v9483
    %9896 = vmatprep.subr.bf16.mxu0 %v9480
    %9897 = vmatpush1.bf16.msra.mxu0 %v9479
    %9898 = vmatprep.subr.bf16.mxu0 %v9476
    %9899 = vmatpush1.bf16.msra.mxu0 %v9475
    %9900 = vmatprep.subr.bf16.mxu0 0
    %9901 = vmatpush2.bf16.msra.mxu0 0
    %9902 = vmatprep.subr.bf16.mxu0 0
    %9903 = vmatpush2.bf16.msra.mxu0 0
    %9904 = vmatprep.subr.bf16.mxu0 0
    %9905 = vmatpush2.bf16.msra.mxu0 0
    %9906 = vmatprep.subr.bf16.mxu0 0
    %9907 = vmatpush2.bf16.msra.mxu0 0
    %9908 = vmatprep.subr.bf16.mxu0 0
    %9909 = vmatpush2.bf16.msra.mxu0 0
    %9910 = vmatprep.subr.bf16.mxu0 0
    %9911 = vmatpush2.bf16.msra.mxu0 0
    %9912 = vmatprep.subr.bf16.mxu0 0
    %9913 = vmatpush2.bf16.msra.mxu0 0
    %9914 = vmatprep.subr.bf16.mxu0 0
    %9915 = vmatpush2.bf16.msra.mxu0 0
    %9916 = vmatprep.mubr.bf16.mxu0 0
    %9917 = vmatmul.mubr.bf16.gmra.mxu0 %v9883
    %v9918 = vpop.f32.mrf.mxu0
    %v9919 = vadd.f32 0.0, %v9918
    %v9920 = vpop.f32.mrf.mxu0
    %v9921 = vadd.f32 0.0, %v9920
    %v9922 = vpop.f32.mrf.mxu0
    %v9923 = vpop.f32.mrf.mxu0
    %9924 = vdwg.mxu0
    %9925 = vmatprep.subr.bf16.mxu0 %v9506
    %9926 = vmatpush1.bf16.msra.mxu0 %v9505
    %9927 = vmatprep.subr.bf16.mxu0 %v9502
    %9928 = vmatpush1.bf16.msra.mxu0 %v9501
    %9929 = vmatprep.subr.bf16.mxu0 %v9498
    %9930 = vmatpush1.bf16.msra.mxu0 %v9497
    %9931 = vmatprep.subr.bf16.mxu0 %v9494
    %9932 = vmatpush1.bf16.msra.mxu0 %v9493
    %9933 = vmatprep.subr.bf16.mxu0 %v9490
    %9934 = vmatpush1.bf16.msra.mxu0 %v9489
    %9935 = vmatprep.subr.bf16.mxu0 %v9486
    %9936 = vmatpush1.bf16.msra.mxu0 %v9485
    %9937 = vmatprep.subr.bf16.mxu0 %v9482
    %9938 = vmatpush1.bf16.msra.mxu0 %v9481
    %9939 = vmatprep.subr.bf16.mxu0 %v9478
    %9940 = vmatpush1.bf16.msra.mxu0 %v9477
    %9941 = vmatprep.subr.bf16.mxu0 0
    %9942 = vmatpush2.bf16.msra.mxu0 0
    %9943 = vmatprep.subr.bf16.mxu0 0
    %9944 = vmatpush2.bf16.msra.mxu0 0
    %9945 = vmatprep.subr.bf16.mxu0 0
    %9946 = vmatpush2.bf16.msra.mxu0 0
    %9947 = vmatprep.subr.bf16.mxu0 0
    %9948 = vmatpush2.bf16.msra.mxu0 0
    %9949 = vmatprep.subr.bf16.mxu0 0
    %9950 = vmatpush2.bf16.msra.mxu0 0
    %9951 = vmatprep.subr.bf16.mxu0 0
    %9952 = vmatpush2.bf16.msra.mxu0 0
    %9953 = vmatprep.subr.bf16.mxu0 0
    %9954 = vmatpush2.bf16.msra.mxu0 0
    %9955 = vmatprep.subr.bf16.mxu0 0
    %9956 = vmatpush2.bf16.msra.mxu0 0
    %9957 = vmatprep.mubr.bf16.mxu0 0
    %9958 = vmatmul.mubr.bf16.gmra.mxu0 %v9883
    %v9959 = vpop.f32.mrf.mxu0
    %v9960 = vadd.f32 0.0, %v9959
    %v9961 = vpop.f32.mrf.mxu0
    %v9962 = vadd.f32 0.0, %v9961
    %v9963 = vpop.f32.mrf.mxu0
    %v9964 = vpop.f32.mrf.mxu0
    %9965 = vdwg.mxu0
    %v9966 = vadd.f32 %v9879, %v9919
    %v9967 = vadd.f32 %v9880, %v9921
    %v9968 = vadd.f32 %v9881, %v9960
    %v9969 = vadd.f32 %v9882, %v9962
    %v9970 = vxor.u32 %v9966, 2147483648
    %v9971 = vxor.u32 %v9967, 2147483648
    %v9972 = vxor.u32 %v9968, 2147483648
    %v9973 = vmul.f32 %v9970, 1.442695
    %v9974 = vpow.pop %v9973
    %v9975 = vmul.f32 %v9971, 1.442695
    %v9976 = vpow.pop %v9975
    %v9977 = vmul.f32 %v9972, 1.442695
    %v9978 = vpow.pop %v9977
    %v9979 = vadd.f32 %v9974, 1.0
    %v9980 = vadd.f32 %v9976, 1.0
    %v9981 = vadd.f32 %v9978, 1.0
    %v9982 = vrcp.pop %v9979
    %v9983 = vmul.f32 1.0, %v9982
    %v9984 = vrcp.pop %v9980
    %v9985 = vmul.f32 1.0, %v9984
    %v9986 = vrcp.pop %v9981
    %v9987 = vmul.f32 1.0, %v9986
    %v9988 = vtanh.pop %v9969
    %v9989 = vmul.f32 %v9985, %v9876
    %v9990 = vmul.f32 %v9983, %v9988
    %v9991 = vadd.f32 %v9989, %v9990
    %v9992 = vtanh.pop %v9991
    %v9993 = vmul.f32 %v9987, %v9992
    %v9994 = vld [vmem:[#allocation4 + $0x80] sm:$0xff]
    %v9995 = vld [vmem:[#allocation4 + $0x88] sm:$0xff]
    %v9996 = vld [vmem:[#allocation4 + $0x90] sm:$0xff]
    %v9997 = vld [vmem:[#allocation4 + $0x98] sm:$0xff]
    %v9998 = vpack.c.bf16 %v9993, %v9993
    %9999 = vmatprep.subr.bf16.mxu0 %v9504
    %10000 = vmatpush1.bf16.msra.mxu0 %v9503
    %10001 = vmatprep.subr.bf16.mxu0 %v9500
    %10002 = vmatpush1.bf16.msra.mxu0 %v9499
    %10003 = vmatprep.subr.bf16.mxu0 %v9496
    %10004 = vmatpush1.bf16.msra.mxu0 %v9495
    %10005 = vmatprep.subr.bf16.mxu0 %v9492
    %10006 = vmatpush1.bf16.msra.mxu0 %v9491
    %10007 = vmatprep.subr.bf16.mxu0 %v9488
    %10008 = vmatpush1.bf16.msra.mxu0 %v9487
    %10009 = vmatprep.subr.bf16.mxu0 %v9484
    %10010 = vmatpush1.bf16.msra.mxu0 %v9483
    %10011 = vmatprep.subr.bf16.mxu0 %v9480
    %10012 = vmatpush1.bf16.msra.mxu0 %v9479
    %10013 = vmatprep.subr.bf16.mxu0 %v9476
    %10014 = vmatpush1.bf16.msra.mxu0 %v9475
    %10015 = vmatprep.subr.bf16.mxu0 0
    %10016 = vmatpush2.bf16.msra.mxu0 0
    %10017 = vmatprep.subr.bf16.mxu0 0
    %10018 = vmatpush2.bf16.msra.mxu0 0
    %10019 = vmatprep.subr.bf16.mxu0 0
    %10020 = vmatpush2.bf16.msra.mxu0 0
    %10021 = vmatprep.subr.bf16.mxu0 0
    %10022 = vmatpush2.bf16.msra.mxu0 0
    %10023 = vmatprep.subr.bf16.mxu0 0
    %10024 = vmatpush2.bf16.msra.mxu0 0
    %10025 = vmatprep.subr.bf16.mxu0 0
    %10026 = vmatpush2.bf16.msra.mxu0 0
    %10027 = vmatprep.subr.bf16.mxu0 0
    %10028 = vmatpush2.bf16.msra.mxu0 0
    %10029 = vmatprep.subr.bf16.mxu0 0
    %10030 = vmatpush2.bf16.msra.mxu0 0
    %10031 = vmatprep.mubr.bf16.mxu0 0
    %10032 = vmatmul.mubr.bf16.gmra.mxu0 %v9998
    %v10033 = vpop.f32.mrf.mxu0
    %v10034 = vadd.f32 0.0, %v10033
    %v10035 = vpop.f32.mrf.mxu0
    %v10036 = vadd.f32 0.0, %v10035
    %v10037 = vpop.f32.mrf.mxu0
    %v10038 = vpop.f32.mrf.mxu0
    %10039 = vdwg.mxu0
    %10040 = vmatprep.subr.bf16.mxu0 %v9506
    %10041 = vmatpush1.bf16.msra.mxu0 %v9505
    %10042 = vmatprep.subr.bf16.mxu0 %v9502
    %10043 = vmatpush1.bf16.msra.mxu0 %v9501
    %10044 = vmatprep.subr.bf16.mxu0 %v9498
    %10045 = vmatpush1.bf16.msra.mxu0 %v9497
    %10046 = vmatprep.subr.bf16.mxu0 %v9494
    %10047 = vmatpush1.bf16.msra.mxu0 %v9493
    %10048 = vmatprep.subr.bf16.mxu0 %v9490
    %10049 = vmatpush1.bf16.msra.mxu0 %v9489
    %10050 = vmatprep.subr.bf16.mxu0 %v9486
    %10051 = vmatpush1.bf16.msra.mxu0 %v9485
    %10052 = vmatprep.subr.bf16.mxu0 %v9482
    %10053 = vmatpush1.bf16.msra.mxu0 %v9481
    %10054 = vmatprep.subr.bf16.mxu0 %v9478
    %10055 = vmatpush1.bf16.msra.mxu0 %v9477
    %10056 = vmatprep.subr.bf16.mxu0 0
    %10057 = vmatpush2.bf16.msra.mxu0 0
    %10058 = vmatprep.subr.bf16.mxu0 0
    %10059 = vmatpush2.bf16.msra.mxu0 0
    %10060 = vmatprep.subr.bf16.mxu0 0
    %10061 = vmatpush2.bf16.msra.mxu0 0
    %10062 = vmatprep.subr.bf16.mxu0 0
    %10063 = vmatpush2.bf16.msra.mxu0 0
    %10064 = vmatprep.subr.bf16.mxu0 0
    %10065 = vmatpush2.bf16.msra.mxu0 0
    %10066 = vmatprep.subr.bf16.mxu0 0
    %10067 = vmatpush2.bf16.msra.mxu0 0
    %10068 = vmatprep.subr.bf16.mxu0 0
    %10069 = vmatpush2.bf16.msra.mxu0 0
    %10070 = vmatprep.subr.bf16.mxu0 0
    %10071 = vmatpush2.bf16.msra.mxu0 0
    %10072 = vmatprep.mubr.bf16.mxu0 0
    %10073 = vmatmul.mubr.bf16.gmra.mxu0 %v9998
    %v10074 = vpop.f32.mrf.mxu0
    %v10075 = vadd.f32 0.0, %v10074
    %v10076 = vpop.f32.mrf.mxu0
    %v10077 = vadd.f32 0.0, %v10076
    %v10078 = vpop.f32.mrf.mxu0
    %v10079 = vpop.f32.mrf.mxu0
    %10080 = vdwg.mxu0
    %v10081 = vadd.f32 %v9994, %v10034
    %v10082 = vadd.f32 %v9995, %v10036
    %v10083 = vadd.f32 %v9996, %v10075
    %v10084 = vadd.f32 %v9997, %v10077
    %v10085 = vxor.u32 %v10081, 2147483648
    %v10086 = vxor.u32 %v10082, 2147483648
    %v10087 = vxor.u32 %v10083, 2147483648
    %v10088 = vmul.f32 %v10085, 1.442695
    %v10089 = vpow.pop %v10088
    %v10090 = vmul.f32 %v10086, 1.442695
    %v10091 = vpow.pop %v10090
    %v10092 = vmul.f32 %v10087, 1.442695
    %v10093 = vpow.pop %v10092
    %v10094 = vadd.f32 %v10089, 1.0
    %v10095 = vadd.f32 %v10091, 1.0
    %v10096 = vadd.f32 %v10093, 1.0
    %v10097 = vrcp.pop %v10094
    %v10098 = vmul.f32 1.0, %v10097
    %v10099 = vrcp.pop %v10095
    %v10100 = vmul.f32 1.0, %v10099
    %v10101 = vrcp.pop %v10096
    %v10102 = vmul.f32 1.0, %v10101
    %v10103 = vtanh.pop %v10084
    %v10104 = vmul.f32 %v10100, %v9991
    %v10105 = vmul.f32 %v10098, %v10103
    %v10106 = vadd.f32 %v10104, %v10105
    %v10107 = vtanh.pop %v10106
    %v10108 = vmul.f32 %v10102, %v10107
    %v10109 = vld [vmem:[#allocation4 + $0xa0] sm:$0xff]
    %v10110 = vld [vmem:[#allocation4 + $0xa8] sm:$0xff]
    %v10111 = vld [vmem:[#allocation4 + $0xb0] sm:$0xff]
    %v10112 = vld [vmem:[#allocation4 + $0xb8] sm:$0xff]
    %v10113 = vpack.c.bf16 %v10108, %v10108
    %10114 = vmatprep.subr.bf16.mxu0 %v9504
    %10115 = vmatpush1.bf16.msra.mxu0 %v9503
    %10116 = vmatprep.subr.bf16.mxu0 %v9500
    %10117 = vmatpush1.bf16.msra.mxu0 %v9499
    %10118 = vmatprep.subr.bf16.mxu0 %v9496
    %10119 = vmatpush1.bf16.msra.mxu0 %v9495
    %10120 = vmatprep.subr.bf16.mxu0 %v9492
    %10121 = vmatpush1.bf16.msra.mxu0 %v9491
    %10122 = vmatprep.subr.bf16.mxu0 %v9488
    %10123 = vmatpush1.bf16.msra.mxu0 %v9487
    %10124 = vmatprep.subr.bf16.mxu0 %v9484
    %10125 = vmatpush1.bf16.msra.mxu0 %v9483
    %10126 = vmatprep.subr.bf16.mxu0 %v9480
    %10127 = vmatpush1.bf16.msra.mxu0 %v9479
    %10128 = vmatprep.subr.bf16.mxu0 %v9476
    %10129 = vmatpush1.bf16.msra.mxu0 %v9475
    %10130 = vmatprep.subr.bf16.mxu0 0
    %10131 = vmatpush2.bf16.msra.mxu0 0
    %10132 = vmatprep.subr.bf16.mxu0 0
    %10133 = vmatpush2.bf16.msra.mxu0 0
    %10134 = vmatprep.subr.bf16.mxu0 0
    %10135 = vmatpush2.bf16.msra.mxu0 0
    %10136 = vmatprep.subr.bf16.mxu0 0
    %10137 = vmatpush2.bf16.msra.mxu0 0
    %10138 = vmatprep.subr.bf16.mxu0 0
    %10139 = vmatpush2.bf16.msra.mxu0 0
    %10140 = vmatprep.subr.bf16.mxu0 0
    %10141 = vmatpush2.bf16.msra.mxu0 0
    %10142 = vmatprep.subr.bf16.mxu0 0
    %10143 = vmatpush2.bf16.msra.mxu0 0
    %10144 = vmatprep.subr.bf16.mxu0 0
    %10145 = vmatpush2.bf16.msra.mxu0 0
    %10146 = vmatprep.mubr.bf16.mxu0 0
    %10147 = vmatmul.mubr.bf16.gmra.mxu0 %v10113
    %v10148 = vpop.f32.mrf.mxu0
    %v10149 = vadd.f32 0.0, %v10148
    %v10150 = vpop.f32.mrf.mxu0
    %v10151 = vadd.f32 0.0, %v10150
    %v10152 = vpop.f32.mrf.mxu0
    %v10153 = vpop.f32.mrf.mxu0
    %10154 = vdwg.mxu0
    %10155 = vmatprep.subr.bf16.mxu0 %v9506
    %10156 = vmatpush1.bf16.msra.mxu0 %v9505
    %10157 = vmatprep.subr.bf16.mxu0 %v9502
    %10158 = vmatpush1.bf16.msra.mxu0 %v9501
    %10159 = vmatprep.subr.bf16.mxu0 %v9498
    %10160 = vmatpush1.bf16.msra.mxu0 %v9497
    %10161 = vmatprep.subr.bf16.mxu0 %v9494
    %10162 = vmatpush1.bf16.msra.mxu0 %v9493
    %10163 = vmatprep.subr.bf16.mxu0 %v9490
    %10164 = vmatpush1.bf16.msra.mxu0 %v9489
    %10165 = vmatprep.subr.bf16.mxu0 %v9486
    %10166 = vmatpush1.bf16.msra.mxu0 %v9485
    %10167 = vmatprep.subr.bf16.mxu0 %v9482
    %10168 = vmatpush1.bf16.msra.mxu0 %v9481
    %10169 = vmatprep.subr.bf16.mxu0 %v9478
    %10170 = vmatpush1.bf16.msra.mxu0 %v9477
    %10171 = vmatprep.subr.bf16.mxu0 0
    %10172 = vmatpush2.bf16.msra.mxu0 0
    %10173 = vmatprep.subr.bf16.mxu0 0
    %10174 = vmatpush2.bf16.msra.mxu0 0
    %10175 = vmatprep.subr.bf16.mxu0 0
    %10176 = vmatpush2.bf16.msra.mxu0 0
    %10177 = vmatprep.subr.bf16.mxu0 0
    %10178 = vmatpush2.bf16.msra.mxu0 0
    %10179 = vmatprep.subr.bf16.mxu0 0
    %10180 = vmatpush2.bf16.msra.mxu0 0
    %10181 = vmatprep.subr.bf16.mxu0 0
    %10182 = vmatpush2.bf16.msra.mxu0 0
    %10183 = vmatprep.subr.bf16.mxu0 0
    %10184 = vmatpush2.bf16.msra.mxu0 0
    %10185 = vmatprep.subr.bf16.mxu0 0
    %10186 = vmatpush2.bf16.msra.mxu0 0
    %10187 = vmatprep.mubr.bf16.mxu0 0
    %10188 = vmatmul.mubr.bf16.gmra.mxu0 %v10113
    %v10189 = vpop.f32.mrf.mxu0
    %v10190 = vadd.f32 0.0, %v10189
    %v10191 = vpop.f32.mrf.mxu0
    %v10192 = vadd.f32 0.0, %v10191
    %v10193 = vpop.f32.mrf.mxu0
    %v10194 = vpop.f32.mrf.mxu0
    %10195 = vdwg.mxu0
    %v10196 = vadd.f32 %v10109, %v10149
    %v10197 = vadd.f32 %v10110, %v10151
    %v10198 = vadd.f32 %v10111, %v10190
    %v10199 = vadd.f32 %v10112, %v10192
    %v10200 = vxor.u32 %v10196, 2147483648
    %v10201 = vxor.u32 %v10197, 2147483648
    %v10202 = vxor.u32 %v10198, 2147483648
    %v10203 = vmul.f32 %v10200, 1.442695
    %v10204 = vpow.pop %v10203
    %v10205 = vmul.f32 %v10201, 1.442695
    %v10206 = vpow.pop %v10205
    %v10207 = vmul.f32 %v10202, 1.442695
    %v10208 = vpow.pop %v10207
    %v10209 = vadd.f32 %v10204, 1.0
    %v10210 = vadd.f32 %v10206, 1.0
    %v10211 = vadd.f32 %v10208, 1.0
    %v10212 = vrcp.pop %v10209
    %v10213 = vmul.f32 1.0, %v10212
    %v10214 = vrcp.pop %v10210
    %v10215 = vmul.f32 1.0, %v10214
    %v10216 = vrcp.pop %v10211
    %v10217 = vmul.f32 1.0, %v10216
    %v10218 = vtanh.pop %v10199
    %v10219 = vmul.f32 %v10215, %v10106
    %v10220 = vmul.f32 %v10213, %v10218
    %v10221 = vadd.f32 %v10219, %v10220
    %v10222 = vtanh.pop %v10221
    %v10223 = vmul.f32 %v10217, %v10222
    %v10224 = vld [vmem:[#allocation4 + $0xc0] sm:$0xff]
    %v10225 = vld [vmem:[#allocation4 + $0xc8] sm:$0xff]
    %v10226 = vld [vmem:[#allocation4 + $0xd0] sm:$0xff]
    %v10227 = vld [vmem:[#allocation4 + $0xd8] sm:$0xff]
    %v10228 = vpack.c.bf16 %v10223, %v10223
    %10229 = vmatprep.subr.bf16.mxu0 %v9504
    %10230 = vmatpush1.bf16.msra.mxu0 %v9503
    %10231 = vmatprep.subr.bf16.mxu0 %v9500
    %10232 = vmatpush1.bf16.msra.mxu0 %v9499
    %10233 = vmatprep.subr.bf16.mxu0 %v9496
    %10234 = vmatpush1.bf16.msra.mxu0 %v9495
    %10235 = vmatprep.subr.bf16.mxu0 %v9492
    %10236 = vmatpush1.bf16.msra.mxu0 %v9491
    %10237 = vmatprep.subr.bf16.mxu0 %v9488
    %10238 = vmatpush1.bf16.msra.mxu0 %v9487
    %10239 = vmatprep.subr.bf16.mxu0 %v9484
    %10240 = vmatpush1.bf16.msra.mxu0 %v9483
    %10241 = vmatprep.subr.bf16.mxu0 %v9480
    %10242 = vmatpush1.bf16.msra.mxu0 %v9479
    %10243 = vmatprep.subr.bf16.mxu0 %v9476
    %10244 = vmatpush1.bf16.msra.mxu0 %v9475
    %10245 = vmatprep.subr.bf16.mxu0 0
    %10246 = vmatpush2.bf16.msra.mxu0 0
    %10247 = vmatprep.subr.bf16.mxu0 0
    %10248 = vmatpush2.bf16.msra.mxu0 0
    %10249 = vmatprep.subr.bf16.mxu0 0
    %10250 = vmatpush2.bf16.msra.mxu0 0
    %10251 = vmatprep.subr.bf16.mxu0 0
    %10252 = vmatpush2.bf16.msra.mxu0 0
    %10253 = vmatprep.subr.bf16.mxu0 0
    %10254 = vmatpush2.bf16.msra.mxu0 0
    %10255 = vmatprep.subr.bf16.mxu0 0
    %10256 = vmatpush2.bf16.msra.mxu0 0
    %10257 = vmatprep.subr.bf16.mxu0 0
    %10258 = vmatpush2.bf16.msra.mxu0 0
    %10259 = vmatprep.subr.bf16.mxu0 0
    %10260 = vmatpush2.bf16.msra.mxu0 0
    %10261 = vmatprep.mubr.bf16.mxu0 0
    %10262 = vmatmul.mubr.bf16.gmra.mxu0 %v10228
    %v10263 = vpop.f32.mrf.mxu0
    %v10264 = vadd.f32 0.0, %v10263
    %v10265 = vpop.f32.mrf.mxu0
    %v10266 = vadd.f32 0.0, %v10265
    %v10267 = vpop.f32.mrf.mxu0
    %v10268 = vpop.f32.mrf.mxu0
    %10269 = vdwg.mxu0
    %10270 = vmatprep.subr.bf16.mxu0 %v9506
    %10271 = vmatpush1.bf16.msra.mxu0 %v9505
    %10272 = vmatprep.subr.bf16.mxu0 %v9502
    %10273 = vmatpush1.bf16.msra.mxu0 %v9501
    %10274 = vmatprep.subr.bf16.mxu0 %v9498
    %10275 = vmatpush1.bf16.msra.mxu0 %v9497
    %10276 = vmatprep.subr.bf16.mxu0 %v9494
    %10277 = vmatpush1.bf16.msra.mxu0 %v9493
    %10278 = vmatprep.subr.bf16.mxu0 %v9490
    %10279 = vmatpush1.bf16.msra.mxu0 %v9489
    %10280 = vmatprep.subr.bf16.mxu0 %v9486
    %10281 = vmatpush1.bf16.msra.mxu0 %v9485
    %10282 = vmatprep.subr.bf16.mxu0 %v9482
    %10283 = vmatpush1.bf16.msra.mxu0 %v9481
    %10284 = vmatprep.subr.bf16.mxu0 %v9478
    %10285 = vmatpush1.bf16.msra.mxu0 %v9477
    %10286 = vmatprep.subr.bf16.mxu0 0
    %10287 = vmatpush2.bf16.msra.mxu0 0
    %10288 = vmatprep.subr.bf16.mxu0 0
    %10289 = vmatpush2.bf16.msra.mxu0 0
    %10290 = vmatprep.subr.bf16.mxu0 0
    %10291 = vmatpush2.bf16.msra.mxu0 0
    %10292 = vmatprep.subr.bf16.mxu0 0
    %10293 = vmatpush2.bf16.msra.mxu0 0
    %10294 = vmatprep.subr.bf16.mxu0 0
    %10295 = vmatpush2.bf16.msra.mxu0 0
    %10296 = vmatprep.subr.bf16.mxu0 0
    %10297 = vmatpush2.bf16.msra.mxu0 0
    %10298 = vmatprep.subr.bf16.mxu0 0
    %10299 = vmatpush2.bf16.msra.mxu0 0
    %10300 = vmatprep.subr.bf16.mxu0 0
    %10301 = vmatpush2.bf16.msra.mxu0 0
    %10302 = vmatprep.mubr.bf16.mxu0 0
    %10303 = vmatmul.mubr.bf16.gmra.mxu0 %v10228
    %v10304 = vpop.f32.mrf.mxu0
    %v10305 = vadd.f32 0.0, %v10304
    %v10306 = vpop.f32.mrf.mxu0
    %v10307 = vadd.f32 0.0, %v10306
    %v10308 = vpop.f32.mrf.mxu0
    %v10309 = vpop.f32.mrf.mxu0
    %10310 = vdwg.mxu0
    %v10311 = vadd.f32 %v10224, %v10264
    %v10312 = vadd.f32 %v10225, %v10266
    %v10313 = vadd.f32 %v10226, %v10305
    %v10314 = vadd.f32 %v10227, %v10307
    %v10315 = vxor.u32 %v10311, 2147483648
    %v10316 = vxor.u32 %v10312, 2147483648
    %v10317 = vxor.u32 %v10313, 2147483648
    %v10318 = vmul.f32 %v10315, 1.442695
    %v10319 = vpow.pop %v10318
    %v10320 = vmul.f32 %v10316, 1.442695
    %v10321 = vpow.pop %v10320
    %v10322 = vmul.f32 %v10317, 1.442695
    %v10323 = vpow.pop %v10322
    %v10324 = vadd.f32 %v10319, 1.0
    %v10325 = vadd.f32 %v10321, 1.0
    %v10326 = vadd.f32 %v10323, 1.0
    %v10327 = vrcp.pop %v10324
    %v10328 = vmul.f32 1.0, %v10327
    %v10329 = vrcp.pop %v10325
    %v10330 = vmul.f32 1.0, %v10329
    %v10331 = vrcp.pop %v10326
    %v10332 = vmul.f32 1.0, %v10331
    %v10333 = vtanh.pop %v10314
    %v10334 = vmul.f32 %v10330, %v10221
    %v10335 = vmul.f32 %v10328, %v10333
    %v10336 = vadd.f32 %v10334, %v10335
    %v10337 = vtanh.pop %v10336
    %v10338 = vmul.f32 %v10332, %v10337
    %v10339 = vld [vmem:[#allocation4 + $0xe0] sm:$0xff]
    %v10340 = vld [vmem:[#allocation4 + $0xe8] sm:$0xff]
    %v10341 = vld [vmem:[#allocation4 + $0xf0] sm:$0xff]
    %v10342 = vld [vmem:[#allocation4 + $0xf8] sm:$0xff]
    %v10343 = vpack.c.bf16 %v10338, %v10338
    %10344 = vmatprep.subr.bf16.mxu0 %v9504
    %10345 = vmatpush1.bf16.msra.mxu0 %v9503
    %10346 = vmatprep.subr.bf16.mxu0 %v9500
    %10347 = vmatpush1.bf16.msra.mxu0 %v9499
    %10348 = vmatprep.subr.bf16.mxu0 %v9496
    %10349 = vmatpush1.bf16.msra.mxu0 %v9495
    %10350 = vmatprep.subr.bf16.mxu0 %v9492
    %10351 = vmatpush1.bf16.msra.mxu0 %v9491
    %10352 = vmatprep.subr.bf16.mxu0 %v9488
    %10353 = vmatpush1.bf16.msra.mxu0 %v9487
    %10354 = vmatprep.subr.bf16.mxu0 %v9484
    %10355 = vmatpush1.bf16.msra.mxu0 %v9483
    %10356 = vmatprep.subr.bf16.mxu0 %v9480
    %10357 = vmatpush1.bf16.msra.mxu0 %v9479
    %10358 = vmatprep.subr.bf16.mxu0 %v9476
    %10359 = vmatpush1.bf16.msra.mxu0 %v9475
    %10360 = vmatprep.subr.bf16.mxu0 0
    %10361 = vmatpush2.bf16.msra.mxu0 0
    %10362 = vmatprep.subr.bf16.mxu0 0
    %10363 = vmatpush2.bf16.msra.mxu0 0
    %10364 = vmatprep.subr.bf16.mxu0 0
    %10365 = vmatpush2.bf16.msra.mxu0 0
    %10366 = vmatprep.subr.bf16.mxu0 0
    %10367 = vmatpush2.bf16.msra.mxu0 0
    %10368 = vmatprep.subr.bf16.mxu0 0
    %10369 = vmatpush2.bf16.msra.mxu0 0
    %10370 = vmatprep.subr.bf16.mxu0 0
    %10371 = vmatpush2.bf16.msra.mxu0 0
    %10372 = vmatprep.subr.bf16.mxu0 0
    %10373 = vmatpush2.bf16.msra.mxu0 0
    %10374 = vmatprep.subr.bf16.mxu0 0
    %10375 = vmatpush2.bf16.msra.mxu0 0
    %10376 = vmatprep.mubr.bf16.mxu0 0
    %10377 = vmatmul.mubr.bf16.gmra.mxu0 %v10343
    %v10378 = vpop.f32.mrf.mxu0
    %v10379 = vadd.f32 0.0, %v10378
    %v10380 = vpop.f32.mrf.mxu0
    %v10381 = vadd.f32 0.0, %v10380
    %v10382 = vpop.f32.mrf.mxu0
    %v10383 = vpop.f32.mrf.mxu0
    %10384 = vdwg.mxu0
    %10385 = vmatprep.subr.bf16.mxu0 %v9506
    %10386 = vmatpush1.bf16.msra.mxu0 %v9505
    %10387 = vmatprep.subr.bf16.mxu0 %v9502
    %10388 = vmatpush1.bf16.msra.mxu0 %v9501
    %10389 = vmatprep.subr.bf16.mxu0 %v9498
    %10390 = vmatpush1.bf16.msra.mxu0 %v9497
    %10391 = vmatprep.subr.bf16.mxu0 %v9494
    %10392 = vmatpush1.bf16.msra.mxu0 %v9493
    %10393 = vmatprep.subr.bf16.mxu0 %v9490
    %10394 = vmatpush1.bf16.msra.mxu0 %v9489
    %10395 = vmatprep.subr.bf16.mxu0 %v9486
    %10396 = vmatpush1.bf16.msra.mxu0 %v9485
    %10397 = vmatprep.subr.bf16.mxu0 %v9482
    %10398 = vmatpush1.bf16.msra.mxu0 %v9481
    %10399 = vmatprep.subr.bf16.mxu0 %v9478
    %10400 = vmatpush1.bf16.msra.mxu0 %v9477
    %10401 = vmatprep.subr.bf16.mxu0 0
    %10402 = vmatpush2.bf16.msra.mxu0 0
    %10403 = vmatprep.subr.bf16.mxu0 0
    %10404 = vmatpush2.bf16.msra.mxu0 0
    %10405 = vmatprep.subr.bf16.mxu0 0
    %10406 = vmatpush2.bf16.msra.mxu0 0
    %10407 = vmatprep.subr.bf16.mxu0 0
    %10408 = vmatpush2.bf16.msra.mxu0 0
    %10409 = vmatprep.subr.bf16.mxu0 0
    %10410 = vmatpush2.bf16.msra.mxu0 0
    %10411 = vmatprep.subr.bf16.mxu0 0
    %10412 = vmatpush2.bf16.msra.mxu0 0
    %10413 = vmatprep.subr.bf16.mxu0 0
    %10414 = vmatpush2.bf16.msra.mxu0 0
    %10415 = vmatprep.subr.bf16.mxu0 0
    %10416 = vmatpush2.bf16.msra.mxu0 0
    %10417 = vmatprep.mubr.bf16.mxu0 0
    %10418 = vmatmul.mubr.bf16.gmra.mxu0 %v10343
    %v10419 = vpop.f32.mrf.mxu0
    %v10420 = vadd.f32 0.0, %v10419
    %v10421 = vpop.f32.mrf.mxu0
    %v10422 = vadd.f32 0.0, %v10421
    %v10423 = vpop.f32.mrf.mxu0
    %v10424 = vpop.f32.mrf.mxu0
    %10425 = vdwg.mxu0
    %v10426 = vadd.f32 %v10339, %v10379
    %v10427 = vadd.f32 %v10340, %v10381
    %v10428 = vadd.f32 %v10341, %v10420
    %v10429 = vadd.f32 %v10342, %v10422
    %v10430 = vxor.u32 %v10426, 2147483648
    %v10431 = vxor.u32 %v10427, 2147483648
    %v10432 = vxor.u32 %v10428, 2147483648
    %v10433 = vmul.f32 %v10430, 1.442695
    %v10434 = vpow.pop %v10433
    %v10435 = vmul.f32 %v10431, 1.442695
    %v10436 = vpow.pop %v10435
    %v10437 = vmul.f32 %v10432, 1.442695
    %v10438 = vpow.pop %v10437
    %v10439 = vadd.f32 %v10434, 1.0
    %v10440 = vadd.f32 %v10436, 1.0
    %v10441 = vadd.f32 %v10438, 1.0
    %v10442 = vrcp.pop %v10439
    %v10443 = vmul.f32 1.0, %v10442
    %v10444 = vrcp.pop %v10440
    %v10445 = vmul.f32 1.0, %v10444
    %v10446 = vrcp.pop %v10441
    %v10447 = vmul.f32 1.0, %v10446
    %v10448 = vtanh.pop %v10429
    %v10449 = vmul.f32 %v10445, %v10336
    %v10450 = vmul.f32 %v10443, %v10448
    %v10451 = vadd.f32 %v10449, %v10450
    %v10452 = vtanh.pop %v10451
    %v10453 = vmul.f32 %v10447, %v10452
    %v10454 = vlaneseq
    %v10455 = vand.u32 %v10454, 127
    %vm10456 = vcmp.lt.s32.totalorder %v10455, 64
    %v10457 = vsel %vm10456, %v10453, %v9648
    %s10458 = smul.u32 %s7053, 1
    %s10459 = sshll.u32 %s10458, 4
    %10460 = dma.done %s113, %s10459
    %s10461 = sshll.u32 %s10458, 4
    %10462 = dma.done %s171, %s10461
    %v10463 = vpack.c.bf16 %v10457, %v10457
    %v10464 = vld [vmem:[#allocation7] sm:$0xf]
    %v10465 = vld [vmem:[#allocation7 + $0x4] sm:$0xf]
    %v10466 = vld [vmem:[#allocation7 + $0x8] sm:$0xf]
    %v10467 = vld [vmem:[#allocation7 + $0xc] sm:$0xf]
    %v10468 = vld [vmem:[#allocation7 + $0x10] sm:$0xf]
    %v10469 = vld [vmem:[#allocation7 + $0x14] sm:$0xf]
    %v10470 = vld [vmem:[#allocation7 + $0x18] sm:$0xf]
    %v10471 = vld [vmem:[#allocation7 + $0x1c] sm:$0xf]
    %v10472 = vld [vmem:[#allocation7 + $0x20] sm:$0xf]
    %v10473 = vld [vmem:[#allocation7 + $0x24] sm:$0xf]
    %v10474 = vld [vmem:[#allocation7 + $0x28] sm:$0xf]
    %v10475 = vld [vmem:[#allocation7 + $0x2c] sm:$0xf]
    %v10476 = vld [vmem:[#allocation7 + $0x30] sm:$0xf]
    %v10477 = vld [vmem:[#allocation7 + $0x34] sm:$0xf]
    %v10478 = vld [vmem:[#allocation7 + $0x38] sm:$0xf]
    %v10479 = vld [vmem:[#allocation7 + $0x3c] sm:$0xf]
    %v10480 = vld [vmem:[%s6] sm:$0x1]
    %v10482 = vlaneseq
    %v10483 = vshrl.u32 %v10482, 7
    %v10484 = vsub.s32 0, %v10483
    %v10485 = vrot.slane %v10480, %v10484
    %v10503 = vunpack.c.l.b16 %v10464
    %v10504 = vunpack.c.l.b16 %v10465
    %v10505 = vunpack.c.l.b16 %v10466
    %v10506 = vunpack.c.l.b16 %v10467
    %v10507 = vunpack.c.l.b16 %v10468
    %v10508 = vunpack.c.l.b16 %v10469
    %v10509 = vunpack.c.l.b16 %v10470
    %v10510 = vunpack.c.l.b16 %v10471
    %v10511 = vunpack.c.l.b16 %v10472
    %v10512 = vunpack.c.l.b16 %v10473
    %v10513 = vunpack.c.l.b16 %v10474
    %v10514 = vunpack.c.l.b16 %v10475
    %v10515 = vunpack.c.l.b16 %v10476
    %v10516 = vunpack.c.l.b16 %v10477
    %v10517 = vunpack.c.l.b16 %v10478
    %v10518 = vunpack.c.l.b16 %v10479
    %v10519 = vpack.c.b16 %v10504, %v10503
    %v10520 = vpack.c.b16 %v10506, %v10505
    %v10521 = vpack.c.b16 %v10508, %v10507
    %v10522 = vpack.c.b16 %v10510, %v10509
    %v10523 = vpack.c.b16 %v10512, %v10511
    %v10524 = vpack.c.b16 %v10514, %v10513
    %v10525 = vpack.c.b16 %v10516, %v10515
    %v10526 = vpack.c.b16 %v10518, %v10517
    %10535 = vmatprep.subr.bf16.mxu0 0
    %10536 = vmatpush1.bf16.msra.mxu0 %v10526
    %10537 = vmatprep.subr.bf16.mxu0 0
    %10538 = vmatpush1.bf16.msra.mxu0 %v10525
    %10539 = vmatprep.subr.bf16.mxu0 0
    %10540 = vmatpush1.bf16.msra.mxu0 %v10524
    %10541 = vmatprep.subr.bf16.mxu0 0
    %10542 = vmatpush1.bf16.msra.mxu0 %v10523
    %10543 = vmatprep.subr.bf16.mxu0 0
    %10544 = vmatpush1.bf16.msra.mxu0 %v10522
    %10545 = vmatprep.subr.bf16.mxu0 0
    %10546 = vmatpush1.bf16.msra.mxu0 %v10521
    %10547 = vmatprep.subr.bf16.mxu0 0
    %10548 = vmatpush1.bf16.msra.mxu0 %v10520
    %10549 = vmatprep.subr.bf16.mxu0 0
    %10550 = vmatpush1.bf16.msra.mxu0 %v10519
    %10551 = vmatprep.subr.bf16.mxu0 0
    %10552 = vmatpush2.bf16.msra.mxu0 0
    %10553 = vmatprep.subr.bf16.mxu0 0
    %10554 = vmatpush2.bf16.msra.mxu0 0
    %10555 = vmatprep.subr.bf16.mxu0 0
    %10556 = vmatpush2.bf16.msra.mxu0 0
    %10557 = vmatprep.subr.bf16.mxu0 0
    %10558 = vmatpush2.bf16.msra.mxu0 0
    %10559 = vmatprep.subr.bf16.mxu0 0
    %10560 = vmatpush2.bf16.msra.mxu0 0
    %10561 = vmatprep.subr.bf16.mxu0 0
    %10562 = vmatpush2.bf16.msra.mxu0 0
    %10563 = vmatprep.subr.bf16.mxu0 0
    %10564 = vmatpush2.bf16.msra.mxu0 0
    %10565 = vmatprep.subr.bf16.mxu0 0
    %10566 = vmatpush2.bf16.msra.mxu0 0
    %10567 = vmatprep.mubr.bf16.mxu0 0
    %10568 = vmatmul.mubr.bf16.gmra.mxu0 %v10463
    %v10569 = vpop.f32.mrf.mxu0
    %v10570 = vadd.f32 %v10485, %v10569
    %v10571 = vpop.f32.mrf.mxu0
    %v10572 = vpop.f32.mrf.mxu0
    %v10573 = vpop.f32.mrf.mxu0
    %10574 = vdwg.mxu0
    %v10575 = vtanh.pop %v10570
    %v10576 = vpack.c.bf16 %v10575, %v10575
    %v10577 = vld [vmem:[%s7] sm:$0xf]
    %v10578 = vld [vmem:[%s7 + $0x4] sm:$0xf]
    %v10579 = vld [vmem:[%s7 + $0x8] sm:$0xf]
    %v10580 = vld [vmem:[%s7 + $0xc] sm:$0xf]
    %v10581 = vld [vmem:[%s7 + $0x10] sm:$0xf]
    %v10582 = vld [vmem:[%s7 + $0x14] sm:$0xf]
    %v10583 = vld [vmem:[%s7 + $0x18] sm:$0xf]
    %v10584 = vld [vmem:[%s7 + $0x1c] sm:$0xf]
    %v10585 = vld [vmem:[%s7 + $0x20] sm:$0xf]
    %v10586 = vld [vmem:[%s7 + $0x24] sm:$0xf]
    %v10587 = vld [vmem:[%s7 + $0x28] sm:$0xf]
    %v10588 = vld [vmem:[%s7 + $0x2c] sm:$0xf]
    %v10589 = vld [vmem:[%s7 + $0x30] sm:$0xf]
    %v10590 = vld [vmem:[%s7 + $0x34] sm:$0xf]
    %v10591 = vld [vmem:[%s7 + $0x38] sm:$0xf]
    %v10592 = vld [vmem:[%s7 + $0x3c] sm:$0xf]
    %v10593 = vld [vmem:[#allocation10] sm:$0x1]
    %v10595 = vlaneseq
    %v10596 = vshrl.u32 %v10595, 7
    %v10597 = vsub.s32 0, %v10596
    %v10598 = vrot.slane %v10593, %v10597
    %v10616 = vunpack.c.l.b16 %v10577
    %v10617 = vunpack.c.l.b16 %v10578
    %v10618 = vunpack.c.l.b16 %v10579
    %v10619 = vunpack.c.l.b16 %v10580
    %v10620 = vunpack.c.l.b16 %v10581
    %v10621 = vunpack.c.l.b16 %v10582
    %v10622 = vunpack.c.l.b16 %v10583
    %v10623 = vunpack.c.l.b16 %v10584
    %v10624 = vunpack.c.l.b16 %v10585
    %v10625 = vunpack.c.l.b16 %v10586
    %v10626 = vunpack.c.l.b16 %v10587
    %v10627 = vunpack.c.l.b16 %v10588
    %v10628 = vunpack.c.l.b16 %v10589
    %v10629 = vunpack.c.l.b16 %v10590
    %v10630 = vunpack.c.l.b16 %v10591
    %v10631 = vunpack.c.l.b16 %v10592
    %v10632 = vpack.c.b16 %v10617, %v10616
    %v10633 = vpack.c.b16 %v10619, %v10618
    %v10634 = vpack.c.b16 %v10621, %v10620
    %v10635 = vpack.c.b16 %v10623, %v10622
    %v10636 = vpack.c.b16 %v10625, %v10624
    %v10637 = vpack.c.b16 %v10627, %v10626
    %v10638 = vpack.c.b16 %v10629, %v10628
    %v10639 = vpack.c.b16 %v10631, %v10630
    %10648 = vmatprep.subr.bf16.mxu0 0
    %10649 = vmatpush1.bf16.msra.mxu0 %v10639
    %10650 = vmatprep.subr.bf16.mxu0 0
    %10651 = vmatpush1.bf16.msra.mxu0 %v10638
    %10652 = vmatprep.subr.bf16.mxu0 0
    %10653 = vmatpush1.bf16.msra.mxu0 %v10637
    %10654 = vmatprep.subr.bf16.mxu0 0
    %10655 = vmatpush1.bf16.msra.mxu0 %v10636
    %10656 = vmatprep.subr.bf16.mxu0 0
    %10657 = vmatpush1.bf16.msra.mxu0 %v10635
    %10658 = vmatprep.subr.bf16.mxu0 0
    %10659 = vmatpush1.bf16.msra.mxu0 %v10634
    %10660 = vmatprep.subr.bf16.mxu0 0
    %10661 = vmatpush1.bf16.msra.mxu0 %v10633
    %10662 = vmatprep.subr.bf16.mxu0 0
    %10663 = vmatpush1.bf16.msra.mxu0 %v10632
    %10664 = vmatprep.subr.bf16.mxu0 0
    %10665 = vmatpush2.bf16.msra.mxu0 0
    %10666 = vmatprep.subr.bf16.mxu0 0
    %10667 = vmatpush2.bf16.msra.mxu0 0
    %10668 = vmatprep.subr.bf16.mxu0 0
    %10669 = vmatpush2.bf16.msra.mxu0 0
    %10670 = vmatprep.subr.bf16.mxu0 0
    %10671 = vmatpush2.bf16.msra.mxu0 0
    %10672 = vmatprep.subr.bf16.mxu0 0
    %10673 = vmatpush2.bf16.msra.mxu0 0
    %10674 = vmatprep.subr.bf16.mxu0 0
    %10675 = vmatpush2.bf16.msra.mxu0 0
    %10676 = vmatprep.subr.bf16.mxu0 0
    %10677 = vmatpush2.bf16.msra.mxu0 0
    %10678 = vmatprep.subr.bf16.mxu0 0
    %10679 = vmatpush2.bf16.msra.mxu0 0
    %10680 = vmatprep.mubr.bf16.mxu0 0
    %10681 = vmatmul.mubr.bf16.gmra.mxu0 %v10576
    %v10682 = vpop.f32.mrf.mxu0
    %v10683 = vadd.f32 %v10598, %v10682
    %v10684 = vpop.f32.mrf.mxu0
    %v10685 = vpop.f32.mrf.mxu0
    %v10686 = vpop.f32.mrf.mxu0
    %10687 = vdwg.mxu0
    %v10688 = vlaneseq
    %v10689 = vshrl.u32 %v10688, 7
    %vm10690 = vcmp.lt.s32.totalorder %v10689, 4
    %v10691 = vsel %vm10690, %v10683, -1e+30
    %vm10692 = vcmask 7168
    %v10693 = vsel %vm10692, %v10691, -inf
    %v10694 = vrot.slane %v10693, 4
    %v10695 = vmax.f32 %v10693, %v10694
    %v10696 = vrot.slane %v10695, 2
    %v10697 = vmax.f32 %v10695, %v10696
    %v10698 = vrot.slane %v10697, 1
    %v10699 = vmax.f32 %v10697, %v10698
    %v10700 = vsub.f32 %v10691, %v10699
    %v10701 = vmul.f32 %v10700, 1.442695
    %v10702 = vpow.pop %v10701
    %v10703 = vsel %vm10692, %v10702, 0.0
    %v10704 = vrot.slane %v10703, 4
    %v10705 = vadd.f32 %v10703, %v10704
    %v10706 = vrot.slane %v10705, 2
    %v10707 = vadd.f32 %v10705, %v10706
    %v10708 = vrot.slane %v10707, 1
    %v10709 = vadd.f32 %v10707, %v10708
    %v10710 = vrcp.pop %v10709
    %v10711 = vmul.f32 %v10702, %v10710
    %10713 = vset.pattern.permute.xlu0 0
    %10714 = vperm.xlu0 %10713, %v10711
    %v10715 = vpop.permute.xlu0 %10714
    %v10717 = vmul.f32 %v10715, %v10457
    %v10718 = vrot.slane %v10717, 4
    %v10719 = vadd.f32 %v10717, %v10718
    %v10720 = vrot.slane %v10719, 2
    %v10721 = vadd.f32 %v10719, %v10720
    %v10722 = vrot.slane %v10721, 1
    %v10723 = vadd.f32 %v10721, %v10722
    %v10724 = vpack.c.bf16 %v10723, %v10723
    %v10725 = vld [vmem:[#allocation8] sm:$0xf]
    %v10726 = vld [vmem:[#allocation8 + $0x4] sm:$0xf]
    %v10727 = vld [vmem:[#allocation8 + $0x8] sm:$0xf]
    %v10728 = vld [vmem:[#allocation8 + $0xc] sm:$0xf]
    %v10729 = vld [vmem:[#allocation8 + $0x10] sm:$0xf]
    %v10730 = vld [vmem:[#allocation8 + $0x14] sm:$0xf]
    %v10731 = vld [vmem:[#allocation8 + $0x18] sm:$0xf]
    %v10732 = vld [vmem:[#allocation8 + $0x1c] sm:$0xf]
    %v10733 = vld [vmem:[#allocation8 + $0x20] sm:$0xf]
    %v10734 = vld [vmem:[#allocation8 + $0x24] sm:$0xf]
    %v10735 = vld [vmem:[#allocation8 + $0x28] sm:$0xf]
    %v10736 = vld [vmem:[#allocation8 + $0x2c] sm:$0xf]
    %v10737 = vld [vmem:[#allocation8 + $0x30] sm:$0xf]
    %v10738 = vld [vmem:[#allocation8 + $0x34] sm:$0xf]
    %v10739 = vld [vmem:[#allocation8 + $0x38] sm:$0xf]
    %v10740 = vld [vmem:[#allocation8 + $0x3c] sm:$0xf]
    %v10741 = vld [vmem:[%s9] sm:$0x1]
    %v10758 = vunpack.c.l.b16 %v10725
    %v10759 = vunpack.c.l.b16 %v10726
    %v10760 = vunpack.c.l.b16 %v10727
    %v10761 = vunpack.c.l.b16 %v10728
    %v10762 = vunpack.c.l.b16 %v10729
    %v10763 = vunpack.c.l.b16 %v10730
    %v10764 = vunpack.c.l.b16 %v10731
    %v10765 = vunpack.c.l.b16 %v10732
    %v10766 = vunpack.c.l.b16 %v10733
    %v10767 = vunpack.c.l.b16 %v10734
    %v10768 = vunpack.c.l.b16 %v10735
    %v10769 = vunpack.c.l.b16 %v10736
    %v10770 = vunpack.c.l.b16 %v10737
    %v10771 = vunpack.c.l.b16 %v10738
    %v10772 = vunpack.c.l.b16 %v10739
    %v10773 = vunpack.c.l.b16 %v10740
    %v10774 = vpack.c.b16 %v10759, %v10758
    %v10775 = vpack.c.b16 %v10761, %v10760
    %v10776 = vpack.c.b16 %v10763, %v10762
    %v10777 = vpack.c.b16 %v10765, %v10764
    %v10778 = vpack.c.b16 %v10767, %v10766
    %v10779 = vpack.c.b16 %v10769, %v10768
    %v10780 = vpack.c.b16 %v10771, %v10770
    %v10781 = vpack.c.b16 %v10773, %v10772
    %10790 = vmatprep.subr.bf16.mxu0 0
    %10791 = vmatpush1.bf16.msra.mxu0 %v10781
    %10792 = vmatprep.subr.bf16.mxu0 0
    %10793 = vmatpush1.bf16.msra.mxu0 %v10780
    %10794 = vmatprep.subr.bf16.mxu0 0
    %10795 = vmatpush1.bf16.msra.mxu0 %v10779
    %10796 = vmatprep.subr.bf16.mxu0 0
    %10797 = vmatpush1.bf16.msra.mxu0 %v10778
    %10798 = vmatprep.subr.bf16.mxu0 0
    %10799 = vmatpush1.bf16.msra.mxu0 %v10777
    %10800 = vmatprep.subr.bf16.mxu0 0
    %10801 = vmatpush1.bf16.msra.mxu0 %v10776
    %10802 = vmatprep.subr.bf16.mxu0 0
    %10803 = vmatpush1.bf16.msra.mxu0 %v10775
    %10804 = vmatprep.subr.bf16.mxu0 0
    %10805 = vmatpush1.bf16.msra.mxu0 %v10774
    %10806 = vmatprep.subr.bf16.mxu0 0
    %10807 = vmatpush2.bf16.msra.mxu0 0
    %10808 = vmatprep.subr.bf16.mxu0 0
    %10809 = vmatpush2.bf16.msra.mxu0 0
    %10810 = vmatprep.subr.bf16.mxu0 0
    %10811 = vmatpush2.bf16.msra.mxu0 0
    %10812 = vmatprep.subr.bf16.mxu0 0
    %10813 = vmatpush2.bf16.msra.mxu0 0
    %10814 = vmatprep.subr.bf16.mxu0 0
    %10815 = vmatpush2.bf16.msra.mxu0 0
    %10816 = vmatprep.subr.bf16.mxu0 0
    %10817 = vmatpush2.bf16.msra.mxu0 0
    %10818 = vmatprep.subr.bf16.mxu0 0
    %10819 = vmatpush2.bf16.msra.mxu0 0
    %10820 = vmatprep.subr.bf16.mxu0 0
    %10821 = vmatpush2.bf16.msra.mxu0 0
    %10822 = vmatprep.mubr.bf16.mxu0 0
    %10823 = vmatmul.mubr.bf16.gmra.mxu0 %v10724
    %v10824 = vpop.f32.mrf.mxu0
    %v10825 = vadd.f32 %v10741, %v10824
    %v10826 = vpop.f32.mrf.mxu0
    %v10827 = vpop.f32.mrf.mxu0
    %v10828 = vpop.f32.mrf.mxu0
    %10829 = vdwg.mxu0
    %v10830 = vpack.c.bf16 %v10825, %v10825
    %v10831 = vld [vmem:[%s10] sm:$0xf]
    %v10832 = vld [vmem:[%s10 + $0x4] sm:$0xf]
    %v10833 = vld [vmem:[%s10 + $0x8] sm:$0xf]
    %v10834 = vld [vmem:[%s10 + $0xc] sm:$0xf]
    %v10835 = vld [vmem:[%s10 + $0x10] sm:$0xf]
    %v10836 = vld [vmem:[%s10 + $0x14] sm:$0xf]
    %v10837 = vld [vmem:[%s10 + $0x18] sm:$0xf]
    %v10838 = vld [vmem:[%s10 + $0x1c] sm:$0xf]
    %v10839 = vld [vmem:[%s10 + $0x20] sm:$0xf]
    %v10840 = vld [vmem:[%s10 + $0x24] sm:$0xf]
    %v10841 = vld [vmem:[%s10 + $0x28] sm:$0xf]
    %v10842 = vld [vmem:[%s10 + $0x2c] sm:$0xf]
    %v10843 = vld [vmem:[%s10 + $0x30] sm:$0xf]
    %v10844 = vld [vmem:[%s10 + $0x34] sm:$0xf]
    %v10845 = vld [vmem:[%s10 + $0x38] sm:$0xf]
    %v10846 = vld [vmem:[%s10 + $0x3c] sm:$0xf]
    %v10847 = vld [vmem:[%s11] sm:$0x1]
    %v10864 = vunpack.c.l.b16 %v10831
    %v10865 = vunpack.c.l.b16 %v10832
    %v10866 = vunpack.c.l.b16 %v10833
    %v10867 = vunpack.c.l.b16 %v10834
    %v10868 = vunpack.c.l.b16 %v10835
    %v10869 = vunpack.c.l.b16 %v10836
    %v10870 = vunpack.c.l.b16 %v10837
    %v10871 = vunpack.c.l.b16 %v10838
    %v10872 = vunpack.c.l.b16 %v10839
    %v10873 = vunpack.c.l.b16 %v10840
    %v10874 = vunpack.c.l.b16 %v10841
    %v10875 = vunpack.c.l.b16 %v10842
    %v10876 = vunpack.c.l.b16 %v10843
    %v10877 = vunpack.c.l.b16 %v10844
    %v10878 = vunpack.c.l.b16 %v10845
    %v10879 = vunpack.c.l.b16 %v10846
    %v10880 = vpack.c.b16 %v10865, %v10864
    %v10881 = vpack.c.b16 %v10867, %v10866
    %v10882 = vpack.c.b16 %v10869, %v10868
    %v10883 = vpack.c.b16 %v10871, %v10870
    %v10884 = vpack.c.b16 %v10873, %v10872
    %v10885 = vpack.c.b16 %v10875, %v10874
    %v10886 = vpack.c.b16 %v10877, %v10876
    %v10887 = vpack.c.b16 %v10879, %v10878
    %10896 = vmatprep.subr.bf16.mxu0 0
    %10897 = vmatpush1.bf16.msra.mxu0 %v10887
    %10898 = vmatprep.subr.bf16.mxu0 0
    %10899 = vmatpush1.bf16.msra.mxu0 %v10886
    %10900 = vmatprep.subr.bf16.mxu0 0
    %10901 = vmatpush1.bf16.msra.mxu0 %v10885
    %10902 = vmatprep.subr.bf16.mxu0 0
    %10903 = vmatpush1.bf16.msra.mxu0 %v10884
    %10904 = vmatprep.subr.bf16.mxu0 0
    %10905 = vmatpush1.bf16.msra.mxu0 %v10883
    %10906 = vmatprep.subr.bf16.mxu0 0
    %10907 = vmatpush1.bf16.msra.mxu0 %v10882
    %10908 = vmatprep.subr.bf16.mxu0 0
    %10909 = vmatpush1.bf16.msra.mxu0 %v10881
    %10910 = vmatprep.subr.bf16.mxu0 0
    %10911 = vmatpush1.bf16.msra.mxu0 %v10880
    %10912 = vmatprep.subr.bf16.mxu0 0
    %10913 = vmatpush2.bf16.msra.mxu0 0
    %10914 = vmatprep.subr.bf16.mxu0 0
    %10915 = vmatpush2.bf16.msra.mxu0 0
    %10916 = vmatprep.subr.bf16.mxu0 0
    %10917 = vmatpush2.bf16.msra.mxu0 0
    %10918 = vmatprep.subr.bf16.mxu0 0
    %10919 = vmatpush2.bf16.msra.mxu0 0
    %10920 = vmatprep.subr.bf16.mxu0 0
    %10921 = vmatpush2.bf16.msra.mxu0 0
    %10922 = vmatprep.subr.bf16.mxu0 0
    %10923 = vmatpush2.bf16.msra.mxu0 0
    %10924 = vmatprep.subr.bf16.mxu0 0
    %10925 = vmatpush2.bf16.msra.mxu0 0
    %10926 = vmatprep.subr.bf16.mxu0 0
    %10927 = vmatpush2.bf16.msra.mxu0 0
    %10928 = vmatprep.mubr.bf16.mxu0 0
    %10929 = vmatmul.mubr.bf16.gmra.mxu0 %v10830
    %v10930 = vpop.f32.mrf.mxu0
    %v10931 = vadd.f32 %v10847, %v10930
    %v10932 = vpop.f32.mrf.mxu0
    %v10933 = vpop.f32.mrf.mxu0
    %v10934 = vpop.f32.mrf.mxu0
    %10935 = vdwg.mxu0
    %vm10936 = vcmask 57344
    %10937 = vst.msk [vmem:[#allocation17] sm:$0x1] %vm10936, %v10931
    // Predicated region
    $region138: #{lstmnet_forward.1} parent=1 // pred_check
      _
    $region139: #{lstmnet_forward.1} parent=1 // pred_check_branch
      %10939 = sbr.rel (0) target = $region141
    $region140: #{lstmnet_forward.1} parent=1 // pred_region
      %s10941 = ssub.s32 16, 16
      %10942 = vsyncadd [#allocation13], %s10941
      %s10944 = sshll.u32 [#allocation17], 4
      %s10945 = int_to_ptr.vmem [resolvable:$true] %s10944
      %10947 = dma.vmem_to_hbm [thread:$0]  %s10945, 16, %s16, [#allocation13]
    $region141: #{lstmnet_forward.1} parent=1 // pred_fallthru
      _
    // Predicated region
    $region142: #{lstmnet_forward.1} parent=1 // pred_check
      _
    $region143: #{lstmnet_forward.1} parent=1 // pred_check_branch
      %10949 = sbr.rel (0) target = $region145
    $region144: #{lstmnet_forward.1} parent=1 // pred_region
      %10950 = dma.done [#allocation13], 16
    $region145: #{lstmnet_forward.1} parent=1 // pred_fallthru
      _
    %10951 = vsyncpa [#allocation12], 1
    %10952 = vsyncpa [#allocation15], 1
    %10953 = vsyncpa [#allocation13], 1
  %10954 = vsyncmov [#allocation9]
  %s10955 = vpop.sfrf %10954
  %p10956 = scmp.eq.s32.totalorder %s10955, 0
  %p10957 = pneg %p10956
  %10959 = shalt.err (%p10957)
  %s10960 = scalar_lea.sflag [#allocation9], 1
  %10961 = vsyncmov %s10960
  %s10962 = vpop.sfrf %10961
  %p10963 = scmp.eq.s32.totalorder %s10962, 0
  %p10964 = pneg %p10963
  %10966 = shalt.err (%p10964)
  %s10967 = scalar_lea.sflag [#allocation9], 2
  %10968 = vsyncmov %s10967
  %s10969 = vpop.sfrf %10968
  %p10970 = scmp.eq.s32.totalorder %s10969, 0
  %p10971 = pneg %p10970
  %10973 = shalt.err (%p10971)
  %s10974 = scalar_lea.sflag [#allocation9], 3
  %10975 = vsyncmov %s10974
  %s10976 = vpop.sfrf %10975
  %p10977 = scmp.eq.s32.totalorder %s10976, 0
  %p10978 = pneg %p10977
  %10980 = shalt.err (%p10978)

</llo_original>
